<compile_context>
chip_gen: v5e
topology: v5e:2x2
jax: 0.10.0
libtpu: 0.0.40
codegen_flags: <defaults>
</compile_context>

<pallas_src>
import functools

import jax
import jax.numpy as jnp
from jax import lax
from jax.experimental import pallas as pl
from jax.experimental.pallas import tpu as pltpu


def _round_up(v, m):
    return ((v + m - 1) // m) * m


def _num_tensorcore_tiles():
    """Target number of parallel M tiles: 2 on dual-TensorCore chips (v7x), else 1."""
    try:
        dev = jax.devices()[0]
        if dev.platform != "tpu":
            return 1
        kind = str(getattr(dev, "device_kind", "")).lower()
        if "v7" in kind:                       # v7x: 2 TensorCores per chip
            return 2
        n = getattr(dev, "num_cores", None)
        if n:
            return min(2, max(1, int(n)))
        return 1
    except Exception:
        return 1


_NUM_TC_TILES = _num_tensorcore_tiles()
_TM_CAP = 2048                       # rows per tile cap (keeps tiles VMEM-friendly)
_VMEM_LIMIT = 48 * 1024 * 1024       # scoped VMEM limit: safe on v7x (64 MiB physical)
_VMEM_TILE_BUDGET = 40 * 1024 * 1024 # budget used when deriving the M tile size


# ----------------------------------------------------------------------------
# Pallas kernel: (TM, K_pad) @ (K_pad, C_pad) bf16 matmul (f32 acc) + shift
#                [+ ReLU] [+ residual], tiled over M = N*Ho*Wo rows.
# BN scale is pre-folded into the weight columns, so the epilogue is one add.
# All lane dims (K_pad, C_pad) are multiples of 128 -> unmasked loads/stores.
# ----------------------------------------------------------------------------
def _conv_fused_kernel(cols_ref, w_ref, sh_ref, *rest, relu, has_res):
    if has_res:
        res_ref, o_ref = rest
    else:
        (o_ref,) = rest
    acc = jnp.dot(cols_ref[...], w_ref[...], preferred_element_type=jnp.float32)
    y = acc + sh_ref[...]                       # bias + BN folded into shift
    if relu:
        y = jnp.maximum(y, 0.0)
    if has_res:
        # Reference order: ReLU first, then the UNet skip add (s*_ = up_conv(s) + skip).
        y = y + res_ref[...].astype(jnp.float32)
    o_ref[...] = y.astype(o_ref.dtype)


def conv3x3_block(x, w, scale, shift, *, stride=1, relu=False, residual=None,
                  out_dtype=jnp.bfloat16):
    """3x3 conv (padding 1) fused with BN affine / ReLU / residual add.

    x:        (N, H, W, Cin) NHWC
    w:        (Cout, Cin, 3, 3) — PyTorch weight layout
    scale:    (Cout,)  gamma / sqrt(var + eps)       (1.0 if no BN)
    shift:    (Cout,)  beta + (bias - mean) * scale  (bias if no BN)
    residual: optional (N, Ho, Wo, Cout) added after the activation.
    """
    N, H, W, Cin = x.shape
    Cout = w.shape[0]
    Ho = (H - 1) // stride + 1
    Wo = (W - 1) // stride + 1
    xp = jnp.pad(x, ((0, 0), (1, 1), (1, 1), (0, 0)))
    # Stride-aware im2col (glue): taps ordered (kh, kw, cin) along K; the stride
    # is applied while slicing so stride-2 layers never build 4x extra data.
    cols = jnp.concatenate(
        [xp[:, kh:kh + (Ho - 1) * stride + 1:stride,
             kw:kw + (Wo - 1) * stride + 1:stride, :]
         for kh in range(3) for kw in range(3)],
        axis=-1)                                   # (N, Ho, Wo, 9*Cin)
    K = 9 * Cin
    M = N * Ho * Wo
    cols = cols.reshape(M, K).astype(jnp.bfloat16)

    # BN scale folded into the weight columns; bf16 weights, f32 accumulation.
    wmat = jnp.transpose(w, (2, 3, 1, 0)).reshape(K, Cout) * scale.reshape(1, Cout)
    sh = shift.reshape(1, Cout).astype(jnp.float32)
    res = None if residual is None else residual.reshape(M, Cout)

    if Ho * Wo <= 16:
        # Tiny deep-stage layers (HW <= 16): pallas_call / grid-step / DMA setup
        # overhead dominates the few-kFLOP matmul, so let XLA fuse them.
        y = jnp.dot(cols, wmat.astype(jnp.bfloat16),
                    preferred_element_type=jnp.float32) + sh
        if relu:
            y = jnp.maximum(y, 0.0)
        if res is not None:
            y = y + res.astype(jnp.float32)
        return y.astype(out_dtype).reshape(N, Ho, Wo, Cout)

    # Lane-dense padding (perf review): K and Cout zero-padded to multiples of
    # 128 -> unmasked vector loads/stores, full 128-lane MXU output passes.
    K_pad = _round_up(K, 128)
    C_pad = _round_up(Cout, 128)
    has_res = res is not None
    out_bytes = jnp.dtype(out_dtype).itemsize

    # Adaptive, VMEM-aware M tile: collapse the grid to one step per TensorCore
    # (1 on v5e/v6e, 2 parallel tiles on v7x) unless the row cap or the VMEM
    # budget forces more steps.  Rows are multiples of 16 (bf16 sublane pack).
    per_row = 2 * (K_pad * 2 + C_pad * out_bytes + (C_pad * 2 if has_res else 0))
    fixed = 2 * (K_pad * C_pad * 2) + 2 * (C_pad * 4)   # resident weights + shift
    tm_cap = max(16, ((_VMEM_TILE_BUDGET - fixed) // per_row) // 16 * 16)
    tm_cap = min(tm_cap, _TM_CAP)
    steps = max(_NUM_TC_TILES, -(-M // tm_cap))
    tm = min(_round_up(-(-M // steps), 16), tm_cap)
    steps = -(-M // tm)
    m_pad = steps * tm

    cols = jnp.pad(cols, ((0, m_pad - M), (0, K_pad - K)))
    wmat = jnp.pad(wmat, ((0, K_pad - K), (0, C_pad - Cout))).astype(jnp.bfloat16)
    sh = jnp.pad(sh, ((0, 0), (0, C_pad - Cout)))
    if has_res:
        res = jnp.pad(res, ((0, m_pad - M), (0, C_pad - Cout)))

    inputs = [cols, wmat, sh]
    in_specs = [
        pl.BlockSpec((tm, K_pad), lambda m: (m, 0)),
        pl.BlockSpec((K_pad, C_pad), lambda m: (0, 0)),
        pl.BlockSpec((1, C_pad), lambda m: (0, 0)),
    ]
    if has_res:
        inputs.append(res)
        in_specs.append(pl.BlockSpec((tm, C_pad), lambda m: (m, 0)))

    out = pl.pallas_call(
        functools.partial(_conv_fused_kernel, relu=relu, has_res=has_res),
        out_shape=jax.ShapeDtypeStruct((m_pad, C_pad), out_dtype),
        grid=(steps,),
        in_specs=in_specs,
        out_specs=pl.BlockSpec((tm, C_pad), lambda m: (m, 0)),
        compiler_params=pltpu.CompilerParams(
            dimension_semantics=("parallel",),       # M tiles split across TCs (v7x)
            vmem_limit_bytes=_VMEM_LIMIT),
    )(*inputs)
    return out[:M, :Cout].reshape(N, Ho, Wo, Cout)


# ----------------------------------------------------------------------------
# Bilinear 2x upsample (nn.Upsample(scale_factor=2, 'bilinear'),
# align_corners=False) as a gather-free fixed-weight 0.75/0.25 stencil built
# from static shifted slices (pure VPU work; matches PyTorch's half-pixel
# mapping with the negative-coordinate clamp).  Stays in bf16 so the following
# conv's im2col reads bf16 without an f32 round trip.
# TODO(synk): fold this stencil into the conv's in-kernel im2col once that lands.
# ----------------------------------------------------------------------------
def upsample2x_bilinear(x):  # NHWC
    def up_axis(y, axis):
        L = y.shape[axis]
        lo = lax.slice_in_dim(y, 0, 1, axis=axis)
        hi = lax.slice_in_dim(y, L - 1, L, axis=axis)
        xm = jnp.concatenate([lo, lax.slice_in_dim(y, 0, L - 1, axis=axis)], axis=axis)
        xp_ = jnp.concatenate([lax.slice_in_dim(y, 1, L, axis=axis), hi], axis=axis)
        even = 0.25 * xm + 0.75 * y     # output index 2j   (clamped at j=0)
        odd = 0.75 * y + 0.25 * xp_     # output index 2j+1 (clamped at j=L-1)
        out = jnp.stack([even, odd], axis=axis + 1)
        shp = list(y.shape)
        shp[axis] = 2 * L
        return out.reshape(shp)
    return up_axis(up_axis(x, 1), 2)


# ----------------------------------------------------------------------------
# Deterministic parameter construction
# ----------------------------------------------------------------------------
def make_conv_bn_params(key, cin, cout, with_bn=True, eps=1e-5):
    ks = jax.random.split(key, 6)
    w = jax.random.normal(ks[0], (cout, cin, 3, 3), jnp.float32) / jnp.sqrt(9.0 * cin)
    b = 0.01 * jax.random.normal(ks[1], (cout,), jnp.float32)
    if with_bn:
        # TODO(synk): eval-mode BatchNorm (running stats) is folded into an affine;
        # train-mode batch-statistics BN is not reproduced here.
        gamma = 1.0 + 0.1 * jax.random.normal(ks[2], (cout,), jnp.float32)
        beta = 0.01 * jax.random.normal(ks[3], (cout,), jnp.float32)
        rmean = 0.01 * jax.random.normal(ks[4], (cout,), jnp.float32)
        rvar = 1.0 + 0.1 * jax.random.uniform(ks[5], (cout,), jnp.float32)
        bn_scale = gamma / jnp.sqrt(rvar + eps)
        scale = bn_scale
        shift = (b - rmean) * bn_scale + beta
    else:
        scale = jnp.ones((cout,), jnp.float32)
        shift = b
    return {"w": w, "scale": scale, "shift": shift}


def init_params(key, classes=3):
    keys = jax.random.split(key, 16)
    p = {}
    # TODO(synk): SUPPORTED_BACKBONES['mobilenetv2'] source is not provided; stand-in
    # backbone with MobileNetV2 stage channels (16, 24, 32, 96, 1280) at strides
    # (2, 4, 8, 16, 32), each stage = stride-2 conv3x3 + BN + ReLU (same fused
    # kernel), instead of the full inverted-residual stack.
    backbone_ch = [(3, 16), (16, 24), (24, 32), (32, 96), (96, 1280)]
    p["backbone"] = [make_conv_bn_params(keys[i], cin, cout)
                     for i, (cin, cout) in enumerate(backbone_ch)]
    p["s5_up_conv"] = make_conv_bn_params(keys[5], 1280, 96)
    p["s4_fusion"] = make_conv_bn_params(keys[6], 96, 96)
    p["s4_up_conv"] = make_conv_bn_params(keys[7], 96, 32)
    p["s3_fusion"] = make_conv_bn_params(keys[8], 32, 32)
    p["s3_up_conv"] = make_conv_bn_params(keys[9], 32, 24)
    p["s2_fusion"] = make_conv_bn_params(keys[10], 24, 24)
    p["s2_up_conv"] = make_conv_bn_params(keys[11], 24, 16)
    p["s1_fusion"] = make_conv_bn_params(keys[12], 16, 16)
    p["s1_up_conv"] = make_conv_bn_params(keys[13], 16, 16)
    p["last_conv"] = make_conv_bn_params(keys[14], 16, classes, with_bn=False)
    return p


# ----------------------------------------------------------------------------
# T_mv2_unet forward
# ----------------------------------------------------------------------------
def t_mv2_unet_forward(params, x_nchw):
    x = jnp.transpose(x_nchw, (0, 2, 3, 1)).astype(jnp.float32)   # NCHW -> NHWC

    # backbone: s1..s5 at strides /2, /4, /8, /16, /32 (bf16 activations)
    feats = []
    h = x
    for bp in params["backbone"]:
        h = conv3x3_block(h, bp["w"], bp["scale"], bp["shift"], stride=2, relu=True)
        feats.append(h)
    s1, s2, s3, s4, s5 = feats

    def up_conv(x, p, residual):
        # Upsample(x2, bilinear) -> Conv3x3 -> BN -> ReLU, then (+ skip) fused in-kernel
        return conv3x3_block(upsample2x_bilinear(x), p["w"], p["scale"], p["shift"],
                             relu=True, residual=residual)

    def fusion(x, p):
        # Conv3x3 -> BN (no activation)
        return conv3x3_block(x, p["w"], p["scale"], p["shift"], relu=False)

    s4_ = up_conv(s5, params["s5_up_conv"], s4)       # s5_up_conv(s5) + s4
    s4 = fusion(s4_, params["s4_fusion"])
    s3_ = up_conv(s4, params["s4_up_conv"], s3)
    s3 = fusion(s3_, params["s3_fusion"])
    s2_ = up_conv(s3, params["s3_up_conv"], s2)
    s2 = fusion(s2_, params["s2_fusion"])
    s1_ = up_conv(s2, params["s2_up_conv"], s1)
    s1 = fusion(s1_, params["s1_fusion"])
    s1 = conv3x3_block(upsample2x_bilinear(s1),
                       params["s1_up_conv"]["w"], params["s1_up_conv"]["scale"],
                       params["s1_up_conv"]["shift"], relu=True)
    out = conv3x3_block(s1, params["last_conv"]["w"], params["last_conv"]["scale"],
                        params["last_conv"]["shift"], relu=False,
                        out_dtype=jnp.float32)
    # note: self.last_up is defined in __init__ but unused in the reference forward.
    return jnp.transpose(out, (0, 3, 1, 2))           # NHWC -> NCHW


if __name__ == "__main__":
    key = jax.random.PRNGKey(0)
    kx, kp = jax.random.split(key)
    x = jax.random.normal(kx, (2, 3, 32, 32), jnp.float32)   # NCHW, like PyTorch
    params = init_params(kp, classes=3)

    fwd = jax.jit(t_mv2_unet_forward)
    out = fwd(params, x)
    out = jax.block_until_ready(out)
    assert out.shape == (2, 3, 32, 32), out.shape
    assert jnp.all(jnp.isfinite(out))
    print("KERNEL_OK")
</pallas_src>

<mosaic_0001>
module attributes {stable_mosaic.version = 11 : i64} {
  func.func @_conv_fused_kernel(%arg0: i32, %arg1: memref<512x128xbf16, #tpu.memory_space<vmem>>, %arg2: memref<128x128xbf16, #tpu.memory_space<vmem>>, %arg3: memref<1x128xf32, #tpu.memory_space<vmem>>, %arg4: memref<512x128xbf16, #tpu.memory_space<vmem>>) attributes {dimension_semantics = [#tpu.dimension_semantics<parallel>], iteration_bounds = array<i64: 1>, scalar_prefetch = 0 : i64, scratch_operands = 0 : i64, tpu.core_type = #tpu.core_type<tc>, window_params = [{transform_indices = @transform_0, window_bounds = array<i64: 512, 128>}, {pipeline_mode = #tpu.pipeline_mode<synchronous>, transform_indices = @transform_1, window_bounds = array<i64: 128, 128>}, {pipeline_mode = #tpu.pipeline_mode<synchronous>, transform_indices = @transform_2, window_bounds = array<i64: 1, 128>}, {transform_indices = @transform_3, window_bounds = array<i64: 512, 128>}]} {
    %c0 = arith.constant 0 : index
    %c0_0 = arith.constant 0 : index
    %0 = vector.load %arg1[%c0, %c0_0] : memref<512x128xbf16, #tpu.memory_space<vmem>>, vector<512x128xbf16>
    %c0_1 = arith.constant 0 : index
    %c0_2 = arith.constant 0 : index
    %1 = vector.load %arg2[%c0_1, %c0_2] : memref<128x128xbf16, #tpu.memory_space<vmem>>, vector<128x128xbf16>
    %cst = arith.constant dense<0.000000e+00> : vector<512x128xf32>
    %2 = tpu.matmul %0, %1, %cst {dimension_numbers = #tpu.dot_dimension_numbers<[1], [0], [0], [1], [0, 0, 1, 1], [], []>} : vector<512x128xbf16>, vector<128x128xbf16>, vector<512x128xf32> -> vector<512x128xf32>
    %c0_3 = arith.constant 0 : index
    %c0_4 = arith.constant 0 : index
    %3 = vector.load %arg3[%c0_3, %c0_4] : memref<1x128xf32, #tpu.memory_space<vmem>>, vector<1x128xf32>
    %4 = vector.broadcast %3 : vector<1x128xf32> to vector<512x128xf32>
    %5 = arith.addf %2, %4 : vector<512x128xf32>
    %cst_5 = arith.constant 0.000000e+00 : f32
    %6 = vector.broadcast %cst_5 : f32 to vector<512x128xf32>
    %7 = arith.maximumf %5, %6 : vector<512x128xf32>
    %8 = arith.truncf %7 : vector<512x128xf32> to vector<512x128xbf16>
    %c0_6 = arith.constant 0 : index
    %c0_7 = arith.constant 0 : index
    %9 = vector.load %arg4[%c0_6, %c0_7] : memref<512x128xbf16, #tpu.memory_space<vmem>>, vector<512x128xbf16>
    tpu.vector_store %arg4[%c0_6, %c0_7], %8 {strides = array<i32>} : memref<512x128xbf16, #tpu.memory_space<vmem>>, vector<512x128xbf16>,
    return
  }
  func.func @transform_0(%arg0: i32) -> (i32, i32) {
    %c0_i32 = arith.constant 0 : i32
    %c0_i32_0 = arith.constant 0 : i32
    return %arg0, %c0_i32 : i32, i32
  }
  func.func @transform_1(%arg0: i32) -> (i32, i32) {
    %c0_i32 = arith.constant 0 : i32
    %c0_i32_0 = arith.constant 0 : i32
    %c0_i32_1 = arith.constant 0 : i32
    return %c0_i32, %c0_i32_0 : i32, i32
  }
  func.func @transform_2(%arg0: i32) -> (i32, i32) {
    %c0_i32 = arith.constant 0 : i32
    %c0_i32_0 = arith.constant 0 : i32
    %c0_i32_1 = arith.constant 0 : i32
    return %c0_i32, %c0_i32_0 : i32, i32
  }
  func.func @transform_3(%arg0: i32) -> (i32, i32) {
    %c0_i32 = arith.constant 0 : i32
    %c0_i32_0 = arith.constant 0 : i32
    return %arg0, %c0_i32 : i32, i32
  }
}

module attributes {stable_mosaic.version = 11 : i64} {
  func.func @_conv_fused_kernel(%arg0: i32, %arg1: memref<128x256xbf16, #tpu.memory_space<vmem>>, %arg2: memref<256x128xbf16, #tpu.memory_space<vmem>>, %arg3: memref<1x128xf32, #tpu.memory_space<vmem>>, %arg4: memref<128x128xbf16, #tpu.memory_space<vmem>>) attributes {dimension_semantics = [#tpu.dimension_semantics<parallel>], iteration_bounds = array<i64: 1>, scalar_prefetch = 0 : i64, scratch_operands = 0 : i64, tpu.core_type = #tpu.core_type<tc>, window_params = [{transform_indices = @transform_0, window_bounds = array<i64: 128, 256>}, {pipeline_mode = #tpu.pipeline_mode<synchronous>, transform_indices = @transform_1, window_bounds = array<i64: 256, 128>}, {pipeline_mode = #tpu.pipeline_mode<synchronous>, transform_indices = @transform_2, window_bounds = array<i64: 1, 128>}, {transform_indices = @transform_3, window_bounds = array<i64: 128, 128>}]} {
    %c0 = arith.constant 0 : index
    %c0_0 = arith.constant 0 : index
    %0 = vector.load %arg1[%c0, %c0_0] : memref<128x256xbf16, #tpu.memory_space<vmem>>, vector<128x256xbf16>
    %c0_1 = arith.constant 0 : index
    %c0_2 = arith.constant 0 : index
    %1 = vector.load %arg2[%c0_1, %c0_2] : memref<256x128xbf16, #tpu.memory_space<vmem>>, vector<256x128xbf16>
    %cst = arith.constant dense<0.000000e+00> : vector<128x128xf32>
    %2 = tpu.matmul %0, %1, %cst {dimension_numbers = #tpu.dot_dimension_numbers<[1], [0], [0], [1], [0, 0, 1, 1], [], []>} : vector<128x256xbf16>, vector<256x128xbf16>, vector<128x128xf32> -> vector<128x128xf32>
    %c0_3 = arith.constant 0 : index
    %c0_4 = arith.constant 0 : index
    %3 = vector.load %arg3[%c0_3, %c0_4] : memref<1x128xf32, #tpu.memory_space<vmem>>, vector<1x128xf32>
    %4 = vector.broadcast %3 : vector<1x128xf32> to vector<128x128xf32>
    %5 = arith.addf %2, %4 : vector<128x128xf32>
    %cst_5 = arith.constant 0.000000e+00 : f32
    %6 = vector.broadcast %cst_5 : f32 to vector<128x128xf32>
    %7 = arith.maximumf %5, %6 : vector<128x128xf32>
    %8 = arith.truncf %7 : vector<128x128xf32> to vector<128x128xbf16>
    %c0_6 = arith.constant 0 : index
    %c0_7 = arith.constant 0 : index
    %9 = vector.load %arg4[%c0_6, %c0_7] : memref<128x128xbf16, #tpu.memory_space<vmem>>, vector<128x128xbf16>
    tpu.vector_store %arg4[%c0_6, %c0_7], %8 {strides = array<i32>} : memref<128x128xbf16, #tpu.memory_space<vmem>>, vector<128x128xbf16>,
    return
  }
  func.func @transform_0(%arg0: i32) -> (i32, i32) {
    %c0_i32 = arith.constant 0 : i32
    %c0_i32_0 = arith.constant 0 : i32
    return %arg0, %c0_i32 : i32, i32
  }
  func.func @transform_1(%arg0: i32) -> (i32, i32) {
    %c0_i32 = arith.constant 0 : i32
    %c0_i32_0 = arith.constant 0 : i32
    %c0_i32_1 = arith.constant 0 : i32
    return %c0_i32, %c0_i32_0 : i32, i32
  }
  func.func @transform_2(%arg0: i32) -> (i32, i32) {
    %c0_i32 = arith.constant 0 : i32
    %c0_i32_0 = arith.constant 0 : i32
    %c0_i32_1 = arith.constant 0 : i32
    return %c0_i32, %c0_i32_0 : i32, i32
  }
  func.func @transform_3(%arg0: i32) -> (i32, i32) {
    %c0_i32 = arith.constant 0 : i32
    %c0_i32_0 = arith.constant 0 : i32
    return %arg0, %c0_i32 : i32, i32
  }
}

module attributes {stable_mosaic.version = 11 : i64} {
  func.func @_conv_fused_kernel(%arg0: i32, %arg1: memref<128x384xbf16, #tpu.memory_space<vmem>>, %arg2: memref<384x128xbf16, #tpu.memory_space<vmem>>, %arg3: memref<1x128xf32, #tpu.memory_space<vmem>>, %arg4: memref<128x128xbf16, #tpu.memory_space<vmem>>, %arg5: memref<128x128xbf16, #tpu.memory_space<vmem>>) attributes {dimension_semantics = [#tpu.dimension_semantics<parallel>], iteration_bounds = array<i64: 1>, scalar_prefetch = 0 : i64, scratch_operands = 0 : i64, tpu.core_type = #tpu.core_type<tc>, window_params = [{transform_indices = @transform_0, window_bounds = array<i64: 128, 384>}, {pipeline_mode = #tpu.pipeline_mode<synchronous>, transform_indices = @transform_1, window_bounds = array<i64: 384, 128>}, {pipeline_mode = #tpu.pipeline_mode<synchronous>, transform_indices = @transform_2, window_bounds = array<i64: 1, 128>}, {transform_indices = @transform_3, window_bounds = array<i64: 128, 128>}, {transform_indices = @transform_4, window_bounds = array<i64: 128, 128>}]} {
    %c0 = arith.constant 0 : index
    %c0_0 = arith.constant 0 : index
    %0 = vector.load %arg1[%c0, %c0_0] : memref<128x384xbf16, #tpu.memory_space<vmem>>, vector<128x384xbf16>
    %c0_1 = arith.constant 0 : index
    %c0_2 = arith.constant 0 : index
    %1 = vector.load %arg2[%c0_1, %c0_2] : memref<384x128xbf16, #tpu.memory_space<vmem>>, vector<384x128xbf16>
    %cst = arith.constant dense<0.000000e+00> : vector<128x128xf32>
    %2 = tpu.matmul %0, %1, %cst {dimension_numbers = #tpu.dot_dimension_numbers<[1], [0], [0], [1], [0, 0, 1, 1], [], []>} : vector<128x384xbf16>, vector<384x128xbf16>, vector<128x128xf32> -> vector<128x128xf32>
    %c0_3 = arith.constant 0 : index
    %c0_4 = arith.constant 0 : index
    %3 = vector.load %arg3[%c0_3, %c0_4] : memref<1x128xf32, #tpu.memory_space<vmem>>, vector<1x128xf32>
    %4 = vector.broadcast %3 : vector<1x128xf32> to vector<128x128xf32>
    %5 = arith.addf %2, %4 : vector<128x128xf32>
    %cst_5 = arith.constant 0.000000e+00 : f32
    %6 = vector.broadcast %cst_5 : f32 to vector<128x128xf32>
    %7 = arith.maximumf %5, %6 : vector<128x128xf32>
    %c0_6 = arith.constant 0 : index
    %c0_7 = arith.constant 0 : index
    %8 = vector.load %arg4[%c0_6, %c0_7] : memref<128x128xbf16, #tpu.memory_space<vmem>>, vector<128x128xbf16>
    %9 = arith.extf %8 : vector<128x128xbf16> to vector<128x128xf32>
    %10 = arith.addf %7, %9 : vector<128x128xf32>
    %11 = arith.truncf %10 : vector<128x128xf32> to vector<128x128xbf16>
    %c0_8 = arith.constant 0 : index
    %c0_9 = arith.constant 0 : index
    %12 = vector.load %arg5[%c0_8, %c0_9] : memref<128x128xbf16, #tpu.memory_space<vmem>>, vector<128x128xbf16>
    tpu.vector_store %arg5[%c0_8, %c0_9], %11 {strides = array<i32>} : memref<128x128xbf16, #tpu.memory_space<vmem>>, vector<128x128xbf16>,
    return
  }
  func.func @transform_0(%arg0: i32) -> (i32, i32) {
    %c0_i32 = arith.constant 0 : i32
    %c0_i32_0 = arith.constant 0 : i32
    return %arg0, %c0_i32 : i32, i32
  }
  func.func @transform_1(%arg0: i32) -> (i32, i32) {
    %c0_i32 = arith.constant 0 : i32
    %c0_i32_0 = arith.constant 0 : i32
    %c0_i32_1 = arith.constant 0 : i32
    return %c0_i32, %c0_i32_0 : i32, i32
  }
  func.func @transform_2(%arg0: i32) -> (i32, i32) {
    %c0_i32 = arith.constant 0 : i32
    %c0_i32_0 = arith.constant 0 : i32
    %c0_i32_1 = arith.constant 0 : i32
    return %c0_i32, %c0_i32_0 : i32, i32
  }
  func.func @transform_3(%arg0: i32) -> (i32, i32) {
    %c0_i32 = arith.constant 0 : i32
    %c0_i32_0 = arith.constant 0 : i32
    return %arg0, %c0_i32 : i32, i32
  }
  func.func @transform_4(%arg0: i32) -> (i32, i32) {
    %c0_i32 = arith.constant 0 : i32
    %c0_i32_0 = arith.constant 0 : i32
    return %arg0, %c0_i32 : i32, i32
  }
}

module attributes {stable_mosaic.version = 11 : i64} {
  func.func @_conv_fused_kernel(%arg0: i32, %arg1: memref<128x256xbf16, #tpu.memory_space<vmem>>, %arg2: memref<256x128xbf16, #tpu.memory_space<vmem>>, %arg3: memref<1x128xf32, #tpu.memory_space<vmem>>, %arg4: memref<128x128xbf16, #tpu.memory_space<vmem>>) attributes {dimension_semantics = [#tpu.dimension_semantics<parallel>], iteration_bounds = array<i64: 1>, scalar_prefetch = 0 : i64, scratch_operands = 0 : i64, tpu.core_type = #tpu.core_type<tc>, window_params = [{transform_indices = @transform_0, window_bounds = array<i64: 128, 256>}, {pipeline_mode = #tpu.pipeline_mode<synchronous>, transform_indices = @transform_1, window_bounds = array<i64: 256, 128>}, {pipeline_mode = #tpu.pipeline_mode<synchronous>, transform_indices = @transform_2, window_bounds = array<i64: 1, 128>}, {transform_indices = @transform_3, window_bounds = array<i64: 128, 128>}]} {
    %c0 = arith.constant 0 : index
    %c0_0 = arith.constant 0 : index
    %0 = vector.load %arg1[%c0, %c0_0] : memref<128x256xbf16, #tpu.memory_space<vmem>>, vector<128x256xbf16>
    %c0_1 = arith.constant 0 : index
    %c0_2 = arith.constant 0 : index
    %1 = vector.load %arg2[%c0_1, %c0_2] : memref<256x128xbf16, #tpu.memory_space<vmem>>, vector<256x128xbf16>
    %cst = arith.constant dense<0.000000e+00> : vector<128x128xf32>
    %2 = tpu.matmul %0, %1, %cst {dimension_numbers = #tpu.dot_dimension_numbers<[1], [0], [0], [1], [0, 0, 1, 1], [], []>} : vector<128x256xbf16>, vector<256x128xbf16>, vector<128x128xf32> -> vector<128x128xf32>
    %c0_3 = arith.constant 0 : index
    %c0_4 = arith.constant 0 : index
    %3 = vector.load %arg3[%c0_3, %c0_4] : memref<1x128xf32, #tpu.memory_space<vmem>>, vector<1x128xf32>
    %4 = vector.broadcast %3 : vector<1x128xf32> to vector<128x128xf32>
    %5 = arith.addf %2, %4 : vector<128x128xf32>
    %6 = arith.truncf %5 : vector<128x128xf32> to vector<128x128xbf16>
    %c0_5 = arith.constant 0 : index
    %c0_6 = arith.constant 0 : index
    %7 = vector.load %arg4[%c0_5, %c0_6] : memref<128x128xbf16, #tpu.memory_space<vmem>>, vector<128x128xbf16>
    tpu.vector_store %arg4[%c0_5, %c0_6], %6 {strides = array<i32>} : memref<128x128xbf16, #tpu.memory_space<vmem>>, vector<128x128xbf16>,
    return
  }
  func.func @transform_0(%arg0: i32) -> (i32, i32) {
    %c0_i32 = arith.constant 0 : i32
    %c0_i32_0 = arith.constant 0 : i32
    return %arg0, %c0_i32 : i32, i32
  }
  func.func @transform_1(%arg0: i32) -> (i32, i32) {
    %c0_i32 = arith.constant 0 : i32
    %c0_i32_0 = arith.constant 0 : i32
    %c0_i32_1 = arith.constant 0 : i32
    return %c0_i32, %c0_i32_0 : i32, i32
  }
  func.func @transform_2(%arg0: i32) -> (i32, i32) {
    %c0_i32 = arith.constant 0 : i32
    %c0_i32_0 = arith.constant 0 : i32
    %c0_i32_1 = arith.constant 0 : i32
    return %c0_i32, %c0_i32_0 : i32, i32
  }
  func.func @transform_3(%arg0: i32) -> (i32, i32) {
    %c0_i32 = arith.constant 0 : i32
    %c0_i32_0 = arith.constant 0 : i32
    return %arg0, %c0_i32 : i32, i32
  }
}

module attributes {stable_mosaic.version = 11 : i64} {
  func.func @_conv_fused_kernel(%arg0: i32, %arg1: memref<512x256xbf16, #tpu.memory_space<vmem>>, %arg2: memref<256x128xbf16, #tpu.memory_space<vmem>>, %arg3: memref<1x128xf32, #tpu.memory_space<vmem>>, %arg4: memref<512x128xbf16, #tpu.memory_space<vmem>>, %arg5: memref<512x128xbf16, #tpu.memory_space<vmem>>) attributes {dimension_semantics = [#tpu.dimension_semantics<parallel>], iteration_bounds = array<i64: 1>, scalar_prefetch = 0 : i64, scratch_operands = 0 : i64, tpu.core_type = #tpu.core_type<tc>, window_params = [{transform_indices = @transform_0, window_bounds = array<i64: 512, 256>}, {pipeline_mode = #tpu.pipeline_mode<synchronous>, transform_indices = @transform_1, window_bounds = array<i64: 256, 128>}, {pipeline_mode = #tpu.pipeline_mode<synchronous>, transform_indices = @transform_2, window_bounds = array<i64: 1, 128>}, {transform_indices = @transform_3, window_bounds = array<i64: 512, 128>}, {transform_indices = @transform_4, window_bounds = array<i64: 512, 128>}]} {
    %c0 = arith.constant 0 : index
    %c0_0 = arith.constant 0 : index
    %0 = vector.load %arg1[%c0, %c0_0] : memref<512x256xbf16, #tpu.memory_space<vmem>>, vector<512x256xbf16>
    %c0_1 = arith.constant 0 : index
    %c0_2 = arith.constant 0 : index
    %1 = vector.load %arg2[%c0_1, %c0_2] : memref<256x128xbf16, #tpu.memory_space<vmem>>, vector<256x128xbf16>
    %cst = arith.constant dense<0.000000e+00> : vector<512x128xf32>
    %2 = tpu.matmul %0, %1, %cst {dimension_numbers = #tpu.dot_dimension_numbers<[1], [0], [0], [1], [0, 0, 1, 1], [], []>} : vector<512x256xbf16>, vector<256x128xbf16>, vector<512x128xf32> -> vector<512x128xf32>
    %c0_3 = arith.constant 0 : index
    %c0_4 = arith.constant 0 : index
    %3 = vector.load %arg3[%c0_3, %c0_4] : memref<1x128xf32, #tpu.memory_space<vmem>>, vector<1x128xf32>
    %4 = vector.broadcast %3 : vector<1x128xf32> to vector<512x128xf32>
    %5 = arith.addf %2, %4 : vector<512x128xf32>
    %cst_5 = arith.constant 0.000000e+00 : f32
    %6 = vector.broadcast %cst_5 : f32 to vector<512x128xf32>
    %7 = arith.maximumf %5, %6 : vector<512x128xf32>
    %c0_6 = arith.constant 0 : index
    %c0_7 = arith.constant 0 : index
    %8 = vector.load %arg4[%c0_6, %c0_7] : memref<512x128xbf16, #tpu.memory_space<vmem>>, vector<512x128xbf16>
    %9 = arith.extf %8 : vector<512x128xbf16> to vector<512x128xf32>
    %10 = arith.addf %7, %9 : vector<512x128xf32>
    %11 = arith.truncf %10 : vector<512x128xf32> to vector<512x128xbf16>
    %c0_8 = arith.constant 0 : index
    %c0_9 = arith.constant 0 : index
    %12 = vector.load %arg5[%c0_8, %c0_9] : memref<512x128xbf16, #tpu.memory_space<vmem>>, vector<512x128xbf16>
    tpu.vector_store %arg5[%c0_8, %c0_9], %11 {strides = array<i32>} : memref<512x128xbf16, #tpu.memory_space<vmem>>, vector<512x128xbf16>,
    return
  }
  func.func @transform_0(%arg0: i32) -> (i32, i32) {
    %c0_i32 = arith.constant 0 : i32
    %c0_i32_0 = arith.constant 0 : i32
    return %arg0, %c0_i32 : i32, i32
  }
  func.func @transform_1(%arg0: i32) -> (i32, i32) {
    %c0_i32 = arith.constant 0 : i32
    %c0_i32_0 = arith.constant 0 : i32
    %c0_i32_1 = arith.constant 0 : i32
    return %c0_i32, %c0_i32_0 : i32, i32
  }
  func.func @transform_2(%arg0: i32) -> (i32, i32) {
    %c0_i32 = arith.constant 0 : i32
    %c0_i32_0 = arith.constant 0 : i32
    %c0_i32_1 = arith.constant 0 : i32
    return %c0_i32, %c0_i32_0 : i32, i32
  }
  func.func @transform_3(%arg0: i32) -> (i32, i32) {
    %c0_i32 = arith.constant 0 : i32
    %c0_i32_0 = arith.constant 0 : i32
    return %arg0, %c0_i32 : i32, i32
  }
  func.func @transform_4(%arg0: i32) -> (i32, i32) {
    %c0_i32 = arith.constant 0 : i32
    %c0_i32_0 = arith.constant 0 : i32
    return %arg0, %c0_i32 : i32, i32
  }
}

module attributes {stable_mosaic.version = 11 : i64} {
  func.func @_conv_fused_kernel(%arg0: i32, %arg1: memref<512x256xbf16, #tpu.memory_space<vmem>>, %arg2: memref<256x128xbf16, #tpu.memory_space<vmem>>, %arg3: memref<1x128xf32, #tpu.memory_space<vmem>>, %arg4: memref<512x128xbf16, #tpu.memory_space<vmem>>) attributes {dimension_semantics = [#tpu.dimension_semantics<parallel>], iteration_bounds = array<i64: 1>, scalar_prefetch = 0 : i64, scratch_operands = 0 : i64, tpu.core_type = #tpu.core_type<tc>, window_params = [{transform_indices = @transform_0, window_bounds = array<i64: 512, 256>}, {pipeline_mode = #tpu.pipeline_mode<synchronous>, transform_indices = @transform_1, window_bounds = array<i64: 256, 128>}, {pipeline_mode = #tpu.pipeline_mode<synchronous>, transform_indices = @transform_2, window_bounds = array<i64: 1, 128>}, {transform_indices = @transform_3, window_bounds = array<i64: 512, 128>}]} {
    %c0 = arith.constant 0 : index
    %c0_0 = arith.constant 0 : index
    %0 = vector.load %arg1[%c0, %c0_0] : memref<512x256xbf16, #tpu.memory_space<vmem>>, vector<512x256xbf16>
    %c0_1 = arith.constant 0 : index
    %c0_2 = arith.constant 0 : index
    %1 = vector.load %arg2[%c0_1, %c0_2] : memref<256x128xbf16, #tpu.memory_space<vmem>>, vector<256x128xbf16>
    %cst = arith.constant dense<0.000000e+00> : vector<512x128xf32>
    %2 = tpu.matmul %0, %1, %cst {dimension_numbers = #tpu.dot_dimension_numbers<[1], [0], [0], [1], [0, 0, 1, 1], [], []>} : vector<512x256xbf16>, vector<256x128xbf16>, vector<512x128xf32> -> vector<512x128xf32>
    %c0_3 = arith.constant 0 : index
    %c0_4 = arith.constant 0 : index
    %3 = vector.load %arg3[%c0_3, %c0_4] : memref<1x128xf32, #tpu.memory_space<vmem>>, vector<1x128xf32>
    %4 = vector.broadcast %3 : vector<1x128xf32> to vector<512x128xf32>
    %5 = arith.addf %2, %4 : vector<512x128xf32>
    %6 = arith.truncf %5 : vector<512x128xf32> to vector<512x128xbf16>
    %c0_5 = arith.constant 0 : index
    %c0_6 = arith.constant 0 : index
    %7 = vector.load %arg4[%c0_5, %c0_6] : memref<512x128xbf16, #tpu.memory_space<vmem>>, vector<512x128xbf16>
    tpu.vector_store %arg4[%c0_5, %c0_6], %6 {strides = array<i32>} : memref<512x128xbf16, #tpu.memory_space<vmem>>, vector<512x128xbf16>,
    return
  }
  func.func @transform_0(%arg0: i32) -> (i32, i32) {
    %c0_i32 = arith.constant 0 : i32
    %c0_i32_0 = arith.constant 0 : i32
    return %arg0, %c0_i32 : i32, i32
  }
  func.func @transform_1(%arg0: i32) -> (i32, i32) {
    %c0_i32 = arith.constant 0 : i32
    %c0_i32_0 = arith.constant 0 : i32
    %c0_i32_1 = arith.constant 0 : i32
    return %c0_i32, %c0_i32_0 : i32, i32
  }
  func.func @transform_2(%arg0: i32) -> (i32, i32) {
    %c0_i32 = arith.constant 0 : i32
    %c0_i32_0 = arith.constant 0 : i32
    %c0_i32_1 = arith.constant 0 : i32
    return %c0_i32, %c0_i32_0 : i32, i32
  }
  func.func @transform_3(%arg0: i32) -> (i32, i32) {
    %c0_i32 = arith.constant 0 : i32
    %c0_i32_0 = arith.constant 0 : i32
    return %arg0, %c0_i32 : i32, i32
  }
}

module attributes {stable_mosaic.version = 11 : i64} {
  func.func @_conv_fused_kernel(%arg0: i32, %arg1: memref<2048x256xbf16, #tpu.memory_space<vmem>>, %arg2: memref<256x128xbf16, #tpu.memory_space<vmem>>, %arg3: memref<1x128xf32, #tpu.memory_space<vmem>>, %arg4: memref<2048x128xbf16, #tpu.memory_space<vmem>>) attributes {dimension_semantics = [#tpu.dimension_semantics<parallel>], iteration_bounds = array<i64: 1>, scalar_prefetch = 0 : i64, scratch_operands = 0 : i64, tpu.core_type = #tpu.core_type<tc>, window_params = [{transform_indices = @transform_0, window_bounds = array<i64: 2048, 256>}, {pipeline_mode = #tpu.pipeline_mode<synchronous>, transform_indices = @transform_1, window_bounds = array<i64: 256, 128>}, {pipeline_mode = #tpu.pipeline_mode<synchronous>, transform_indices = @transform_2, window_bounds = array<i64: 1, 128>}, {transform_indices = @transform_3, window_bounds = array<i64: 2048, 128>}]} {
    %c0 = arith.constant 0 : index
    %c0_0 = arith.constant 0 : index
    %0 = vector.load %arg1[%c0, %c0_0] : memref<2048x256xbf16, #tpu.memory_space<vmem>>, vector<2048x256xbf16>
    %c0_1 = arith.constant 0 : index
    %c0_2 = arith.constant 0 : index
    %1 = vector.load %arg2[%c0_1, %c0_2] : memref<256x128xbf16, #tpu.memory_space<vmem>>, vector<256x128xbf16>
    %cst = arith.constant dense<0.000000e+00> : vector<2048x128xf32>
    %2 = tpu.matmul %0, %1, %cst {dimension_numbers = #tpu.dot_dimension_numbers<[1], [0], [0], [1], [0, 0, 1, 1], [], []>} : vector<2048x256xbf16>, vector<256x128xbf16>, vector<2048x128xf32> -> vector<2048x128xf32>
    %c0_3 = arith.constant 0 : index
    %c0_4 = arith.constant 0 : index
    %3 = vector.load %arg3[%c0_3, %c0_4] : memref<1x128xf32, #tpu.memory_space<vmem>>, vector<1x128xf32>
    %4 = vector.broadcast %3 : vector<1x128xf32> to vector<2048x128xf32>
    %5 = arith.addf %2, %4 : vector<2048x128xf32>
    %cst_5 = arith.constant 0.000000e+00 : f32
    %6 = vector.broadcast %cst_5 : f32 to vector<2048x128xf32>
    %7 = arith.maximumf %5, %6 : vector<2048x128xf32>
    %8 = arith.truncf %7 : vector<2048x128xf32> to vector<2048x128xbf16>
    %c0_6 = arith.constant 0 : index
    %c0_7 = arith.constant 0 : index
    %9 = vector.load %arg4[%c0_6, %c0_7] : memref<2048x128xbf16, #tpu.memory_space<vmem>>, vector<2048x128xbf16>
    tpu.vector_store %arg4[%c0_6, %c0_7], %8 {strides = array<i32>} : memref<2048x128xbf16, #tpu.memory_space<vmem>>, vector<2048x128xbf16>,
    return
  }
  func.func @transform_0(%arg0: i32) -> (i32, i32) {
    %c0_i32 = arith.constant 0 : i32
    %c0_i32_0 = arith.constant 0 : i32
    return %arg0, %c0_i32 : i32, i32
  }
  func.func @transform_1(%arg0: i32) -> (i32, i32) {
    %c0_i32 = arith.constant 0 : i32
    %c0_i32_0 = arith.constant 0 : i32
    %c0_i32_1 = arith.constant 0 : i32
    return %c0_i32, %c0_i32_0 : i32, i32
  }
  func.func @transform_2(%arg0: i32) -> (i32, i32) {
    %c0_i32 = arith.constant 0 : i32
    %c0_i32_0 = arith.constant 0 : i32
    %c0_i32_1 = arith.constant 0 : i32
    return %c0_i32, %c0_i32_0 : i32, i32
  }
  func.func @transform_3(%arg0: i32) -> (i32, i32) {
    %c0_i32 = arith.constant 0 : i32
    %c0_i32_0 = arith.constant 0 : i32
    return %arg0, %c0_i32 : i32, i32
  }
}

module attributes {stable_mosaic.version = 11 : i64} {
  func.func @_conv_fused_kernel(%arg0: i32, %arg1: memref<2048x256xbf16, #tpu.memory_space<vmem>>, %arg2: memref<256x128xbf16, #tpu.memory_space<vmem>>, %arg3: memref<1x128xf32, #tpu.memory_space<vmem>>, %arg4: memref<2048x128xf32, #tpu.memory_space<vmem>>) attributes {dimension_semantics = [#tpu.dimension_semantics<parallel>], iteration_bounds = array<i64: 1>, scalar_prefetch = 0 : i64, scratch_operands = 0 : i64, tpu.core_type = #tpu.core_type<tc>, window_params = [{transform_indices = @transform_0, window_bounds = array<i64: 2048, 256>}, {pipeline_mode = #tpu.pipeline_mode<synchronous>, transform_indices = @transform_1, window_bounds = array<i64: 256, 128>}, {pipeline_mode = #tpu.pipeline_mode<synchronous>, transform_indices = @transform_2, window_bounds = array<i64: 1, 128>}, {transform_indices = @transform_3, window_bounds = array<i64: 2048, 128>}]} {
    %c0 = arith.constant 0 : index
    %c0_0 = arith.constant 0 : index
    %0 = vector.load %arg1[%c0, %c0_0] : memref<2048x256xbf16, #tpu.memory_space<vmem>>, vector<2048x256xbf16>
    %c0_1 = arith.constant 0 : index
    %c0_2 = arith.constant 0 : index
    %1 = vector.load %arg2[%c0_1, %c0_2] : memref<256x128xbf16, #tpu.memory_space<vmem>>, vector<256x128xbf16>
    %cst = arith.constant dense<0.000000e+00> : vector<2048x128xf32>
    %2 = tpu.matmul %0, %1, %cst {dimension_numbers = #tpu.dot_dimension_numbers<[1], [0], [0], [1], [0, 0, 1, 1], [], []>} : vector<2048x256xbf16>, vector<256x128xbf16>, vector<2048x128xf32> -> vector<2048x128xf32>
    %c0_3 = arith.constant 0 : index
    %c0_4 = arith.constant 0 : index
    %3 = vector.load %arg3[%c0_3, %c0_4] : memref<1x128xf32, #tpu.memory_space<vmem>>, vector<1x128xf32>
    %4 = vector.broadcast %3 : vector<1x128xf32> to vector<2048x128xf32>
    %5 = arith.addf %2, %4 : vector<2048x128xf32>
    %c0_5 = arith.constant 0 : index
    %c0_6 = arith.constant 0 : index
    %6 = vector.load %arg4[%c0_5, %c0_6] : memref<2048x128xf32, #tpu.memory_space<vmem>>, vector<2048x128xf32>
    tpu.vector_store %arg4[%c0_5, %c0_6], %5 {strides = array<i32>} : memref<2048x128xf32, #tpu.memory_space<vmem>>, vector<2048x128xf32>,
    return
  }
  func.func @transform_0(%arg0: i32) -> (i32, i32) {
    %c0_i32 = arith.constant 0 : i32
    %c0_i32_0 = arith.constant 0 : i32
    return %arg0, %c0_i32 : i32, i32
  }
  func.func @transform_1(%arg0: i32) -> (i32, i32) {
    %c0_i32 = arith.constant 0 : i32
    %c0_i32_0 = arith.constant 0 : i32
    %c0_i32_1 = arith.constant 0 : i32
    return %c0_i32, %c0_i32_0 : i32, i32
  }
  func.func @transform_2(%arg0: i32) -> (i32, i32) {
    %c0_i32 = arith.constant 0 : i32
    %c0_i32_0 = arith.constant 0 : i32
    %c0_i32_1 = arith.constant 0 : i32
    return %c0_i32, %c0_i32_0 : i32, i32
  }
  func.func @transform_3(%arg0: i32) -> (i32, i32) {
    %c0_i32 = arith.constant 0 : i32
    %c0_i32_0 = arith.constant 0 : i32
    return %arg0, %c0_i32 : i32, i32
  }
}

</mosaic_0001>

<llo_original>
// kernel: t_mv2_unet_forward.8
$region0: #{t_mv2_unet_forward.8}
  #allocation0 [shape = 'u32[]', space=smem, size = 0x4, offset = 0x4, fixed_abs, tag = 'smem constant byte address 0x4 - core index']
  #allocation1 [shape = 'u32[72,128]{1,0:T(1,128)}', space=vmem, size = 0x9000, scoped, tag = 'internal scratch']
  %s0 = inlined_call_operand.vmem [shape: bf16[512,128], index: 0, kind: input, shape index: {}]
  %s1 = inlined_call_operand.vmem [shape: bf16[128,128], index: 1, kind: input, shape index: {}]
  %s2 = inlined_call_operand.vmem [shape: f32[1,128], index: 2, kind: input, shape index: {}]
  %s3 = inlined_call_operand.vmem [shape: bf16[512,128], index: 3, kind: output, shape index: {}]
  %s4 = sld [smem:[#allocation0]]
  $region22: #{t_mv2_unet_forward.8} parent=0
    _
  %s6 = ssub.s32 1, %s4
  %s7 = scalar_select 0, %s6, %s4
  // Predicated region
  $region2: #{t_mv2_unet_forward.8} parent=0 // pred_check
    _
  $region3: #{t_mv2_unet_forward.8} parent=0 // pred_check_branch
    %9 = sbr.rel (0) target = $region5
  $region4: #{t_mv2_unet_forward.8} parent=0 // pred_region
    _
  $region5: #{t_mv2_unet_forward.8} parent=0 // pred_fallthru
    _
  // Predicated region
  $region6: #{t_mv2_unet_forward.8} parent=0 // pred_check
    _
  $region7: #{t_mv2_unet_forward.8} parent=0 // pred_check_branch
    %11 = sbr.rel (0) target = $region9
  $region8: #{t_mv2_unet_forward.8} parent=0 // pred_region
    _
  $region9: #{t_mv2_unet_forward.8} parent=0 // pred_fallthru
    _
  // Predicated region
  $region10: #{t_mv2_unet_forward.8} parent=0 // pred_check
    _
  $region11: #{t_mv2_unet_forward.8} parent=0 // pred_check_branch
    %13 = sbr.rel (0) target = $region13
  $region12: #{t_mv2_unet_forward.8} parent=0 // pred_region
    _
  $region13: #{t_mv2_unet_forward.8} parent=0 // pred_fallthru
    _
  %v14 = vld [vmem:[%s0] sm:$0xf]
  %v15 = vld [vmem:[%s0 + $0x4] sm:$0xf]
  %v16 = vld [vmem:[%s0 + $0x8] sm:$0xf]
  %v17 = vld [vmem:[%s0 + $0xc] sm:$0xf]
  %v18 = vld [vmem:[%s0 + $0x10] sm:$0xf]
  %v19 = vld [vmem:[%s0 + $0x14] sm:$0xf]
  %v20 = vld [vmem:[%s0 + $0x18] sm:$0xf]
  %v21 = vld [vmem:[%s0 + $0x1c] sm:$0xf]
  %v22 = vld [vmem:[%s0 + $0x20] sm:$0xf]
  %v23 = vld [vmem:[%s0 + $0x24] sm:$0xf]
  %v24 = vld [vmem:[%s0 + $0x28] sm:$0xf]
  %v25 = vld [vmem:[%s0 + $0x2c] sm:$0xf]
  %v26 = vld [vmem:[%s0 + $0x30] sm:$0xf]
  %v27 = vld [vmem:[%s0 + $0x34] sm:$0xf]
  %v28 = vld [vmem:[%s0 + $0x38] sm:$0xf]
  %v29 = vld [vmem:[%s0 + $0x3c] sm:$0xf]
  %v30 = vld [vmem:[%s0 + $0x40] sm:$0xf]
  %v31 = vld [vmem:[%s0 + $0x44] sm:$0xf]
  %v32 = vld [vmem:[%s0 + $0x48] sm:$0xf]
  %v33 = vld [vmem:[%s0 + $0x4c] sm:$0xf]
  %v34 = vld [vmem:[%s0 + $0x50] sm:$0xf]
  %v35 = vld [vmem:[%s0 + $0x54] sm:$0xf]
  %v36 = vld [vmem:[%s0 + $0x58] sm:$0xf]
  %v37 = vld [vmem:[%s0 + $0x5c] sm:$0xf]
  %v38 = vld [vmem:[%s0 + $0x60] sm:$0xf]
  %v39 = vld [vmem:[%s0 + $0x64] sm:$0xf]
  %v40 = vld [vmem:[%s0 + $0x68] sm:$0xf]
  %v41 = vld [vmem:[%s0 + $0x6c] sm:$0xf]
  %v42 = vld [vmem:[%s0 + $0x70] sm:$0xf]
  %v43 = vld [vmem:[%s0 + $0x74] sm:$0xf]
  %v44 = vld [vmem:[%s0 + $0x78] sm:$0xf]
  %v45 = vld [vmem:[%s0 + $0x7c] sm:$0xf]
  %v46 = vld [vmem:[%s0 + $0x80] sm:$0xf]
  %v47 = vld [vmem:[%s0 + $0x84] sm:$0xf]
  %v48 = vld [vmem:[%s0 + $0x88] sm:$0xf]
  %v49 = vld [vmem:[%s0 + $0x8c] sm:$0xf]
  %v50 = vld [vmem:[%s0 + $0x90] sm:$0xf]
  %v51 = vld [vmem:[%s0 + $0x94] sm:$0xf]
  %v52 = vld [vmem:[%s0 + $0x98] sm:$0xf]
  %v53 = vld [vmem:[%s0 + $0x9c] sm:$0xf]
  %v54 = vld [vmem:[%s0 + $0xa0] sm:$0xf]
  %v55 = vld [vmem:[%s0 + $0xa4] sm:$0xf]
  %v56 = vld [vmem:[%s0 + $0xa8] sm:$0xf]
  %v57 = vld [vmem:[%s0 + $0xac] sm:$0xf]
  %v58 = vld [vmem:[%s0 + $0xb0] sm:$0xf]
  %v59 = vld [vmem:[%s0 + $0xb4] sm:$0xf]
  %v60 = vld [vmem:[%s0 + $0xb8] sm:$0xf]
  %v61 = vld [vmem:[%s0 + $0xbc] sm:$0xf]
  %v62 = vld [vmem:[%s0 + $0xc0] sm:$0xf]
  %v63 = vld [vmem:[%s0 + $0xc4] sm:$0xf]
  %v64 = vld [vmem:[%s0 + $0xc8] sm:$0xf]
  %v65 = vld [vmem:[%s0 + $0xcc] sm:$0xf]
  %v66 = vld [vmem:[%s0 + $0xd0] sm:$0xf]
  %v67 = vld [vmem:[%s0 + $0xd4] sm:$0xf]
  %v68 = vld [vmem:[%s0 + $0xd8] sm:$0xf]
  %v69 = vld [vmem:[%s0 + $0xdc] sm:$0xf]
  %v70 = vld [vmem:[%s0 + $0xe0] sm:$0xf]
  %v71 = vld [vmem:[%s0 + $0xe4] sm:$0xf]
  %v72 = vld [vmem:[%s0 + $0xe8] sm:$0xf]
  %v73 = vld [vmem:[%s0 + $0xec] sm:$0xf]
  %v74 = vld [vmem:[%s0 + $0xf0] sm:$0xf]
  %v75 = vld [vmem:[%s0 + $0xf4] sm:$0xf]
  %v76 = vld [vmem:[%s0 + $0xf8] sm:$0xf]
  %v77 = vld [vmem:[%s0 + $0xfc] sm:$0xf]
  %v78 = vld [vmem:[%s1] sm:$0xf]
  %v79 = vld [vmem:[%s1 + $0x4] sm:$0xf]
  %v80 = vld [vmem:[%s1 + $0x8] sm:$0xf]
  %v81 = vld [vmem:[%s1 + $0xc] sm:$0xf]
  %v82 = vld [vmem:[%s1 + $0x10] sm:$0xf]
  %v83 = vld [vmem:[%s1 + $0x14] sm:$0xf]
  %v84 = vld [vmem:[%s1 + $0x18] sm:$0xf]
  %v85 = vld [vmem:[%s1 + $0x1c] sm:$0xf]
  %v86 = vld [vmem:[%s1 + $0x20] sm:$0xf]
  %v87 = vld [vmem:[%s1 + $0x24] sm:$0xf]
  %v88 = vld [vmem:[%s1 + $0x28] sm:$0xf]
  %v89 = vld [vmem:[%s1 + $0x2c] sm:$0xf]
  %v90 = vld [vmem:[%s1 + $0x30] sm:$0xf]
  %v91 = vld [vmem:[%s1 + $0x34] sm:$0xf]
  %v92 = vld [vmem:[%s1 + $0x38] sm:$0xf]
  %v93 = vld [vmem:[%s1 + $0x3c] sm:$0xf]
  %v94 = vld [vmem:[%s2] sm:$0x1]
  %v96 = vperm.slane %v94, 0
  %v162 = vunpack.c.l.b16 %v14
  %v163 = vunpack.c.l.b16 %v15
  %v164 = vunpack.c.l.b16 %v16
  %v165 = vunpack.c.l.b16 %v17
  %v166 = vunpack.c.l.b16 %v18
  %v167 = vunpack.c.l.b16 %v19
  %v168 = vunpack.c.l.b16 %v20
  %v169 = vunpack.c.l.b16 %v21
  %v170 = vunpack.c.l.b16 %v22
  %v171 = vunpack.c.l.b16 %v23
  %v172 = vunpack.c.l.b16 %v24
  %v173 = vunpack.c.l.b16 %v25
  %v174 = vunpack.c.l.b16 %v26
  %v175 = vunpack.c.l.b16 %v27
  %v176 = vunpack.c.l.b16 %v28
  %v177 = vunpack.c.l.b16 %v29
  %v178 = vunpack.c.l.b16 %v30
  %v179 = vunpack.c.l.b16 %v31
  %v180 = vunpack.c.l.b16 %v32
  %v181 = vunpack.c.l.b16 %v33
  %v182 = vunpack.c.l.b16 %v34
  %v183 = vunpack.c.l.b16 %v35
  %v184 = vunpack.c.l.b16 %v36
  %v185 = vunpack.c.l.b16 %v37
  %v186 = vunpack.c.l.b16 %v38
  %v187 = vunpack.c.l.b16 %v39
  %v188 = vunpack.c.l.b16 %v40
  %v189 = vunpack.c.l.b16 %v41
  %v190 = vunpack.c.l.b16 %v42
  %v191 = vunpack.c.l.b16 %v43
  %v192 = vunpack.c.l.b16 %v44
  %v193 = vunpack.c.l.b16 %v45
  %v194 = vunpack.c.l.b16 %v46
  %v195 = vunpack.c.l.b16 %v47
  %v196 = vunpack.c.l.b16 %v48
  %v197 = vunpack.c.l.b16 %v49
  %v198 = vunpack.c.l.b16 %v50
  %v199 = vunpack.c.l.b16 %v51
  %v200 = vunpack.c.l.b16 %v52
  %v201 = vunpack.c.l.b16 %v53
  %v202 = vunpack.c.l.b16 %v54
  %v203 = vunpack.c.l.b16 %v55
  %v204 = vunpack.c.l.b16 %v56
  %v205 = vunpack.c.l.b16 %v57
  %v206 = vunpack.c.l.b16 %v58
  %v207 = vunpack.c.l.b16 %v59
  %v208 = vunpack.c.l.b16 %v60
  %v209 = vunpack.c.l.b16 %v61
  %v210 = vunpack.c.l.b16 %v62
  %v211 = vunpack.c.l.b16 %v63
  %v212 = vunpack.c.l.b16 %v64
  %v213 = vunpack.c.l.b16 %v65
  %v214 = vunpack.c.l.b16 %v66
  %v215 = vunpack.c.l.b16 %v67
  %v216 = vunpack.c.l.b16 %v68
  %v217 = vunpack.c.l.b16 %v69
  %v218 = vunpack.c.l.b16 %v70
  %v219 = vunpack.c.l.b16 %v71
  %v220 = vunpack.c.l.b16 %v72
  %v221 = vunpack.c.l.b16 %v73
  %v222 = vunpack.c.l.b16 %v74
  %v223 = vunpack.c.l.b16 %v75
  %v224 = vunpack.c.l.b16 %v76
  %v225 = vunpack.c.l.b16 %v77
  %v226 = vpack.c.b16 %v163, %v162
  %v227 = vpack.c.b16 %v165, %v164
  %v228 = vpack.c.b16 %v167, %v166
  %v229 = vpack.c.b16 %v169, %v168
  %v230 = vpack.c.b16 %v171, %v170
  %v231 = vpack.c.b16 %v173, %v172
  %v232 = vpack.c.b16 %v175, %v174
  %v233 = vpack.c.b16 %v177, %v176
  %v234 = vpack.c.b16 %v179, %v178
  %v235 = vpack.c.b16 %v181, %v180
  %v236 = vpack.c.b16 %v183, %v182
  %v237 = vpack.c.b16 %v185, %v184
  %v238 = vpack.c.b16 %v187, %v186
  %v239 = vpack.c.b16 %v189, %v188
  %v240 = vpack.c.b16 %v191, %v190
  %v241 = vpack.c.b16 %v193, %v192
  %v242 = vpack.c.b16 %v195, %v194
  %v243 = vpack.c.b16 %v197, %v196
  %v244 = vpack.c.b16 %v199, %v198
  %v245 = vpack.c.b16 %v201, %v200
  %v246 = vpack.c.b16 %v203, %v202
  %v247 = vpack.c.b16 %v205, %v204
  %v248 = vpack.c.b16 %v207, %v206
  %v249 = vpack.c.b16 %v209, %v208
  %v250 = vpack.c.b16 %v211, %v210
  %v251 = vpack.c.b16 %v213, %v212
  %v252 = vpack.c.b16 %v215, %v214
  %v253 = vpack.c.b16 %v217, %v216
  %v254 = vpack.c.b16 %v219, %v218
  %v255 = vpack.c.b16 %v221, %v220
  %v256 = vpack.c.b16 %v223, %v222
  %v257 = vpack.c.b16 %v225, %v224
  %v306 = vunpack.c.l.b16 %v78
  %v307 = vunpack.c.l.b16 %v79
  %v308 = vunpack.c.l.b16 %v80
  %v309 = vunpack.c.l.b16 %v81
  %v310 = vunpack.c.l.b16 %v82
  %v311 = vunpack.c.l.b16 %v83
  %v312 = vunpack.c.l.b16 %v84
  %v313 = vunpack.c.l.b16 %v85
  %v314 = vunpack.c.l.b16 %v86
  %v315 = vunpack.c.l.b16 %v87
  %v316 = vunpack.c.l.b16 %v88
  %v317 = vunpack.c.l.b16 %v89
  %v318 = vunpack.c.l.b16 %v90
  %v319 = vunpack.c.l.b16 %v91
  %v320 = vunpack.c.l.b16 %v92
  %v321 = vunpack.c.l.b16 %v93
  %v322 = vpack.c.b16 %v307, %v306
  %v323 = vpack.c.b16 %v309, %v308
  %v324 = vpack.c.b16 %v311, %v310
  %v325 = vpack.c.b16 %v313, %v312
  %v326 = vpack.c.b16 %v315, %v314
  %v327 = vpack.c.b16 %v317, %v316
  %v328 = vpack.c.b16 %v319, %v318
  %v329 = vpack.c.b16 %v321, %v320
  %338 = vmatpush.bf16.msra.mxu0 %v329
  %339 = vmatpush.bf16.msra.mxu0 %v328
  %340 = vmatpush.bf16.msra.mxu0 %v327
  %341 = vmatpush.bf16.msra.mxu0 %v326
  %342 = vmatpush.bf16.msra.mxu0 %v325
  %343 = vmatpush.bf16.msra.mxu0 %v324
  %344 = vmatpush.bf16.msra.mxu0 %v323
  %345 = vmatpush.bf16.msra.mxu0 %v322
  %346 = vmatmul.bf16.gmra.mxu0 %v226
  %v347 = vpop.f32.mrf.mxu0
  %v348 = vadd.f32 %v96, %v347
  %v349 = vpop.f32.mrf.mxu0
  %v350 = vadd.f32 %v96, %v349
  %351 = vmatmul.bf16.gmra.mxu0 %v227
  %v352 = vpop.f32.mrf.mxu0
  %v353 = vadd.f32 %v96, %v352
  %v354 = vpop.f32.mrf.mxu0
  %v355 = vadd.f32 %v96, %v354
  %356 = vmatmul.bf16.gmra.mxu0 %v228
  %v357 = vpop.f32.mrf.mxu0
  %v358 = vadd.f32 %v96, %v357
  %v359 = vpop.f32.mrf.mxu0
  %v360 = vadd.f32 %v96, %v359
  %361 = vmatmul.bf16.gmra.mxu0 %v229
  %v362 = vpop.f32.mrf.mxu0
  %v363 = vadd.f32 %v96, %v362
  %v364 = vpop.f32.mrf.mxu0
  %v365 = vadd.f32 %v96, %v364
  %366 = vmatmul.bf16.gmra.mxu0 %v230
  %v367 = vpop.f32.mrf.mxu0
  %v368 = vadd.f32 %v96, %v367
  %v369 = vpop.f32.mrf.mxu0
  %v370 = vadd.f32 %v96, %v369
  %371 = vmatmul.bf16.gmra.mxu0 %v231
  %v372 = vpop.f32.mrf.mxu0
  %v373 = vadd.f32 %v96, %v372
  %v374 = vpop.f32.mrf.mxu0
  %v375 = vadd.f32 %v96, %v374
  %376 = vmatmul.bf16.gmra.mxu0 %v232
  %v377 = vpop.f32.mrf.mxu0
  %v378 = vadd.f32 %v96, %v377
  %v379 = vpop.f32.mrf.mxu0
  %v380 = vadd.f32 %v96, %v379
  %381 = vmatmul.bf16.gmra.mxu0 %v233
  %v382 = vpop.f32.mrf.mxu0
  %v383 = vadd.f32 %v96, %v382
  %v384 = vpop.f32.mrf.mxu0
  %v385 = vadd.f32 %v96, %v384
  %386 = vmatmul.bf16.gmra.mxu0 %v234
  %v387 = vpop.f32.mrf.mxu0
  %v388 = vadd.f32 %v96, %v387
  %v389 = vpop.f32.mrf.mxu0
  %v390 = vadd.f32 %v96, %v389
  %391 = vmatmul.bf16.gmra.mxu0 %v235
  %v392 = vpop.f32.mrf.mxu0
  %v393 = vadd.f32 %v96, %v392
  %v394 = vpop.f32.mrf.mxu0
  %v395 = vadd.f32 %v96, %v394
  %396 = vmatmul.bf16.gmra.mxu0 %v236
  %v397 = vpop.f32.mrf.mxu0
  %v398 = vadd.f32 %v96, %v397
  %v399 = vpop.f32.mrf.mxu0
  %v400 = vadd.f32 %v96, %v399
  %401 = vmatmul.bf16.gmra.mxu0 %v237
  %v402 = vpop.f32.mrf.mxu0
  %v403 = vadd.f32 %v96, %v402
  %v404 = vpop.f32.mrf.mxu0
  %v405 = vadd.f32 %v96, %v404
  %406 = vmatmul.bf16.gmra.mxu0 %v238
  %v407 = vpop.f32.mrf.mxu0
  %v408 = vadd.f32 %v96, %v407
  %v409 = vpop.f32.mrf.mxu0
  %v410 = vadd.f32 %v96, %v409
  %411 = vmatmul.bf16.gmra.mxu0 %v239
  %v412 = vpop.f32.mrf.mxu0
  %v413 = vadd.f32 %v96, %v412
  %v414 = vpop.f32.mrf.mxu0
  %v415 = vadd.f32 %v96, %v414
  %416 = vmatmul.bf16.gmra.mxu0 %v240
  %v417 = vpop.f32.mrf.mxu0
  %v418 = vadd.f32 %v96, %v417
  %v419 = vpop.f32.mrf.mxu0
  %v420 = vadd.f32 %v96, %v419
  %421 = vmatmul.bf16.gmra.mxu0 %v241
  %v422 = vpop.f32.mrf.mxu0
  %v423 = vadd.f32 %v96, %v422
  %v424 = vpop.f32.mrf.mxu0
  %v425 = vadd.f32 %v96, %v424
  %426 = vmatmul.bf16.gmra.mxu0 %v242
  %v427 = vpop.f32.mrf.mxu0
  %v428 = vadd.f32 %v96, %v427
  %v429 = vpop.f32.mrf.mxu0
  %v430 = vadd.f32 %v96, %v429
  %431 = vmatmul.bf16.gmra.mxu0 %v243
  %v432 = vpop.f32.mrf.mxu0
  %v433 = vadd.f32 %v96, %v432
  %v434 = vpop.f32.mrf.mxu0
  %v435 = vadd.f32 %v96, %v434
  %436 = vmatmul.bf16.gmra.mxu0 %v244
  %v437 = vpop.f32.mrf.mxu0
  %v438 = vadd.f32 %v96, %v437
  %v439 = vpop.f32.mrf.mxu0
  %v440 = vadd.f32 %v96, %v439
  %441 = vmatmul.bf16.gmra.mxu0 %v245
  %v442 = vpop.f32.mrf.mxu0
  %v443 = vadd.f32 %v96, %v442
  %v444 = vpop.f32.mrf.mxu0
  %v445 = vadd.f32 %v96, %v444
  %446 = vmatmul.bf16.gmra.mxu0 %v246
  %v447 = vpop.f32.mrf.mxu0
  %v448 = vadd.f32 %v96, %v447
  %v449 = vpop.f32.mrf.mxu0
  %v450 = vadd.f32 %v96, %v449
  %451 = vmatmul.bf16.gmra.mxu0 %v247
  %v452 = vpop.f32.mrf.mxu0
  %v453 = vadd.f32 %v96, %v452
  %v454 = vpop.f32.mrf.mxu0
  %v455 = vadd.f32 %v96, %v454
  %456 = vmatmul.bf16.gmra.mxu0 %v248
  %v457 = vpop.f32.mrf.mxu0
  %v458 = vadd.f32 %v96, %v457
  %v459 = vpop.f32.mrf.mxu0
  %v460 = vadd.f32 %v96, %v459
  %461 = vmatmul.bf16.gmra.mxu0 %v249
  %v462 = vpop.f32.mrf.mxu0
  %v463 = vadd.f32 %v96, %v462
  %v464 = vpop.f32.mrf.mxu0
  %v465 = vadd.f32 %v96, %v464
  %466 = vmatmul.bf16.gmra.mxu0 %v250
  %v467 = vpop.f32.mrf.mxu0
  %v468 = vadd.f32 %v96, %v467
  %v469 = vpop.f32.mrf.mxu0
  %v470 = vadd.f32 %v96, %v469
  %471 = vmatmul.bf16.gmra.mxu0 %v251
  %v472 = vpop.f32.mrf.mxu0
  %v473 = vadd.f32 %v96, %v472
  %v474 = vpop.f32.mrf.mxu0
  %v475 = vadd.f32 %v96, %v474
  %476 = vmatmul.bf16.gmra.mxu0 %v252
  %v477 = vpop.f32.mrf.mxu0
  %v478 = vadd.f32 %v96, %v477
  %v479 = vpop.f32.mrf.mxu0
  %v480 = vadd.f32 %v96, %v479
  %481 = vmatmul.bf16.gmra.mxu0 %v253
  %v482 = vpop.f32.mrf.mxu0
  %v483 = vadd.f32 %v96, %v482
  %v484 = vpop.f32.mrf.mxu0
  %v485 = vadd.f32 %v96, %v484
  %486 = vmatmul.bf16.gmra.mxu0 %v254
  %v487 = vpop.f32.mrf.mxu0
  %v488 = vadd.f32 %v96, %v487
  %v489 = vpop.f32.mrf.mxu0
  %v490 = vadd.f32 %v96, %v489
  %491 = vmatmul.bf16.gmra.mxu0 %v255
  %v492 = vpop.f32.mrf.mxu0
  %v493 = vadd.f32 %v96, %v492
  %v494 = vpop.f32.mrf.mxu0
  %v495 = vadd.f32 %v96, %v494
  %496 = vmatmul.bf16.gmra.mxu0 %v256
  %v497 = vpop.f32.mrf.mxu0
  %v498 = vadd.f32 %v96, %v497
  %v499 = vpop.f32.mrf.mxu0
  %v500 = vadd.f32 %v96, %v499
  %501 = vmatmul.bf16.gmra.mxu0 %v257
  %v502 = vpop.f32.mrf.mxu0
  %v503 = vadd.f32 %v96, %v502
  %v504 = vpop.f32.mrf.mxu0
  %v505 = vadd.f32 %v96, %v504
  %506 = vdwg.mxu0
  %v507 = vmax.f32 %v348, 0.0
  %v508 = vmax.f32 %v350, 0.0
  %v509 = vmax.f32 %v353, 0.0
  %v510 = vmax.f32 %v355, 0.0
  %v511 = vmax.f32 %v358, 0.0
  %v512 = vmax.f32 %v360, 0.0
  %v513 = vmax.f32 %v363, 0.0
  %v514 = vmax.f32 %v365, 0.0
  %v515 = vmax.f32 %v368, 0.0
  %v516 = vmax.f32 %v370, 0.0
  %v517 = vmax.f32 %v373, 0.0
  %v518 = vmax.f32 %v375, 0.0
  %v519 = vmax.f32 %v378, 0.0
  %v520 = vmax.f32 %v380, 0.0
  %v521 = vmax.f32 %v383, 0.0
  %v522 = vmax.f32 %v385, 0.0
  %v523 = vmax.f32 %v388, 0.0
  %v524 = vmax.f32 %v390, 0.0
  %v525 = vmax.f32 %v393, 0.0
  %v526 = vmax.f32 %v395, 0.0
  %v527 = vmax.f32 %v398, 0.0
  %v528 = vmax.f32 %v400, 0.0
  %v529 = vmax.f32 %v403, 0.0
  %v530 = vmax.f32 %v405, 0.0
  %v531 = vmax.f32 %v408, 0.0
  %v532 = vmax.f32 %v410, 0.0
  %v533 = vmax.f32 %v413, 0.0
  %v534 = vmax.f32 %v415, 0.0
  %v535 = vmax.f32 %v418, 0.0
  %v536 = vmax.f32 %v420, 0.0
  %v537 = vmax.f32 %v423, 0.0
  %v538 = vmax.f32 %v425, 0.0
  %v539 = vmax.f32 %v428, 0.0
  %v540 = vmax.f32 %v430, 0.0
  %v541 = vmax.f32 %v433, 0.0
  %v542 = vmax.f32 %v435, 0.0
  %v543 = vmax.f32 %v438, 0.0
  %v544 = vmax.f32 %v440, 0.0
  %v545 = vmax.f32 %v443, 0.0
  %v546 = vmax.f32 %v445, 0.0
  %v547 = vmax.f32 %v448, 0.0
  %v548 = vmax.f32 %v450, 0.0
  %v549 = vmax.f32 %v453, 0.0
  %v550 = vmax.f32 %v455, 0.0
  %v551 = vmax.f32 %v458, 0.0
  %v552 = vmax.f32 %v460, 0.0
  %v553 = vmax.f32 %v463, 0.0
  %v554 = vmax.f32 %v465, 0.0
  %v555 = vmax.f32 %v468, 0.0
  %v556 = vmax.f32 %v470, 0.0
  %v557 = vmax.f32 %v473, 0.0
  %v558 = vmax.f32 %v475, 0.0
  %v559 = vmax.f32 %v478, 0.0
  %v560 = vmax.f32 %v480, 0.0
  %v561 = vmax.f32 %v483, 0.0
  %v562 = vmax.f32 %v485, 0.0
  %v563 = vmax.f32 %v488, 0.0
  %v564 = vmax.f32 %v490, 0.0
  %v565 = vmax.f32 %v493, 0.0
  %v566 = vmax.f32 %v495, 0.0
  %v567 = vmax.f32 %v498, 0.0
  %v568 = vmax.f32 %v500, 0.0
  %v569 = vmax.f32 %v503, 0.0
  %v570 = vmax.f32 %v505, 0.0
  %v571 = vpack.c.bf16 %v507, %v507
  %v572 = vpack.c.bf16 %v508, %v508
  %v573 = vpack.c.bf16 %v509, %v509
  %v574 = vpack.c.bf16 %v510, %v510
  %v575 = vpack.c.bf16 %v511, %v511
  %v576 = vpack.c.bf16 %v512, %v512
  %v577 = vpack.c.bf16 %v513, %v513
  %v578 = vpack.c.bf16 %v514, %v514
  %v579 = vpack.c.bf16 %v515, %v515
  %v580 = vpack.c.bf16 %v516, %v516
  %v581 = vpack.c.bf16 %v517, %v517
  %v582 = vpack.c.bf16 %v518, %v518
  %v583 = vpack.c.bf16 %v519, %v519
  %v584 = vpack.c.bf16 %v520, %v520
  %v585 = vpack.c.bf16 %v521, %v521
  %v586 = vpack.c.bf16 %v522, %v522
  %v587 = vpack.c.bf16 %v523, %v523
  %v588 = vpack.c.bf16 %v524, %v524
  %v589 = vpack.c.bf16 %v525, %v525
  %v590 = vpack.c.bf16 %v526, %v526
  %v591 = vpack.c.bf16 %v527, %v527
  %v592 = vpack.c.bf16 %v528, %v528
  %v593 = vpack.c.bf16 %v529, %v529
  %v594 = vpack.c.bf16 %v530, %v530
  %v595 = vpack.c.bf16 %v531, %v531
  %v596 = vpack.c.bf16 %v532, %v532
  %v597 = vpack.c.bf16 %v533, %v533
  %v598 = vpack.c.bf16 %v534, %v534
  %v599 = vpack.c.bf16 %v535, %v535
  %v600 = vpack.c.bf16 %v536, %v536
  %v601 = vpack.c.bf16 %v537, %v537
  %v602 = vpack.c.bf16 %v538, %v538
  %v603 = vpack.c.bf16 %v539, %v539
  %v604 = vpack.c.bf16 %v540, %v540
  %v605 = vpack.c.bf16 %v541, %v541
  %v606 = vpack.c.bf16 %v542, %v542
  %v607 = vpack.c.bf16 %v543, %v543
  %v608 = vpack.c.bf16 %v544, %v544
  %v609 = vpack.c.bf16 %v545, %v545
  %v610 = vpack.c.bf16 %v546, %v546
  %v611 = vpack.c.bf16 %v547, %v547
  %v612 = vpack.c.bf16 %v548, %v548
  %v613 = vpack.c.bf16 %v549, %v549
  %v614 = vpack.c.bf16 %v550, %v550
  %v615 = vpack.c.bf16 %v551, %v551
  %v616 = vpack.c.bf16 %v552, %v552
  %v617 = vpack.c.bf16 %v553, %v553
  %v618 = vpack.c.bf16 %v554, %v554
  %v619 = vpack.c.bf16 %v555, %v555
  %v620 = vpack.c.bf16 %v556, %v556
  %v621 = vpack.c.bf16 %v557, %v557
  %v622 = vpack.c.bf16 %v558, %v558
  %v623 = vpack.c.bf16 %v559, %v559
  %v624 = vpack.c.bf16 %v560, %v560
  %v625 = vpack.c.bf16 %v561, %v561
  %v626 = vpack.c.bf16 %v562, %v562
  %v627 = vpack.c.bf16 %v563, %v563
  %v628 = vpack.c.bf16 %v564, %v564
  %v629 = vpack.c.bf16 %v565, %v565
  %v630 = vpack.c.bf16 %v566, %v566
  %v631 = vpack.c.bf16 %v567, %v567
  %v632 = vpack.c.bf16 %v568, %v568
  %v633 = vpack.c.bf16 %v569, %v569
  %v634 = vpack.c.bf16 %v570, %v570
  %635 = vst [vmem:[%s3] sm:$0xf] %v571
  %636 = vst [vmem:[%s3 + $0x4] sm:$0xf] %v572
  %637 = vst [vmem:[%s3 + $0x8] sm:$0xf] %v573
  %638 = vst [vmem:[%s3 + $0xc] sm:$0xf] %v574
  %639 = vst [vmem:[%s3 + $0x10] sm:$0xf] %v575
  %640 = vst [vmem:[%s3 + $0x14] sm:$0xf] %v576
  %641 = vst [vmem:[%s3 + $0x18] sm:$0xf] %v577
  %642 = vst [vmem:[%s3 + $0x1c] sm:$0xf] %v578
  %643 = vst [vmem:[%s3 + $0x20] sm:$0xf] %v579
  %644 = vst [vmem:[%s3 + $0x24] sm:$0xf] %v580
  %645 = vst [vmem:[%s3 + $0x28] sm:$0xf] %v581
  %646 = vst [vmem:[%s3 + $0x2c] sm:$0xf] %v582
  %647 = vst [vmem:[%s3 + $0x30] sm:$0xf] %v583
  %648 = vst [vmem:[%s3 + $0x34] sm:$0xf] %v584
  %649 = vst [vmem:[%s3 + $0x38] sm:$0xf] %v585
  %650 = vst [vmem:[%s3 + $0x3c] sm:$0xf] %v586
  %651 = vst [vmem:[%s3 + $0x40] sm:$0xf] %v587
  %652 = vst [vmem:[%s3 + $0x44] sm:$0xf] %v588
  %653 = vst [vmem:[%s3 + $0x48] sm:$0xf] %v589
  %654 = vst [vmem:[%s3 + $0x4c] sm:$0xf] %v590
  %655 = vst [vmem:[%s3 + $0x50] sm:$0xf] %v591
  %656 = vst [vmem:[%s3 + $0x54] sm:$0xf] %v592
  %657 = vst [vmem:[%s3 + $0x58] sm:$0xf] %v593
  %658 = vst [vmem:[%s3 + $0x5c] sm:$0xf] %v594
  %659 = vst [vmem:[%s3 + $0x60] sm:$0xf] %v595
  %660 = vst [vmem:[%s3 + $0x64] sm:$0xf] %v596
  %661 = vst [vmem:[%s3 + $0x68] sm:$0xf] %v597
  %662 = vst [vmem:[%s3 + $0x6c] sm:$0xf] %v598
  %663 = vst [vmem:[%s3 + $0x70] sm:$0xf] %v599
  %664 = vst [vmem:[%s3 + $0x74] sm:$0xf] %v600
  %665 = vst [vmem:[%s3 + $0x78] sm:$0xf] %v601
  %666 = vst [vmem:[%s3 + $0x7c] sm:$0xf] %v602
  %667 = vst [vmem:[%s3 + $0x80] sm:$0xf] %v603
  %668 = vst [vmem:[%s3 + $0x84] sm:$0xf] %v604
  %669 = vst [vmem:[%s3 + $0x88] sm:$0xf] %v605
  %670 = vst [vmem:[%s3 + $0x8c] sm:$0xf] %v606
  %671 = vst [vmem:[%s3 + $0x90] sm:$0xf] %v607
  %672 = vst [vmem:[%s3 + $0x94] sm:$0xf] %v608
  %673 = vst [vmem:[%s3 + $0x98] sm:$0xf] %v609
  %674 = vst [vmem:[%s3 + $0x9c] sm:$0xf] %v610
  %675 = vst [vmem:[%s3 + $0xa0] sm:$0xf] %v611
  %676 = vst [vmem:[%s3 + $0xa4] sm:$0xf] %v612
  %677 = vst [vmem:[%s3 + $0xa8] sm:$0xf] %v613
  %678 = vst [vmem:[%s3 + $0xac] sm:$0xf] %v614
  %679 = vst [vmem:[%s3 + $0xb0] sm:$0xf] %v615
  %680 = vst [vmem:[%s3 + $0xb4] sm:$0xf] %v616
  %681 = vst [vmem:[%s3 + $0xb8] sm:$0xf] %v617
  %682 = vst [vmem:[%s3 + $0xbc] sm:$0xf] %v618
  %683 = vst [vmem:[%s3 + $0xc0] sm:$0xf] %v619
  %684 = vst [vmem:[%s3 + $0xc4] sm:$0xf] %v620
  %685 = vst [vmem:[%s3 + $0xc8] sm:$0xf] %v621
  %686 = vst [vmem:[%s3 + $0xcc] sm:$0xf] %v622
  %687 = vst [vmem:[%s3 + $0xd0] sm:$0xf] %v623
  %688 = vst [vmem:[%s3 + $0xd4] sm:$0xf] %v624
  %689 = vst [vmem:[%s3 + $0xd8] sm:$0xf] %v625
  %690 = vst [vmem:[%s3 + $0xdc] sm:$0xf] %v626
  %691 = vst [vmem:[%s3 + $0xe0] sm:$0xf] %v627
  %692 = vst [vmem:[%s3 + $0xe4] sm:$0xf] %v628
  %693 = vst [vmem:[%s3 + $0xe8] sm:$0xf] %v629
  %694 = vst [vmem:[%s3 + $0xec] sm:$0xf] %v630
  %695 = vst [vmem:[%s3 + $0xf0] sm:$0xf] %v631
  %696 = vst [vmem:[%s3 + $0xf4] sm:$0xf] %v632
  %697 = vst [vmem:[%s3 + $0xf8] sm:$0xf] %v633
  %698 = vst [vmem:[%s3 + $0xfc] sm:$0xf] %v634
  // Predicated region
  $region14: #{t_mv2_unet_forward.8} parent=0 // pred_check
    _
  $region15: #{t_mv2_unet_forward.8} parent=0 // pred_check_branch
    %700 = sbr.rel (0) target = $region17
  $region16: #{t_mv2_unet_forward.8} parent=0 // pred_region
    _
  $region17: #{t_mv2_unet_forward.8} parent=0 // pred_fallthru
    _
  // Predicated region
  $region18: #{t_mv2_unet_forward.8} parent=0 // pred_check
    _
  $region19: #{t_mv2_unet_forward.8} parent=0 // pred_check_branch
    %702 = sbr.rel (0) target = $region21
  $region20: #{t_mv2_unet_forward.8} parent=0 // pred_region
    _
  $region21: #{t_mv2_unet_forward.8} parent=0 // pred_fallthru
    _

// kernel: t_mv2_unet_forward.9
$region0: #{t_mv2_unet_forward.9}
  #allocation0 [shape = 'u32[]', space=smem, size = 0x4, offset = 0x4, fixed_abs, tag = 'smem constant byte address 0x4 - core index']
  #allocation1 [shape = 'u32[72,128]{1,0:T(1,128)}', space=vmem, size = 0x9000, scoped, tag = 'internal scratch']
  %s0 = inlined_call_operand.vmem [shape: bf16[128,256], index: 0, kind: input, shape index: {}]
  %s1 = inlined_call_operand.vmem [shape: bf16[256,128], index: 1, kind: input, shape index: {}]
  %s2 = inlined_call_operand.vmem [shape: f32[1,128], index: 2, kind: input, shape index: {}]
  %s3 = inlined_call_operand.vmem [shape: bf16[128,128], index: 3, kind: output, shape index: {}]
  %s4 = sld [smem:[#allocation0]]
  $region22: #{t_mv2_unet_forward.9} parent=0
    _
  %s6 = ssub.s32 1, %s4
  %s7 = scalar_select 0, %s6, %s4
  // Predicated region
  $region2: #{t_mv2_unet_forward.9} parent=0 // pred_check
    _
  $region3: #{t_mv2_unet_forward.9} parent=0 // pred_check_branch
    %9 = sbr.rel (0) target = $region5
  $region4: #{t_mv2_unet_forward.9} parent=0 // pred_region
    _
  $region5: #{t_mv2_unet_forward.9} parent=0 // pred_fallthru
    _
  // Predicated region
  $region6: #{t_mv2_unet_forward.9} parent=0 // pred_check
    _
  $region7: #{t_mv2_unet_forward.9} parent=0 // pred_check_branch
    %11 = sbr.rel (0) target = $region9
  $region8: #{t_mv2_unet_forward.9} parent=0 // pred_region
    _
  $region9: #{t_mv2_unet_forward.9} parent=0 // pred_fallthru
    _
  // Predicated region
  $region10: #{t_mv2_unet_forward.9} parent=0 // pred_check
    _
  $region11: #{t_mv2_unet_forward.9} parent=0 // pred_check_branch
    %13 = sbr.rel (0) target = $region13
  $region12: #{t_mv2_unet_forward.9} parent=0 // pred_region
    _
  $region13: #{t_mv2_unet_forward.9} parent=0 // pred_fallthru
    _
  %v14 = vld [vmem:[%s0] sm:$0xff]
  %v15 = vld [vmem:[%s0 + $0x8] sm:$0xff]
  %v16 = vld [vmem:[%s0 + $0x10] sm:$0xff]
  %v17 = vld [vmem:[%s0 + $0x18] sm:$0xff]
  %v18 = vld [vmem:[%s0 + $0x20] sm:$0xff]
  %v19 = vld [vmem:[%s0 + $0x28] sm:$0xff]
  %v20 = vld [vmem:[%s0 + $0x30] sm:$0xff]
  %v21 = vld [vmem:[%s0 + $0x38] sm:$0xff]
  %v22 = vld [vmem:[%s0 + $0x40] sm:$0xff]
  %v23 = vld [vmem:[%s0 + $0x48] sm:$0xff]
  %v24 = vld [vmem:[%s0 + $0x50] sm:$0xff]
  %v25 = vld [vmem:[%s0 + $0x58] sm:$0xff]
  %v26 = vld [vmem:[%s0 + $0x60] sm:$0xff]
  %v27 = vld [vmem:[%s0 + $0x68] sm:$0xff]
  %v28 = vld [vmem:[%s0 + $0x70] sm:$0xff]
  %v29 = vld [vmem:[%s0 + $0x78] sm:$0xff]
  %v30 = vld [vmem:[%s1] sm:$0xf]
  %v31 = vld [vmem:[%s1 + $0x4] sm:$0xf]
  %v32 = vld [vmem:[%s1 + $0x8] sm:$0xf]
  %v33 = vld [vmem:[%s1 + $0xc] sm:$0xf]
  %v34 = vld [vmem:[%s1 + $0x10] sm:$0xf]
  %v35 = vld [vmem:[%s1 + $0x14] sm:$0xf]
  %v36 = vld [vmem:[%s1 + $0x18] sm:$0xf]
  %v37 = vld [vmem:[%s1 + $0x1c] sm:$0xf]
  %v38 = vld [vmem:[%s1 + $0x20] sm:$0xf]
  %v39 = vld [vmem:[%s1 + $0x24] sm:$0xf]
  %v40 = vld [vmem:[%s1 + $0x28] sm:$0xf]
  %v41 = vld [vmem:[%s1 + $0x2c] sm:$0xf]
  %v42 = vld [vmem:[%s1 + $0x30] sm:$0xf]
  %v43 = vld [vmem:[%s1 + $0x34] sm:$0xf]
  %v44 = vld [vmem:[%s1 + $0x38] sm:$0xf]
  %v45 = vld [vmem:[%s1 + $0x3c] sm:$0xf]
  %v46 = vld [vmem:[%s1 + $0x40] sm:$0xf]
  %v47 = vld [vmem:[%s1 + $0x44] sm:$0xf]
  %v48 = vld [vmem:[%s1 + $0x48] sm:$0xf]
  %v49 = vld [vmem:[%s1 + $0x4c] sm:$0xf]
  %v50 = vld [vmem:[%s1 + $0x50] sm:$0xf]
  %v51 = vld [vmem:[%s1 + $0x54] sm:$0xf]
  %v52 = vld [vmem:[%s1 + $0x58] sm:$0xf]
  %v53 = vld [vmem:[%s1 + $0x5c] sm:$0xf]
  %v54 = vld [vmem:[%s1 + $0x60] sm:$0xf]
  %v55 = vld [vmem:[%s1 + $0x64] sm:$0xf]
  %v56 = vld [vmem:[%s1 + $0x68] sm:$0xf]
  %v57 = vld [vmem:[%s1 + $0x6c] sm:$0xf]
  %v58 = vld [vmem:[%s1 + $0x70] sm:$0xf]
  %v59 = vld [vmem:[%s1 + $0x74] sm:$0xf]
  %v60 = vld [vmem:[%s1 + $0x78] sm:$0xf]
  %v61 = vld [vmem:[%s1 + $0x7c] sm:$0xf]
  %v62 = vld [vmem:[%s2] sm:$0x1]
  %v64 = vperm.slane %v62, 0
  %v82 = vunpack.c.l.b16 %v14
  %v83 = vunpack.c.h.b16 %v14
  %v84 = vunpack.c.l.b16 %v15
  %v85 = vunpack.c.h.b16 %v15
  %v86 = vunpack.c.l.b16 %v16
  %v87 = vunpack.c.h.b16 %v16
  %v88 = vunpack.c.l.b16 %v17
  %v89 = vunpack.c.h.b16 %v17
  %v90 = vunpack.c.l.b16 %v18
  %v91 = vunpack.c.h.b16 %v18
  %v92 = vunpack.c.l.b16 %v19
  %v93 = vunpack.c.h.b16 %v19
  %v94 = vunpack.c.l.b16 %v20
  %v95 = vunpack.c.h.b16 %v20
  %v96 = vunpack.c.l.b16 %v21
  %v97 = vunpack.c.h.b16 %v21
  %v98 = vunpack.c.l.b16 %v22
  %v99 = vunpack.c.h.b16 %v22
  %v100 = vunpack.c.l.b16 %v23
  %v101 = vunpack.c.h.b16 %v23
  %v102 = vunpack.c.l.b16 %v24
  %v103 = vunpack.c.h.b16 %v24
  %v104 = vunpack.c.l.b16 %v25
  %v105 = vunpack.c.h.b16 %v25
  %v106 = vunpack.c.l.b16 %v26
  %v107 = vunpack.c.h.b16 %v26
  %v108 = vunpack.c.l.b16 %v27
  %v109 = vunpack.c.h.b16 %v27
  %v110 = vunpack.c.l.b16 %v28
  %v111 = vunpack.c.h.b16 %v28
  %v112 = vunpack.c.l.b16 %v29
  %v113 = vunpack.c.h.b16 %v29
  %v114 = vpack.c.b16 %v84, %v82
  %v115 = vpack.c.b16 %v85, %v83
  %v116 = vpack.c.b16 %v88, %v86
  %v117 = vpack.c.b16 %v89, %v87
  %v118 = vpack.c.b16 %v92, %v90
  %v119 = vpack.c.b16 %v93, %v91
  %v120 = vpack.c.b16 %v96, %v94
  %v121 = vpack.c.b16 %v97, %v95
  %v122 = vpack.c.b16 %v100, %v98
  %v123 = vpack.c.b16 %v101, %v99
  %v124 = vpack.c.b16 %v104, %v102
  %v125 = vpack.c.b16 %v105, %v103
  %v126 = vpack.c.b16 %v108, %v106
  %v127 = vpack.c.b16 %v109, %v107
  %v128 = vpack.c.b16 %v112, %v110
  %v129 = vpack.c.b16 %v113, %v111
  %v178 = vunpack.c.l.b16 %v30
  %v179 = vunpack.c.l.b16 %v31
  %v180 = vunpack.c.l.b16 %v32
  %v181 = vunpack.c.l.b16 %v33
  %v182 = vunpack.c.l.b16 %v34
  %v183 = vunpack.c.l.b16 %v35
  %v184 = vunpack.c.l.b16 %v36
  %v185 = vunpack.c.l.b16 %v37
  %v186 = vunpack.c.l.b16 %v38
  %v187 = vunpack.c.l.b16 %v39
  %v188 = vunpack.c.l.b16 %v40
  %v189 = vunpack.c.l.b16 %v41
  %v190 = vunpack.c.l.b16 %v42
  %v191 = vunpack.c.l.b16 %v43
  %v192 = vunpack.c.l.b16 %v44
  %v193 = vunpack.c.l.b16 %v45
  %v194 = vunpack.c.l.b16 %v46
  %v195 = vunpack.c.l.b16 %v47
  %v196 = vunpack.c.l.b16 %v48
  %v197 = vunpack.c.l.b16 %v49
  %v198 = vunpack.c.l.b16 %v50
  %v199 = vunpack.c.l.b16 %v51
  %v200 = vunpack.c.l.b16 %v52
  %v201 = vunpack.c.l.b16 %v53
  %v202 = vunpack.c.l.b16 %v54
  %v203 = vunpack.c.l.b16 %v55
  %v204 = vunpack.c.l.b16 %v56
  %v205 = vunpack.c.l.b16 %v57
  %v206 = vunpack.c.l.b16 %v58
  %v207 = vunpack.c.l.b16 %v59
  %v208 = vunpack.c.l.b16 %v60
  %v209 = vunpack.c.l.b16 %v61
  %v210 = vpack.c.b16 %v179, %v178
  %v211 = vpack.c.b16 %v181, %v180
  %v212 = vpack.c.b16 %v183, %v182
  %v213 = vpack.c.b16 %v185, %v184
  %v214 = vpack.c.b16 %v187, %v186
  %v215 = vpack.c.b16 %v189, %v188
  %v216 = vpack.c.b16 %v191, %v190
  %v217 = vpack.c.b16 %v193, %v192
  %v218 = vpack.c.b16 %v195, %v194
  %v219 = vpack.c.b16 %v197, %v196
  %v220 = vpack.c.b16 %v199, %v198
  %v221 = vpack.c.b16 %v201, %v200
  %v222 = vpack.c.b16 %v203, %v202
  %v223 = vpack.c.b16 %v205, %v204
  %v224 = vpack.c.b16 %v207, %v206
  %v225 = vpack.c.b16 %v209, %v208
  %242 = vmatpush.bf16.msra.mxu0 %v217
  %243 = vmatpush.bf16.msra.mxu0 %v216
  %244 = vmatpush.bf16.msra.mxu0 %v215
  %245 = vmatpush.bf16.msra.mxu0 %v214
  %246 = vmatpush.bf16.msra.mxu0 %v213
  %247 = vmatpush.bf16.msra.mxu0 %v212
  %248 = vmatpush.bf16.msra.mxu0 %v211
  %249 = vmatpush.bf16.msra.mxu0 %v210
  %250 = vmatmul.bf16.gmra.mxu0 %v114
  %v251 = vpop.f32.mrf.mxu0
  %v252 = vadd.f32 %v64, %v251
  %v253 = vpop.f32.mrf.mxu0
  %v254 = vadd.f32 %v64, %v253
  %255 = vmatmul.bf16.gmra.mxu0 %v116
  %v256 = vpop.f32.mrf.mxu0
  %v257 = vadd.f32 %v64, %v256
  %v258 = vpop.f32.mrf.mxu0
  %v259 = vadd.f32 %v64, %v258
  %260 = vmatmul.bf16.gmra.mxu0 %v118
  %v261 = vpop.f32.mrf.mxu0
  %v262 = vadd.f32 %v64, %v261
  %v263 = vpop.f32.mrf.mxu0
  %v264 = vadd.f32 %v64, %v263
  %265 = vmatmul.bf16.gmra.mxu0 %v120
  %v266 = vpop.f32.mrf.mxu0
  %v267 = vadd.f32 %v64, %v266
  %v268 = vpop.f32.mrf.mxu0
  %v269 = vadd.f32 %v64, %v268
  %270 = vmatmul.bf16.gmra.mxu0 %v122
  %v271 = vpop.f32.mrf.mxu0
  %v272 = vadd.f32 %v64, %v271
  %v273 = vpop.f32.mrf.mxu0
  %v274 = vadd.f32 %v64, %v273
  %275 = vmatmul.bf16.gmra.mxu0 %v124
  %v276 = vpop.f32.mrf.mxu0
  %v277 = vadd.f32 %v64, %v276
  %v278 = vpop.f32.mrf.mxu0
  %v279 = vadd.f32 %v64, %v278
  %280 = vmatmul.bf16.gmra.mxu0 %v126
  %v281 = vpop.f32.mrf.mxu0
  %v282 = vadd.f32 %v64, %v281
  %v283 = vpop.f32.mrf.mxu0
  %v284 = vadd.f32 %v64, %v283
  %285 = vmatmul.bf16.gmra.mxu0 %v128
  %v286 = vpop.f32.mrf.mxu0
  %v287 = vadd.f32 %v64, %v286
  %v288 = vpop.f32.mrf.mxu0
  %v289 = vadd.f32 %v64, %v288
  %290 = vdwg.mxu0
  %291 = vmatpush.bf16.msra.mxu0 %v225
  %292 = vmatpush.bf16.msra.mxu0 %v224
  %293 = vmatpush.bf16.msra.mxu0 %v223
  %294 = vmatpush.bf16.msra.mxu0 %v222
  %295 = vmatpush.bf16.msra.mxu0 %v221
  %296 = vmatpush.bf16.msra.mxu0 %v220
  %297 = vmatpush.bf16.msra.mxu0 %v219
  %298 = vmatpush.bf16.msra.mxu0 %v218
  %299 = vmatmul.bf16.gmra.mxu0 %v115
  %v300 = vpop.f32.mrf.mxu0
  %v301 = vadd.f32 %v252, %v300
  %v302 = vpop.f32.mrf.mxu0
  %v303 = vadd.f32 %v254, %v302
  %304 = vmatmul.bf16.gmra.mxu0 %v117
  %v305 = vpop.f32.mrf.mxu0
  %v306 = vadd.f32 %v257, %v305
  %v307 = vpop.f32.mrf.mxu0
  %v308 = vadd.f32 %v259, %v307
  %309 = vmatmul.bf16.gmra.mxu0 %v119
  %v310 = vpop.f32.mrf.mxu0
  %v311 = vadd.f32 %v262, %v310
  %v312 = vpop.f32.mrf.mxu0
  %v313 = vadd.f32 %v264, %v312
  %314 = vmatmul.bf16.gmra.mxu0 %v121
  %v315 = vpop.f32.mrf.mxu0
  %v316 = vadd.f32 %v267, %v315
  %v317 = vpop.f32.mrf.mxu0
  %v318 = vadd.f32 %v269, %v317
  %319 = vmatmul.bf16.gmra.mxu0 %v123
  %v320 = vpop.f32.mrf.mxu0
  %v321 = vadd.f32 %v272, %v320
  %v322 = vpop.f32.mrf.mxu0
  %v323 = vadd.f32 %v274, %v322
  %324 = vmatmul.bf16.gmra.mxu0 %v125
  %v325 = vpop.f32.mrf.mxu0
  %v326 = vadd.f32 %v277, %v325
  %v327 = vpop.f32.mrf.mxu0
  %v328 = vadd.f32 %v279, %v327
  %329 = vmatmul.bf16.gmra.mxu0 %v127
  %v330 = vpop.f32.mrf.mxu0
  %v331 = vadd.f32 %v282, %v330
  %v332 = vpop.f32.mrf.mxu0
  %v333 = vadd.f32 %v284, %v332
  %334 = vmatmul.bf16.gmra.mxu0 %v129
  %v335 = vpop.f32.mrf.mxu0
  %v336 = vadd.f32 %v287, %v335
  %v337 = vpop.f32.mrf.mxu0
  %v338 = vadd.f32 %v289, %v337
  %339 = vdwg.mxu0
  %v340 = vmax.f32 %v301, 0.0
  %v341 = vmax.f32 %v303, 0.0
  %v342 = vmax.f32 %v306, 0.0
  %v343 = vmax.f32 %v308, 0.0
  %v344 = vmax.f32 %v311, 0.0
  %v345 = vmax.f32 %v313, 0.0
  %v346 = vmax.f32 %v316, 0.0
  %v347 = vmax.f32 %v318, 0.0
  %v348 = vmax.f32 %v321, 0.0
  %v349 = vmax.f32 %v323, 0.0
  %v350 = vmax.f32 %v326, 0.0
  %v351 = vmax.f32 %v328, 0.0
  %v352 = vmax.f32 %v331, 0.0
  %v353 = vmax.f32 %v333, 0.0
  %v354 = vmax.f32 %v336, 0.0
  %v355 = vmax.f32 %v338, 0.0
  %v356 = vpack.c.bf16 %v340, %v340
  %v357 = vpack.c.bf16 %v341, %v341
  %v358 = vpack.c.bf16 %v342, %v342
  %v359 = vpack.c.bf16 %v343, %v343
  %v360 = vpack.c.bf16 %v344, %v344
  %v361 = vpack.c.bf16 %v345, %v345
  %v362 = vpack.c.bf16 %v346, %v346
  %v363 = vpack.c.bf16 %v347, %v347
  %v364 = vpack.c.bf16 %v348, %v348
  %v365 = vpack.c.bf16 %v349, %v349
  %v366 = vpack.c.bf16 %v350, %v350
  %v367 = vpack.c.bf16 %v351, %v351
  %v368 = vpack.c.bf16 %v352, %v352
  %v369 = vpack.c.bf16 %v353, %v353
  %v370 = vpack.c.bf16 %v354, %v354
  %v371 = vpack.c.bf16 %v355, %v355
  %372 = vst [vmem:[%s3] sm:$0xf] %v356
  %373 = vst [vmem:[%s3 + $0x4] sm:$0xf] %v357
  %374 = vst [vmem:[%s3 + $0x8] sm:$0xf] %v358
  %375 = vst [vmem:[%s3 + $0xc] sm:$0xf] %v359
  %376 = vst [vmem:[%s3 + $0x10] sm:$0xf] %v360
  %377 = vst [vmem:[%s3 + $0x14] sm:$0xf] %v361
  %378 = vst [vmem:[%s3 + $0x18] sm:$0xf] %v362
  %379 = vst [vmem:[%s3 + $0x1c] sm:$0xf] %v363
  %380 = vst [vmem:[%s3 + $0x20] sm:$0xf] %v364
  %381 = vst [vmem:[%s3 + $0x24] sm:$0xf] %v365
  %382 = vst [vmem:[%s3 + $0x28] sm:$0xf] %v366
  %383 = vst [vmem:[%s3 + $0x2c] sm:$0xf] %v367
  %384 = vst [vmem:[%s3 + $0x30] sm:$0xf] %v368
  %385 = vst [vmem:[%s3 + $0x34] sm:$0xf] %v369
  %386 = vst [vmem:[%s3 + $0x38] sm:$0xf] %v370
  %387 = vst [vmem:[%s3 + $0x3c] sm:$0xf] %v371
  // Predicated region
  $region14: #{t_mv2_unet_forward.9} parent=0 // pred_check
    _
  $region15: #{t_mv2_unet_forward.9} parent=0 // pred_check_branch
    %389 = sbr.rel (0) target = $region17
  $region16: #{t_mv2_unet_forward.9} parent=0 // pred_region
    _
  $region17: #{t_mv2_unet_forward.9} parent=0 // pred_fallthru
    _
  // Predicated region
  $region18: #{t_mv2_unet_forward.9} parent=0 // pred_check
    _
  $region19: #{t_mv2_unet_forward.9} parent=0 // pred_check_branch
    %391 = sbr.rel (0) target = $region21
  $region20: #{t_mv2_unet_forward.9} parent=0 // pred_region
    _
  $region21: #{t_mv2_unet_forward.9} parent=0 // pred_fallthru
    _

// kernel: t_mv2_unet_forward.10
$region0: #{t_mv2_unet_forward.10}
  #allocation0 [shape = 'u32[]', space=smem, size = 0x4, offset = 0x4, fixed_abs, tag = 'smem constant byte address 0x4 - core index']
  #allocation1 [shape = 'u32[72,128]{1,0:T(1,128)}', space=vmem, size = 0x9000, scoped, tag = 'internal scratch']
  %s0 = inlined_call_operand.vmem [shape: bf16[128,384], index: 0, kind: input, shape index: {}]
  %s1 = inlined_call_operand.vmem [shape: bf16[384,128], index: 1, kind: input, shape index: {}]
  %s2 = inlined_call_operand.vmem [shape: f32[1,128], index: 2, kind: input, shape index: {}]
  %s3 = inlined_call_operand.vmem [shape: bf16[128,128], index: 3, kind: input, shape index: {}]
  %s4 = inlined_call_operand.vmem [shape: bf16[128,128], index: 4, kind: output, shape index: {}]
  %s5 = sld [smem:[#allocation0]]
  $region26: #{t_mv2_unet_forward.10} parent=0
    _
  %s7 = ssub.s32 1, %s5
  %s8 = scalar_select 0, %s7, %s5
  // Predicated region
  $region2: #{t_mv2_unet_forward.10} parent=0 // pred_check
    _
  $region3: #{t_mv2_unet_forward.10} parent=0 // pred_check_branch
    %10 = sbr.rel (0) target = $region5
  $region4: #{t_mv2_unet_forward.10} parent=0 // pred_region
    _
  $region5: #{t_mv2_unet_forward.10} parent=0 // pred_fallthru
    _
  // Predicated region
  $region6: #{t_mv2_unet_forward.10} parent=0 // pred_check
    _
  $region7: #{t_mv2_unet_forward.10} parent=0 // pred_check_branch
    %12 = sbr.rel (0) target = $region9
  $region8: #{t_mv2_unet_forward.10} parent=0 // pred_region
    _
  $region9: #{t_mv2_unet_forward.10} parent=0 // pred_fallthru
    _
  // Predicated region
  $region10: #{t_mv2_unet_forward.10} parent=0 // pred_check
    _
  $region11: #{t_mv2_unet_forward.10} parent=0 // pred_check_branch
    %14 = sbr.rel (0) target = $region13
  $region12: #{t_mv2_unet_forward.10} parent=0 // pred_region
    _
  $region13: #{t_mv2_unet_forward.10} parent=0 // pred_fallthru
    _
  // Predicated region
  $region14: #{t_mv2_unet_forward.10} parent=0 // pred_check
    _
  $region15: #{t_mv2_unet_forward.10} parent=0 // pred_check_branch
    %16 = sbr.rel (0) target = $region17
  $region16: #{t_mv2_unet_forward.10} parent=0 // pred_region
    _
  $region17: #{t_mv2_unet_forward.10} parent=0 // pred_fallthru
    _
  %v17 = vld [vmem:[%s0] sm:$0xff]
  %v18 = vld [vmem:[%s0 + $0x8] sm:$0xf]
  %v19 = vld [vmem:[%s0 + $0xc] sm:$0xff]
  %v20 = vld [vmem:[%s0 + $0x14] sm:$0xf]
  %v21 = vld [vmem:[%s0 + $0x18] sm:$0xff]
  %v22 = vld [vmem:[%s0 + $0x20] sm:$0xf]
  %v23 = vld [vmem:[%s0 + $0x24] sm:$0xff]
  %v24 = vld [vmem:[%s0 + $0x2c] sm:$0xf]
  %v25 = vld [vmem:[%s0 + $0x30] sm:$0xff]
  %v26 = vld [vmem:[%s0 + $0x38] sm:$0xf]
  %v27 = vld [vmem:[%s0 + $0x3c] sm:$0xff]
  %v28 = vld [vmem:[%s0 + $0x44] sm:$0xf]
  %v29 = vld [vmem:[%s0 + $0x48] sm:$0xff]
  %v30 = vld [vmem:[%s0 + $0x50] sm:$0xf]
  %v31 = vld [vmem:[%s0 + $0x54] sm:$0xff]
  %v32 = vld [vmem:[%s0 + $0x5c] sm:$0xf]
  %v33 = vld [vmem:[%s0 + $0x60] sm:$0xff]
  %v34 = vld [vmem:[%s0 + $0x68] sm:$0xf]
  %v35 = vld [vmem:[%s0 + $0x6c] sm:$0xff]
  %v36 = vld [vmem:[%s0 + $0x74] sm:$0xf]
  %v37 = vld [vmem:[%s0 + $0x78] sm:$0xff]
  %v38 = vld [vmem:[%s0 + $0x80] sm:$0xf]
  %v39 = vld [vmem:[%s0 + $0x84] sm:$0xff]
  %v40 = vld [vmem:[%s0 + $0x8c] sm:$0xf]
  %v41 = vld [vmem:[%s0 + $0x90] sm:$0xff]
  %v42 = vld [vmem:[%s0 + $0x98] sm:$0xf]
  %v43 = vld [vmem:[%s0 + $0x9c] sm:$0xff]
  %v44 = vld [vmem:[%s0 + $0xa4] sm:$0xf]
  %v45 = vld [vmem:[%s0 + $0xa8] sm:$0xff]
  %v46 = vld [vmem:[%s0 + $0xb0] sm:$0xf]
  %v47 = vld [vmem:[%s0 + $0xb4] sm:$0xff]
  %v48 = vld [vmem:[%s0 + $0xbc] sm:$0xf]
  %v49 = vld [vmem:[%s1] sm:$0xf]
  %v50 = vld [vmem:[%s1 + $0x4] sm:$0xf]
  %v51 = vld [vmem:[%s1 + $0x8] sm:$0xf]
  %v52 = vld [vmem:[%s1 + $0xc] sm:$0xf]
  %v53 = vld [vmem:[%s1 + $0x10] sm:$0xf]
  %v54 = vld [vmem:[%s1 + $0x14] sm:$0xf]
  %v55 = vld [vmem:[%s1 + $0x18] sm:$0xf]
  %v56 = vld [vmem:[%s1 + $0x1c] sm:$0xf]
  %v57 = vld [vmem:[%s1 + $0x20] sm:$0xf]
  %v58 = vld [vmem:[%s1 + $0x24] sm:$0xf]
  %v59 = vld [vmem:[%s1 + $0x28] sm:$0xf]
  %v60 = vld [vmem:[%s1 + $0x2c] sm:$0xf]
  %v61 = vld [vmem:[%s1 + $0x30] sm:$0xf]
  %v62 = vld [vmem:[%s1 + $0x34] sm:$0xf]
  %v63 = vld [vmem:[%s1 + $0x38] sm:$0xf]
  %v64 = vld [vmem:[%s1 + $0x3c] sm:$0xf]
  %v65 = vld [vmem:[%s1 + $0x40] sm:$0xf]
  %v66 = vld [vmem:[%s1 + $0x44] sm:$0xf]
  %v67 = vld [vmem:[%s1 + $0x48] sm:$0xf]
  %v68 = vld [vmem:[%s1 + $0x4c] sm:$0xf]
  %v69 = vld [vmem:[%s1 + $0x50] sm:$0xf]
  %v70 = vld [vmem:[%s1 + $0x54] sm:$0xf]
  %v71 = vld [vmem:[%s1 + $0x58] sm:$0xf]
  %v72 = vld [vmem:[%s1 + $0x5c] sm:$0xf]
  %v73 = vld [vmem:[%s1 + $0x60] sm:$0xf]
  %v74 = vld [vmem:[%s1 + $0x64] sm:$0xf]
  %v75 = vld [vmem:[%s1 + $0x68] sm:$0xf]
  %v76 = vld [vmem:[%s1 + $0x6c] sm:$0xf]
  %v77 = vld [vmem:[%s1 + $0x70] sm:$0xf]
  %v78 = vld [vmem:[%s1 + $0x74] sm:$0xf]
  %v79 = vld [vmem:[%s1 + $0x78] sm:$0xf]
  %v80 = vld [vmem:[%s1 + $0x7c] sm:$0xf]
  %v81 = vld [vmem:[%s1 + $0x80] sm:$0xf]
  %v82 = vld [vmem:[%s1 + $0x84] sm:$0xf]
  %v83 = vld [vmem:[%s1 + $0x88] sm:$0xf]
  %v84 = vld [vmem:[%s1 + $0x8c] sm:$0xf]
  %v85 = vld [vmem:[%s1 + $0x90] sm:$0xf]
  %v86 = vld [vmem:[%s1 + $0x94] sm:$0xf]
  %v87 = vld [vmem:[%s1 + $0x98] sm:$0xf]
  %v88 = vld [vmem:[%s1 + $0x9c] sm:$0xf]
  %v89 = vld [vmem:[%s1 + $0xa0] sm:$0xf]
  %v90 = vld [vmem:[%s1 + $0xa4] sm:$0xf]
  %v91 = vld [vmem:[%s1 + $0xa8] sm:$0xf]
  %v92 = vld [vmem:[%s1 + $0xac] sm:$0xf]
  %v93 = vld [vmem:[%s1 + $0xb0] sm:$0xf]
  %v94 = vld [vmem:[%s1 + $0xb4] sm:$0xf]
  %v95 = vld [vmem:[%s1 + $0xb8] sm:$0xf]
  %v96 = vld [vmem:[%s1 + $0xbc] sm:$0xf]
  %v97 = vld [vmem:[%s2] sm:$0x1]
  %v99 = vperm.slane %v97, 0
  %v133 = vunpack.c.l.b16 %v17
  %v134 = vunpack.c.h.b16 %v17
  %v135 = vunpack.c.l.b16 %v18
  %v136 = vunpack.c.l.b16 %v19
  %v137 = vunpack.c.h.b16 %v19
  %v138 = vunpack.c.l.b16 %v20
  %v139 = vunpack.c.l.b16 %v21
  %v140 = vunpack.c.h.b16 %v21
  %v141 = vunpack.c.l.b16 %v22
  %v142 = vunpack.c.l.b16 %v23
  %v143 = vunpack.c.h.b16 %v23
  %v144 = vunpack.c.l.b16 %v24
  %v145 = vunpack.c.l.b16 %v25
  %v146 = vunpack.c.h.b16 %v25
  %v147 = vunpack.c.l.b16 %v26
  %v148 = vunpack.c.l.b16 %v27
  %v149 = vunpack.c.h.b16 %v27
  %v150 = vunpack.c.l.b16 %v28
  %v151 = vunpack.c.l.b16 %v29
  %v152 = vunpack.c.h.b16 %v29
  %v153 = vunpack.c.l.b16 %v30
  %v154 = vunpack.c.l.b16 %v31
  %v155 = vunpack.c.h.b16 %v31
  %v156 = vunpack.c.l.b16 %v32
  %v157 = vunpack.c.l.b16 %v33
  %v158 = vunpack.c.h.b16 %v33
  %v159 = vunpack.c.l.b16 %v34
  %v160 = vunpack.c.l.b16 %v35
  %v161 = vunpack.c.h.b16 %v35
  %v162 = vunpack.c.l.b16 %v36
  %v163 = vunpack.c.l.b16 %v37
  %v164 = vunpack.c.h.b16 %v37
  %v165 = vunpack.c.l.b16 %v38
  %v166 = vunpack.c.l.b16 %v39
  %v167 = vunpack.c.h.b16 %v39
  %v168 = vunpack.c.l.b16 %v40
  %v169 = vunpack.c.l.b16 %v41
  %v170 = vunpack.c.h.b16 %v41
  %v171 = vunpack.c.l.b16 %v42
  %v172 = vunpack.c.l.b16 %v43
  %v173 = vunpack.c.h.b16 %v43
  %v174 = vunpack.c.l.b16 %v44
  %v175 = vunpack.c.l.b16 %v45
  %v176 = vunpack.c.h.b16 %v45
  %v177 = vunpack.c.l.b16 %v46
  %v178 = vunpack.c.l.b16 %v47
  %v179 = vunpack.c.h.b16 %v47
  %v180 = vunpack.c.l.b16 %v48
  %v181 = vpack.c.b16 %v136, %v133
  %v182 = vpack.c.b16 %v137, %v134
  %v183 = vpack.c.b16 %v138, %v135
  %v184 = vpack.c.b16 %v142, %v139
  %v185 = vpack.c.b16 %v143, %v140
  %v186 = vpack.c.b16 %v144, %v141
  %v187 = vpack.c.b16 %v148, %v145
  %v188 = vpack.c.b16 %v149, %v146
  %v189 = vpack.c.b16 %v150, %v147
  %v190 = vpack.c.b16 %v154, %v151
  %v191 = vpack.c.b16 %v155, %v152
  %v192 = vpack.c.b16 %v156, %v153
  %v193 = vpack.c.b16 %v160, %v157
  %v194 = vpack.c.b16 %v161, %v158
  %v195 = vpack.c.b16 %v162, %v159
  %v196 = vpack.c.b16 %v166, %v163
  %v197 = vpack.c.b16 %v167, %v164
  %v198 = vpack.c.b16 %v168, %v165
  %v199 = vpack.c.b16 %v172, %v169
  %v200 = vpack.c.b16 %v173, %v170
  %v201 = vpack.c.b16 %v174, %v171
  %v202 = vpack.c.b16 %v178, %v175
  %v203 = vpack.c.b16 %v179, %v176
  %v204 = vpack.c.b16 %v180, %v177
  %v277 = vunpack.c.l.b16 %v49
  %v278 = vunpack.c.l.b16 %v50
  %v279 = vunpack.c.l.b16 %v51
  %v280 = vunpack.c.l.b16 %v52
  %v281 = vunpack.c.l.b16 %v53
  %v282 = vunpack.c.l.b16 %v54
  %v283 = vunpack.c.l.b16 %v55
  %v284 = vunpack.c.l.b16 %v56
  %v285 = vunpack.c.l.b16 %v57
  %v286 = vunpack.c.l.b16 %v58
  %v287 = vunpack.c.l.b16 %v59
  %v288 = vunpack.c.l.b16 %v60
  %v289 = vunpack.c.l.b16 %v61
  %v290 = vunpack.c.l.b16 %v62
  %v291 = vunpack.c.l.b16 %v63
  %v292 = vunpack.c.l.b16 %v64
  %v293 = vunpack.c.l.b16 %v65
  %v294 = vunpack.c.l.b16 %v66
  %v295 = vunpack.c.l.b16 %v67
  %v296 = vunpack.c.l.b16 %v68
  %v297 = vunpack.c.l.b16 %v69
  %v298 = vunpack.c.l.b16 %v70
  %v299 = vunpack.c.l.b16 %v71
  %v300 = vunpack.c.l.b16 %v72
  %v301 = vunpack.c.l.b16 %v73
  %v302 = vunpack.c.l.b16 %v74
  %v303 = vunpack.c.l.b16 %v75
  %v304 = vunpack.c.l.b16 %v76
  %v305 = vunpack.c.l.b16 %v77
  %v306 = vunpack.c.l.b16 %v78
  %v307 = vunpack.c.l.b16 %v79
  %v308 = vunpack.c.l.b16 %v80
  %v309 = vunpack.c.l.b16 %v81
  %v310 = vunpack.c.l.b16 %v82
  %v311 = vunpack.c.l.b16 %v83
  %v312 = vunpack.c.l.b16 %v84
  %v313 = vunpack.c.l.b16 %v85
  %v314 = vunpack.c.l.b16 %v86
  %v315 = vunpack.c.l.b16 %v87
  %v316 = vunpack.c.l.b16 %v88
  %v317 = vunpack.c.l.b16 %v89
  %v318 = vunpack.c.l.b16 %v90
  %v319 = vunpack.c.l.b16 %v91
  %v320 = vunpack.c.l.b16 %v92
  %v321 = vunpack.c.l.b16 %v93
  %v322 = vunpack.c.l.b16 %v94
  %v323 = vunpack.c.l.b16 %v95
  %v324 = vunpack.c.l.b16 %v96
  %v325 = vpack.c.b16 %v278, %v277
  %v326 = vpack.c.b16 %v280, %v279
  %v327 = vpack.c.b16 %v282, %v281
  %v328 = vpack.c.b16 %v284, %v283
  %v329 = vpack.c.b16 %v286, %v285
  %v330 = vpack.c.b16 %v288, %v287
  %v331 = vpack.c.b16 %v290, %v289
  %v332 = vpack.c.b16 %v292, %v291
  %v333 = vpack.c.b16 %v294, %v293
  %v334 = vpack.c.b16 %v296, %v295
  %v335 = vpack.c.b16 %v298, %v297
  %v336 = vpack.c.b16 %v300, %v299
  %v337 = vpack.c.b16 %v302, %v301
  %v338 = vpack.c.b16 %v304, %v303
  %v339 = vpack.c.b16 %v306, %v305
  %v340 = vpack.c.b16 %v308, %v307
  %v341 = vpack.c.b16 %v310, %v309
  %v342 = vpack.c.b16 %v312, %v311
  %v343 = vpack.c.b16 %v314, %v313
  %v344 = vpack.c.b16 %v316, %v315
  %v345 = vpack.c.b16 %v318, %v317
  %v346 = vpack.c.b16 %v320, %v319
  %v347 = vpack.c.b16 %v322, %v321
  %v348 = vpack.c.b16 %v324, %v323
  %373 = vmatpush.bf16.msra.mxu0 %v332
  %374 = vmatpush.bf16.msra.mxu0 %v331
  %375 = vmatpush.bf16.msra.mxu0 %v330
  %376 = vmatpush.bf16.msra.mxu0 %v329
  %377 = vmatpush.bf16.msra.mxu0 %v328
  %378 = vmatpush.bf16.msra.mxu0 %v327
  %379 = vmatpush.bf16.msra.mxu0 %v326
  %380 = vmatpush.bf16.msra.mxu0 %v325
  %381 = vmatmul.bf16.gmra.mxu0 %v181
  %v382 = vpop.f32.mrf.mxu0
  %v383 = vadd.f32 %v99, %v382
  %v384 = vpop.f32.mrf.mxu0
  %v385 = vadd.f32 %v99, %v384
  %386 = vmatmul.bf16.gmra.mxu0 %v184
  %v387 = vpop.f32.mrf.mxu0
  %v388 = vadd.f32 %v99, %v387
  %v389 = vpop.f32.mrf.mxu0
  %v390 = vadd.f32 %v99, %v389
  %391 = vmatmul.bf16.gmra.mxu0 %v187
  %v392 = vpop.f32.mrf.mxu0
  %v393 = vadd.f32 %v99, %v392
  %v394 = vpop.f32.mrf.mxu0
  %v395 = vadd.f32 %v99, %v394
  %396 = vmatmul.bf16.gmra.mxu0 %v190
  %v397 = vpop.f32.mrf.mxu0
  %v398 = vadd.f32 %v99, %v397
  %v399 = vpop.f32.mrf.mxu0
  %v400 = vadd.f32 %v99, %v399
  %401 = vmatmul.bf16.gmra.mxu0 %v193
  %v402 = vpop.f32.mrf.mxu0
  %v403 = vadd.f32 %v99, %v402
  %v404 = vpop.f32.mrf.mxu0
  %v405 = vadd.f32 %v99, %v404
  %406 = vmatmul.bf16.gmra.mxu0 %v196
  %v407 = vpop.f32.mrf.mxu0
  %v408 = vadd.f32 %v99, %v407
  %v409 = vpop.f32.mrf.mxu0
  %v410 = vadd.f32 %v99, %v409
  %411 = vmatmul.bf16.gmra.mxu0 %v199
  %v412 = vpop.f32.mrf.mxu0
  %v413 = vadd.f32 %v99, %v412
  %v414 = vpop.f32.mrf.mxu0
  %v415 = vadd.f32 %v99, %v414
  %416 = vmatmul.bf16.gmra.mxu0 %v202
  %v417 = vpop.f32.mrf.mxu0
  %v418 = vadd.f32 %v99, %v417
  %v419 = vpop.f32.mrf.mxu0
  %v420 = vadd.f32 %v99, %v419
  %421 = vdwg.mxu0
  %422 = vmatpush.bf16.msra.mxu0 %v340
  %423 = vmatpush.bf16.msra.mxu0 %v339
  %424 = vmatpush.bf16.msra.mxu0 %v338
  %425 = vmatpush.bf16.msra.mxu0 %v337
  %426 = vmatpush.bf16.msra.mxu0 %v336
  %427 = vmatpush.bf16.msra.mxu0 %v335
  %428 = vmatpush.bf16.msra.mxu0 %v334
  %429 = vmatpush.bf16.msra.mxu0 %v333
  %430 = vmatmul.bf16.gmra.mxu0 %v182
  %v431 = vpop.f32.mrf.mxu0
  %v432 = vadd.f32 %v383, %v431
  %v433 = vpop.f32.mrf.mxu0
  %v434 = vadd.f32 %v385, %v433
  %435 = vmatmul.bf16.gmra.mxu0 %v185
  %v436 = vpop.f32.mrf.mxu0
  %v437 = vadd.f32 %v388, %v436
  %v438 = vpop.f32.mrf.mxu0
  %v439 = vadd.f32 %v390, %v438
  %440 = vmatmul.bf16.gmra.mxu0 %v188
  %v441 = vpop.f32.mrf.mxu0
  %v442 = vadd.f32 %v393, %v441
  %v443 = vpop.f32.mrf.mxu0
  %v444 = vadd.f32 %v395, %v443
  %445 = vmatmul.bf16.gmra.mxu0 %v191
  %v446 = vpop.f32.mrf.mxu0
  %v447 = vadd.f32 %v398, %v446
  %v448 = vpop.f32.mrf.mxu0
  %v449 = vadd.f32 %v400, %v448
  %450 = vmatmul.bf16.gmra.mxu0 %v194
  %v451 = vpop.f32.mrf.mxu0
  %v452 = vadd.f32 %v403, %v451
  %v453 = vpop.f32.mrf.mxu0
  %v454 = vadd.f32 %v405, %v453
  %455 = vmatmul.bf16.gmra.mxu0 %v197
  %v456 = vpop.f32.mrf.mxu0
  %v457 = vadd.f32 %v408, %v456
  %v458 = vpop.f32.mrf.mxu0
  %v459 = vadd.f32 %v410, %v458
  %460 = vmatmul.bf16.gmra.mxu0 %v200
  %v461 = vpop.f32.mrf.mxu0
  %v462 = vadd.f32 %v413, %v461
  %v463 = vpop.f32.mrf.mxu0
  %v464 = vadd.f32 %v415, %v463
  %465 = vmatmul.bf16.gmra.mxu0 %v203
  %v466 = vpop.f32.mrf.mxu0
  %v467 = vadd.f32 %v418, %v466
  %v468 = vpop.f32.mrf.mxu0
  %v469 = vadd.f32 %v420, %v468
  %470 = vdwg.mxu0
  %471 = vmatpush.bf16.msra.mxu0 %v348
  %472 = vmatpush.bf16.msra.mxu0 %v347
  %473 = vmatpush.bf16.msra.mxu0 %v346
  %474 = vmatpush.bf16.msra.mxu0 %v345
  %475 = vmatpush.bf16.msra.mxu0 %v344
  %476 = vmatpush.bf16.msra.mxu0 %v343
  %477 = vmatpush.bf16.msra.mxu0 %v342
  %478 = vmatpush.bf16.msra.mxu0 %v341
  %479 = vmatmul.bf16.gmra.mxu0 %v183
  %v480 = vpop.f32.mrf.mxu0
  %v481 = vadd.f32 %v432, %v480
  %v482 = vpop.f32.mrf.mxu0
  %v483 = vadd.f32 %v434, %v482
  %484 = vmatmul.bf16.gmra.mxu0 %v186
  %v485 = vpop.f32.mrf.mxu0
  %v486 = vadd.f32 %v437, %v485
  %v487 = vpop.f32.mrf.mxu0
  %v488 = vadd.f32 %v439, %v487
  %489 = vmatmul.bf16.gmra.mxu0 %v189
  %v490 = vpop.f32.mrf.mxu0
  %v491 = vadd.f32 %v442, %v490
  %v492 = vpop.f32.mrf.mxu0
  %v493 = vadd.f32 %v444, %v492
  %494 = vmatmul.bf16.gmra.mxu0 %v192
  %v495 = vpop.f32.mrf.mxu0
  %v496 = vadd.f32 %v447, %v495
  %v497 = vpop.f32.mrf.mxu0
  %v498 = vadd.f32 %v449, %v497
  %499 = vmatmul.bf16.gmra.mxu0 %v195
  %v500 = vpop.f32.mrf.mxu0
  %v501 = vadd.f32 %v452, %v500
  %v502 = vpop.f32.mrf.mxu0
  %v503 = vadd.f32 %v454, %v502
  %504 = vmatmul.bf16.gmra.mxu0 %v198
  %v505 = vpop.f32.mrf.mxu0
  %v506 = vadd.f32 %v457, %v505
  %v507 = vpop.f32.mrf.mxu0
  %v508 = vadd.f32 %v459, %v507
  %509 = vmatmul.bf16.gmra.mxu0 %v201
  %v510 = vpop.f32.mrf.mxu0
  %v511 = vadd.f32 %v462, %v510
  %v512 = vpop.f32.mrf.mxu0
  %v513 = vadd.f32 %v464, %v512
  %514 = vmatmul.bf16.gmra.mxu0 %v204
  %v515 = vpop.f32.mrf.mxu0
  %v516 = vadd.f32 %v467, %v515
  %v517 = vpop.f32.mrf.mxu0
  %v518 = vadd.f32 %v469, %v517
  %519 = vdwg.mxu0
  %v520 = vmax.f32 %v481, 0.0
  %v521 = vmax.f32 %v483, 0.0
  %v522 = vmax.f32 %v486, 0.0
  %v523 = vmax.f32 %v488, 0.0
  %v524 = vmax.f32 %v491, 0.0
  %v525 = vmax.f32 %v493, 0.0
  %v526 = vmax.f32 %v496, 0.0
  %v527 = vmax.f32 %v498, 0.0
  %v528 = vmax.f32 %v501, 0.0
  %v529 = vmax.f32 %v503, 0.0
  %v530 = vmax.f32 %v506, 0.0
  %v531 = vmax.f32 %v508, 0.0
  %v532 = vmax.f32 %v511, 0.0
  %v533 = vmax.f32 %v513, 0.0
  %v534 = vmax.f32 %v516, 0.0
  %v535 = vmax.f32 %v518, 0.0
  %v536 = vld [vmem:[%s3] sm:$0xf]
  %v537 = vld [vmem:[%s3 + $0x4] sm:$0xf]
  %v538 = vld [vmem:[%s3 + $0x8] sm:$0xf]
  %v539 = vld [vmem:[%s3 + $0xc] sm:$0xf]
  %v540 = vld [vmem:[%s3 + $0x10] sm:$0xf]
  %v541 = vld [vmem:[%s3 + $0x14] sm:$0xf]
  %v542 = vld [vmem:[%s3 + $0x18] sm:$0xf]
  %v543 = vld [vmem:[%s3 + $0x1c] sm:$0xf]
  %v544 = vld [vmem:[%s3 + $0x20] sm:$0xf]
  %v545 = vld [vmem:[%s3 + $0x24] sm:$0xf]
  %v546 = vld [vmem:[%s3 + $0x28] sm:$0xf]
  %v547 = vld [vmem:[%s3 + $0x2c] sm:$0xf]
  %v548 = vld [vmem:[%s3 + $0x30] sm:$0xf]
  %v549 = vld [vmem:[%s3 + $0x34] sm:$0xf]
  %v550 = vld [vmem:[%s3 + $0x38] sm:$0xf]
  %v551 = vld [vmem:[%s3 + $0x3c] sm:$0xf]
  %v552 = vunpack.c.l.bf16 %v536
  %v553 = vunpack.c.l.bf16 %v537
  %v554 = vunpack.c.l.bf16 %v538
  %v555 = vunpack.c.l.bf16 %v539
  %v556 = vunpack.c.l.bf16 %v540
  %v557 = vunpack.c.l.bf16 %v541
  %v558 = vunpack.c.l.bf16 %v542
  %v559 = vunpack.c.l.bf16 %v543
  %v560 = vunpack.c.l.bf16 %v544
  %v561 = vunpack.c.l.bf16 %v545
  %v562 = vunpack.c.l.bf16 %v546
  %v563 = vunpack.c.l.bf16 %v547
  %v564 = vunpack.c.l.bf16 %v548
  %v565 = vunpack.c.l.bf16 %v549
  %v566 = vunpack.c.l.bf16 %v550
  %v567 = vunpack.c.l.bf16 %v551
  %v568 = vadd.f32 %v520, %v552
  %v569 = vadd.f32 %v521, %v553
  %v570 = vadd.f32 %v522, %v554
  %v571 = vadd.f32 %v523, %v555
  %v572 = vadd.f32 %v524, %v556
  %v573 = vadd.f32 %v525, %v557
  %v574 = vadd.f32 %v526, %v558
  %v575 = vadd.f32 %v527, %v559
  %v576 = vadd.f32 %v528, %v560
  %v577 = vadd.f32 %v529, %v561
  %v578 = vadd.f32 %v530, %v562
  %v579 = vadd.f32 %v531, %v563
  %v580 = vadd.f32 %v532, %v564
  %v581 = vadd.f32 %v533, %v565
  %v582 = vadd.f32 %v534, %v566
  %v583 = vadd.f32 %v535, %v567
  %v584 = vpack.c.bf16 %v568, %v568
  %v585 = vpack.c.bf16 %v569, %v569
  %v586 = vpack.c.bf16 %v570, %v570
  %v587 = vpack.c.bf16 %v571, %v571
  %v588 = vpack.c.bf16 %v572, %v572
  %v589 = vpack.c.bf16 %v573, %v573
  %v590 = vpack.c.bf16 %v574, %v574
  %v591 = vpack.c.bf16 %v575, %v575
  %v592 = vpack.c.bf16 %v576, %v576
  %v593 = vpack.c.bf16 %v577, %v577
  %v594 = vpack.c.bf16 %v578, %v578
  %v595 = vpack.c.bf16 %v579, %v579
  %v596 = vpack.c.bf16 %v580, %v580
  %v597 = vpack.c.bf16 %v581, %v581
  %v598 = vpack.c.bf16 %v582, %v582
  %v599 = vpack.c.bf16 %v583, %v583
  %600 = vst [vmem:[%s4] sm:$0xf] %v584
  %601 = vst [vmem:[%s4 + $0x4] sm:$0xf] %v585
  %602 = vst [vmem:[%s4 + $0x8] sm:$0xf] %v586
  %603 = vst [vmem:[%s4 + $0xc] sm:$0xf] %v587
  %604 = vst [vmem:[%s4 + $0x10] sm:$0xf] %v588
  %605 = vst [vmem:[%s4 + $0x14] sm:$0xf] %v589
  %606 = vst [vmem:[%s4 + $0x18] sm:$0xf] %v590
  %607 = vst [vmem:[%s4 + $0x1c] sm:$0xf] %v591
  %608 = vst [vmem:[%s4 + $0x20] sm:$0xf] %v592
  %609 = vst [vmem:[%s4 + $0x24] sm:$0xf] %v593
  %610 = vst [vmem:[%s4 + $0x28] sm:$0xf] %v594
  %611 = vst [vmem:[%s4 + $0x2c] sm:$0xf] %v595
  %612 = vst [vmem:[%s4 + $0x30] sm:$0xf] %v596
  %613 = vst [vmem:[%s4 + $0x34] sm:$0xf] %v597
  %614 = vst [vmem:[%s4 + $0x38] sm:$0xf] %v598
  %615 = vst [vmem:[%s4 + $0x3c] sm:$0xf] %v599
  // Predicated region
  $region18: #{t_mv2_unet_forward.10} parent=0 // pred_check
    _
  $region19: #{t_mv2_unet_forward.10} parent=0 // pred_check_branch
    %617 = sbr.rel (0) target = $region21
  $region20: #{t_mv2_unet_forward.10} parent=0 // pred_region
    _
  $region21: #{t_mv2_unet_forward.10} parent=0 // pred_fallthru
    _
  // Predicated region
  $region22: #{t_mv2_unet_forward.10} parent=0 // pred_check
    _
  $region23: #{t_mv2_unet_forward.10} parent=0 // pred_check_branch
    %619 = sbr.rel (0) target = $region25
  $region24: #{t_mv2_unet_forward.10} parent=0 // pred_region
    _
  $region25: #{t_mv2_unet_forward.10} parent=0 // pred_fallthru
    _

// kernel: t_mv2_unet_forward.11
$region0: #{t_mv2_unet_forward.11}
  #allocation0 [shape = 'u32[]', space=smem, size = 0x4, offset = 0x4, fixed_abs, tag = 'smem constant byte address 0x4 - core index']
  #allocation1 [shape = 'u32[72,128]{1,0:T(1,128)}', space=vmem, size = 0x9000, scoped, tag = 'internal scratch']
  %s0 = inlined_call_operand.vmem [shape: bf16[128,256], index: 0, kind: input, shape index: {}]
  %s1 = inlined_call_operand.vmem [shape: bf16[256,128], index: 1, kind: input, shape index: {}]
  %s2 = inlined_call_operand.vmem [shape: f32[1,128], index: 2, kind: input, shape index: {}]
  %s3 = inlined_call_operand.vmem [shape: bf16[128,128], index: 3, kind: output, shape index: {}]
  %s4 = sld [smem:[#allocation0]]
  $region22: #{t_mv2_unet_forward.11} parent=0
    _
  %s6 = ssub.s32 1, %s4
  %s7 = scalar_select 0, %s6, %s4
  // Predicated region
  $region2: #{t_mv2_unet_forward.11} parent=0 // pred_check
    _
  $region3: #{t_mv2_unet_forward.11} parent=0 // pred_check_branch
    %9 = sbr.rel (0) target = $region5
  $region4: #{t_mv2_unet_forward.11} parent=0 // pred_region
    _
  $region5: #{t_mv2_unet_forward.11} parent=0 // pred_fallthru
    _
  // Predicated region
  $region6: #{t_mv2_unet_forward.11} parent=0 // pred_check
    _
  $region7: #{t_mv2_unet_forward.11} parent=0 // pred_check_branch
    %11 = sbr.rel (0) target = $region9
  $region8: #{t_mv2_unet_forward.11} parent=0 // pred_region
    _
  $region9: #{t_mv2_unet_forward.11} parent=0 // pred_fallthru
    _
  // Predicated region
  $region10: #{t_mv2_unet_forward.11} parent=0 // pred_check
    _
  $region11: #{t_mv2_unet_forward.11} parent=0 // pred_check_branch
    %13 = sbr.rel (0) target = $region13
  $region12: #{t_mv2_unet_forward.11} parent=0 // pred_region
    _
  $region13: #{t_mv2_unet_forward.11} parent=0 // pred_fallthru
    _
  %v14 = vld [vmem:[%s0] sm:$0xff]
  %v15 = vld [vmem:[%s0 + $0x8] sm:$0xff]
  %v16 = vld [vmem:[%s0 + $0x10] sm:$0xff]
  %v17 = vld [vmem:[%s0 + $0x18] sm:$0xff]
  %v18 = vld [vmem:[%s0 + $0x20] sm:$0xff]
  %v19 = vld [vmem:[%s0 + $0x28] sm:$0xff]
  %v20 = vld [vmem:[%s0 + $0x30] sm:$0xff]
  %v21 = vld [vmem:[%s0 + $0x38] sm:$0xff]
  %v22 = vld [vmem:[%s0 + $0x40] sm:$0xff]
  %v23 = vld [vmem:[%s0 + $0x48] sm:$0xff]
  %v24 = vld [vmem:[%s0 + $0x50] sm:$0xff]
  %v25 = vld [vmem:[%s0 + $0x58] sm:$0xff]
  %v26 = vld [vmem:[%s0 + $0x60] sm:$0xff]
  %v27 = vld [vmem:[%s0 + $0x68] sm:$0xff]
  %v28 = vld [vmem:[%s0 + $0x70] sm:$0xff]
  %v29 = vld [vmem:[%s0 + $0x78] sm:$0xff]
  %v30 = vld [vmem:[%s1] sm:$0xf]
  %v31 = vld [vmem:[%s1 + $0x4] sm:$0xf]
  %v32 = vld [vmem:[%s1 + $0x8] sm:$0xf]
  %v33 = vld [vmem:[%s1 + $0xc] sm:$0xf]
  %v34 = vld [vmem:[%s1 + $0x10] sm:$0xf]
  %v35 = vld [vmem:[%s1 + $0x14] sm:$0xf]
  %v36 = vld [vmem:[%s1 + $0x18] sm:$0xf]
  %v37 = vld [vmem:[%s1 + $0x1c] sm:$0xf]
  %v38 = vld [vmem:[%s1 + $0x20] sm:$0xf]
  %v39 = vld [vmem:[%s1 + $0x24] sm:$0xf]
  %v40 = vld [vmem:[%s1 + $0x28] sm:$0xf]
  %v41 = vld [vmem:[%s1 + $0x2c] sm:$0xf]
  %v42 = vld [vmem:[%s1 + $0x30] sm:$0xf]
  %v43 = vld [vmem:[%s1 + $0x34] sm:$0xf]
  %v44 = vld [vmem:[%s1 + $0x38] sm:$0xf]
  %v45 = vld [vmem:[%s1 + $0x3c] sm:$0xf]
  %v46 = vld [vmem:[%s1 + $0x40] sm:$0xf]
  %v47 = vld [vmem:[%s1 + $0x44] sm:$0xf]
  %v48 = vld [vmem:[%s1 + $0x48] sm:$0xf]
  %v49 = vld [vmem:[%s1 + $0x4c] sm:$0xf]
  %v50 = vld [vmem:[%s1 + $0x50] sm:$0xf]
  %v51 = vld [vmem:[%s1 + $0x54] sm:$0xf]
  %v52 = vld [vmem:[%s1 + $0x58] sm:$0xf]
  %v53 = vld [vmem:[%s1 + $0x5c] sm:$0xf]
  %v54 = vld [vmem:[%s1 + $0x60] sm:$0xf]
  %v55 = vld [vmem:[%s1 + $0x64] sm:$0xf]
  %v56 = vld [vmem:[%s1 + $0x68] sm:$0xf]
  %v57 = vld [vmem:[%s1 + $0x6c] sm:$0xf]
  %v58 = vld [vmem:[%s1 + $0x70] sm:$0xf]
  %v59 = vld [vmem:[%s1 + $0x74] sm:$0xf]
  %v60 = vld [vmem:[%s1 + $0x78] sm:$0xf]
  %v61 = vld [vmem:[%s1 + $0x7c] sm:$0xf]
  %v62 = vld [vmem:[%s2] sm:$0x1]
  %v64 = vperm.slane %v62, 0
  %v82 = vunpack.c.l.b16 %v14
  %v83 = vunpack.c.h.b16 %v14
  %v84 = vunpack.c.l.b16 %v15
  %v85 = vunpack.c.h.b16 %v15
  %v86 = vunpack.c.l.b16 %v16
  %v87 = vunpack.c.h.b16 %v16
  %v88 = vunpack.c.l.b16 %v17
  %v89 = vunpack.c.h.b16 %v17
  %v90 = vunpack.c.l.b16 %v18
  %v91 = vunpack.c.h.b16 %v18
  %v92 = vunpack.c.l.b16 %v19
  %v93 = vunpack.c.h.b16 %v19
  %v94 = vunpack.c.l.b16 %v20
  %v95 = vunpack.c.h.b16 %v20
  %v96 = vunpack.c.l.b16 %v21
  %v97 = vunpack.c.h.b16 %v21
  %v98 = vunpack.c.l.b16 %v22
  %v99 = vunpack.c.h.b16 %v22
  %v100 = vunpack.c.l.b16 %v23
  %v101 = vunpack.c.h.b16 %v23
  %v102 = vunpack.c.l.b16 %v24
  %v103 = vunpack.c.h.b16 %v24
  %v104 = vunpack.c.l.b16 %v25
  %v105 = vunpack.c.h.b16 %v25
  %v106 = vunpack.c.l.b16 %v26
  %v107 = vunpack.c.h.b16 %v26
  %v108 = vunpack.c.l.b16 %v27
  %v109 = vunpack.c.h.b16 %v27
  %v110 = vunpack.c.l.b16 %v28
  %v111 = vunpack.c.h.b16 %v28
  %v112 = vunpack.c.l.b16 %v29
  %v113 = vunpack.c.h.b16 %v29
  %v114 = vpack.c.b16 %v84, %v82
  %v115 = vpack.c.b16 %v85, %v83
  %v116 = vpack.c.b16 %v88, %v86
  %v117 = vpack.c.b16 %v89, %v87
  %v118 = vpack.c.b16 %v92, %v90
  %v119 = vpack.c.b16 %v93, %v91
  %v120 = vpack.c.b16 %v96, %v94
  %v121 = vpack.c.b16 %v97, %v95
  %v122 = vpack.c.b16 %v100, %v98
  %v123 = vpack.c.b16 %v101, %v99
  %v124 = vpack.c.b16 %v104, %v102
  %v125 = vpack.c.b16 %v105, %v103
  %v126 = vpack.c.b16 %v108, %v106
  %v127 = vpack.c.b16 %v109, %v107
  %v128 = vpack.c.b16 %v112, %v110
  %v129 = vpack.c.b16 %v113, %v111
  %v178 = vunpack.c.l.b16 %v30
  %v179 = vunpack.c.l.b16 %v31
  %v180 = vunpack.c.l.b16 %v32
  %v181 = vunpack.c.l.b16 %v33
  %v182 = vunpack.c.l.b16 %v34
  %v183 = vunpack.c.l.b16 %v35
  %v184 = vunpack.c.l.b16 %v36
  %v185 = vunpack.c.l.b16 %v37
  %v186 = vunpack.c.l.b16 %v38
  %v187 = vunpack.c.l.b16 %v39
  %v188 = vunpack.c.l.b16 %v40
  %v189 = vunpack.c.l.b16 %v41
  %v190 = vunpack.c.l.b16 %v42
  %v191 = vunpack.c.l.b16 %v43
  %v192 = vunpack.c.l.b16 %v44
  %v193 = vunpack.c.l.b16 %v45
  %v194 = vunpack.c.l.b16 %v46
  %v195 = vunpack.c.l.b16 %v47
  %v196 = vunpack.c.l.b16 %v48
  %v197 = vunpack.c.l.b16 %v49
  %v198 = vunpack.c.l.b16 %v50
  %v199 = vunpack.c.l.b16 %v51
  %v200 = vunpack.c.l.b16 %v52
  %v201 = vunpack.c.l.b16 %v53
  %v202 = vunpack.c.l.b16 %v54
  %v203 = vunpack.c.l.b16 %v55
  %v204 = vunpack.c.l.b16 %v56
  %v205 = vunpack.c.l.b16 %v57
  %v206 = vunpack.c.l.b16 %v58
  %v207 = vunpack.c.l.b16 %v59
  %v208 = vunpack.c.l.b16 %v60
  %v209 = vunpack.c.l.b16 %v61
  %v210 = vpack.c.b16 %v179, %v178
  %v211 = vpack.c.b16 %v181, %v180
  %v212 = vpack.c.b16 %v183, %v182
  %v213 = vpack.c.b16 %v185, %v184
  %v214 = vpack.c.b16 %v187, %v186
  %v215 = vpack.c.b16 %v189, %v188
  %v216 = vpack.c.b16 %v191, %v190
  %v217 = vpack.c.b16 %v193, %v192
  %v218 = vpack.c.b16 %v195, %v194
  %v219 = vpack.c.b16 %v197, %v196
  %v220 = vpack.c.b16 %v199, %v198
  %v221 = vpack.c.b16 %v201, %v200
  %v222 = vpack.c.b16 %v203, %v202
  %v223 = vpack.c.b16 %v205, %v204
  %v224 = vpack.c.b16 %v207, %v206
  %v225 = vpack.c.b16 %v209, %v208
  %242 = vmatpush.bf16.msra.mxu0 %v217
  %243 = vmatpush.bf16.msra.mxu0 %v216
  %244 = vmatpush.bf16.msra.mxu0 %v215
  %245 = vmatpush.bf16.msra.mxu0 %v214
  %246 = vmatpush.bf16.msra.mxu0 %v213
  %247 = vmatpush.bf16.msra.mxu0 %v212
  %248 = vmatpush.bf16.msra.mxu0 %v211
  %249 = vmatpush.bf16.msra.mxu0 %v210
  %250 = vmatmul.bf16.gmra.mxu0 %v114
  %v251 = vpop.f32.mrf.mxu0
  %v252 = vadd.f32 %v64, %v251
  %v253 = vpop.f32.mrf.mxu0
  %v254 = vadd.f32 %v64, %v253
  %255 = vmatmul.bf16.gmra.mxu0 %v116
  %v256 = vpop.f32.mrf.mxu0
  %v257 = vadd.f32 %v64, %v256
  %v258 = vpop.f32.mrf.mxu0
  %v259 = vadd.f32 %v64, %v258
  %260 = vmatmul.bf16.gmra.mxu0 %v118
  %v261 = vpop.f32.mrf.mxu0
  %v262 = vadd.f32 %v64, %v261
  %v263 = vpop.f32.mrf.mxu0
  %v264 = vadd.f32 %v64, %v263
  %265 = vmatmul.bf16.gmra.mxu0 %v120
  %v266 = vpop.f32.mrf.mxu0
  %v267 = vadd.f32 %v64, %v266
  %v268 = vpop.f32.mrf.mxu0
  %v269 = vadd.f32 %v64, %v268
  %270 = vmatmul.bf16.gmra.mxu0 %v122
  %v271 = vpop.f32.mrf.mxu0
  %v272 = vadd.f32 %v64, %v271
  %v273 = vpop.f32.mrf.mxu0
  %v274 = vadd.f32 %v64, %v273
  %275 = vmatmul.bf16.gmra.mxu0 %v124
  %v276 = vpop.f32.mrf.mxu0
  %v277 = vadd.f32 %v64, %v276
  %v278 = vpop.f32.mrf.mxu0
  %v279 = vadd.f32 %v64, %v278
  %280 = vmatmul.bf16.gmra.mxu0 %v126
  %v281 = vpop.f32.mrf.mxu0
  %v282 = vadd.f32 %v64, %v281
  %v283 = vpop.f32.mrf.mxu0
  %v284 = vadd.f32 %v64, %v283
  %285 = vmatmul.bf16.gmra.mxu0 %v128
  %v286 = vpop.f32.mrf.mxu0
  %v287 = vadd.f32 %v64, %v286
  %v288 = vpop.f32.mrf.mxu0
  %v289 = vadd.f32 %v64, %v288
  %290 = vdwg.mxu0
  %291 = vmatpush.bf16.msra.mxu0 %v225
  %292 = vmatpush.bf16.msra.mxu0 %v224
  %293 = vmatpush.bf16.msra.mxu0 %v223
  %294 = vmatpush.bf16.msra.mxu0 %v222
  %295 = vmatpush.bf16.msra.mxu0 %v221
  %296 = vmatpush.bf16.msra.mxu0 %v220
  %297 = vmatpush.bf16.msra.mxu0 %v219
  %298 = vmatpush.bf16.msra.mxu0 %v218
  %299 = vmatmul.bf16.gmra.mxu0 %v115
  %v300 = vpop.f32.mrf.mxu0
  %v301 = vadd.f32 %v252, %v300
  %v302 = vpop.f32.mrf.mxu0
  %v303 = vadd.f32 %v254, %v302
  %304 = vmatmul.bf16.gmra.mxu0 %v117
  %v305 = vpop.f32.mrf.mxu0
  %v306 = vadd.f32 %v257, %v305
  %v307 = vpop.f32.mrf.mxu0
  %v308 = vadd.f32 %v259, %v307
  %309 = vmatmul.bf16.gmra.mxu0 %v119
  %v310 = vpop.f32.mrf.mxu0
  %v311 = vadd.f32 %v262, %v310
  %v312 = vpop.f32.mrf.mxu0
  %v313 = vadd.f32 %v264, %v312
  %314 = vmatmul.bf16.gmra.mxu0 %v121
  %v315 = vpop.f32.mrf.mxu0
  %v316 = vadd.f32 %v267, %v315
  %v317 = vpop.f32.mrf.mxu0
  %v318 = vadd.f32 %v269, %v317
  %319 = vmatmul.bf16.gmra.mxu0 %v123
  %v320 = vpop.f32.mrf.mxu0
  %v321 = vadd.f32 %v272, %v320
  %v322 = vpop.f32.mrf.mxu0
  %v323 = vadd.f32 %v274, %v322
  %324 = vmatmul.bf16.gmra.mxu0 %v125
  %v325 = vpop.f32.mrf.mxu0
  %v326 = vadd.f32 %v277, %v325
  %v327 = vpop.f32.mrf.mxu0
  %v328 = vadd.f32 %v279, %v327
  %329 = vmatmul.bf16.gmra.mxu0 %v127
  %v330 = vpop.f32.mrf.mxu0
  %v331 = vadd.f32 %v282, %v330
  %v332 = vpop.f32.mrf.mxu0
  %v333 = vadd.f32 %v284, %v332
  %334 = vmatmul.bf16.gmra.mxu0 %v129
  %v335 = vpop.f32.mrf.mxu0
  %v336 = vadd.f32 %v287, %v335
  %v337 = vpop.f32.mrf.mxu0
  %v338 = vadd.f32 %v289, %v337
  %339 = vdwg.mxu0
  %v340 = vpack.c.bf16 %v301, %v301
  %v341 = vpack.c.bf16 %v303, %v303
  %v342 = vpack.c.bf16 %v306, %v306
  %v343 = vpack.c.bf16 %v308, %v308
  %v344 = vpack.c.bf16 %v311, %v311
  %v345 = vpack.c.bf16 %v313, %v313
  %v346 = vpack.c.bf16 %v316, %v316
  %v347 = vpack.c.bf16 %v318, %v318
  %v348 = vpack.c.bf16 %v321, %v321
  %v349 = vpack.c.bf16 %v323, %v323
  %v350 = vpack.c.bf16 %v326, %v326
  %v351 = vpack.c.bf16 %v328, %v328
  %v352 = vpack.c.bf16 %v331, %v331
  %v353 = vpack.c.bf16 %v333, %v333
  %v354 = vpack.c.bf16 %v336, %v336
  %v355 = vpack.c.bf16 %v338, %v338
  %356 = vst [vmem:[%s3] sm:$0xf] %v340
  %357 = vst [vmem:[%s3 + $0x4] sm:$0xf] %v341
  %358 = vst [vmem:[%s3 + $0x8] sm:$0xf] %v342
  %359 = vst [vmem:[%s3 + $0xc] sm:$0xf] %v343
  %360 = vst [vmem:[%s3 + $0x10] sm:$0xf] %v344
  %361 = vst [vmem:[%s3 + $0x14] sm:$0xf] %v345
  %362 = vst [vmem:[%s3 + $0x18] sm:$0xf] %v346
  %363 = vst [vmem:[%s3 + $0x1c] sm:$0xf] %v347
  %364 = vst [vmem:[%s3 + $0x20] sm:$0xf] %v348
  %365 = vst [vmem:[%s3 + $0x24] sm:$0xf] %v349
  %366 = vst [vmem:[%s3 + $0x28] sm:$0xf] %v350
  %367 = vst [vmem:[%s3 + $0x2c] sm:$0xf] %v351
  %368 = vst [vmem:[%s3 + $0x30] sm:$0xf] %v352
  %369 = vst [vmem:[%s3 + $0x34] sm:$0xf] %v353
  %370 = vst [vmem:[%s3 + $0x38] sm:$0xf] %v354
  %371 = vst [vmem:[%s3 + $0x3c] sm:$0xf] %v355
  // Predicated region
  $region14: #{t_mv2_unet_forward.11} parent=0 // pred_check
    _
  $region15: #{t_mv2_unet_forward.11} parent=0 // pred_check_branch
    %373 = sbr.rel (0) target = $region17
  $region16: #{t_mv2_unet_forward.11} parent=0 // pred_region
    _
  $region17: #{t_mv2_unet_forward.11} parent=0 // pred_fallthru
    _
  // Predicated region
  $region18: #{t_mv2_unet_forward.11} parent=0 // pred_check
    _
  $region19: #{t_mv2_unet_forward.11} parent=0 // pred_check_branch
    %375 = sbr.rel (0) target = $region21
  $region20: #{t_mv2_unet_forward.11} parent=0 // pred_region
    _
  $region21: #{t_mv2_unet_forward.11} parent=0 // pred_fallthru
    _

// kernel: t_mv2_unet_forward.12
$region0: #{t_mv2_unet_forward.12}
  #allocation0 [shape = 'u32[]', space=smem, size = 0x4, offset = 0x4, fixed_abs, tag = 'smem constant byte address 0x4 - core index']
  #allocation1 [shape = 'u32[72,128]{1,0:T(1,128)}', space=vmem, size = 0x9000, scoped, tag = 'internal scratch']
  %s0 = inlined_call_operand.vmem [shape: bf16[512,256], index: 0, kind: input, shape index: {}]
  %s1 = inlined_call_operand.vmem [shape: bf16[256,128], index: 1, kind: input, shape index: {}]
  %s2 = inlined_call_operand.vmem [shape: f32[1,128], index: 2, kind: input, shape index: {}]
  %s3 = inlined_call_operand.vmem [shape: bf16[512,128], index: 3, kind: input, shape index: {}]
  %s4 = inlined_call_operand.vmem [shape: bf16[512,128], index: 4, kind: output, shape index: {}]
  %s5 = sld [smem:[#allocation0]]
  $region26: #{t_mv2_unet_forward.12} parent=0
    _
  %s7 = ssub.s32 1, %s5
  %s8 = scalar_select 0, %s7, %s5
  // Predicated region
  $region2: #{t_mv2_unet_forward.12} parent=0 // pred_check
    _
  $region3: #{t_mv2_unet_forward.12} parent=0 // pred_check_branch
    %10 = sbr.rel (0) target = $region5
  $region4: #{t_mv2_unet_forward.12} parent=0 // pred_region
    _
  $region5: #{t_mv2_unet_forward.12} parent=0 // pred_fallthru
    _
  // Predicated region
  $region6: #{t_mv2_unet_forward.12} parent=0 // pred_check
    _
  $region7: #{t_mv2_unet_forward.12} parent=0 // pred_check_branch
    %12 = sbr.rel (0) target = $region9
  $region8: #{t_mv2_unet_forward.12} parent=0 // pred_region
    _
  $region9: #{t_mv2_unet_forward.12} parent=0 // pred_fallthru
    _
  // Predicated region
  $region10: #{t_mv2_unet_forward.12} parent=0 // pred_check
    _
  $region11: #{t_mv2_unet_forward.12} parent=0 // pred_check_branch
    %14 = sbr.rel (0) target = $region13
  $region12: #{t_mv2_unet_forward.12} parent=0 // pred_region
    _
  $region13: #{t_mv2_unet_forward.12} parent=0 // pred_fallthru
    _
  // Predicated region
  $region14: #{t_mv2_unet_forward.12} parent=0 // pred_check
    _
  $region15: #{t_mv2_unet_forward.12} parent=0 // pred_check_branch
    %16 = sbr.rel (0) target = $region17
  $region16: #{t_mv2_unet_forward.12} parent=0 // pred_region
    _
  $region17: #{t_mv2_unet_forward.12} parent=0 // pred_fallthru
    _
  %v17 = vld [vmem:[%s0] sm:$0xff]
  %v18 = vld [vmem:[%s0 + $0x8] sm:$0xff]
  %v19 = vld [vmem:[%s0 + $0x10] sm:$0xff]
  %v20 = vld [vmem:[%s0 + $0x18] sm:$0xff]
  %v21 = vld [vmem:[%s0 + $0x20] sm:$0xff]
  %v22 = vld [vmem:[%s0 + $0x28] sm:$0xff]
  %v23 = vld [vmem:[%s0 + $0x30] sm:$0xff]
  %v24 = vld [vmem:[%s0 + $0x38] sm:$0xff]
  %v25 = vld [vmem:[%s0 + $0x40] sm:$0xff]
  %v26 = vld [vmem:[%s0 + $0x48] sm:$0xff]
  %v27 = vld [vmem:[%s0 + $0x50] sm:$0xff]
  %v28 = vld [vmem:[%s0 + $0x58] sm:$0xff]
  %v29 = vld [vmem:[%s0 + $0x60] sm:$0xff]
  %v30 = vld [vmem:[%s0 + $0x68] sm:$0xff]
  %v31 = vld [vmem:[%s0 + $0x70] sm:$0xff]
  %v32 = vld [vmem:[%s0 + $0x78] sm:$0xff]
  %v33 = vld [vmem:[%s0 + $0x80] sm:$0xff]
  %v34 = vld [vmem:[%s0 + $0x88] sm:$0xff]
  %v35 = vld [vmem:[%s0 + $0x90] sm:$0xff]
  %v36 = vld [vmem:[%s0 + $0x98] sm:$0xff]
  %v37 = vld [vmem:[%s0 + $0xa0] sm:$0xff]
  %v38 = vld [vmem:[%s0 + $0xa8] sm:$0xff]
  %v39 = vld [vmem:[%s0 + $0xb0] sm:$0xff]
  %v40 = vld [vmem:[%s0 + $0xb8] sm:$0xff]
  %v41 = vld [vmem:[%s0 + $0xc0] sm:$0xff]
  %v42 = vld [vmem:[%s0 + $0xc8] sm:$0xff]
  %v43 = vld [vmem:[%s0 + $0xd0] sm:$0xff]
  %v44 = vld [vmem:[%s0 + $0xd8] sm:$0xff]
  %v45 = vld [vmem:[%s0 + $0xe0] sm:$0xff]
  %v46 = vld [vmem:[%s0 + $0xe8] sm:$0xff]
  %v47 = vld [vmem:[%s0 + $0xf0] sm:$0xff]
  %v48 = vld [vmem:[%s0 + $0xf8] sm:$0xff]
  %v49 = vld [vmem:[%s0 + $0x100] sm:$0xff]
  %v50 = vld [vmem:[%s0 + $0x108] sm:$0xff]
  %v51 = vld [vmem:[%s0 + $0x110] sm:$0xff]
  %v52 = vld [vmem:[%s0 + $0x118] sm:$0xff]
  %v53 = vld [vmem:[%s0 + $0x120] sm:$0xff]
  %v54 = vld [vmem:[%s0 + $0x128] sm:$0xff]
  %v55 = vld [vmem:[%s0 + $0x130] sm:$0xff]
  %v56 = vld [vmem:[%s0 + $0x138] sm:$0xff]
  %v57 = vld [vmem:[%s0 + $0x140] sm:$0xff]
  %v58 = vld [vmem:[%s0 + $0x148] sm:$0xff]
  %v59 = vld [vmem:[%s0 + $0x150] sm:$0xff]
  %v60 = vld [vmem:[%s0 + $0x158] sm:$0xff]
  %v61 = vld [vmem:[%s0 + $0x160] sm:$0xff]
  %v62 = vld [vmem:[%s0 + $0x168] sm:$0xff]
  %v63 = vld [vmem:[%s0 + $0x170] sm:$0xff]
  %v64 = vld [vmem:[%s0 + $0x178] sm:$0xff]
  %v65 = vld [vmem:[%s0 + $0x180] sm:$0xff]
  %v66 = vld [vmem:[%s0 + $0x188] sm:$0xff]
  %v67 = vld [vmem:[%s0 + $0x190] sm:$0xff]
  %v68 = vld [vmem:[%s0 + $0x198] sm:$0xff]
  %v69 = vld [vmem:[%s0 + $0x1a0] sm:$0xff]
  %v70 = vld [vmem:[%s0 + $0x1a8] sm:$0xff]
  %v71 = vld [vmem:[%s0 + $0x1b0] sm:$0xff]
  %v72 = vld [vmem:[%s0 + $0x1b8] sm:$0xff]
  %v73 = vld [vmem:[%s0 + $0x1c0] sm:$0xff]
  %v74 = vld [vmem:[%s0 + $0x1c8] sm:$0xff]
  %v75 = vld [vmem:[%s0 + $0x1d0] sm:$0xff]
  %v76 = vld [vmem:[%s0 + $0x1d8] sm:$0xff]
  %v77 = vld [vmem:[%s0 + $0x1e0] sm:$0xff]
  %v78 = vld [vmem:[%s0 + $0x1e8] sm:$0xff]
  %v79 = vld [vmem:[%s0 + $0x1f0] sm:$0xff]
  %v80 = vld [vmem:[%s0 + $0x1f8] sm:$0xff]
  %v81 = vld [vmem:[%s1] sm:$0xf]
  %v82 = vld [vmem:[%s1 + $0x4] sm:$0xf]
  %v83 = vld [vmem:[%s1 + $0x8] sm:$0xf]
  %v84 = vld [vmem:[%s1 + $0xc] sm:$0xf]
  %v85 = vld [vmem:[%s1 + $0x10] sm:$0xf]
  %v86 = vld [vmem:[%s1 + $0x14] sm:$0xf]
  %v87 = vld [vmem:[%s1 + $0x18] sm:$0xf]
  %v88 = vld [vmem:[%s1 + $0x1c] sm:$0xf]
  %v89 = vld [vmem:[%s1 + $0x20] sm:$0xf]
  %v90 = vld [vmem:[%s1 + $0x24] sm:$0xf]
  %v91 = vld [vmem:[%s1 + $0x28] sm:$0xf]
  %v92 = vld [vmem:[%s1 + $0x2c] sm:$0xf]
  %v93 = vld [vmem:[%s1 + $0x30] sm:$0xf]
  %v94 = vld [vmem:[%s1 + $0x34] sm:$0xf]
  %v95 = vld [vmem:[%s1 + $0x38] sm:$0xf]
  %v96 = vld [vmem:[%s1 + $0x3c] sm:$0xf]
  %v97 = vld [vmem:[%s1 + $0x40] sm:$0xf]
  %v98 = vld [vmem:[%s1 + $0x44] sm:$0xf]
  %v99 = vld [vmem:[%s1 + $0x48] sm:$0xf]
  %v100 = vld [vmem:[%s1 + $0x4c] sm:$0xf]
  %v101 = vld [vmem:[%s1 + $0x50] sm:$0xf]
  %v102 = vld [vmem:[%s1 + $0x54] sm:$0xf]
  %v103 = vld [vmem:[%s1 + $0x58] sm:$0xf]
  %v104 = vld [vmem:[%s1 + $0x5c] sm:$0xf]
  %v105 = vld [vmem:[%s1 + $0x60] sm:$0xf]
  %v106 = vld [vmem:[%s1 + $0x64] sm:$0xf]
  %v107 = vld [vmem:[%s1 + $0x68] sm:$0xf]
  %v108 = vld [vmem:[%s1 + $0x6c] sm:$0xf]
  %v109 = vld [vmem:[%s1 + $0x70] sm:$0xf]
  %v110 = vld [vmem:[%s1 + $0x74] sm:$0xf]
  %v111 = vld [vmem:[%s1 + $0x78] sm:$0xf]
  %v112 = vld [vmem:[%s1 + $0x7c] sm:$0xf]
  %v113 = vld [vmem:[%s2] sm:$0x1]
  %v115 = vperm.slane %v113, 0
  %v181 = vunpack.c.l.b16 %v17
  %v182 = vunpack.c.h.b16 %v17
  %v183 = vunpack.c.l.b16 %v18
  %v184 = vunpack.c.h.b16 %v18
  %v185 = vunpack.c.l.b16 %v19
  %v186 = vunpack.c.h.b16 %v19
  %v187 = vunpack.c.l.b16 %v20
  %v188 = vunpack.c.h.b16 %v20
  %v189 = vunpack.c.l.b16 %v21
  %v190 = vunpack.c.h.b16 %v21
  %v191 = vunpack.c.l.b16 %v22
  %v192 = vunpack.c.h.b16 %v22
  %v193 = vunpack.c.l.b16 %v23
  %v194 = vunpack.c.h.b16 %v23
  %v195 = vunpack.c.l.b16 %v24
  %v196 = vunpack.c.h.b16 %v24
  %v197 = vunpack.c.l.b16 %v25
  %v198 = vunpack.c.h.b16 %v25
  %v199 = vunpack.c.l.b16 %v26
  %v200 = vunpack.c.h.b16 %v26
  %v201 = vunpack.c.l.b16 %v27
  %v202 = vunpack.c.h.b16 %v27
  %v203 = vunpack.c.l.b16 %v28
  %v204 = vunpack.c.h.b16 %v28
  %v205 = vunpack.c.l.b16 %v29
  %v206 = vunpack.c.h.b16 %v29
  %v207 = vunpack.c.l.b16 %v30
  %v208 = vunpack.c.h.b16 %v30
  %v209 = vunpack.c.l.b16 %v31
  %v210 = vunpack.c.h.b16 %v31
  %v211 = vunpack.c.l.b16 %v32
  %v212 = vunpack.c.h.b16 %v32
  %v213 = vunpack.c.l.b16 %v33
  %v214 = vunpack.c.h.b16 %v33
  %v215 = vunpack.c.l.b16 %v34
  %v216 = vunpack.c.h.b16 %v34
  %v217 = vunpack.c.l.b16 %v35
  %v218 = vunpack.c.h.b16 %v35
  %v219 = vunpack.c.l.b16 %v36
  %v220 = vunpack.c.h.b16 %v36
  %v221 = vunpack.c.l.b16 %v37
  %v222 = vunpack.c.h.b16 %v37
  %v223 = vunpack.c.l.b16 %v38
  %v224 = vunpack.c.h.b16 %v38
  %v225 = vunpack.c.l.b16 %v39
  %v226 = vunpack.c.h.b16 %v39
  %v227 = vunpack.c.l.b16 %v40
  %v228 = vunpack.c.h.b16 %v40
  %v229 = vunpack.c.l.b16 %v41
  %v230 = vunpack.c.h.b16 %v41
  %v231 = vunpack.c.l.b16 %v42
  %v232 = vunpack.c.h.b16 %v42
  %v233 = vunpack.c.l.b16 %v43
  %v234 = vunpack.c.h.b16 %v43
  %v235 = vunpack.c.l.b16 %v44
  %v236 = vunpack.c.h.b16 %v44
  %v237 = vunpack.c.l.b16 %v45
  %v238 = vunpack.c.h.b16 %v45
  %v239 = vunpack.c.l.b16 %v46
  %v240 = vunpack.c.h.b16 %v46
  %v241 = vunpack.c.l.b16 %v47
  %v242 = vunpack.c.h.b16 %v47
  %v243 = vunpack.c.l.b16 %v48
  %v244 = vunpack.c.h.b16 %v48
  %v245 = vunpack.c.l.b16 %v49
  %v246 = vunpack.c.h.b16 %v49
  %v247 = vunpack.c.l.b16 %v50
  %v248 = vunpack.c.h.b16 %v50
  %v249 = vunpack.c.l.b16 %v51
  %v250 = vunpack.c.h.b16 %v51
  %v251 = vunpack.c.l.b16 %v52
  %v252 = vunpack.c.h.b16 %v52
  %v253 = vunpack.c.l.b16 %v53
  %v254 = vunpack.c.h.b16 %v53
  %v255 = vunpack.c.l.b16 %v54
  %v256 = vunpack.c.h.b16 %v54
  %v257 = vunpack.c.l.b16 %v55
  %v258 = vunpack.c.h.b16 %v55
  %v259 = vunpack.c.l.b16 %v56
  %v260 = vunpack.c.h.b16 %v56
  %v261 = vunpack.c.l.b16 %v57
  %v262 = vunpack.c.h.b16 %v57
  %v263 = vunpack.c.l.b16 %v58
  %v264 = vunpack.c.h.b16 %v58
  %v265 = vunpack.c.l.b16 %v59
  %v266 = vunpack.c.h.b16 %v59
  %v267 = vunpack.c.l.b16 %v60
  %v268 = vunpack.c.h.b16 %v60
  %v269 = vunpack.c.l.b16 %v61
  %v270 = vunpack.c.h.b16 %v61
  %v271 = vunpack.c.l.b16 %v62
  %v272 = vunpack.c.h.b16 %v62
  %v273 = vunpack.c.l.b16 %v63
  %v274 = vunpack.c.h.b16 %v63
  %v275 = vunpack.c.l.b16 %v64
  %v276 = vunpack.c.h.b16 %v64
  %v277 = vunpack.c.l.b16 %v65
  %v278 = vunpack.c.h.b16 %v65
  %v279 = vunpack.c.l.b16 %v66
  %v280 = vunpack.c.h.b16 %v66
  %v281 = vunpack.c.l.b16 %v67
  %v282 = vunpack.c.h.b16 %v67
  %v283 = vunpack.c.l.b16 %v68
  %v284 = vunpack.c.h.b16 %v68
  %v285 = vunpack.c.l.b16 %v69
  %v286 = vunpack.c.h.b16 %v69
  %v287 = vunpack.c.l.b16 %v70
  %v288 = vunpack.c.h.b16 %v70
  %v289 = vunpack.c.l.b16 %v71
  %v290 = vunpack.c.h.b16 %v71
  %v291 = vunpack.c.l.b16 %v72
  %v292 = vunpack.c.h.b16 %v72
  %v293 = vunpack.c.l.b16 %v73
  %v294 = vunpack.c.h.b16 %v73
  %v295 = vunpack.c.l.b16 %v74
  %v296 = vunpack.c.h.b16 %v74
  %v297 = vunpack.c.l.b16 %v75
  %v298 = vunpack.c.h.b16 %v75
  %v299 = vunpack.c.l.b16 %v76
  %v300 = vunpack.c.h.b16 %v76
  %v301 = vunpack.c.l.b16 %v77
  %v302 = vunpack.c.h.b16 %v77
  %v303 = vunpack.c.l.b16 %v78
  %v304 = vunpack.c.h.b16 %v78
  %v305 = vunpack.c.l.b16 %v79
  %v306 = vunpack.c.h.b16 %v79
  %v307 = vunpack.c.l.b16 %v80
  %v308 = vunpack.c.h.b16 %v80
  %v309 = vpack.c.b16 %v183, %v181
  %v310 = vpack.c.b16 %v184, %v182
  %v311 = vpack.c.b16 %v187, %v185
  %v312 = vpack.c.b16 %v188, %v186
  %v313 = vpack.c.b16 %v191, %v189
  %v314 = vpack.c.b16 %v192, %v190
  %v315 = vpack.c.b16 %v195, %v193
  %v316 = vpack.c.b16 %v196, %v194
  %v317 = vpack.c.b16 %v199, %v197
  %v318 = vpack.c.b16 %v200, %v198
  %v319 = vpack.c.b16 %v203, %v201
  %v320 = vpack.c.b16 %v204, %v202
  %v321 = vpack.c.b16 %v207, %v205
  %v322 = vpack.c.b16 %v208, %v206
  %v323 = vpack.c.b16 %v211, %v209
  %v324 = vpack.c.b16 %v212, %v210
  %v325 = vpack.c.b16 %v215, %v213
  %v326 = vpack.c.b16 %v216, %v214
  %v327 = vpack.c.b16 %v219, %v217
  %v328 = vpack.c.b16 %v220, %v218
  %v329 = vpack.c.b16 %v223, %v221
  %v330 = vpack.c.b16 %v224, %v222
  %v331 = vpack.c.b16 %v227, %v225
  %v332 = vpack.c.b16 %v228, %v226
  %v333 = vpack.c.b16 %v231, %v229
  %v334 = vpack.c.b16 %v232, %v230
  %v335 = vpack.c.b16 %v235, %v233
  %v336 = vpack.c.b16 %v236, %v234
  %v337 = vpack.c.b16 %v239, %v237
  %v338 = vpack.c.b16 %v240, %v238
  %v339 = vpack.c.b16 %v243, %v241
  %v340 = vpack.c.b16 %v244, %v242
  %v341 = vpack.c.b16 %v247, %v245
  %v342 = vpack.c.b16 %v248, %v246
  %v343 = vpack.c.b16 %v251, %v249
  %v344 = vpack.c.b16 %v252, %v250
  %v345 = vpack.c.b16 %v255, %v253
  %v346 = vpack.c.b16 %v256, %v254
  %v347 = vpack.c.b16 %v259, %v257
  %v348 = vpack.c.b16 %v260, %v258
  %v349 = vpack.c.b16 %v263, %v261
  %v350 = vpack.c.b16 %v264, %v262
  %v351 = vpack.c.b16 %v267, %v265
  %v352 = vpack.c.b16 %v268, %v266
  %v353 = vpack.c.b16 %v271, %v269
  %v354 = vpack.c.b16 %v272, %v270
  %v355 = vpack.c.b16 %v275, %v273
  %v356 = vpack.c.b16 %v276, %v274
  %v357 = vpack.c.b16 %v279, %v277
  %v358 = vpack.c.b16 %v280, %v278
  %v359 = vpack.c.b16 %v283, %v281
  %v360 = vpack.c.b16 %v284, %v282
  %v361 = vpack.c.b16 %v287, %v285
  %v362 = vpack.c.b16 %v288, %v286
  %v363 = vpack.c.b16 %v291, %v289
  %v364 = vpack.c.b16 %v292, %v290
  %v365 = vpack.c.b16 %v295, %v293
  %v366 = vpack.c.b16 %v296, %v294
  %v367 = vpack.c.b16 %v299, %v297
  %v368 = vpack.c.b16 %v300, %v298
  %v369 = vpack.c.b16 %v303, %v301
  %v370 = vpack.c.b16 %v304, %v302
  %v371 = vpack.c.b16 %v307, %v305
  %v372 = vpack.c.b16 %v308, %v306
  %v469 = vunpack.c.l.b16 %v81
  %v470 = vunpack.c.l.b16 %v82
  %v471 = vunpack.c.l.b16 %v83
  %v472 = vunpack.c.l.b16 %v84
  %v473 = vunpack.c.l.b16 %v85
  %v474 = vunpack.c.l.b16 %v86
  %v475 = vunpack.c.l.b16 %v87
  %v476 = vunpack.c.l.b16 %v88
  %v477 = vunpack.c.l.b16 %v89
  %v478 = vunpack.c.l.b16 %v90
  %v479 = vunpack.c.l.b16 %v91
  %v480 = vunpack.c.l.b16 %v92
  %v481 = vunpack.c.l.b16 %v93
  %v482 = vunpack.c.l.b16 %v94
  %v483 = vunpack.c.l.b16 %v95
  %v484 = vunpack.c.l.b16 %v96
  %v485 = vunpack.c.l.b16 %v97
  %v486 = vunpack.c.l.b16 %v98
  %v487 = vunpack.c.l.b16 %v99
  %v488 = vunpack.c.l.b16 %v100
  %v489 = vunpack.c.l.b16 %v101
  %v490 = vunpack.c.l.b16 %v102
  %v491 = vunpack.c.l.b16 %v103
  %v492 = vunpack.c.l.b16 %v104
  %v493 = vunpack.c.l.b16 %v105
  %v494 = vunpack.c.l.b16 %v106
  %v495 = vunpack.c.l.b16 %v107
  %v496 = vunpack.c.l.b16 %v108
  %v497 = vunpack.c.l.b16 %v109
  %v498 = vunpack.c.l.b16 %v110
  %v499 = vunpack.c.l.b16 %v111
  %v500 = vunpack.c.l.b16 %v112
  %v501 = vpack.c.b16 %v470, %v469
  %v502 = vpack.c.b16 %v472, %v471
  %v503 = vpack.c.b16 %v474, %v473
  %v504 = vpack.c.b16 %v476, %v475
  %v505 = vpack.c.b16 %v478, %v477
  %v506 = vpack.c.b16 %v480, %v479
  %v507 = vpack.c.b16 %v482, %v481
  %v508 = vpack.c.b16 %v484, %v483
  %v509 = vpack.c.b16 %v486, %v485
  %v510 = vpack.c.b16 %v488, %v487
  %v511 = vpack.c.b16 %v490, %v489
  %v512 = vpack.c.b16 %v492, %v491
  %v513 = vpack.c.b16 %v494, %v493
  %v514 = vpack.c.b16 %v496, %v495
  %v515 = vpack.c.b16 %v498, %v497
  %v516 = vpack.c.b16 %v500, %v499
  %533 = vmatpush.bf16.msra.mxu0 %v508
  %534 = vmatpush.bf16.msra.mxu0 %v507
  %535 = vmatpush.bf16.msra.mxu0 %v506
  %536 = vmatpush.bf16.msra.mxu0 %v505
  %537 = vmatpush.bf16.msra.mxu0 %v504
  %538 = vmatpush.bf16.msra.mxu0 %v503
  %539 = vmatpush.bf16.msra.mxu0 %v502
  %540 = vmatpush.bf16.msra.mxu0 %v501
  %541 = vmatmul.bf16.gmra.mxu0 %v309
  %v542 = vpop.f32.mrf.mxu0
  %v543 = vadd.f32 %v115, %v542
  %v544 = vpop.f32.mrf.mxu0
  %v545 = vadd.f32 %v115, %v544
  %546 = vmatmul.bf16.gmra.mxu0 %v311
  %v547 = vpop.f32.mrf.mxu0
  %v548 = vadd.f32 %v115, %v547
  %v549 = vpop.f32.mrf.mxu0
  %v550 = vadd.f32 %v115, %v549
  %551 = vmatmul.bf16.gmra.mxu0 %v313
  %v552 = vpop.f32.mrf.mxu0
  %v553 = vadd.f32 %v115, %v552
  %v554 = vpop.f32.mrf.mxu0
  %v555 = vadd.f32 %v115, %v554
  %556 = vmatmul.bf16.gmra.mxu0 %v315
  %v557 = vpop.f32.mrf.mxu0
  %v558 = vadd.f32 %v115, %v557
  %v559 = vpop.f32.mrf.mxu0
  %v560 = vadd.f32 %v115, %v559
  %561 = vmatmul.bf16.gmra.mxu0 %v317
  %v562 = vpop.f32.mrf.mxu0
  %v563 = vadd.f32 %v115, %v562
  %v564 = vpop.f32.mrf.mxu0
  %v565 = vadd.f32 %v115, %v564
  %566 = vmatmul.bf16.gmra.mxu0 %v319
  %v567 = vpop.f32.mrf.mxu0
  %v568 = vadd.f32 %v115, %v567
  %v569 = vpop.f32.mrf.mxu0
  %v570 = vadd.f32 %v115, %v569
  %571 = vmatmul.bf16.gmra.mxu0 %v321
  %v572 = vpop.f32.mrf.mxu0
  %v573 = vadd.f32 %v115, %v572
  %v574 = vpop.f32.mrf.mxu0
  %v575 = vadd.f32 %v115, %v574
  %576 = vmatmul.bf16.gmra.mxu0 %v323
  %v577 = vpop.f32.mrf.mxu0
  %v578 = vadd.f32 %v115, %v577
  %v579 = vpop.f32.mrf.mxu0
  %v580 = vadd.f32 %v115, %v579
  %581 = vmatmul.bf16.gmra.mxu0 %v325
  %v582 = vpop.f32.mrf.mxu0
  %v583 = vadd.f32 %v115, %v582
  %v584 = vpop.f32.mrf.mxu0
  %v585 = vadd.f32 %v115, %v584
  %586 = vmatmul.bf16.gmra.mxu0 %v327
  %v587 = vpop.f32.mrf.mxu0
  %v588 = vadd.f32 %v115, %v587
  %v589 = vpop.f32.mrf.mxu0
  %v590 = vadd.f32 %v115, %v589
  %591 = vmatmul.bf16.gmra.mxu0 %v329
  %v592 = vpop.f32.mrf.mxu0
  %v593 = vadd.f32 %v115, %v592
  %v594 = vpop.f32.mrf.mxu0
  %v595 = vadd.f32 %v115, %v594
  %596 = vmatmul.bf16.gmra.mxu0 %v331
  %v597 = vpop.f32.mrf.mxu0
  %v598 = vadd.f32 %v115, %v597
  %v599 = vpop.f32.mrf.mxu0
  %v600 = vadd.f32 %v115, %v599
  %601 = vmatmul.bf16.gmra.mxu0 %v333
  %v602 = vpop.f32.mrf.mxu0
  %v603 = vadd.f32 %v115, %v602
  %v604 = vpop.f32.mrf.mxu0
  %v605 = vadd.f32 %v115, %v604
  %606 = vmatmul.bf16.gmra.mxu0 %v335
  %v607 = vpop.f32.mrf.mxu0
  %v608 = vadd.f32 %v115, %v607
  %v609 = vpop.f32.mrf.mxu0
  %v610 = vadd.f32 %v115, %v609
  %611 = vmatmul.bf16.gmra.mxu0 %v337
  %v612 = vpop.f32.mrf.mxu0
  %v613 = vadd.f32 %v115, %v612
  %v614 = vpop.f32.mrf.mxu0
  %v615 = vadd.f32 %v115, %v614
  %616 = vmatmul.bf16.gmra.mxu0 %v339
  %v617 = vpop.f32.mrf.mxu0
  %v618 = vadd.f32 %v115, %v617
  %v619 = vpop.f32.mrf.mxu0
  %v620 = vadd.f32 %v115, %v619
  %621 = vmatmul.bf16.gmra.mxu0 %v341
  %v622 = vpop.f32.mrf.mxu0
  %v623 = vadd.f32 %v115, %v622
  %v624 = vpop.f32.mrf.mxu0
  %v625 = vadd.f32 %v115, %v624
  %626 = vmatmul.bf16.gmra.mxu0 %v343
  %v627 = vpop.f32.mrf.mxu0
  %v628 = vadd.f32 %v115, %v627
  %v629 = vpop.f32.mrf.mxu0
  %v630 = vadd.f32 %v115, %v629
  %631 = vmatmul.bf16.gmra.mxu0 %v345
  %v632 = vpop.f32.mrf.mxu0
  %v633 = vadd.f32 %v115, %v632
  %v634 = vpop.f32.mrf.mxu0
  %v635 = vadd.f32 %v115, %v634
  %636 = vmatmul.bf16.gmra.mxu0 %v347
  %v637 = vpop.f32.mrf.mxu0
  %v638 = vadd.f32 %v115, %v637
  %v639 = vpop.f32.mrf.mxu0
  %v640 = vadd.f32 %v115, %v639
  %641 = vmatmul.bf16.gmra.mxu0 %v349
  %v642 = vpop.f32.mrf.mxu0
  %v643 = vadd.f32 %v115, %v642
  %v644 = vpop.f32.mrf.mxu0
  %v645 = vadd.f32 %v115, %v644
  %646 = vmatmul.bf16.gmra.mxu0 %v351
  %v647 = vpop.f32.mrf.mxu0
  %v648 = vadd.f32 %v115, %v647
  %v649 = vpop.f32.mrf.mxu0
  %v650 = vadd.f32 %v115, %v649
  %651 = vmatmul.bf16.gmra.mxu0 %v353
  %v652 = vpop.f32.mrf.mxu0
  %v653 = vadd.f32 %v115, %v652
  %v654 = vpop.f32.mrf.mxu0
  %v655 = vadd.f32 %v115, %v654
  %656 = vmatmul.bf16.gmra.mxu0 %v355
  %v657 = vpop.f32.mrf.mxu0
  %v658 = vadd.f32 %v115, %v657
  %v659 = vpop.f32.mrf.mxu0
  %v660 = vadd.f32 %v115, %v659
  %661 = vmatmul.bf16.gmra.mxu0 %v357
  %v662 = vpop.f32.mrf.mxu0
  %v663 = vadd.f32 %v115, %v662
  %v664 = vpop.f32.mrf.mxu0
  %v665 = vadd.f32 %v115, %v664
  %666 = vmatmul.bf16.gmra.mxu0 %v359
  %v667 = vpop.f32.mrf.mxu0
  %v668 = vadd.f32 %v115, %v667
  %v669 = vpop.f32.mrf.mxu0
  %v670 = vadd.f32 %v115, %v669
  %671 = vmatmul.bf16.gmra.mxu0 %v361
  %v672 = vpop.f32.mrf.mxu0
  %v673 = vadd.f32 %v115, %v672
  %v674 = vpop.f32.mrf.mxu0
  %v675 = vadd.f32 %v115, %v674
  %676 = vmatmul.bf16.gmra.mxu0 %v363
  %v677 = vpop.f32.mrf.mxu0
  %v678 = vadd.f32 %v115, %v677
  %v679 = vpop.f32.mrf.mxu0
  %v680 = vadd.f32 %v115, %v679
  %681 = vmatmul.bf16.gmra.mxu0 %v365
  %v682 = vpop.f32.mrf.mxu0
  %v683 = vadd.f32 %v115, %v682
  %v684 = vpop.f32.mrf.mxu0
  %v685 = vadd.f32 %v115, %v684
  %686 = vmatmul.bf16.gmra.mxu0 %v367
  %v687 = vpop.f32.mrf.mxu0
  %v688 = vadd.f32 %v115, %v687
  %v689 = vpop.f32.mrf.mxu0
  %v690 = vadd.f32 %v115, %v689
  %691 = vmatmul.bf16.gmra.mxu0 %v369
  %v692 = vpop.f32.mrf.mxu0
  %v693 = vadd.f32 %v115, %v692
  %v694 = vpop.f32.mrf.mxu0
  %v695 = vadd.f32 %v115, %v694
  %696 = vmatmul.bf16.gmra.mxu0 %v371
  %v697 = vpop.f32.mrf.mxu0
  %v698 = vadd.f32 %v115, %v697
  %v699 = vpop.f32.mrf.mxu0
  %v700 = vadd.f32 %v115, %v699
  %701 = vdwg.mxu0
  %702 = vmatpush.bf16.msra.mxu0 %v516
  %703 = vmatpush.bf16.msra.mxu0 %v515
  %704 = vmatpush.bf16.msra.mxu0 %v514
  %705 = vmatpush.bf16.msra.mxu0 %v513
  %706 = vmatpush.bf16.msra.mxu0 %v512
  %707 = vmatpush.bf16.msra.mxu0 %v511
  %708 = vmatpush.bf16.msra.mxu0 %v510
  %709 = vmatpush.bf16.msra.mxu0 %v509
  %710 = vmatmul.bf16.gmra.mxu0 %v310
  %v711 = vpop.f32.mrf.mxu0
  %v712 = vadd.f32 %v543, %v711
  %v713 = vpop.f32.mrf.mxu0
  %v714 = vadd.f32 %v545, %v713
  %715 = vmatmul.bf16.gmra.mxu0 %v312
  %v716 = vpop.f32.mrf.mxu0
  %v717 = vadd.f32 %v548, %v716
  %v718 = vpop.f32.mrf.mxu0
  %v719 = vadd.f32 %v550, %v718
  %720 = vmatmul.bf16.gmra.mxu0 %v314
  %v721 = vpop.f32.mrf.mxu0
  %v722 = vadd.f32 %v553, %v721
  %v723 = vpop.f32.mrf.mxu0
  %v724 = vadd.f32 %v555, %v723
  %725 = vmatmul.bf16.gmra.mxu0 %v316
  %v726 = vpop.f32.mrf.mxu0
  %v727 = vadd.f32 %v558, %v726
  %v728 = vpop.f32.mrf.mxu0
  %v729 = vadd.f32 %v560, %v728
  %730 = vmatmul.bf16.gmra.mxu0 %v318
  %v731 = vpop.f32.mrf.mxu0
  %v732 = vadd.f32 %v563, %v731
  %v733 = vpop.f32.mrf.mxu0
  %v734 = vadd.f32 %v565, %v733
  %735 = vmatmul.bf16.gmra.mxu0 %v320
  %v736 = vpop.f32.mrf.mxu0
  %v737 = vadd.f32 %v568, %v736
  %v738 = vpop.f32.mrf.mxu0
  %v739 = vadd.f32 %v570, %v738
  %740 = vmatmul.bf16.gmra.mxu0 %v322
  %v741 = vpop.f32.mrf.mxu0
  %v742 = vadd.f32 %v573, %v741
  %v743 = vpop.f32.mrf.mxu0
  %v744 = vadd.f32 %v575, %v743
  %745 = vmatmul.bf16.gmra.mxu0 %v324
  %v746 = vpop.f32.mrf.mxu0
  %v747 = vadd.f32 %v578, %v746
  %v748 = vpop.f32.mrf.mxu0
  %v749 = vadd.f32 %v580, %v748
  %750 = vmatmul.bf16.gmra.mxu0 %v326
  %v751 = vpop.f32.mrf.mxu0
  %v752 = vadd.f32 %v583, %v751
  %v753 = vpop.f32.mrf.mxu0
  %v754 = vadd.f32 %v585, %v753
  %755 = vmatmul.bf16.gmra.mxu0 %v328
  %v756 = vpop.f32.mrf.mxu0
  %v757 = vadd.f32 %v588, %v756
  %v758 = vpop.f32.mrf.mxu0
  %v759 = vadd.f32 %v590, %v758
  %760 = vmatmul.bf16.gmra.mxu0 %v330
  %v761 = vpop.f32.mrf.mxu0
  %v762 = vadd.f32 %v593, %v761
  %v763 = vpop.f32.mrf.mxu0
  %v764 = vadd.f32 %v595, %v763
  %765 = vmatmul.bf16.gmra.mxu0 %v332
  %v766 = vpop.f32.mrf.mxu0
  %v767 = vadd.f32 %v598, %v766
  %v768 = vpop.f32.mrf.mxu0
  %v769 = vadd.f32 %v600, %v768
  %770 = vmatmul.bf16.gmra.mxu0 %v334
  %v771 = vpop.f32.mrf.mxu0
  %v772 = vadd.f32 %v603, %v771
  %v773 = vpop.f32.mrf.mxu0
  %v774 = vadd.f32 %v605, %v773
  %775 = vmatmul.bf16.gmra.mxu0 %v336
  %v776 = vpop.f32.mrf.mxu0
  %v777 = vadd.f32 %v608, %v776
  %v778 = vpop.f32.mrf.mxu0
  %v779 = vadd.f32 %v610, %v778
  %780 = vmatmul.bf16.gmra.mxu0 %v338
  %v781 = vpop.f32.mrf.mxu0
  %v782 = vadd.f32 %v613, %v781
  %v783 = vpop.f32.mrf.mxu0
  %v784 = vadd.f32 %v615, %v783
  %785 = vmatmul.bf16.gmra.mxu0 %v340
  %v786 = vpop.f32.mrf.mxu0
  %v787 = vadd.f32 %v618, %v786
  %v788 = vpop.f32.mrf.mxu0
  %v789 = vadd.f32 %v620, %v788
  %790 = vmatmul.bf16.gmra.mxu0 %v342
  %v791 = vpop.f32.mrf.mxu0
  %v792 = vadd.f32 %v623, %v791
  %v793 = vpop.f32.mrf.mxu0
  %v794 = vadd.f32 %v625, %v793
  %795 = vmatmul.bf16.gmra.mxu0 %v344
  %v796 = vpop.f32.mrf.mxu0
  %v797 = vadd.f32 %v628, %v796
  %v798 = vpop.f32.mrf.mxu0
  %v799 = vadd.f32 %v630, %v798
  %800 = vmatmul.bf16.gmra.mxu0 %v346
  %v801 = vpop.f32.mrf.mxu0
  %v802 = vadd.f32 %v633, %v801
  %v803 = vpop.f32.mrf.mxu0
  %v804 = vadd.f32 %v635, %v803
  %805 = vmatmul.bf16.gmra.mxu0 %v348
  %v806 = vpop.f32.mrf.mxu0
  %v807 = vadd.f32 %v638, %v806
  %v808 = vpop.f32.mrf.mxu0
  %v809 = vadd.f32 %v640, %v808
  %810 = vmatmul.bf16.gmra.mxu0 %v350
  %v811 = vpop.f32.mrf.mxu0
  %v812 = vadd.f32 %v643, %v811
  %v813 = vpop.f32.mrf.mxu0
  %v814 = vadd.f32 %v645, %v813
  %815 = vmatmul.bf16.gmra.mxu0 %v352
  %v816 = vpop.f32.mrf.mxu0
  %v817 = vadd.f32 %v648, %v816
  %v818 = vpop.f32.mrf.mxu0
  %v819 = vadd.f32 %v650, %v818
  %820 = vmatmul.bf16.gmra.mxu0 %v354
  %v821 = vpop.f32.mrf.mxu0
  %v822 = vadd.f32 %v653, %v821
  %v823 = vpop.f32.mrf.mxu0
  %v824 = vadd.f32 %v655, %v823
  %825 = vmatmul.bf16.gmra.mxu0 %v356
  %v826 = vpop.f32.mrf.mxu0
  %v827 = vadd.f32 %v658, %v826
  %v828 = vpop.f32.mrf.mxu0
  %v829 = vadd.f32 %v660, %v828
  %830 = vmatmul.bf16.gmra.mxu0 %v358
  %v831 = vpop.f32.mrf.mxu0
  %v832 = vadd.f32 %v663, %v831
  %v833 = vpop.f32.mrf.mxu0
  %v834 = vadd.f32 %v665, %v833
  %835 = vmatmul.bf16.gmra.mxu0 %v360
  %v836 = vpop.f32.mrf.mxu0
  %v837 = vadd.f32 %v668, %v836
  %v838 = vpop.f32.mrf.mxu0
  %v839 = vadd.f32 %v670, %v838
  %840 = vmatmul.bf16.gmra.mxu0 %v362
  %v841 = vpop.f32.mrf.mxu0
  %v842 = vadd.f32 %v673, %v841
  %v843 = vpop.f32.mrf.mxu0
  %v844 = vadd.f32 %v675, %v843
  %845 = vmatmul.bf16.gmra.mxu0 %v364
  %v846 = vpop.f32.mrf.mxu0
  %v847 = vadd.f32 %v678, %v846
  %v848 = vpop.f32.mrf.mxu0
  %v849 = vadd.f32 %v680, %v848
  %850 = vmatmul.bf16.gmra.mxu0 %v366
  %v851 = vpop.f32.mrf.mxu0
  %v852 = vadd.f32 %v683, %v851
  %v853 = vpop.f32.mrf.mxu0
  %v854 = vadd.f32 %v685, %v853
  %855 = vmatmul.bf16.gmra.mxu0 %v368
  %v856 = vpop.f32.mrf.mxu0
  %v857 = vadd.f32 %v688, %v856
  %v858 = vpop.f32.mrf.mxu0
  %v859 = vadd.f32 %v690, %v858
  %860 = vmatmul.bf16.gmra.mxu0 %v370
  %v861 = vpop.f32.mrf.mxu0
  %v862 = vadd.f32 %v693, %v861
  %v863 = vpop.f32.mrf.mxu0
  %v864 = vadd.f32 %v695, %v863
  %865 = vmatmul.bf16.gmra.mxu0 %v372
  %v866 = vpop.f32.mrf.mxu0
  %v867 = vadd.f32 %v698, %v866
  %v868 = vpop.f32.mrf.mxu0
  %v869 = vadd.f32 %v700, %v868
  %870 = vdwg.mxu0
  %v871 = vmax.f32 %v712, 0.0
  %v872 = vmax.f32 %v714, 0.0
  %v873 = vmax.f32 %v717, 0.0
  %v874 = vmax.f32 %v719, 0.0
  %v875 = vmax.f32 %v722, 0.0
  %v876 = vmax.f32 %v724, 0.0
  %v877 = vmax.f32 %v727, 0.0
  %v878 = vmax.f32 %v729, 0.0
  %v879 = vmax.f32 %v732, 0.0
  %v880 = vmax.f32 %v734, 0.0
  %v881 = vmax.f32 %v737, 0.0
  %v882 = vmax.f32 %v739, 0.0
  %v883 = vmax.f32 %v742, 0.0
  %v884 = vmax.f32 %v744, 0.0
  %v885 = vmax.f32 %v747, 0.0
  %v886 = vmax.f32 %v749, 0.0
  %v887 = vmax.f32 %v752, 0.0
  %v888 = vmax.f32 %v754, 0.0
  %v889 = vmax.f32 %v757, 0.0
  %v890 = vmax.f32 %v759, 0.0
  %v891 = vmax.f32 %v762, 0.0
  %v892 = vmax.f32 %v764, 0.0
  %v893 = vmax.f32 %v767, 0.0
  %v894 = vmax.f32 %v769, 0.0
  %v895 = vmax.f32 %v772, 0.0
  %v896 = vmax.f32 %v774, 0.0
  %v897 = vmax.f32 %v777, 0.0
  %v898 = vmax.f32 %v779, 0.0
  %v899 = vmax.f32 %v782, 0.0
  %v900 = vmax.f32 %v784, 0.0
  %v901 = vmax.f32 %v787, 0.0
  %v902 = vmax.f32 %v789, 0.0
  %v903 = vmax.f32 %v792, 0.0
  %v904 = vmax.f32 %v794, 0.0
  %v905 = vmax.f32 %v797, 0.0
  %v906 = vmax.f32 %v799, 0.0
  %v907 = vmax.f32 %v802, 0.0
  %v908 = vmax.f32 %v804, 0.0
  %v909 = vmax.f32 %v807, 0.0
  %v910 = vmax.f32 %v809, 0.0
  %v911 = vmax.f32 %v812, 0.0
  %v912 = vmax.f32 %v814, 0.0
  %v913 = vmax.f32 %v817, 0.0
  %v914 = vmax.f32 %v819, 0.0
  %v915 = vmax.f32 %v822, 0.0
  %v916 = vmax.f32 %v824, 0.0
  %v917 = vmax.f32 %v827, 0.0
  %v918 = vmax.f32 %v829, 0.0
  %v919 = vmax.f32 %v832, 0.0
  %v920 = vmax.f32 %v834, 0.0
  %v921 = vmax.f32 %v837, 0.0
  %v922 = vmax.f32 %v839, 0.0
  %v923 = vmax.f32 %v842, 0.0
  %v924 = vmax.f32 %v844, 0.0
  %v925 = vmax.f32 %v847, 0.0
  %v926 = vmax.f32 %v849, 0.0
  %v927 = vmax.f32 %v852, 0.0
  %v928 = vmax.f32 %v854, 0.0
  %v929 = vmax.f32 %v857, 0.0
  %v930 = vmax.f32 %v859, 0.0
  %v931 = vmax.f32 %v862, 0.0
  %v932 = vmax.f32 %v864, 0.0
  %v933 = vmax.f32 %v867, 0.0
  %v934 = vmax.f32 %v869, 0.0
  %v935 = vld [vmem:[%s3] sm:$0xf]
  %v936 = vld [vmem:[%s3 + $0x4] sm:$0xf]
  %v937 = vld [vmem:[%s3 + $0x8] sm:$0xf]
  %v938 = vld [vmem:[%s3 + $0xc] sm:$0xf]
  %v939 = vld [vmem:[%s3 + $0x10] sm:$0xf]
  %v940 = vld [vmem:[%s3 + $0x14] sm:$0xf]
  %v941 = vld [vmem:[%s3 + $0x18] sm:$0xf]
  %v942 = vld [vmem:[%s3 + $0x1c] sm:$0xf]
  %v943 = vld [vmem:[%s3 + $0x20] sm:$0xf]
  %v944 = vld [vmem:[%s3 + $0x24] sm:$0xf]
  %v945 = vld [vmem:[%s3 + $0x28] sm:$0xf]
  %v946 = vld [vmem:[%s3 + $0x2c] sm:$0xf]
  %v947 = vld [vmem:[%s3 + $0x30] sm:$0xf]
  %v948 = vld [vmem:[%s3 + $0x34] sm:$0xf]
  %v949 = vld [vmem:[%s3 + $0x38] sm:$0xf]
  %v950 = vld [vmem:[%s3 + $0x3c] sm:$0xf]
  %v951 = vld [vmem:[%s3 + $0x40] sm:$0xf]
  %v952 = vld [vmem:[%s3 + $0x44] sm:$0xf]
  %v953 = vld [vmem:[%s3 + $0x48] sm:$0xf]
  %v954 = vld [vmem:[%s3 + $0x4c] sm:$0xf]
  %v955 = vld [vmem:[%s3 + $0x50] sm:$0xf]
  %v956 = vld [vmem:[%s3 + $0x54] sm:$0xf]
  %v957 = vld [vmem:[%s3 + $0x58] sm:$0xf]
  %v958 = vld [vmem:[%s3 + $0x5c] sm:$0xf]
  %v959 = vld [vmem:[%s3 + $0x60] sm:$0xf]
  %v960 = vld [vmem:[%s3 + $0x64] sm:$0xf]
  %v961 = vld [vmem:[%s3 + $0x68] sm:$0xf]
  %v962 = vld [vmem:[%s3 + $0x6c] sm:$0xf]
  %v963 = vld [vmem:[%s3 + $0x70] sm:$0xf]
  %v964 = vld [vmem:[%s3 + $0x74] sm:$0xf]
  %v965 = vld [vmem:[%s3 + $0x78] sm:$0xf]
  %v966 = vld [vmem:[%s3 + $0x7c] sm:$0xf]
  %v967 = vld [vmem:[%s3 + $0x80] sm:$0xf]
  %v968 = vld [vmem:[%s3 + $0x84] sm:$0xf]
  %v969 = vld [vmem:[%s3 + $0x88] sm:$0xf]
  %v970 = vld [vmem:[%s3 + $0x8c] sm:$0xf]
  %v971 = vld [vmem:[%s3 + $0x90] sm:$0xf]
  %v972 = vld [vmem:[%s3 + $0x94] sm:$0xf]
  %v973 = vld [vmem:[%s3 + $0x98] sm:$0xf]
  %v974 = vld [vmem:[%s3 + $0x9c] sm:$0xf]
  %v975 = vld [vmem:[%s3 + $0xa0] sm:$0xf]
  %v976 = vld [vmem:[%s3 + $0xa4] sm:$0xf]
  %v977 = vld [vmem:[%s3 + $0xa8] sm:$0xf]
  %v978 = vld [vmem:[%s3 + $0xac] sm:$0xf]
  %v979 = vld [vmem:[%s3 + $0xb0] sm:$0xf]
  %v980 = vld [vmem:[%s3 + $0xb4] sm:$0xf]
  %v981 = vld [vmem:[%s3 + $0xb8] sm:$0xf]
  %v982 = vld [vmem:[%s3 + $0xbc] sm:$0xf]
  %v983 = vld [vmem:[%s3 + $0xc0] sm:$0xf]
  %v984 = vld [vmem:[%s3 + $0xc4] sm:$0xf]
  %v985 = vld [vmem:[%s3 + $0xc8] sm:$0xf]
  %v986 = vld [vmem:[%s3 + $0xcc] sm:$0xf]
  %v987 = vld [vmem:[%s3 + $0xd0] sm:$0xf]
  %v988 = vld [vmem:[%s3 + $0xd4] sm:$0xf]
  %v989 = vld [vmem:[%s3 + $0xd8] sm:$0xf]
  %v990 = vld [vmem:[%s3 + $0xdc] sm:$0xf]
  %v991 = vld [vmem:[%s3 + $0xe0] sm:$0xf]
  %v992 = vld [vmem:[%s3 + $0xe4] sm:$0xf]
  %v993 = vld [vmem:[%s3 + $0xe8] sm:$0xf]
  %v994 = vld [vmem:[%s3 + $0xec] sm:$0xf]
  %v995 = vld [vmem:[%s3 + $0xf0] sm:$0xf]
  %v996 = vld [vmem:[%s3 + $0xf4] sm:$0xf]
  %v997 = vld [vmem:[%s3 + $0xf8] sm:$0xf]
  %v998 = vld [vmem:[%s3 + $0xfc] sm:$0xf]
  %v999 = vunpack.c.l.bf16 %v935
  %v1000 = vunpack.c.l.bf16 %v936
  %v1001 = vunpack.c.l.bf16 %v937
  %v1002 = vunpack.c.l.bf16 %v938
  %v1003 = vunpack.c.l.bf16 %v939
  %v1004 = vunpack.c.l.bf16 %v940
  %v1005 = vunpack.c.l.bf16 %v941
  %v1006 = vunpack.c.l.bf16 %v942
  %v1007 = vunpack.c.l.bf16 %v943
  %v1008 = vunpack.c.l.bf16 %v944
  %v1009 = vunpack.c.l.bf16 %v945
  %v1010 = vunpack.c.l.bf16 %v946
  %v1011 = vunpack.c.l.bf16 %v947
  %v1012 = vunpack.c.l.bf16 %v948
  %v1013 = vunpack.c.l.bf16 %v949
  %v1014 = vunpack.c.l.bf16 %v950
  %v1015 = vunpack.c.l.bf16 %v951
  %v1016 = vunpack.c.l.bf16 %v952
  %v1017 = vunpack.c.l.bf16 %v953
  %v1018 = vunpack.c.l.bf16 %v954
  %v1019 = vunpack.c.l.bf16 %v955
  %v1020 = vunpack.c.l.bf16 %v956
  %v1021 = vunpack.c.l.bf16 %v957
  %v1022 = vunpack.c.l.bf16 %v958
  %v1023 = vunpack.c.l.bf16 %v959
  %v1024 = vunpack.c.l.bf16 %v960
  %v1025 = vunpack.c.l.bf16 %v961
  %v1026 = vunpack.c.l.bf16 %v962
  %v1027 = vunpack.c.l.bf16 %v963
  %v1028 = vunpack.c.l.bf16 %v964
  %v1029 = vunpack.c.l.bf16 %v965
  %v1030 = vunpack.c.l.bf16 %v966
  %v1031 = vunpack.c.l.bf16 %v967
  %v1032 = vunpack.c.l.bf16 %v968
  %v1033 = vunpack.c.l.bf16 %v969
  %v1034 = vunpack.c.l.bf16 %v970
  %v1035 = vunpack.c.l.bf16 %v971
  %v1036 = vunpack.c.l.bf16 %v972
  %v1037 = vunpack.c.l.bf16 %v973
  %v1038 = vunpack.c.l.bf16 %v974
  %v1039 = vunpack.c.l.bf16 %v975
  %v1040 = vunpack.c.l.bf16 %v976
  %v1041 = vunpack.c.l.bf16 %v977
  %v1042 = vunpack.c.l.bf16 %v978
  %v1043 = vunpack.c.l.bf16 %v979
  %v1044 = vunpack.c.l.bf16 %v980
  %v1045 = vunpack.c.l.bf16 %v981
  %v1046 = vunpack.c.l.bf16 %v982
  %v1047 = vunpack.c.l.bf16 %v983
  %v1048 = vunpack.c.l.bf16 %v984
  %v1049 = vunpack.c.l.bf16 %v985
  %v1050 = vunpack.c.l.bf16 %v986
  %v1051 = vunpack.c.l.bf16 %v987
  %v1052 = vunpack.c.l.bf16 %v988
  %v1053 = vunpack.c.l.bf16 %v989
  %v1054 = vunpack.c.l.bf16 %v990
  %v1055 = vunpack.c.l.bf16 %v991
  %v1056 = vunpack.c.l.bf16 %v992
  %v1057 = vunpack.c.l.bf16 %v993
  %v1058 = vunpack.c.l.bf16 %v994
  %v1059 = vunpack.c.l.bf16 %v995
  %v1060 = vunpack.c.l.bf16 %v996
  %v1061 = vunpack.c.l.bf16 %v997
  %v1062 = vunpack.c.l.bf16 %v998
  %v1063 = vadd.f32 %v871, %v999
  %v1064 = vadd.f32 %v872, %v1000
  %v1065 = vadd.f32 %v873, %v1001
  %v1066 = vadd.f32 %v874, %v1002
  %v1067 = vadd.f32 %v875, %v1003
  %v1068 = vadd.f32 %v876, %v1004
  %v1069 = vadd.f32 %v877, %v1005
  %v1070 = vadd.f32 %v878, %v1006
  %v1071 = vadd.f32 %v879, %v1007
  %v1072 = vadd.f32 %v880, %v1008
  %v1073 = vadd.f32 %v881, %v1009
  %v1074 = vadd.f32 %v882, %v1010
  %v1075 = vadd.f32 %v883, %v1011
  %v1076 = vadd.f32 %v884, %v1012
  %v1077 = vadd.f32 %v885, %v1013
  %v1078 = vadd.f32 %v886, %v1014
  %v1079 = vadd.f32 %v887, %v1015
  %v1080 = vadd.f32 %v888, %v1016
  %v1081 = vadd.f32 %v889, %v1017
  %v1082 = vadd.f32 %v890, %v1018
  %v1083 = vadd.f32 %v891, %v1019
  %v1084 = vadd.f32 %v892, %v1020
  %v1085 = vadd.f32 %v893, %v1021
  %v1086 = vadd.f32 %v894, %v1022
  %v1087 = vadd.f32 %v895, %v1023
  %v1088 = vadd.f32 %v896, %v1024
  %v1089 = vadd.f32 %v897, %v1025
  %v1090 = vadd.f32 %v898, %v1026
  %v1091 = vadd.f32 %v899, %v1027
  %v1092 = vadd.f32 %v900, %v1028
  %v1093 = vadd.f32 %v901, %v1029
  %v1094 = vadd.f32 %v902, %v1030
  %v1095 = vadd.f32 %v903, %v1031
  %v1096 = vadd.f32 %v904, %v1032
  %v1097 = vadd.f32 %v905, %v1033
  %v1098 = vadd.f32 %v906, %v1034
  %v1099 = vadd.f32 %v907, %v1035
  %v1100 = vadd.f32 %v908, %v1036
  %v1101 = vadd.f32 %v909, %v1037
  %v1102 = vadd.f32 %v910, %v1038
  %v1103 = vadd.f32 %v911, %v1039
  %v1104 = vadd.f32 %v912, %v1040
  %v1105 = vadd.f32 %v913, %v1041
  %v1106 = vadd.f32 %v914, %v1042
  %v1107 = vadd.f32 %v915, %v1043
  %v1108 = vadd.f32 %v916, %v1044
  %v1109 = vadd.f32 %v917, %v1045
  %v1110 = vadd.f32 %v918, %v1046
  %v1111 = vadd.f32 %v919, %v1047
  %v1112 = vadd.f32 %v920, %v1048
  %v1113 = vadd.f32 %v921, %v1049
  %v1114 = vadd.f32 %v922, %v1050
  %v1115 = vadd.f32 %v923, %v1051
  %v1116 = vadd.f32 %v924, %v1052
  %v1117 = vadd.f32 %v925, %v1053
  %v1118 = vadd.f32 %v926, %v1054
  %v1119 = vadd.f32 %v927, %v1055
  %v1120 = vadd.f32 %v928, %v1056
  %v1121 = vadd.f32 %v929, %v1057
  %v1122 = vadd.f32 %v930, %v1058
  %v1123 = vadd.f32 %v931, %v1059
  %v1124 = vadd.f32 %v932, %v1060
  %v1125 = vadd.f32 %v933, %v1061
  %v1126 = vadd.f32 %v934, %v1062
  %v1127 = vpack.c.bf16 %v1063, %v1063
  %v1128 = vpack.c.bf16 %v1064, %v1064
  %v1129 = vpack.c.bf16 %v1065, %v1065
  %v1130 = vpack.c.bf16 %v1066, %v1066
  %v1131 = vpack.c.bf16 %v1067, %v1067
  %v1132 = vpack.c.bf16 %v1068, %v1068
  %v1133 = vpack.c.bf16 %v1069, %v1069
  %v1134 = vpack.c.bf16 %v1070, %v1070
  %v1135 = vpack.c.bf16 %v1071, %v1071
  %v1136 = vpack.c.bf16 %v1072, %v1072
  %v1137 = vpack.c.bf16 %v1073, %v1073
  %v1138 = vpack.c.bf16 %v1074, %v1074
  %v1139 = vpack.c.bf16 %v1075, %v1075
  %v1140 = vpack.c.bf16 %v1076, %v1076
  %v1141 = vpack.c.bf16 %v1077, %v1077
  %v1142 = vpack.c.bf16 %v1078, %v1078
  %v1143 = vpack.c.bf16 %v1079, %v1079
  %v1144 = vpack.c.bf16 %v1080, %v1080
  %v1145 = vpack.c.bf16 %v1081, %v1081
  %v1146 = vpack.c.bf16 %v1082, %v1082
  %v1147 = vpack.c.bf16 %v1083, %v1083
  %v1148 = vpack.c.bf16 %v1084, %v1084
  %v1149 = vpack.c.bf16 %v1085, %v1085
  %v1150 = vpack.c.bf16 %v1086, %v1086
  %v1151 = vpack.c.bf16 %v1087, %v1087
  %v1152 = vpack.c.bf16 %v1088, %v1088
  %v1153 = vpack.c.bf16 %v1089, %v1089
  %v1154 = vpack.c.bf16 %v1090, %v1090
  %v1155 = vpack.c.bf16 %v1091, %v1091
  %v1156 = vpack.c.bf16 %v1092, %v1092
  %v1157 = vpack.c.bf16 %v1093, %v1093
  %v1158 = vpack.c.bf16 %v1094, %v1094
  %v1159 = vpack.c.bf16 %v1095, %v1095
  %v1160 = vpack.c.bf16 %v1096, %v1096
  %v1161 = vpack.c.bf16 %v1097, %v1097
  %v1162 = vpack.c.bf16 %v1098, %v1098
  %v1163 = vpack.c.bf16 %v1099, %v1099
  %v1164 = vpack.c.bf16 %v1100, %v1100
  %v1165 = vpack.c.bf16 %v1101, %v1101
  %v1166 = vpack.c.bf16 %v1102, %v1102
  %v1167 = vpack.c.bf16 %v1103, %v1103
  %v1168 = vpack.c.bf16 %v1104, %v1104
  %v1169 = vpack.c.bf16 %v1105, %v1105
  %v1170 = vpack.c.bf16 %v1106, %v1106
  %v1171 = vpack.c.bf16 %v1107, %v1107
  %v1172 = vpack.c.bf16 %v1108, %v1108
  %v1173 = vpack.c.bf16 %v1109, %v1109
  %v1174 = vpack.c.bf16 %v1110, %v1110
  %v1175 = vpack.c.bf16 %v1111, %v1111
  %v1176 = vpack.c.bf16 %v1112, %v1112
  %v1177 = vpack.c.bf16 %v1113, %v1113
  %v1178 = vpack.c.bf16 %v1114, %v1114
  %v1179 = vpack.c.bf16 %v1115, %v1115
  %v1180 = vpack.c.bf16 %v1116, %v1116
  %v1181 = vpack.c.bf16 %v1117, %v1117
  %v1182 = vpack.c.bf16 %v1118, %v1118
  %v1183 = vpack.c.bf16 %v1119, %v1119
  %v1184 = vpack.c.bf16 %v1120, %v1120
  %v1185 = vpack.c.bf16 %v1121, %v1121
  %v1186 = vpack.c.bf16 %v1122, %v1122
  %v1187 = vpack.c.bf16 %v1123, %v1123
  %v1188 = vpack.c.bf16 %v1124, %v1124
  %v1189 = vpack.c.bf16 %v1125, %v1125
  %v1190 = vpack.c.bf16 %v1126, %v1126
  %1191 = vst [vmem:[%s4] sm:$0xf] %v1127
  %1192 = vst [vmem:[%s4 + $0x4] sm:$0xf] %v1128
  %1193 = vst [vmem:[%s4 + $0x8] sm:$0xf] %v1129
  %1194 = vst [vmem:[%s4 + $0xc] sm:$0xf] %v1130
  %1195 = vst [vmem:[%s4 + $0x10] sm:$0xf] %v1131
  %1196 = vst [vmem:[%s4 + $0x14] sm:$0xf] %v1132
  %1197 = vst [vmem:[%s4 + $0x18] sm:$0xf] %v1133
  %1198 = vst [vmem:[%s4 + $0x1c] sm:$0xf] %v1134
  %1199 = vst [vmem:[%s4 + $0x20] sm:$0xf] %v1135
  %1200 = vst [vmem:[%s4 + $0x24] sm:$0xf] %v1136
  %1201 = vst [vmem:[%s4 + $0x28] sm:$0xf] %v1137
  %1202 = vst [vmem:[%s4 + $0x2c] sm:$0xf] %v1138
  %1203 = vst [vmem:[%s4 + $0x30] sm:$0xf] %v1139
  %1204 = vst [vmem:[%s4 + $0x34] sm:$0xf] %v1140
  %1205 = vst [vmem:[%s4 + $0x38] sm:$0xf] %v1141
  %1206 = vst [vmem:[%s4 + $0x3c] sm:$0xf] %v1142
  %1207 = vst [vmem:[%s4 + $0x40] sm:$0xf] %v1143
  %1208 = vst [vmem:[%s4 + $0x44] sm:$0xf] %v1144
  %1209 = vst [vmem:[%s4 + $0x48] sm:$0xf] %v1145
  %1210 = vst [vmem:[%s4 + $0x4c] sm:$0xf] %v1146
  %1211 = vst [vmem:[%s4 + $0x50] sm:$0xf] %v1147
  %1212 = vst [vmem:[%s4 + $0x54] sm:$0xf] %v1148
  %1213 = vst [vmem:[%s4 + $0x58] sm:$0xf] %v1149
  %1214 = vst [vmem:[%s4 + $0x5c] sm:$0xf] %v1150
  %1215 = vst [vmem:[%s4 + $0x60] sm:$0xf] %v1151
  %1216 = vst [vmem:[%s4 + $0x64] sm:$0xf] %v1152
  %1217 = vst [vmem:[%s4 + $0x68] sm:$0xf] %v1153
  %1218 = vst [vmem:[%s4 + $0x6c] sm:$0xf] %v1154
  %1219 = vst [vmem:[%s4 + $0x70] sm:$0xf] %v1155
  %1220 = vst [vmem:[%s4 + $0x74] sm:$0xf] %v1156
  %1221 = vst [vmem:[%s4 + $0x78] sm:$0xf] %v1157
  %1222 = vst [vmem:[%s4 + $0x7c] sm:$0xf] %v1158
  %1223 = vst [vmem:[%s4 + $0x80] sm:$0xf] %v1159
  %1224 = vst [vmem:[%s4 + $0x84] sm:$0xf] %v1160
  %1225 = vst [vmem:[%s4 + $0x88] sm:$0xf] %v1161
  %1226 = vst [vmem:[%s4 + $0x8c] sm:$0xf] %v1162
  %1227 = vst [vmem:[%s4 + $0x90] sm:$0xf] %v1163
  %1228 = vst [vmem:[%s4 + $0x94] sm:$0xf] %v1164
  %1229 = vst [vmem:[%s4 + $0x98] sm:$0xf] %v1165
  %1230 = vst [vmem:[%s4 + $0x9c] sm:$0xf] %v1166
  %1231 = vst [vmem:[%s4 + $0xa0] sm:$0xf] %v1167
  %1232 = vst [vmem:[%s4 + $0xa4] sm:$0xf] %v1168
  %1233 = vst [vmem:[%s4 + $0xa8] sm:$0xf] %v1169
  %1234 = vst [vmem:[%s4 + $0xac] sm:$0xf] %v1170
  %1235 = vst [vmem:[%s4 + $0xb0] sm:$0xf] %v1171
  %1236 = vst [vmem:[%s4 + $0xb4] sm:$0xf] %v1172
  %1237 = vst [vmem:[%s4 + $0xb8] sm:$0xf] %v1173
  %1238 = vst [vmem:[%s4 + $0xbc] sm:$0xf] %v1174
  %1239 = vst [vmem:[%s4 + $0xc0] sm:$0xf] %v1175
  %1240 = vst [vmem:[%s4 + $0xc4] sm:$0xf] %v1176
  %1241 = vst [vmem:[%s4 + $0xc8] sm:$0xf] %v1177
  %1242 = vst [vmem:[%s4 + $0xcc] sm:$0xf] %v1178
  %1243 = vst [vmem:[%s4 + $0xd0] sm:$0xf] %v1179
  %1244 = vst [vmem:[%s4 + $0xd4] sm:$0xf] %v1180
  %1245 = vst [vmem:[%s4 + $0xd8] sm:$0xf] %v1181
  %1246 = vst [vmem:[%s4 + $0xdc] sm:$0xf] %v1182
  %1247 = vst [vmem:[%s4 + $0xe0] sm:$0xf] %v1183
  %1248 = vst [vmem:[%s4 + $0xe4] sm:$0xf] %v1184
  %1249 = vst [vmem:[%s4 + $0xe8] sm:$0xf] %v1185
  %1250 = vst [vmem:[%s4 + $0xec] sm:$0xf] %v1186
  %1251 = vst [vmem:[%s4 + $0xf0] sm:$0xf] %v1187
  %1252 = vst [vmem:[%s4 + $0xf4] sm:$0xf] %v1188
  %1253 = vst [vmem:[%s4 + $0xf8] sm:$0xf] %v1189
  %1254 = vst [vmem:[%s4 + $0xfc] sm:$0xf] %v1190
  // Predicated region
  $region18: #{t_mv2_unet_forward.12} parent=0 // pred_check
    _
  $region19: #{t_mv2_unet_forward.12} parent=0 // pred_check_branch
    %1256 = sbr.rel (0) target = $region21
  $region20: #{t_mv2_unet_forward.12} parent=0 // pred_region
    _
  $region21: #{t_mv2_unet_forward.12} parent=0 // pred_fallthru
    _
  // Predicated region
  $region22: #{t_mv2_unet_forward.12} parent=0 // pred_check
    _
  $region23: #{t_mv2_unet_forward.12} parent=0 // pred_check_branch
    %1258 = sbr.rel (0) target = $region25
  $region24: #{t_mv2_unet_forward.12} parent=0 // pred_region
    _
  $region25: #{t_mv2_unet_forward.12} parent=0 // pred_fallthru
    _

// kernel: t_mv2_unet_forward.13
$region0: #{t_mv2_unet_forward.13}
  #allocation0 [shape = 'u32[]', space=smem, size = 0x4, offset = 0x4, fixed_abs, tag = 'smem constant byte address 0x4 - core index']
  #allocation1 [shape = 'u32[72,128]{1,0:T(1,128)}', space=vmem, size = 0x9000, scoped, tag = 'internal scratch']
  %s0 = inlined_call_operand.vmem [shape: bf16[512,256], index: 0, kind: input, shape index: {}]
  %s1 = inlined_call_operand.vmem [shape: bf16[256,128], index: 1, kind: input, shape index: {}]
  %s2 = inlined_call_operand.vmem [shape: f32[1,128], index: 2, kind: input, shape index: {}]
  %s3 = inlined_call_operand.vmem [shape: bf16[512,128], index: 3, kind: output, shape index: {}]
  %s4 = sld [smem:[#allocation0]]
  $region22: #{t_mv2_unet_forward.13} parent=0
    _
  %s6 = ssub.s32 1, %s4
  %s7 = scalar_select 0, %s6, %s4
  // Predicated region
  $region2: #{t_mv2_unet_forward.13} parent=0 // pred_check
    _
  $region3: #{t_mv2_unet_forward.13} parent=0 // pred_check_branch
    %9 = sbr.rel (0) target = $region5
  $region4: #{t_mv2_unet_forward.13} parent=0 // pred_region
    _
  $region5: #{t_mv2_unet_forward.13} parent=0 // pred_fallthru
    _
  // Predicated region
  $region6: #{t_mv2_unet_forward.13} parent=0 // pred_check
    _
  $region7: #{t_mv2_unet_forward.13} parent=0 // pred_check_branch
    %11 = sbr.rel (0) target = $region9
  $region8: #{t_mv2_unet_forward.13} parent=0 // pred_region
    _
  $region9: #{t_mv2_unet_forward.13} parent=0 // pred_fallthru
    _
  // Predicated region
  $region10: #{t_mv2_unet_forward.13} parent=0 // pred_check
    _
  $region11: #{t_mv2_unet_forward.13} parent=0 // pred_check_branch
    %13 = sbr.rel (0) target = $region13
  $region12: #{t_mv2_unet_forward.13} parent=0 // pred_region
    _
  $region13: #{t_mv2_unet_forward.13} parent=0 // pred_fallthru
    _
  %v14 = vld [vmem:[%s0] sm:$0xff]
  %v15 = vld [vmem:[%s0 + $0x8] sm:$0xff]
  %v16 = vld [vmem:[%s0 + $0x10] sm:$0xff]
  %v17 = vld [vmem:[%s0 + $0x18] sm:$0xff]
  %v18 = vld [vmem:[%s0 + $0x20] sm:$0xff]
  %v19 = vld [vmem:[%s0 + $0x28] sm:$0xff]
  %v20 = vld [vmem:[%s0 + $0x30] sm:$0xff]
  %v21 = vld [vmem:[%s0 + $0x38] sm:$0xff]
  %v22 = vld [vmem:[%s0 + $0x40] sm:$0xff]
  %v23 = vld [vmem:[%s0 + $0x48] sm:$0xff]
  %v24 = vld [vmem:[%s0 + $0x50] sm:$0xff]
  %v25 = vld [vmem:[%s0 + $0x58] sm:$0xff]
  %v26 = vld [vmem:[%s0 + $0x60] sm:$0xff]
  %v27 = vld [vmem:[%s0 + $0x68] sm:$0xff]
  %v28 = vld [vmem:[%s0 + $0x70] sm:$0xff]
  %v29 = vld [vmem:[%s0 + $0x78] sm:$0xff]
  %v30 = vld [vmem:[%s0 + $0x80] sm:$0xff]
  %v31 = vld [vmem:[%s0 + $0x88] sm:$0xff]
  %v32 = vld [vmem:[%s0 + $0x90] sm:$0xff]
  %v33 = vld [vmem:[%s0 + $0x98] sm:$0xff]
  %v34 = vld [vmem:[%s0 + $0xa0] sm:$0xff]
  %v35 = vld [vmem:[%s0 + $0xa8] sm:$0xff]
  %v36 = vld [vmem:[%s0 + $0xb0] sm:$0xff]
  %v37 = vld [vmem:[%s0 + $0xb8] sm:$0xff]
  %v38 = vld [vmem:[%s0 + $0xc0] sm:$0xff]
  %v39 = vld [vmem:[%s0 + $0xc8] sm:$0xff]
  %v40 = vld [vmem:[%s0 + $0xd0] sm:$0xff]
  %v41 = vld [vmem:[%s0 + $0xd8] sm:$0xff]
  %v42 = vld [vmem:[%s0 + $0xe0] sm:$0xff]
  %v43 = vld [vmem:[%s0 + $0xe8] sm:$0xff]
  %v44 = vld [vmem:[%s0 + $0xf0] sm:$0xff]
  %v45 = vld [vmem:[%s0 + $0xf8] sm:$0xff]
  %v46 = vld [vmem:[%s0 + $0x100] sm:$0xff]
  %v47 = vld [vmem:[%s0 + $0x108] sm:$0xff]
  %v48 = vld [vmem:[%s0 + $0x110] sm:$0xff]
  %v49 = vld [vmem:[%s0 + $0x118] sm:$0xff]
  %v50 = vld [vmem:[%s0 + $0x120] sm:$0xff]
  %v51 = vld [vmem:[%s0 + $0x128] sm:$0xff]
  %v52 = vld [vmem:[%s0 + $0x130] sm:$0xff]
  %v53 = vld [vmem:[%s0 + $0x138] sm:$0xff]
  %v54 = vld [vmem:[%s0 + $0x140] sm:$0xff]
  %v55 = vld [vmem:[%s0 + $0x148] sm:$0xff]
  %v56 = vld [vmem:[%s0 + $0x150] sm:$0xff]
  %v57 = vld [vmem:[%s0 + $0x158] sm:$0xff]
  %v58 = vld [vmem:[%s0 + $0x160] sm:$0xff]
  %v59 = vld [vmem:[%s0 + $0x168] sm:$0xff]
  %v60 = vld [vmem:[%s0 + $0x170] sm:$0xff]
  %v61 = vld [vmem:[%s0 + $0x178] sm:$0xff]
  %v62 = vld [vmem:[%s0 + $0x180] sm:$0xff]
  %v63 = vld [vmem:[%s0 + $0x188] sm:$0xff]
  %v64 = vld [vmem:[%s0 + $0x190] sm:$0xff]
  %v65 = vld [vmem:[%s0 + $0x198] sm:$0xff]
  %v66 = vld [vmem:[%s0 + $0x1a0] sm:$0xff]
  %v67 = vld [vmem:[%s0 + $0x1a8] sm:$0xff]
  %v68 = vld [vmem:[%s0 + $0x1b0] sm:$0xff]
  %v69 = vld [vmem:[%s0 + $0x1b8] sm:$0xff]
  %v70 = vld [vmem:[%s0 + $0x1c0] sm:$0xff]
  %v71 = vld [vmem:[%s0 + $0x1c8] sm:$0xff]
  %v72 = vld [vmem:[%s0 + $0x1d0] sm:$0xff]
  %v73 = vld [vmem:[%s0 + $0x1d8] sm:$0xff]
  %v74 = vld [vmem:[%s0 + $0x1e0] sm:$0xff]
  %v75 = vld [vmem:[%s0 + $0x1e8] sm:$0xff]
  %v76 = vld [vmem:[%s0 + $0x1f0] sm:$0xff]
  %v77 = vld [vmem:[%s0 + $0x1f8] sm:$0xff]
  %v78 = vld [vmem:[%s1] sm:$0xf]
  %v79 = vld [vmem:[%s1 + $0x4] sm:$0xf]
  %v80 = vld [vmem:[%s1 + $0x8] sm:$0xf]
  %v81 = vld [vmem:[%s1 + $0xc] sm:$0xf]
  %v82 = vld [vmem:[%s1 + $0x10] sm:$0xf]
  %v83 = vld [vmem:[%s1 + $0x14] sm:$0xf]
  %v84 = vld [vmem:[%s1 + $0x18] sm:$0xf]
  %v85 = vld [vmem:[%s1 + $0x1c] sm:$0xf]
  %v86 = vld [vmem:[%s1 + $0x20] sm:$0xf]
  %v87 = vld [vmem:[%s1 + $0x24] sm:$0xf]
  %v88 = vld [vmem:[%s1 + $0x28] sm:$0xf]
  %v89 = vld [vmem:[%s1 + $0x2c] sm:$0xf]
  %v90 = vld [vmem:[%s1 + $0x30] sm:$0xf]
  %v91 = vld [vmem:[%s1 + $0x34] sm:$0xf]
  %v92 = vld [vmem:[%s1 + $0x38] sm:$0xf]
  %v93 = vld [vmem:[%s1 + $0x3c] sm:$0xf]
  %v94 = vld [vmem:[%s1 + $0x40] sm:$0xf]
  %v95 = vld [vmem:[%s1 + $0x44] sm:$0xf]
  %v96 = vld [vmem:[%s1 + $0x48] sm:$0xf]
  %v97 = vld [vmem:[%s1 + $0x4c] sm:$0xf]
  %v98 = vld [vmem:[%s1 + $0x50] sm:$0xf]
  %v99 = vld [vmem:[%s1 + $0x54] sm:$0xf]
  %v100 = vld [vmem:[%s1 + $0x58] sm:$0xf]
  %v101 = vld [vmem:[%s1 + $0x5c] sm:$0xf]
  %v102 = vld [vmem:[%s1 + $0x60] sm:$0xf]
  %v103 = vld [vmem:[%s1 + $0x64] sm:$0xf]
  %v104 = vld [vmem:[%s1 + $0x68] sm:$0xf]
  %v105 = vld [vmem:[%s1 + $0x6c] sm:$0xf]
  %v106 = vld [vmem:[%s1 + $0x70] sm:$0xf]
  %v107 = vld [vmem:[%s1 + $0x74] sm:$0xf]
  %v108 = vld [vmem:[%s1 + $0x78] sm:$0xf]
  %v109 = vld [vmem:[%s1 + $0x7c] sm:$0xf]
  %v110 = vld [vmem:[%s2] sm:$0x1]
  %v112 = vperm.slane %v110, 0
  %v178 = vunpack.c.l.b16 %v14
  %v179 = vunpack.c.h.b16 %v14
  %v180 = vunpack.c.l.b16 %v15
  %v181 = vunpack.c.h.b16 %v15
  %v182 = vunpack.c.l.b16 %v16
  %v183 = vunpack.c.h.b16 %v16
  %v184 = vunpack.c.l.b16 %v17
  %v185 = vunpack.c.h.b16 %v17
  %v186 = vunpack.c.l.b16 %v18
  %v187 = vunpack.c.h.b16 %v18
  %v188 = vunpack.c.l.b16 %v19
  %v189 = vunpack.c.h.b16 %v19
  %v190 = vunpack.c.l.b16 %v20
  %v191 = vunpack.c.h.b16 %v20
  %v192 = vunpack.c.l.b16 %v21
  %v193 = vunpack.c.h.b16 %v21
  %v194 = vunpack.c.l.b16 %v22
  %v195 = vunpack.c.h.b16 %v22
  %v196 = vunpack.c.l.b16 %v23
  %v197 = vunpack.c.h.b16 %v23
  %v198 = vunpack.c.l.b16 %v24
  %v199 = vunpack.c.h.b16 %v24
  %v200 = vunpack.c.l.b16 %v25
  %v201 = vunpack.c.h.b16 %v25
  %v202 = vunpack.c.l.b16 %v26
  %v203 = vunpack.c.h.b16 %v26
  %v204 = vunpack.c.l.b16 %v27
  %v205 = vunpack.c.h.b16 %v27
  %v206 = vunpack.c.l.b16 %v28
  %v207 = vunpack.c.h.b16 %v28
  %v208 = vunpack.c.l.b16 %v29
  %v209 = vunpack.c.h.b16 %v29
  %v210 = vunpack.c.l.b16 %v30
  %v211 = vunpack.c.h.b16 %v30
  %v212 = vunpack.c.l.b16 %v31
  %v213 = vunpack.c.h.b16 %v31
  %v214 = vunpack.c.l.b16 %v32
  %v215 = vunpack.c.h.b16 %v32
  %v216 = vunpack.c.l.b16 %v33
  %v217 = vunpack.c.h.b16 %v33
  %v218 = vunpack.c.l.b16 %v34
  %v219 = vunpack.c.h.b16 %v34
  %v220 = vunpack.c.l.b16 %v35
  %v221 = vunpack.c.h.b16 %v35
  %v222 = vunpack.c.l.b16 %v36
  %v223 = vunpack.c.h.b16 %v36
  %v224 = vunpack.c.l.b16 %v37
  %v225 = vunpack.c.h.b16 %v37
  %v226 = vunpack.c.l.b16 %v38
  %v227 = vunpack.c.h.b16 %v38
  %v228 = vunpack.c.l.b16 %v39
  %v229 = vunpack.c.h.b16 %v39
  %v230 = vunpack.c.l.b16 %v40
  %v231 = vunpack.c.h.b16 %v40
  %v232 = vunpack.c.l.b16 %v41
  %v233 = vunpack.c.h.b16 %v41
  %v234 = vunpack.c.l.b16 %v42
  %v235 = vunpack.c.h.b16 %v42
  %v236 = vunpack.c.l.b16 %v43
  %v237 = vunpack.c.h.b16 %v43
  %v238 = vunpack.c.l.b16 %v44
  %v239 = vunpack.c.h.b16 %v44
  %v240 = vunpack.c.l.b16 %v45
  %v241 = vunpack.c.h.b16 %v45
  %v242 = vunpack.c.l.b16 %v46
  %v243 = vunpack.c.h.b16 %v46
  %v244 = vunpack.c.l.b16 %v47
  %v245 = vunpack.c.h.b16 %v47
  %v246 = vunpack.c.l.b16 %v48
  %v247 = vunpack.c.h.b16 %v48
  %v248 = vunpack.c.l.b16 %v49
  %v249 = vunpack.c.h.b16 %v49
  %v250 = vunpack.c.l.b16 %v50
  %v251 = vunpack.c.h.b16 %v50
  %v252 = vunpack.c.l.b16 %v51
  %v253 = vunpack.c.h.b16 %v51
  %v254 = vunpack.c.l.b16 %v52
  %v255 = vunpack.c.h.b16 %v52
  %v256 = vunpack.c.l.b16 %v53
  %v257 = vunpack.c.h.b16 %v53
  %v258 = vunpack.c.l.b16 %v54
  %v259 = vunpack.c.h.b16 %v54
  %v260 = vunpack.c.l.b16 %v55
  %v261 = vunpack.c.h.b16 %v55
  %v262 = vunpack.c.l.b16 %v56
  %v263 = vunpack.c.h.b16 %v56
  %v264 = vunpack.c.l.b16 %v57
  %v265 = vunpack.c.h.b16 %v57
  %v266 = vunpack.c.l.b16 %v58
  %v267 = vunpack.c.h.b16 %v58
  %v268 = vunpack.c.l.b16 %v59
  %v269 = vunpack.c.h.b16 %v59
  %v270 = vunpack.c.l.b16 %v60
  %v271 = vunpack.c.h.b16 %v60
  %v272 = vunpack.c.l.b16 %v61
  %v273 = vunpack.c.h.b16 %v61
  %v274 = vunpack.c.l.b16 %v62
  %v275 = vunpack.c.h.b16 %v62
  %v276 = vunpack.c.l.b16 %v63
  %v277 = vunpack.c.h.b16 %v63
  %v278 = vunpack.c.l.b16 %v64
  %v279 = vunpack.c.h.b16 %v64
  %v280 = vunpack.c.l.b16 %v65
  %v281 = vunpack.c.h.b16 %v65
  %v282 = vunpack.c.l.b16 %v66
  %v283 = vunpack.c.h.b16 %v66
  %v284 = vunpack.c.l.b16 %v67
  %v285 = vunpack.c.h.b16 %v67
  %v286 = vunpack.c.l.b16 %v68
  %v287 = vunpack.c.h.b16 %v68
  %v288 = vunpack.c.l.b16 %v69
  %v289 = vunpack.c.h.b16 %v69
  %v290 = vunpack.c.l.b16 %v70
  %v291 = vunpack.c.h.b16 %v70
  %v292 = vunpack.c.l.b16 %v71
  %v293 = vunpack.c.h.b16 %v71
  %v294 = vunpack.c.l.b16 %v72
  %v295 = vunpack.c.h.b16 %v72
  %v296 = vunpack.c.l.b16 %v73
  %v297 = vunpack.c.h.b16 %v73
  %v298 = vunpack.c.l.b16 %v74
  %v299 = vunpack.c.h.b16 %v74
  %v300 = vunpack.c.l.b16 %v75
  %v301 = vunpack.c.h.b16 %v75
  %v302 = vunpack.c.l.b16 %v76
  %v303 = vunpack.c.h.b16 %v76
  %v304 = vunpack.c.l.b16 %v77
  %v305 = vunpack.c.h.b16 %v77
  %v306 = vpack.c.b16 %v180, %v178
  %v307 = vpack.c.b16 %v181, %v179
  %v308 = vpack.c.b16 %v184, %v182
  %v309 = vpack.c.b16 %v185, %v183
  %v310 = vpack.c.b16 %v188, %v186
  %v311 = vpack.c.b16 %v189, %v187
  %v312 = vpack.c.b16 %v192, %v190
  %v313 = vpack.c.b16 %v193, %v191
  %v314 = vpack.c.b16 %v196, %v194
  %v315 = vpack.c.b16 %v197, %v195
  %v316 = vpack.c.b16 %v200, %v198
  %v317 = vpack.c.b16 %v201, %v199
  %v318 = vpack.c.b16 %v204, %v202
  %v319 = vpack.c.b16 %v205, %v203
  %v320 = vpack.c.b16 %v208, %v206
  %v321 = vpack.c.b16 %v209, %v207
  %v322 = vpack.c.b16 %v212, %v210
  %v323 = vpack.c.b16 %v213, %v211
  %v324 = vpack.c.b16 %v216, %v214
  %v325 = vpack.c.b16 %v217, %v215
  %v326 = vpack.c.b16 %v220, %v218
  %v327 = vpack.c.b16 %v221, %v219
  %v328 = vpack.c.b16 %v224, %v222
  %v329 = vpack.c.b16 %v225, %v223
  %v330 = vpack.c.b16 %v228, %v226
  %v331 = vpack.c.b16 %v229, %v227
  %v332 = vpack.c.b16 %v232, %v230
  %v333 = vpack.c.b16 %v233, %v231
  %v334 = vpack.c.b16 %v236, %v234
  %v335 = vpack.c.b16 %v237, %v235
  %v336 = vpack.c.b16 %v240, %v238
  %v337 = vpack.c.b16 %v241, %v239
  %v338 = vpack.c.b16 %v244, %v242
  %v339 = vpack.c.b16 %v245, %v243
  %v340 = vpack.c.b16 %v248, %v246
  %v341 = vpack.c.b16 %v249, %v247
  %v342 = vpack.c.b16 %v252, %v250
  %v343 = vpack.c.b16 %v253, %v251
  %v344 = vpack.c.b16 %v256, %v254
  %v345 = vpack.c.b16 %v257, %v255
  %v346 = vpack.c.b16 %v260, %v258
  %v347 = vpack.c.b16 %v261, %v259
  %v348 = vpack.c.b16 %v264, %v262
  %v349 = vpack.c.b16 %v265, %v263
  %v350 = vpack.c.b16 %v268, %v266
  %v351 = vpack.c.b16 %v269, %v267
  %v352 = vpack.c.b16 %v272, %v270
  %v353 = vpack.c.b16 %v273, %v271
  %v354 = vpack.c.b16 %v276, %v274
  %v355 = vpack.c.b16 %v277, %v275
  %v356 = vpack.c.b16 %v280, %v278
  %v357 = vpack.c.b16 %v281, %v279
  %v358 = vpack.c.b16 %v284, %v282
  %v359 = vpack.c.b16 %v285, %v283
  %v360 = vpack.c.b16 %v288, %v286
  %v361 = vpack.c.b16 %v289, %v287
  %v362 = vpack.c.b16 %v292, %v290
  %v363 = vpack.c.b16 %v293, %v291
  %v364 = vpack.c.b16 %v296, %v294
  %v365 = vpack.c.b16 %v297, %v295
  %v366 = vpack.c.b16 %v300, %v298
  %v367 = vpack.c.b16 %v301, %v299
  %v368 = vpack.c.b16 %v304, %v302
  %v369 = vpack.c.b16 %v305, %v303
  %v466 = vunpack.c.l.b16 %v78
  %v467 = vunpack.c.l.b16 %v79
  %v468 = vunpack.c.l.b16 %v80
  %v469 = vunpack.c.l.b16 %v81
  %v470 = vunpack.c.l.b16 %v82
  %v471 = vunpack.c.l.b16 %v83
  %v472 = vunpack.c.l.b16 %v84
  %v473 = vunpack.c.l.b16 %v85
  %v474 = vunpack.c.l.b16 %v86
  %v475 = vunpack.c.l.b16 %v87
  %v476 = vunpack.c.l.b16 %v88
  %v477 = vunpack.c.l.b16 %v89
  %v478 = vunpack.c.l.b16 %v90
  %v479 = vunpack.c.l.b16 %v91
  %v480 = vunpack.c.l.b16 %v92
  %v481 = vunpack.c.l.b16 %v93
  %v482 = vunpack.c.l.b16 %v94
  %v483 = vunpack.c.l.b16 %v95
  %v484 = vunpack.c.l.b16 %v96
  %v485 = vunpack.c.l.b16 %v97
  %v486 = vunpack.c.l.b16 %v98
  %v487 = vunpack.c.l.b16 %v99
  %v488 = vunpack.c.l.b16 %v100
  %v489 = vunpack.c.l.b16 %v101
  %v490 = vunpack.c.l.b16 %v102
  %v491 = vunpack.c.l.b16 %v103
  %v492 = vunpack.c.l.b16 %v104
  %v493 = vunpack.c.l.b16 %v105
  %v494 = vunpack.c.l.b16 %v106
  %v495 = vunpack.c.l.b16 %v107
  %v496 = vunpack.c.l.b16 %v108
  %v497 = vunpack.c.l.b16 %v109
  %v498 = vpack.c.b16 %v467, %v466
  %v499 = vpack.c.b16 %v469, %v468
  %v500 = vpack.c.b16 %v471, %v470
  %v501 = vpack.c.b16 %v473, %v472
  %v502 = vpack.c.b16 %v475, %v474
  %v503 = vpack.c.b16 %v477, %v476
  %v504 = vpack.c.b16 %v479, %v478
  %v505 = vpack.c.b16 %v481, %v480
  %v506 = vpack.c.b16 %v483, %v482
  %v507 = vpack.c.b16 %v485, %v484
  %v508 = vpack.c.b16 %v487, %v486
  %v509 = vpack.c.b16 %v489, %v488
  %v510 = vpack.c.b16 %v491, %v490
  %v511 = vpack.c.b16 %v493, %v492
  %v512 = vpack.c.b16 %v495, %v494
  %v513 = vpack.c.b16 %v497, %v496
  %530 = vmatpush.bf16.msra.mxu0 %v505
  %531 = vmatpush.bf16.msra.mxu0 %v504
  %532 = vmatpush.bf16.msra.mxu0 %v503
  %533 = vmatpush.bf16.msra.mxu0 %v502
  %534 = vmatpush.bf16.msra.mxu0 %v501
  %535 = vmatpush.bf16.msra.mxu0 %v500
  %536 = vmatpush.bf16.msra.mxu0 %v499
  %537 = vmatpush.bf16.msra.mxu0 %v498
  %538 = vmatmul.bf16.gmra.mxu0 %v306
  %v539 = vpop.f32.mrf.mxu0
  %v540 = vadd.f32 %v112, %v539
  %v541 = vpop.f32.mrf.mxu0
  %v542 = vadd.f32 %v112, %v541
  %543 = vmatmul.bf16.gmra.mxu0 %v308
  %v544 = vpop.f32.mrf.mxu0
  %v545 = vadd.f32 %v112, %v544
  %v546 = vpop.f32.mrf.mxu0
  %v547 = vadd.f32 %v112, %v546
  %548 = vmatmul.bf16.gmra.mxu0 %v310
  %v549 = vpop.f32.mrf.mxu0
  %v550 = vadd.f32 %v112, %v549
  %v551 = vpop.f32.mrf.mxu0
  %v552 = vadd.f32 %v112, %v551
  %553 = vmatmul.bf16.gmra.mxu0 %v312
  %v554 = vpop.f32.mrf.mxu0
  %v555 = vadd.f32 %v112, %v554
  %v556 = vpop.f32.mrf.mxu0
  %v557 = vadd.f32 %v112, %v556
  %558 = vmatmul.bf16.gmra.mxu0 %v314
  %v559 = vpop.f32.mrf.mxu0
  %v560 = vadd.f32 %v112, %v559
  %v561 = vpop.f32.mrf.mxu0
  %v562 = vadd.f32 %v112, %v561
  %563 = vmatmul.bf16.gmra.mxu0 %v316
  %v564 = vpop.f32.mrf.mxu0
  %v565 = vadd.f32 %v112, %v564
  %v566 = vpop.f32.mrf.mxu0
  %v567 = vadd.f32 %v112, %v566
  %568 = vmatmul.bf16.gmra.mxu0 %v318
  %v569 = vpop.f32.mrf.mxu0
  %v570 = vadd.f32 %v112, %v569
  %v571 = vpop.f32.mrf.mxu0
  %v572 = vadd.f32 %v112, %v571
  %573 = vmatmul.bf16.gmra.mxu0 %v320
  %v574 = vpop.f32.mrf.mxu0
  %v575 = vadd.f32 %v112, %v574
  %v576 = vpop.f32.mrf.mxu0
  %v577 = vadd.f32 %v112, %v576
  %578 = vmatmul.bf16.gmra.mxu0 %v322
  %v579 = vpop.f32.mrf.mxu0
  %v580 = vadd.f32 %v112, %v579
  %v581 = vpop.f32.mrf.mxu0
  %v582 = vadd.f32 %v112, %v581
  %583 = vmatmul.bf16.gmra.mxu0 %v324
  %v584 = vpop.f32.mrf.mxu0
  %v585 = vadd.f32 %v112, %v584
  %v586 = vpop.f32.mrf.mxu0
  %v587 = vadd.f32 %v112, %v586
  %588 = vmatmul.bf16.gmra.mxu0 %v326
  %v589 = vpop.f32.mrf.mxu0
  %v590 = vadd.f32 %v112, %v589
  %v591 = vpop.f32.mrf.mxu0
  %v592 = vadd.f32 %v112, %v591
  %593 = vmatmul.bf16.gmra.mxu0 %v328
  %v594 = vpop.f32.mrf.mxu0
  %v595 = vadd.f32 %v112, %v594
  %v596 = vpop.f32.mrf.mxu0
  %v597 = vadd.f32 %v112, %v596
  %598 = vmatmul.bf16.gmra.mxu0 %v330
  %v599 = vpop.f32.mrf.mxu0
  %v600 = vadd.f32 %v112, %v599
  %v601 = vpop.f32.mrf.mxu0
  %v602 = vadd.f32 %v112, %v601
  %603 = vmatmul.bf16.gmra.mxu0 %v332
  %v604 = vpop.f32.mrf.mxu0
  %v605 = vadd.f32 %v112, %v604
  %v606 = vpop.f32.mrf.mxu0
  %v607 = vadd.f32 %v112, %v606
  %608 = vmatmul.bf16.gmra.mxu0 %v334
  %v609 = vpop.f32.mrf.mxu0
  %v610 = vadd.f32 %v112, %v609
  %v611 = vpop.f32.mrf.mxu0
  %v612 = vadd.f32 %v112, %v611
  %613 = vmatmul.bf16.gmra.mxu0 %v336
  %v614 = vpop.f32.mrf.mxu0
  %v615 = vadd.f32 %v112, %v614
  %v616 = vpop.f32.mrf.mxu0
  %v617 = vadd.f32 %v112, %v616
  %618 = vmatmul.bf16.gmra.mxu0 %v338
  %v619 = vpop.f32.mrf.mxu0
  %v620 = vadd.f32 %v112, %v619
  %v621 = vpop.f32.mrf.mxu0
  %v622 = vadd.f32 %v112, %v621
  %623 = vmatmul.bf16.gmra.mxu0 %v340
  %v624 = vpop.f32.mrf.mxu0
  %v625 = vadd.f32 %v112, %v624
  %v626 = vpop.f32.mrf.mxu0
  %v627 = vadd.f32 %v112, %v626
  %628 = vmatmul.bf16.gmra.mxu0 %v342
  %v629 = vpop.f32.mrf.mxu0
  %v630 = vadd.f32 %v112, %v629
  %v631 = vpop.f32.mrf.mxu0
  %v632 = vadd.f32 %v112, %v631
  %633 = vmatmul.bf16.gmra.mxu0 %v344
  %v634 = vpop.f32.mrf.mxu0
  %v635 = vadd.f32 %v112, %v634
  %v636 = vpop.f32.mrf.mxu0
  %v637 = vadd.f32 %v112, %v636
  %638 = vmatmul.bf16.gmra.mxu0 %v346
  %v639 = vpop.f32.mrf.mxu0
  %v640 = vadd.f32 %v112, %v639
  %v641 = vpop.f32.mrf.mxu0
  %v642 = vadd.f32 %v112, %v641
  %643 = vmatmul.bf16.gmra.mxu0 %v348
  %v644 = vpop.f32.mrf.mxu0
  %v645 = vadd.f32 %v112, %v644
  %v646 = vpop.f32.mrf.mxu0
  %v647 = vadd.f32 %v112, %v646
  %648 = vmatmul.bf16.gmra.mxu0 %v350
  %v649 = vpop.f32.mrf.mxu0
  %v650 = vadd.f32 %v112, %v649
  %v651 = vpop.f32.mrf.mxu0
  %v652 = vadd.f32 %v112, %v651
  %653 = vmatmul.bf16.gmra.mxu0 %v352
  %v654 = vpop.f32.mrf.mxu0
  %v655 = vadd.f32 %v112, %v654
  %v656 = vpop.f32.mrf.mxu0
  %v657 = vadd.f32 %v112, %v656
  %658 = vmatmul.bf16.gmra.mxu0 %v354
  %v659 = vpop.f32.mrf.mxu0
  %v660 = vadd.f32 %v112, %v659
  %v661 = vpop.f32.mrf.mxu0
  %v662 = vadd.f32 %v112, %v661
  %663 = vmatmul.bf16.gmra.mxu0 %v356
  %v664 = vpop.f32.mrf.mxu0
  %v665 = vadd.f32 %v112, %v664
  %v666 = vpop.f32.mrf.mxu0
  %v667 = vadd.f32 %v112, %v666
  %668 = vmatmul.bf16.gmra.mxu0 %v358
  %v669 = vpop.f32.mrf.mxu0
  %v670 = vadd.f32 %v112, %v669
  %v671 = vpop.f32.mrf.mxu0
  %v672 = vadd.f32 %v112, %v671
  %673 = vmatmul.bf16.gmra.mxu0 %v360
  %v674 = vpop.f32.mrf.mxu0
  %v675 = vadd.f32 %v112, %v674
  %v676 = vpop.f32.mrf.mxu0
  %v677 = vadd.f32 %v112, %v676
  %678 = vmatmul.bf16.gmra.mxu0 %v362
  %v679 = vpop.f32.mrf.mxu0
  %v680 = vadd.f32 %v112, %v679
  %v681 = vpop.f32.mrf.mxu0
  %v682 = vadd.f32 %v112, %v681
  %683 = vmatmul.bf16.gmra.mxu0 %v364
  %v684 = vpop.f32.mrf.mxu0
  %v685 = vadd.f32 %v112, %v684
  %v686 = vpop.f32.mrf.mxu0
  %v687 = vadd.f32 %v112, %v686
  %688 = vmatmul.bf16.gmra.mxu0 %v366
  %v689 = vpop.f32.mrf.mxu0
  %v690 = vadd.f32 %v112, %v689
  %v691 = vpop.f32.mrf.mxu0
  %v692 = vadd.f32 %v112, %v691
  %693 = vmatmul.bf16.gmra.mxu0 %v368
  %v694 = vpop.f32.mrf.mxu0
  %v695 = vadd.f32 %v112, %v694
  %v696 = vpop.f32.mrf.mxu0
  %v697 = vadd.f32 %v112, %v696
  %698 = vdwg.mxu0
  %699 = vmatpush.bf16.msra.mxu0 %v513
  %700 = vmatpush.bf16.msra.mxu0 %v512
  %701 = vmatpush.bf16.msra.mxu0 %v511
  %702 = vmatpush.bf16.msra.mxu0 %v510
  %703 = vmatpush.bf16.msra.mxu0 %v509
  %704 = vmatpush.bf16.msra.mxu0 %v508
  %705 = vmatpush.bf16.msra.mxu0 %v507
  %706 = vmatpush.bf16.msra.mxu0 %v506
  %707 = vmatmul.bf16.gmra.mxu0 %v307
  %v708 = vpop.f32.mrf.mxu0
  %v709 = vadd.f32 %v540, %v708
  %v710 = vpop.f32.mrf.mxu0
  %v711 = vadd.f32 %v542, %v710
  %712 = vmatmul.bf16.gmra.mxu0 %v309
  %v713 = vpop.f32.mrf.mxu0
  %v714 = vadd.f32 %v545, %v713
  %v715 = vpop.f32.mrf.mxu0
  %v716 = vadd.f32 %v547, %v715
  %717 = vmatmul.bf16.gmra.mxu0 %v311
  %v718 = vpop.f32.mrf.mxu0
  %v719 = vadd.f32 %v550, %v718
  %v720 = vpop.f32.mrf.mxu0
  %v721 = vadd.f32 %v552, %v720
  %722 = vmatmul.bf16.gmra.mxu0 %v313
  %v723 = vpop.f32.mrf.mxu0
  %v724 = vadd.f32 %v555, %v723
  %v725 = vpop.f32.mrf.mxu0
  %v726 = vadd.f32 %v557, %v725
  %727 = vmatmul.bf16.gmra.mxu0 %v315
  %v728 = vpop.f32.mrf.mxu0
  %v729 = vadd.f32 %v560, %v728
  %v730 = vpop.f32.mrf.mxu0
  %v731 = vadd.f32 %v562, %v730
  %732 = vmatmul.bf16.gmra.mxu0 %v317
  %v733 = vpop.f32.mrf.mxu0
  %v734 = vadd.f32 %v565, %v733
  %v735 = vpop.f32.mrf.mxu0
  %v736 = vadd.f32 %v567, %v735
  %737 = vmatmul.bf16.gmra.mxu0 %v319
  %v738 = vpop.f32.mrf.mxu0
  %v739 = vadd.f32 %v570, %v738
  %v740 = vpop.f32.mrf.mxu0
  %v741 = vadd.f32 %v572, %v740
  %742 = vmatmul.bf16.gmra.mxu0 %v321
  %v743 = vpop.f32.mrf.mxu0
  %v744 = vadd.f32 %v575, %v743
  %v745 = vpop.f32.mrf.mxu0
  %v746 = vadd.f32 %v577, %v745
  %747 = vmatmul.bf16.gmra.mxu0 %v323
  %v748 = vpop.f32.mrf.mxu0
  %v749 = vadd.f32 %v580, %v748
  %v750 = vpop.f32.mrf.mxu0
  %v751 = vadd.f32 %v582, %v750
  %752 = vmatmul.bf16.gmra.mxu0 %v325
  %v753 = vpop.f32.mrf.mxu0
  %v754 = vadd.f32 %v585, %v753
  %v755 = vpop.f32.mrf.mxu0
  %v756 = vadd.f32 %v587, %v755
  %757 = vmatmul.bf16.gmra.mxu0 %v327
  %v758 = vpop.f32.mrf.mxu0
  %v759 = vadd.f32 %v590, %v758
  %v760 = vpop.f32.mrf.mxu0
  %v761 = vadd.f32 %v592, %v760
  %762 = vmatmul.bf16.gmra.mxu0 %v329
  %v763 = vpop.f32.mrf.mxu0
  %v764 = vadd.f32 %v595, %v763
  %v765 = vpop.f32.mrf.mxu0
  %v766 = vadd.f32 %v597, %v765
  %767 = vmatmul.bf16.gmra.mxu0 %v331
  %v768 = vpop.f32.mrf.mxu0
  %v769 = vadd.f32 %v600, %v768
  %v770 = vpop.f32.mrf.mxu0
  %v771 = vadd.f32 %v602, %v770
  %772 = vmatmul.bf16.gmra.mxu0 %v333
  %v773 = vpop.f32.mrf.mxu0
  %v774 = vadd.f32 %v605, %v773
  %v775 = vpop.f32.mrf.mxu0
  %v776 = vadd.f32 %v607, %v775
  %777 = vmatmul.bf16.gmra.mxu0 %v335
  %v778 = vpop.f32.mrf.mxu0
  %v779 = vadd.f32 %v610, %v778
  %v780 = vpop.f32.mrf.mxu0
  %v781 = vadd.f32 %v612, %v780
  %782 = vmatmul.bf16.gmra.mxu0 %v337
  %v783 = vpop.f32.mrf.mxu0
  %v784 = vadd.f32 %v615, %v783
  %v785 = vpop.f32.mrf.mxu0
  %v786 = vadd.f32 %v617, %v785
  %787 = vmatmul.bf16.gmra.mxu0 %v339
  %v788 = vpop.f32.mrf.mxu0
  %v789 = vadd.f32 %v620, %v788
  %v790 = vpop.f32.mrf.mxu0
  %v791 = vadd.f32 %v622, %v790
  %792 = vmatmul.bf16.gmra.mxu0 %v341
  %v793 = vpop.f32.mrf.mxu0
  %v794 = vadd.f32 %v625, %v793
  %v795 = vpop.f32.mrf.mxu0
  %v796 = vadd.f32 %v627, %v795
  %797 = vmatmul.bf16.gmra.mxu0 %v343
  %v798 = vpop.f32.mrf.mxu0
  %v799 = vadd.f32 %v630, %v798
  %v800 = vpop.f32.mrf.mxu0
  %v801 = vadd.f32 %v632, %v800
  %802 = vmatmul.bf16.gmra.mxu0 %v345
  %v803 = vpop.f32.mrf.mxu0
  %v804 = vadd.f32 %v635, %v803
  %v805 = vpop.f32.mrf.mxu0
  %v806 = vadd.f32 %v637, %v805
  %807 = vmatmul.bf16.gmra.mxu0 %v347
  %v808 = vpop.f32.mrf.mxu0
  %v809 = vadd.f32 %v640, %v808
  %v810 = vpop.f32.mrf.mxu0
  %v811 = vadd.f32 %v642, %v810
  %812 = vmatmul.bf16.gmra.mxu0 %v349
  %v813 = vpop.f32.mrf.mxu0
  %v814 = vadd.f32 %v645, %v813
  %v815 = vpop.f32.mrf.mxu0
  %v816 = vadd.f32 %v647, %v815
  %817 = vmatmul.bf16.gmra.mxu0 %v351
  %v818 = vpop.f32.mrf.mxu0
  %v819 = vadd.f32 %v650, %v818
  %v820 = vpop.f32.mrf.mxu0
  %v821 = vadd.f32 %v652, %v820
  %822 = vmatmul.bf16.gmra.mxu0 %v353
  %v823 = vpop.f32.mrf.mxu0
  %v824 = vadd.f32 %v655, %v823
  %v825 = vpop.f32.mrf.mxu0
  %v826 = vadd.f32 %v657, %v825
  %827 = vmatmul.bf16.gmra.mxu0 %v355
  %v828 = vpop.f32.mrf.mxu0
  %v829 = vadd.f32 %v660, %v828
  %v830 = vpop.f32.mrf.mxu0
  %v831 = vadd.f32 %v662, %v830
  %832 = vmatmul.bf16.gmra.mxu0 %v357
  %v833 = vpop.f32.mrf.mxu0
  %v834 = vadd.f32 %v665, %v833
  %v835 = vpop.f32.mrf.mxu0
  %v836 = vadd.f32 %v667, %v835
  %837 = vmatmul.bf16.gmra.mxu0 %v359
  %v838 = vpop.f32.mrf.mxu0
  %v839 = vadd.f32 %v670, %v838
  %v840 = vpop.f32.mrf.mxu0
  %v841 = vadd.f32 %v672, %v840
  %842 = vmatmul.bf16.gmra.mxu0 %v361
  %v843 = vpop.f32.mrf.mxu0
  %v844 = vadd.f32 %v675, %v843
  %v845 = vpop.f32.mrf.mxu0
  %v846 = vadd.f32 %v677, %v845
  %847 = vmatmul.bf16.gmra.mxu0 %v363
  %v848 = vpop.f32.mrf.mxu0
  %v849 = vadd.f32 %v680, %v848
  %v850 = vpop.f32.mrf.mxu0
  %v851 = vadd.f32 %v682, %v850
  %852 = vmatmul.bf16.gmra.mxu0 %v365
  %v853 = vpop.f32.mrf.mxu0
  %v854 = vadd.f32 %v685, %v853
  %v855 = vpop.f32.mrf.mxu0
  %v856 = vadd.f32 %v687, %v855
  %857 = vmatmul.bf16.gmra.mxu0 %v367
  %v858 = vpop.f32.mrf.mxu0
  %v859 = vadd.f32 %v690, %v858
  %v860 = vpop.f32.mrf.mxu0
  %v861 = vadd.f32 %v692, %v860
  %862 = vmatmul.bf16.gmra.mxu0 %v369
  %v863 = vpop.f32.mrf.mxu0
  %v864 = vadd.f32 %v695, %v863
  %v865 = vpop.f32.mrf.mxu0
  %v866 = vadd.f32 %v697, %v865
  %867 = vdwg.mxu0
  %v868 = vpack.c.bf16 %v709, %v709
  %v869 = vpack.c.bf16 %v711, %v711
  %v870 = vpack.c.bf16 %v714, %v714
  %v871 = vpack.c.bf16 %v716, %v716
  %v872 = vpack.c.bf16 %v719, %v719
  %v873 = vpack.c.bf16 %v721, %v721
  %v874 = vpack.c.bf16 %v724, %v724
  %v875 = vpack.c.bf16 %v726, %v726
  %v876 = vpack.c.bf16 %v729, %v729
  %v877 = vpack.c.bf16 %v731, %v731
  %v878 = vpack.c.bf16 %v734, %v734
  %v879 = vpack.c.bf16 %v736, %v736
  %v880 = vpack.c.bf16 %v739, %v739
  %v881 = vpack.c.bf16 %v741, %v741
  %v882 = vpack.c.bf16 %v744, %v744
  %v883 = vpack.c.bf16 %v746, %v746
  %v884 = vpack.c.bf16 %v749, %v749
  %v885 = vpack.c.bf16 %v751, %v751
  %v886 = vpack.c.bf16 %v754, %v754
  %v887 = vpack.c.bf16 %v756, %v756
  %v888 = vpack.c.bf16 %v759, %v759
  %v889 = vpack.c.bf16 %v761, %v761
  %v890 = vpack.c.bf16 %v764, %v764
  %v891 = vpack.c.bf16 %v766, %v766
  %v892 = vpack.c.bf16 %v769, %v769
  %v893 = vpack.c.bf16 %v771, %v771
  %v894 = vpack.c.bf16 %v774, %v774
  %v895 = vpack.c.bf16 %v776, %v776
  %v896 = vpack.c.bf16 %v779, %v779
  %v897 = vpack.c.bf16 %v781, %v781
  %v898 = vpack.c.bf16 %v784, %v784
  %v899 = vpack.c.bf16 %v786, %v786
  %v900 = vpack.c.bf16 %v789, %v789
  %v901 = vpack.c.bf16 %v791, %v791
  %v902 = vpack.c.bf16 %v794, %v794
  %v903 = vpack.c.bf16 %v796, %v796
  %v904 = vpack.c.bf16 %v799, %v799
  %v905 = vpack.c.bf16 %v801, %v801
  %v906 = vpack.c.bf16 %v804, %v804
  %v907 = vpack.c.bf16 %v806, %v806
  %v908 = vpack.c.bf16 %v809, %v809
  %v909 = vpack.c.bf16 %v811, %v811
  %v910 = vpack.c.bf16 %v814, %v814
  %v911 = vpack.c.bf16 %v816, %v816
  %v912 = vpack.c.bf16 %v819, %v819
  %v913 = vpack.c.bf16 %v821, %v821
  %v914 = vpack.c.bf16 %v824, %v824
  %v915 = vpack.c.bf16 %v826, %v826
  %v916 = vpack.c.bf16 %v829, %v829
  %v917 = vpack.c.bf16 %v831, %v831
  %v918 = vpack.c.bf16 %v834, %v834
  %v919 = vpack.c.bf16 %v836, %v836
  %v920 = vpack.c.bf16 %v839, %v839
  %v921 = vpack.c.bf16 %v841, %v841
  %v922 = vpack.c.bf16 %v844, %v844
  %v923 = vpack.c.bf16 %v846, %v846
  %v924 = vpack.c.bf16 %v849, %v849
  %v925 = vpack.c.bf16 %v851, %v851
  %v926 = vpack.c.bf16 %v854, %v854
  %v927 = vpack.c.bf16 %v856, %v856
  %v928 = vpack.c.bf16 %v859, %v859
  %v929 = vpack.c.bf16 %v861, %v861
  %v930 = vpack.c.bf16 %v864, %v864
  %v931 = vpack.c.bf16 %v866, %v866
  %932 = vst [vmem:[%s3] sm:$0xf] %v868
  %933 = vst [vmem:[%s3 + $0x4] sm:$0xf] %v869
  %934 = vst [vmem:[%s3 + $0x8] sm:$0xf] %v870
  %935 = vst [vmem:[%s3 + $0xc] sm:$0xf] %v871
  %936 = vst [vmem:[%s3 + $0x10] sm:$0xf] %v872
  %937 = vst [vmem:[%s3 + $0x14] sm:$0xf] %v873
  %938 = vst [vmem:[%s3 + $0x18] sm:$0xf] %v874
  %939 = vst [vmem:[%s3 + $0x1c] sm:$0xf] %v875
  %940 = vst [vmem:[%s3 + $0x20] sm:$0xf] %v876
  %941 = vst [vmem:[%s3 + $0x24] sm:$0xf] %v877
  %942 = vst [vmem:[%s3 + $0x28] sm:$0xf] %v878
  %943 = vst [vmem:[%s3 + $0x2c] sm:$0xf] %v879
  %944 = vst [vmem:[%s3 + $0x30] sm:$0xf] %v880
  %945 = vst [vmem:[%s3 + $0x34] sm:$0xf] %v881
  %946 = vst [vmem:[%s3 + $0x38] sm:$0xf] %v882
  %947 = vst [vmem:[%s3 + $0x3c] sm:$0xf] %v883
  %948 = vst [vmem:[%s3 + $0x40] sm:$0xf] %v884
  %949 = vst [vmem:[%s3 + $0x44] sm:$0xf] %v885
  %950 = vst [vmem:[%s3 + $0x48] sm:$0xf] %v886
  %951 = vst [vmem:[%s3 + $0x4c] sm:$0xf] %v887
  %952 = vst [vmem:[%s3 + $0x50] sm:$0xf] %v888
  %953 = vst [vmem:[%s3 + $0x54] sm:$0xf] %v889
  %954 = vst [vmem:[%s3 + $0x58] sm:$0xf] %v890
  %955 = vst [vmem:[%s3 + $0x5c] sm:$0xf] %v891
  %956 = vst [vmem:[%s3 + $0x60] sm:$0xf] %v892
  %957 = vst [vmem:[%s3 + $0x64] sm:$0xf] %v893
  %958 = vst [vmem:[%s3 + $0x68] sm:$0xf] %v894
  %959 = vst [vmem:[%s3 + $0x6c] sm:$0xf] %v895
  %960 = vst [vmem:[%s3 + $0x70] sm:$0xf] %v896
  %961 = vst [vmem:[%s3 + $0x74] sm:$0xf] %v897
  %962 = vst [vmem:[%s3 + $0x78] sm:$0xf] %v898
  %963 = vst [vmem:[%s3 + $0x7c] sm:$0xf] %v899
  %964 = vst [vmem:[%s3 + $0x80] sm:$0xf] %v900
  %965 = vst [vmem:[%s3 + $0x84] sm:$0xf] %v901
  %966 = vst [vmem:[%s3 + $0x88] sm:$0xf] %v902
  %967 = vst [vmem:[%s3 + $0x8c] sm:$0xf] %v903
  %968 = vst [vmem:[%s3 + $0x90] sm:$0xf] %v904
  %969 = vst [vmem:[%s3 + $0x94] sm:$0xf] %v905
  %970 = vst [vmem:[%s3 + $0x98] sm:$0xf] %v906
  %971 = vst [vmem:[%s3 + $0x9c] sm:$0xf] %v907
  %972 = vst [vmem:[%s3 + $0xa0] sm:$0xf] %v908
  %973 = vst [vmem:[%s3 + $0xa4] sm:$0xf] %v909
  %974 = vst [vmem:[%s3 + $0xa8] sm:$0xf] %v910
  %975 = vst [vmem:[%s3 + $0xac] sm:$0xf] %v911
  %976 = vst [vmem:[%s3 + $0xb0] sm:$0xf] %v912
  %977 = vst [vmem:[%s3 + $0xb4] sm:$0xf] %v913
  %978 = vst [vmem:[%s3 + $0xb8] sm:$0xf] %v914
  %979 = vst [vmem:[%s3 + $0xbc] sm:$0xf] %v915
  %980 = vst [vmem:[%s3 + $0xc0] sm:$0xf] %v916
  %981 = vst [vmem:[%s3 + $0xc4] sm:$0xf] %v917
  %982 = vst [vmem:[%s3 + $0xc8] sm:$0xf] %v918
  %983 = vst [vmem:[%s3 + $0xcc] sm:$0xf] %v919
  %984 = vst [vmem:[%s3 + $0xd0] sm:$0xf] %v920
  %985 = vst [vmem:[%s3 + $0xd4] sm:$0xf] %v921
  %986 = vst [vmem:[%s3 + $0xd8] sm:$0xf] %v922
  %987 = vst [vmem:[%s3 + $0xdc] sm:$0xf] %v923
  %988 = vst [vmem:[%s3 + $0xe0] sm:$0xf] %v924
  %989 = vst [vmem:[%s3 + $0xe4] sm:$0xf] %v925
  %990 = vst [vmem:[%s3 + $0xe8] sm:$0xf] %v926
  %991 = vst [vmem:[%s3 + $0xec] sm:$0xf] %v927
  %992 = vst [vmem:[%s3 + $0xf0] sm:$0xf] %v928
  %993 = vst [vmem:[%s3 + $0xf4] sm:$0xf] %v929
  %994 = vst [vmem:[%s3 + $0xf8] sm:$0xf] %v930
  %995 = vst [vmem:[%s3 + $0xfc] sm:$0xf] %v931
  // Predicated region
  $region14: #{t_mv2_unet_forward.13} parent=0 // pred_check
    _
  $region15: #{t_mv2_unet_forward.13} parent=0 // pred_check_branch
    %997 = sbr.rel (0) target = $region17
  $region16: #{t_mv2_unet_forward.13} parent=0 // pred_region
    _
  $region17: #{t_mv2_unet_forward.13} parent=0 // pred_fallthru
    _
  // Predicated region
  $region18: #{t_mv2_unet_forward.13} parent=0 // pred_check
    _
  $region19: #{t_mv2_unet_forward.13} parent=0 // pred_check_branch
    %999 = sbr.rel (0) target = $region21
  $region20: #{t_mv2_unet_forward.13} parent=0 // pred_region
    _
  $region21: #{t_mv2_unet_forward.13} parent=0 // pred_fallthru
    _

// kernel: t_mv2_unet_forward.15
$region0: #{t_mv2_unet_forward.15}
  #allocation0 [shape = 'u32[]', space=smem, size = 0x4, offset = 0x4, fixed_abs, tag = 'smem constant byte address 0x4 - core index']
  #allocation1 [shape = 'u32[72,128]{1,0:T(1,128)}', space=vmem, size = 0x9000, scoped, tag = 'internal scratch']
  %s0 = inlined_call_operand.vmem [shape: bf16[2048,256], index: 0, kind: input, shape index: {}]
  %s1 = inlined_call_operand.vmem [shape: bf16[256,128], index: 1, kind: input, shape index: {}]
  %s2 = inlined_call_operand.vmem [shape: f32[1,128], index: 2, kind: input, shape index: {}]
  %s3 = inlined_call_operand.vmem [shape: f32[2048,128], index: 3, kind: output, shape index: {}]
  %s4 = sld [smem:[#allocation0]]
  $region22: #{t_mv2_unet_forward.15} parent=0
    _
  %s6 = ssub.s32 1, %s4
  %s7 = scalar_select 0, %s6, %s4
  // Predicated region
  $region2: #{t_mv2_unet_forward.15} parent=0 // pred_check
    _
  $region3: #{t_mv2_unet_forward.15} parent=0 // pred_check_branch
    %9 = sbr.rel (0) target = $region5
  $region4: #{t_mv2_unet_forward.15} parent=0 // pred_region
    _
  $region5: #{t_mv2_unet_forward.15} parent=0 // pred_fallthru
    _
  // Predicated region
  $region6: #{t_mv2_unet_forward.15} parent=0 // pred_check
    _
  $region7: #{t_mv2_unet_forward.15} parent=0 // pred_check_branch
    %11 = sbr.rel (0) target = $region9
  $region8: #{t_mv2_unet_forward.15} parent=0 // pred_region
    _
  $region9: #{t_mv2_unet_forward.15} parent=0 // pred_fallthru
    _
  // Predicated region
  $region10: #{t_mv2_unet_forward.15} parent=0 // pred_check
    _
  $region11: #{t_mv2_unet_forward.15} parent=0 // pred_check_branch
    %13 = sbr.rel (0) target = $region13
  $region12: #{t_mv2_unet_forward.15} parent=0 // pred_region
    _
  $region13: #{t_mv2_unet_forward.15} parent=0 // pred_fallthru
    _
  %v14 = vld [vmem:[%s0] sm:$0xff]
  %v15 = vld [vmem:[%s0 + $0x8] sm:$0xff]
  %v16 = vld [vmem:[%s0 + $0x10] sm:$0xff]
  %v17 = vld [vmem:[%s0 + $0x18] sm:$0xff]
  %v18 = vld [vmem:[%s0 + $0x20] sm:$0xff]
  %v19 = vld [vmem:[%s0 + $0x28] sm:$0xff]
  %v20 = vld [vmem:[%s0 + $0x30] sm:$0xff]
  %v21 = vld [vmem:[%s0 + $0x38] sm:$0xff]
  %v22 = vld [vmem:[%s0 + $0x40] sm:$0xff]
  %v23 = vld [vmem:[%s0 + $0x48] sm:$0xff]
  %v24 = vld [vmem:[%s0 + $0x50] sm:$0xff]
  %v25 = vld [vmem:[%s0 + $0x58] sm:$0xff]
  %v26 = vld [vmem:[%s0 + $0x60] sm:$0xff]
  %v27 = vld [vmem:[%s0 + $0x68] sm:$0xff]
  %v28 = vld [vmem:[%s0 + $0x70] sm:$0xff]
  %v29 = vld [vmem:[%s0 + $0x78] sm:$0xff]
  %v30 = vld [vmem:[%s0 + $0x80] sm:$0xff]
  %v31 = vld [vmem:[%s0 + $0x88] sm:$0xff]
  %v32 = vld [vmem:[%s0 + $0x90] sm:$0xff]
  %v33 = vld [vmem:[%s0 + $0x98] sm:$0xff]
  %v34 = vld [vmem:[%s0 + $0xa0] sm:$0xff]
  %v35 = vld [vmem:[%s0 + $0xa8] sm:$0xff]
  %v36 = vld [vmem:[%s0 + $0xb0] sm:$0xff]
  %v37 = vld [vmem:[%s0 + $0xb8] sm:$0xff]
  %v38 = vld [vmem:[%s0 + $0xc0] sm:$0xff]
  %v39 = vld [vmem:[%s0 + $0xc8] sm:$0xff]
  %v40 = vld [vmem:[%s0 + $0xd0] sm:$0xff]
  %v41 = vld [vmem:[%s0 + $0xd8] sm:$0xff]
  %v42 = vld [vmem:[%s0 + $0xe0] sm:$0xff]
  %v43 = vld [vmem:[%s0 + $0xe8] sm:$0xff]
  %v44 = vld [vmem:[%s0 + $0xf0] sm:$0xff]
  %v45 = vld [vmem:[%s0 + $0xf8] sm:$0xff]
  %v46 = vld [vmem:[%s0 + $0x100] sm:$0xff]
  %v47 = vld [vmem:[%s0 + $0x108] sm:$0xff]
  %v48 = vld [vmem:[%s0 + $0x110] sm:$0xff]
  %v49 = vld [vmem:[%s0 + $0x118] sm:$0xff]
  %v50 = vld [vmem:[%s0 + $0x120] sm:$0xff]
  %v51 = vld [vmem:[%s0 + $0x128] sm:$0xff]
  %v52 = vld [vmem:[%s0 + $0x130] sm:$0xff]
  %v53 = vld [vmem:[%s0 + $0x138] sm:$0xff]
  %v54 = vld [vmem:[%s0 + $0x140] sm:$0xff]
  %v55 = vld [vmem:[%s0 + $0x148] sm:$0xff]
  %v56 = vld [vmem:[%s0 + $0x150] sm:$0xff]
  %v57 = vld [vmem:[%s0 + $0x158] sm:$0xff]
  %v58 = vld [vmem:[%s0 + $0x160] sm:$0xff]
  %v59 = vld [vmem:[%s0 + $0x168] sm:$0xff]
  %v60 = vld [vmem:[%s0 + $0x170] sm:$0xff]
  %v61 = vld [vmem:[%s0 + $0x178] sm:$0xff]
  %v62 = vld [vmem:[%s0 + $0x180] sm:$0xff]
  %v63 = vld [vmem:[%s0 + $0x188] sm:$0xff]
  %v64 = vld [vmem:[%s0 + $0x190] sm:$0xff]
  %v65 = vld [vmem:[%s0 + $0x198] sm:$0xff]
  %v66 = vld [vmem:[%s0 + $0x1a0] sm:$0xff]
  %v67 = vld [vmem:[%s0 + $0x1a8] sm:$0xff]
  %v68 = vld [vmem:[%s0 + $0x1b0] sm:$0xff]
  %v69 = vld [vmem:[%s0 + $0x1b8] sm:$0xff]
  %v70 = vld [vmem:[%s0 + $0x1c0] sm:$0xff]
  %v71 = vld [vmem:[%s0 + $0x1c8] sm:$0xff]
  %v72 = vld [vmem:[%s0 + $0x1d0] sm:$0xff]
  %v73 = vld [vmem:[%s0 + $0x1d8] sm:$0xff]
  %v74 = vld [vmem:[%s0 + $0x1e0] sm:$0xff]
  %v75 = vld [vmem:[%s0 + $0x1e8] sm:$0xff]
  %v76 = vld [vmem:[%s0 + $0x1f0] sm:$0xff]
  %v77 = vld [vmem:[%s0 + $0x1f8] sm:$0xff]
  %v78 = vld [vmem:[%s0 + $0x200] sm:$0xff]
  %v79 = vld [vmem:[%s0 + $0x208] sm:$0xff]
  %v80 = vld [vmem:[%s0 + $0x210] sm:$0xff]
  %v81 = vld [vmem:[%s0 + $0x218] sm:$0xff]
  %v82 = vld [vmem:[%s0 + $0x220] sm:$0xff]
  %v83 = vld [vmem:[%s0 + $0x228] sm:$0xff]
  %v84 = vld [vmem:[%s0 + $0x230] sm:$0xff]
  %v85 = vld [vmem:[%s0 + $0x238] sm:$0xff]
  %v86 = vld [vmem:[%s0 + $0x240] sm:$0xff]
  %v87 = vld [vmem:[%s0 + $0x248] sm:$0xff]
  %v88 = vld [vmem:[%s0 + $0x250] sm:$0xff]
  %v89 = vld [vmem:[%s0 + $0x258] sm:$0xff]
  %v90 = vld [vmem:[%s0 + $0x260] sm:$0xff]
  %v91 = vld [vmem:[%s0 + $0x268] sm:$0xff]
  %v92 = vld [vmem:[%s0 + $0x270] sm:$0xff]
  %v93 = vld [vmem:[%s0 + $0x278] sm:$0xff]
  %v94 = vld [vmem:[%s0 + $0x280] sm:$0xff]
  %v95 = vld [vmem:[%s0 + $0x288] sm:$0xff]
  %v96 = vld [vmem:[%s0 + $0x290] sm:$0xff]
  %v97 = vld [vmem:[%s0 + $0x298] sm:$0xff]
  %v98 = vld [vmem:[%s0 + $0x2a0] sm:$0xff]
  %v99 = vld [vmem:[%s0 + $0x2a8] sm:$0xff]
  %v100 = vld [vmem:[%s0 + $0x2b0] sm:$0xff]
  %v101 = vld [vmem:[%s0 + $0x2b8] sm:$0xff]
  %v102 = vld [vmem:[%s0 + $0x2c0] sm:$0xff]
  %v103 = vld [vmem:[%s0 + $0x2c8] sm:$0xff]
  %v104 = vld [vmem:[%s0 + $0x2d0] sm:$0xff]
  %v105 = vld [vmem:[%s0 + $0x2d8] sm:$0xff]
  %v106 = vld [vmem:[%s0 + $0x2e0] sm:$0xff]
  %v107 = vld [vmem:[%s0 + $0x2e8] sm:$0xff]
  %v108 = vld [vmem:[%s0 + $0x2f0] sm:$0xff]
  %v109 = vld [vmem:[%s0 + $0x2f8] sm:$0xff]
  %v110 = vld [vmem:[%s0 + $0x300] sm:$0xff]
  %v111 = vld [vmem:[%s0 + $0x308] sm:$0xff]
  %v112 = vld [vmem:[%s0 + $0x310] sm:$0xff]
  %v113 = vld [vmem:[%s0 + $0x318] sm:$0xff]
  %v114 = vld [vmem:[%s0 + $0x320] sm:$0xff]
  %v115 = vld [vmem:[%s0 + $0x328] sm:$0xff]
  %v116 = vld [vmem:[%s0 + $0x330] sm:$0xff]
  %v117 = vld [vmem:[%s0 + $0x338] sm:$0xff]
  %v118 = vld [vmem:[%s0 + $0x340] sm:$0xff]
  %v119 = vld [vmem:[%s0 + $0x348] sm:$0xff]
  %v120 = vld [vmem:[%s0 + $0x350] sm:$0xff]
  %v121 = vld [vmem:[%s0 + $0x358] sm:$0xff]
  %v122 = vld [vmem:[%s0 + $0x360] sm:$0xff]
  %v123 = vld [vmem:[%s0 + $0x368] sm:$0xff]
  %v124 = vld [vmem:[%s0 + $0x370] sm:$0xff]
  %v125 = vld [vmem:[%s0 + $0x378] sm:$0xff]
  %v126 = vld [vmem:[%s0 + $0x380] sm:$0xff]
  %v127 = vld [vmem:[%s0 + $0x388] sm:$0xff]
  %v128 = vld [vmem:[%s0 + $0x390] sm:$0xff]
  %v129 = vld [vmem:[%s0 + $0x398] sm:$0xff]
  %v130 = vld [vmem:[%s0 + $0x3a0] sm:$0xff]
  %v131 = vld [vmem:[%s0 + $0x3a8] sm:$0xff]
  %v132 = vld [vmem:[%s0 + $0x3b0] sm:$0xff]
  %v133 = vld [vmem:[%s0 + $0x3b8] sm:$0xff]
  %v134 = vld [vmem:[%s0 + $0x3c0] sm:$0xff]
  %v135 = vld [vmem:[%s0 + $0x3c8] sm:$0xff]
  %v136 = vld [vmem:[%s0 + $0x3d0] sm:$0xff]
  %v137 = vld [vmem:[%s0 + $0x3d8] sm:$0xff]
  %v138 = vld [vmem:[%s0 + $0x3e0] sm:$0xff]
  %v139 = vld [vmem:[%s0 + $0x3e8] sm:$0xff]
  %v140 = vld [vmem:[%s0 + $0x3f0] sm:$0xff]
  %v141 = vld [vmem:[%s0 + $0x3f8] sm:$0xff]
  %v142 = vld [vmem:[%s0 + $0x400] sm:$0xff]
  %v143 = vld [vmem:[%s0 + $0x408] sm:$0xff]
  %v144 = vld [vmem:[%s0 + $0x410] sm:$0xff]
  %v145 = vld [vmem:[%s0 + $0x418] sm:$0xff]
  %v146 = vld [vmem:[%s0 + $0x420] sm:$0xff]
  %v147 = vld [vmem:[%s0 + $0x428] sm:$0xff]
  %v148 = vld [vmem:[%s0 + $0x430] sm:$0xff]
  %v149 = vld [vmem:[%s0 + $0x438] sm:$0xff]
  %v150 = vld [vmem:[%s0 + $0x440] sm:$0xff]
  %v151 = vld [vmem:[%s0 + $0x448] sm:$0xff]
  %v152 = vld [vmem:[%s0 + $0x450] sm:$0xff]
  %v153 = vld [vmem:[%s0 + $0x458] sm:$0xff]
  %v154 = vld [vmem:[%s0 + $0x460] sm:$0xff]
  %v155 = vld [vmem:[%s0 + $0x468] sm:$0xff]
  %v156 = vld [vmem:[%s0 + $0x470] sm:$0xff]
  %v157 = vld [vmem:[%s0 + $0x478] sm:$0xff]
  %v158 = vld [vmem:[%s0 + $0x480] sm:$0xff]
  %v159 = vld [vmem:[%s0 + $0x488] sm:$0xff]
  %v160 = vld [vmem:[%s0 + $0x490] sm:$0xff]
  %v161 = vld [vmem:[%s0 + $0x498] sm:$0xff]
  %v162 = vld [vmem:[%s0 + $0x4a0] sm:$0xff]
  %v163 = vld [vmem:[%s0 + $0x4a8] sm:$0xff]
  %v164 = vld [vmem:[%s0 + $0x4b0] sm:$0xff]
  %v165 = vld [vmem:[%s0 + $0x4b8] sm:$0xff]
  %v166 = vld [vmem:[%s0 + $0x4c0] sm:$0xff]
  %v167 = vld [vmem:[%s0 + $0x4c8] sm:$0xff]
  %v168 = vld [vmem:[%s0 + $0x4d0] sm:$0xff]
  %v169 = vld [vmem:[%s0 + $0x4d8] sm:$0xff]
  %v170 = vld [vmem:[%s0 + $0x4e0] sm:$0xff]
  %v171 = vld [vmem:[%s0 + $0x4e8] sm:$0xff]
  %v172 = vld [vmem:[%s0 + $0x4f0] sm:$0xff]
  %v173 = vld [vmem:[%s0 + $0x4f8] sm:$0xff]
  %v174 = vld [vmem:[%s0 + $0x500] sm:$0xff]
  %v175 = vld [vmem:[%s0 + $0x508] sm:$0xff]
  %v176 = vld [vmem:[%s0 + $0x510] sm:$0xff]
  %v177 = vld [vmem:[%s0 + $0x518] sm:$0xff]
  %v178 = vld [vmem:[%s0 + $0x520] sm:$0xff]
  %v179 = vld [vmem:[%s0 + $0x528] sm:$0xff]
  %v180 = vld [vmem:[%s0 + $0x530] sm:$0xff]
  %v181 = vld [vmem:[%s0 + $0x538] sm:$0xff]
  %v182 = vld [vmem:[%s0 + $0x540] sm:$0xff]
  %v183 = vld [vmem:[%s0 + $0x548] sm:$0xff]
  %v184 = vld [vmem:[%s0 + $0x550] sm:$0xff]
  %v185 = vld [vmem:[%s0 + $0x558] sm:$0xff]
  %v186 = vld [vmem:[%s0 + $0x560] sm:$0xff]
  %v187 = vld [vmem:[%s0 + $0x568] sm:$0xff]
  %v188 = vld [vmem:[%s0 + $0x570] sm:$0xff]
  %v189 = vld [vmem:[%s0 + $0x578] sm:$0xff]
  %v190 = vld [vmem:[%s0 + $0x580] sm:$0xff]
  %v191 = vld [vmem:[%s0 + $0x588] sm:$0xff]
  %v192 = vld [vmem:[%s0 + $0x590] sm:$0xff]
  %v193 = vld [vmem:[%s0 + $0x598] sm:$0xff]
  %v194 = vld [vmem:[%s0 + $0x5a0] sm:$0xff]
  %v195 = vld [vmem:[%s0 + $0x5a8] sm:$0xff]
  %v196 = vld [vmem:[%s0 + $0x5b0] sm:$0xff]
  %v197 = vld [vmem:[%s0 + $0x5b8] sm:$0xff]
  %v198 = vld [vmem:[%s0 + $0x5c0] sm:$0xff]
  %v199 = vld [vmem:[%s0 + $0x5c8] sm:$0xff]
  %v200 = vld [vmem:[%s0 + $0x5d0] sm:$0xff]
  %v201 = vld [vmem:[%s0 + $0x5d8] sm:$0xff]
  %v202 = vld [vmem:[%s0 + $0x5e0] sm:$0xff]
  %v203 = vld [vmem:[%s0 + $0x5e8] sm:$0xff]
  %v204 = vld [vmem:[%s0 + $0x5f0] sm:$0xff]
  %v205 = vld [vmem:[%s0 + $0x5f8] sm:$0xff]
  %v206 = vld [vmem:[%s0 + $0x600] sm:$0xff]
  %v207 = vld [vmem:[%s0 + $0x608] sm:$0xff]
  %v208 = vld [vmem:[%s0 + $0x610] sm:$0xff]
  %v209 = vld [vmem:[%s0 + $0x618] sm:$0xff]
  %v210 = vld [vmem:[%s0 + $0x620] sm:$0xff]
  %v211 = vld [vmem:[%s0 + $0x628] sm:$0xff]
  %v212 = vld [vmem:[%s0 + $0x630] sm:$0xff]
  %v213 = vld [vmem:[%s0 + $0x638] sm:$0xff]
  %v214 = vld [vmem:[%s0 + $0x640] sm:$0xff]
  %v215 = vld [vmem:[%s0 + $0x648] sm:$0xff]
  %v216 = vld [vmem:[%s0 + $0x650] sm:$0xff]
  %v217 = vld [vmem:[%s0 + $0x658] sm:$0xff]
  %v218 = vld [vmem:[%s0 + $0x660] sm:$0xff]
  %v219 = vld [vmem:[%s0 + $0x668] sm:$0xff]
  %v220 = vld [vmem:[%s0 + $0x670] sm:$0xff]
  %v221 = vld [vmem:[%s0 + $0x678] sm:$0xff]
  %v222 = vld [vmem:[%s0 + $0x680] sm:$0xff]
  %v223 = vld [vmem:[%s0 + $0x688] sm:$0xff]
  %v224 = vld [vmem:[%s0 + $0x690] sm:$0xff]
  %v225 = vld [vmem:[%s0 + $0x698] sm:$0xff]
  %v226 = vld [vmem:[%s0 + $0x6a0] sm:$0xff]
  %v227 = vld [vmem:[%s0 + $0x6a8] sm:$0xff]
  %v228 = vld [vmem:[%s0 + $0x6b0] sm:$0xff]
  %v229 = vld [vmem:[%s0 + $0x6b8] sm:$0xff]
  %v230 = vld [vmem:[%s0 + $0x6c0] sm:$0xff]
  %v231 = vld [vmem:[%s0 + $0x6c8] sm:$0xff]
  %v232 = vld [vmem:[%s0 + $0x6d0] sm:$0xff]
  %v233 = vld [vmem:[%s0 + $0x6d8] sm:$0xff]
  %v234 = vld [vmem:[%s0 + $0x6e0] sm:$0xff]
  %v235 = vld [vmem:[%s0 + $0x6e8] sm:$0xff]
  %v236 = vld [vmem:[%s0 + $0x6f0] sm:$0xff]
  %v237 = vld [vmem:[%s0 + $0x6f8] sm:$0xff]
  %v238 = vld [vmem:[%s0 + $0x700] sm:$0xff]
  %v239 = vld [vmem:[%s0 + $0x708] sm:$0xff]
  %v240 = vld [vmem:[%s0 + $0x710] sm:$0xff]
  %v241 = vld [vmem:[%s0 + $0x718] sm:$0xff]
  %v242 = vld [vmem:[%s0 + $0x720] sm:$0xff]
  %v243 = vld [vmem:[%s0 + $0x728] sm:$0xff]
  %v244 = vld [vmem:[%s0 + $0x730] sm:$0xff]
  %v245 = vld [vmem:[%s0 + $0x738] sm:$0xff]
  %v246 = vld [vmem:[%s0 + $0x740] sm:$0xff]
  %v247 = vld [vmem:[%s0 + $0x748] sm:$0xff]
  %v248 = vld [vmem:[%s0 + $0x750] sm:$0xff]
  %v249 = vld [vmem:[%s0 + $0x758] sm:$0xff]
  %v250 = vld [vmem:[%s0 + $0x760] sm:$0xff]
  %v251 = vld [vmem:[%s0 + $0x768] sm:$0xff]
  %v252 = vld [vmem:[%s0 + $0x770] sm:$0xff]
  %v253 = vld [vmem:[%s0 + $0x778] sm:$0xff]
  %v254 = vld [vmem:[%s0 + $0x780] sm:$0xff]
  %v255 = vld [vmem:[%s0 + $0x788] sm:$0xff]
  %v256 = vld [vmem:[%s0 + $0x790] sm:$0xff]
  %v257 = vld [vmem:[%s0 + $0x798] sm:$0xff]
  %v258 = vld [vmem:[%s0 + $0x7a0] sm:$0xff]
  %v259 = vld [vmem:[%s0 + $0x7a8] sm:$0xff]
  %v260 = vld [vmem:[%s0 + $0x7b0] sm:$0xff]
  %v261 = vld [vmem:[%s0 + $0x7b8] sm:$0xff]
  %v262 = vld [vmem:[%s0 + $0x7c0] sm:$0xff]
  %v263 = vld [vmem:[%s0 + $0x7c8] sm:$0xff]
  %v264 = vld [vmem:[%s0 + $0x7d0] sm:$0xff]
  %v265 = vld [vmem:[%s0 + $0x7d8] sm:$0xff]
  %v266 = vld [vmem:[%s0 + $0x7e0] sm:$0xff]
  %v267 = vld [vmem:[%s0 + $0x7e8] sm:$0xff]
  %v268 = vld [vmem:[%s0 + $0x7f0] sm:$0xff]
  %v269 = vld [vmem:[%s0 + $0x7f8] sm:$0xff]
  %v270 = vld [vmem:[%s1] sm:$0xf]
  %v271 = vld [vmem:[%s1 + $0x4] sm:$0xf]
  %v272 = vld [vmem:[%s1 + $0x8] sm:$0xf]
  %v273 = vld [vmem:[%s1 + $0xc] sm:$0xf]
  %v274 = vld [vmem:[%s1 + $0x10] sm:$0xf]
  %v275 = vld [vmem:[%s1 + $0x14] sm:$0xf]
  %v276 = vld [vmem:[%s1 + $0x18] sm:$0xf]
  %v277 = vld [vmem:[%s1 + $0x1c] sm:$0xf]
  %v278 = vld [vmem:[%s1 + $0x20] sm:$0xf]
  %v279 = vld [vmem:[%s1 + $0x24] sm:$0xf]
  %v280 = vld [vmem:[%s1 + $0x28] sm:$0xf]
  %v281 = vld [vmem:[%s1 + $0x2c] sm:$0xf]
  %v282 = vld [vmem:[%s1 + $0x30] sm:$0xf]
  %v283 = vld [vmem:[%s1 + $0x34] sm:$0xf]
  %v284 = vld [vmem:[%s1 + $0x38] sm:$0xf]
  %v285 = vld [vmem:[%s1 + $0x3c] sm:$0xf]
  %v286 = vld [vmem:[%s1 + $0x40] sm:$0xf]
  %v287 = vld [vmem:[%s1 + $0x44] sm:$0xf]
  %v288 = vld [vmem:[%s1 + $0x48] sm:$0xf]
  %v289 = vld [vmem:[%s1 + $0x4c] sm:$0xf]
  %v290 = vld [vmem:[%s1 + $0x50] sm:$0xf]
  %v291 = vld [vmem:[%s1 + $0x54] sm:$0xf]
  %v292 = vld [vmem:[%s1 + $0x58] sm:$0xf]
  %v293 = vld [vmem:[%s1 + $0x5c] sm:$0xf]
  %v294 = vld [vmem:[%s1 + $0x60] sm:$0xf]
  %v295 = vld [vmem:[%s1 + $0x64] sm:$0xf]
  %v296 = vld [vmem:[%s1 + $0x68] sm:$0xf]
  %v297 = vld [vmem:[%s1 + $0x6c] sm:$0xf]
  %v298 = vld [vmem:[%s1 + $0x70] sm:$0xf]
  %v299 = vld [vmem:[%s1 + $0x74] sm:$0xf]
  %v300 = vld [vmem:[%s1 + $0x78] sm:$0xf]
  %v301 = vld [vmem:[%s1 + $0x7c] sm:$0xf]
  %v302 = vld [vmem:[%s2] sm:$0x1]
  %v304 = vperm.slane %v302, 0
  %v562 = vunpack.c.l.b16 %v14
  %v563 = vunpack.c.h.b16 %v14
  %v564 = vunpack.c.l.b16 %v15
  %v565 = vunpack.c.h.b16 %v15
  %v566 = vunpack.c.l.b16 %v16
  %v567 = vunpack.c.h.b16 %v16
  %v568 = vunpack.c.l.b16 %v17
  %v569 = vunpack.c.h.b16 %v17
  %v570 = vunpack.c.l.b16 %v18
  %v571 = vunpack.c.h.b16 %v18
  %v572 = vunpack.c.l.b16 %v19
  %v573 = vunpack.c.h.b16 %v19
  %v574 = vunpack.c.l.b16 %v20
  %v575 = vunpack.c.h.b16 %v20
  %v576 = vunpack.c.l.b16 %v21
  %v577 = vunpack.c.h.b16 %v21
  %v578 = vunpack.c.l.b16 %v22
  %v579 = vunpack.c.h.b16 %v22
  %v580 = vunpack.c.l.b16 %v23
  %v581 = vunpack.c.h.b16 %v23
  %v582 = vunpack.c.l.b16 %v24
  %v583 = vunpack.c.h.b16 %v24
  %v584 = vunpack.c.l.b16 %v25
  %v585 = vunpack.c.h.b16 %v25
  %v586 = vunpack.c.l.b16 %v26
  %v587 = vunpack.c.h.b16 %v26
  %v588 = vunpack.c.l.b16 %v27
  %v589 = vunpack.c.h.b16 %v27
  %v590 = vunpack.c.l.b16 %v28
  %v591 = vunpack.c.h.b16 %v28
  %v592 = vunpack.c.l.b16 %v29
  %v593 = vunpack.c.h.b16 %v29
  %v594 = vunpack.c.l.b16 %v30
  %v595 = vunpack.c.h.b16 %v30
  %v596 = vunpack.c.l.b16 %v31
  %v597 = vunpack.c.h.b16 %v31
  %v598 = vunpack.c.l.b16 %v32
  %v599 = vunpack.c.h.b16 %v32
  %v600 = vunpack.c.l.b16 %v33
  %v601 = vunpack.c.h.b16 %v33
  %v602 = vunpack.c.l.b16 %v34
  %v603 = vunpack.c.h.b16 %v34
  %v604 = vunpack.c.l.b16 %v35
  %v605 = vunpack.c.h.b16 %v35
  %v606 = vunpack.c.l.b16 %v36
  %v607 = vunpack.c.h.b16 %v36
  %v608 = vunpack.c.l.b16 %v37
  %v609 = vunpack.c.h.b16 %v37
  %v610 = vunpack.c.l.b16 %v38
  %v611 = vunpack.c.h.b16 %v38
  %v612 = vunpack.c.l.b16 %v39
  %v613 = vunpack.c.h.b16 %v39
  %v614 = vunpack.c.l.b16 %v40
  %v615 = vunpack.c.h.b16 %v40
  %v616 = vunpack.c.l.b16 %v41
  %v617 = vunpack.c.h.b16 %v41
  %v618 = vunpack.c.l.b16 %v42
  %v619 = vunpack.c.h.b16 %v42
  %v620 = vunpack.c.l.b16 %v43
  %v621 = vunpack.c.h.b16 %v43
  %v622 = vunpack.c.l.b16 %v44
  %v623 = vunpack.c.h.b16 %v44
  %v624 = vunpack.c.l.b16 %v45
  %v625 = vunpack.c.h.b16 %v45
  %v626 = vunpack.c.l.b16 %v46
  %v627 = vunpack.c.h.b16 %v46
  %v628 = vunpack.c.l.b16 %v47
  %v629 = vunpack.c.h.b16 %v47
  %v630 = vunpack.c.l.b16 %v48
  %v631 = vunpack.c.h.b16 %v48
  %v632 = vunpack.c.l.b16 %v49
  %v633 = vunpack.c.h.b16 %v49
  %v634 = vunpack.c.l.b16 %v50
  %v635 = vunpack.c.h.b16 %v50
  %v636 = vunpack.c.l.b16 %v51
  %v637 = vunpack.c.h.b16 %v51
  %v638 = vunpack.c.l.b16 %v52
  %v639 = vunpack.c.h.b16 %v52
  %v640 = vunpack.c.l.b16 %v53
  %v641 = vunpack.c.h.b16 %v53
  %v642 = vunpack.c.l.b16 %v54
  %v643 = vunpack.c.h.b16 %v54
  %v644 = vunpack.c.l.b16 %v55
  %v645 = vunpack.c.h.b16 %v55
  %v646 = vunpack.c.l.b16 %v56
  %v647 = vunpack.c.h.b16 %v56
  %v648 = vunpack.c.l.b16 %v57
  %v649 = vunpack.c.h.b16 %v57
  %v650 = vunpack.c.l.b16 %v58
  %v651 = vunpack.c.h.b16 %v58
  %v652 = vunpack.c.l.b16 %v59
  %v653 = vunpack.c.h.b16 %v59
  %v654 = vunpack.c.l.b16 %v60
  %v655 = vunpack.c.h.b16 %v60
  %v656 = vunpack.c.l.b16 %v61
  %v657 = vunpack.c.h.b16 %v61
  %v658 = vunpack.c.l.b16 %v62
  %v659 = vunpack.c.h.b16 %v62
  %v660 = vunpack.c.l.b16 %v63
  %v661 = vunpack.c.h.b16 %v63
  %v662 = vunpack.c.l.b16 %v64
  %v663 = vunpack.c.h.b16 %v64
  %v664 = vunpack.c.l.b16 %v65
  %v665 = vunpack.c.h.b16 %v65
  %v666 = vunpack.c.l.b16 %v66
  %v667 = vunpack.c.h.b16 %v66
  %v668 = vunpack.c.l.b16 %v67
  %v669 = vunpack.c.h.b16 %v67
  %v670 = vunpack.c.l.b16 %v68
  %v671 = vunpack.c.h.b16 %v68
  %v672 = vunpack.c.l.b16 %v69
  %v673 = vunpack.c.h.b16 %v69
  %v674 = vunpack.c.l.b16 %v70
  %v675 = vunpack.c.h.b16 %v70
  %v676 = vunpack.c.l.b16 %v71
  %v677 = vunpack.c.h.b16 %v71
  %v678 = vunpack.c.l.b16 %v72
  %v679 = vunpack.c.h.b16 %v72
  %v680 = vunpack.c.l.b16 %v73
  %v681 = vunpack.c.h.b16 %v73
  %v682 = vunpack.c.l.b16 %v74
  %v683 = vunpack.c.h.b16 %v74
  %v684 = vunpack.c.l.b16 %v75
  %v685 = vunpack.c.h.b16 %v75
  %v686 = vunpack.c.l.b16 %v76
  %v687 = vunpack.c.h.b16 %v76
  %v688 = vunpack.c.l.b16 %v77
  %v689 = vunpack.c.h.b16 %v77
  %v690 = vunpack.c.l.b16 %v78
  %v691 = vunpack.c.h.b16 %v78
  %v692 = vunpack.c.l.b16 %v79
  %v693 = vunpack.c.h.b16 %v79
  %v694 = vunpack.c.l.b16 %v80
  %v695 = vunpack.c.h.b16 %v80
  %v696 = vunpack.c.l.b16 %v81
  %v697 = vunpack.c.h.b16 %v81
  %v698 = vunpack.c.l.b16 %v82
  %v699 = vunpack.c.h.b16 %v82
  %v700 = vunpack.c.l.b16 %v83
  %v701 = vunpack.c.h.b16 %v83
  %v702 = vunpack.c.l.b16 %v84
  %v703 = vunpack.c.h.b16 %v84
  %v704 = vunpack.c.l.b16 %v85
  %v705 = vunpack.c.h.b16 %v85
  %v706 = vunpack.c.l.b16 %v86
  %v707 = vunpack.c.h.b16 %v86
  %v708 = vunpack.c.l.b16 %v87
  %v709 = vunpack.c.h.b16 %v87
  %v710 = vunpack.c.l.b16 %v88
  %v711 = vunpack.c.h.b16 %v88
  %v712 = vunpack.c.l.b16 %v89
  %v713 = vunpack.c.h.b16 %v89
  %v714 = vunpack.c.l.b16 %v90
  %v715 = vunpack.c.h.b16 %v90
  %v716 = vunpack.c.l.b16 %v91
  %v717 = vunpack.c.h.b16 %v91
  %v718 = vunpack.c.l.b16 %v92
  %v719 = vunpack.c.h.b16 %v92
  %v720 = vunpack.c.l.b16 %v93
  %v721 = vunpack.c.h.b16 %v93
  %v722 = vunpack.c.l.b16 %v94
  %v723 = vunpack.c.h.b16 %v94
  %v724 = vunpack.c.l.b16 %v95
  %v725 = vunpack.c.h.b16 %v95
  %v726 = vunpack.c.l.b16 %v96
  %v727 = vunpack.c.h.b16 %v96
  %v728 = vunpack.c.l.b16 %v97
  %v729 = vunpack.c.h.b16 %v97
  %v730 = vunpack.c.l.b16 %v98
  %v731 = vunpack.c.h.b16 %v98
  %v732 = vunpack.c.l.b16 %v99
  %v733 = vunpack.c.h.b16 %v99
  %v734 = vunpack.c.l.b16 %v100
  %v735 = vunpack.c.h.b16 %v100
  %v736 = vunpack.c.l.b16 %v101
  %v737 = vunpack.c.h.b16 %v101
  %v738 = vunpack.c.l.b16 %v102
  %v739 = vunpack.c.h.b16 %v102
  %v740 = vunpack.c.l.b16 %v103
  %v741 = vunpack.c.h.b16 %v103
  %v742 = vunpack.c.l.b16 %v104
  %v743 = vunpack.c.h.b16 %v104
  %v744 = vunpack.c.l.b16 %v105
  %v745 = vunpack.c.h.b16 %v105
  %v746 = vunpack.c.l.b16 %v106
  %v747 = vunpack.c.h.b16 %v106
  %v748 = vunpack.c.l.b16 %v107
  %v749 = vunpack.c.h.b16 %v107
  %v750 = vunpack.c.l.b16 %v108
  %v751 = vunpack.c.h.b16 %v108
  %v752 = vunpack.c.l.b16 %v109
  %v753 = vunpack.c.h.b16 %v109
  %v754 = vunpack.c.l.b16 %v110
  %v755 = vunpack.c.h.b16 %v110
  %v756 = vunpack.c.l.b16 %v111
  %v757 = vunpack.c.h.b16 %v111
  %v758 = vunpack.c.l.b16 %v112
  %v759 = vunpack.c.h.b16 %v112
  %v760 = vunpack.c.l.b16 %v113
  %v761 = vunpack.c.h.b16 %v113
  %v762 = vunpack.c.l.b16 %v114
  %v763 = vunpack.c.h.b16 %v114
  %v764 = vunpack.c.l.b16 %v115
  %v765 = vunpack.c.h.b16 %v115
  %v766 = vunpack.c.l.b16 %v116
  %v767 = vunpack.c.h.b16 %v116
  %v768 = vunpack.c.l.b16 %v117
  %v769 = vunpack.c.h.b16 %v117
  %v770 = vunpack.c.l.b16 %v118
  %v771 = vunpack.c.h.b16 %v118
  %v772 = vunpack.c.l.b16 %v119
  %v773 = vunpack.c.h.b16 %v119
  %v774 = vunpack.c.l.b16 %v120
  %v775 = vunpack.c.h.b16 %v120
  %v776 = vunpack.c.l.b16 %v121
  %v777 = vunpack.c.h.b16 %v121
  %v778 = vunpack.c.l.b16 %v122
  %v779 = vunpack.c.h.b16 %v122
  %v780 = vunpack.c.l.b16 %v123
  %v781 = vunpack.c.h.b16 %v123
  %v782 = vunpack.c.l.b16 %v124
  %v783 = vunpack.c.h.b16 %v124
  %v784 = vunpack.c.l.b16 %v125
  %v785 = vunpack.c.h.b16 %v125
  %v786 = vunpack.c.l.b16 %v126
  %v787 = vunpack.c.h.b16 %v126
  %v788 = vunpack.c.l.b16 %v127
  %v789 = vunpack.c.h.b16 %v127
  %v790 = vunpack.c.l.b16 %v128
  %v791 = vunpack.c.h.b16 %v128
  %v792 = vunpack.c.l.b16 %v129
  %v793 = vunpack.c.h.b16 %v129
  %v794 = vunpack.c.l.b16 %v130
  %v795 = vunpack.c.h.b16 %v130
  %v796 = vunpack.c.l.b16 %v131
  %v797 = vunpack.c.h.b16 %v131
  %v798 = vunpack.c.l.b16 %v132
  %v799 = vunpack.c.h.b16 %v132
  %v800 = vunpack.c.l.b16 %v133
  %v801 = vunpack.c.h.b16 %v133
  %v802 = vunpack.c.l.b16 %v134
  %v803 = vunpack.c.h.b16 %v134
  %v804 = vunpack.c.l.b16 %v135
  %v805 = vunpack.c.h.b16 %v135
  %v806 = vunpack.c.l.b16 %v136
  %v807 = vunpack.c.h.b16 %v136
  %v808 = vunpack.c.l.b16 %v137
  %v809 = vunpack.c.h.b16 %v137
  %v810 = vunpack.c.l.b16 %v138
  %v811 = vunpack.c.h.b16 %v138
  %v812 = vunpack.c.l.b16 %v139
  %v813 = vunpack.c.h.b16 %v139
  %v814 = vunpack.c.l.b16 %v140
  %v815 = vunpack.c.h.b16 %v140
  %v816 = vunpack.c.l.b16 %v141
  %v817 = vunpack.c.h.b16 %v141
  %v818 = vunpack.c.l.b16 %v142
  %v819 = vunpack.c.h.b16 %v142
  %v820 = vunpack.c.l.b16 %v143
  %v821 = vunpack.c.h.b16 %v143
  %v822 = vunpack.c.l.b16 %v144
  %v823 = vunpack.c.h.b16 %v144
  %v824 = vunpack.c.l.b16 %v145
  %v825 = vunpack.c.h.b16 %v145
  %v826 = vunpack.c.l.b16 %v146
  %v827 = vunpack.c.h.b16 %v146
  %v828 = vunpack.c.l.b16 %v147
  %v829 = vunpack.c.h.b16 %v147
  %v830 = vunpack.c.l.b16 %v148
  %v831 = vunpack.c.h.b16 %v148
  %v832 = vunpack.c.l.b16 %v149
  %v833 = vunpack.c.h.b16 %v149
  %v834 = vunpack.c.l.b16 %v150
  %v835 = vunpack.c.h.b16 %v150
  %v836 = vunpack.c.l.b16 %v151
  %v837 = vunpack.c.h.b16 %v151
  %v838 = vunpack.c.l.b16 %v152
  %v839 = vunpack.c.h.b16 %v152
  %v840 = vunpack.c.l.b16 %v153
  %v841 = vunpack.c.h.b16 %v153
  %v842 = vunpack.c.l.b16 %v154
  %v843 = vunpack.c.h.b16 %v154
  %v844 = vunpack.c.l.b16 %v155
  %v845 = vunpack.c.h.b16 %v155
  %v846 = vunpack.c.l.b16 %v156
  %v847 = vunpack.c.h.b16 %v156
  %v848 = vunpack.c.l.b16 %v157
  %v849 = vunpack.c.h.b16 %v157
  %v850 = vunpack.c.l.b16 %v158
  %v851 = vunpack.c.h.b16 %v158
  %v852 = vunpack.c.l.b16 %v159
  %v853 = vunpack.c.h.b16 %v159
  %v854 = vunpack.c.l.b16 %v160
  %v855 = vunpack.c.h.b16 %v160
  %v856 = vunpack.c.l.b16 %v161
  %v857 = vunpack.c.h.b16 %v161
  %v858 = vunpack.c.l.b16 %v162
  %v859 = vunpack.c.h.b16 %v162
  %v860 = vunpack.c.l.b16 %v163
  %v861 = vunpack.c.h.b16 %v163
  %v862 = vunpack.c.l.b16 %v164
  %v863 = vunpack.c.h.b16 %v164
  %v864 = vunpack.c.l.b16 %v165
  %v865 = vunpack.c.h.b16 %v165
  %v866 = vunpack.c.l.b16 %v166
  %v867 = vunpack.c.h.b16 %v166
  %v868 = vunpack.c.l.b16 %v167
  %v869 = vunpack.c.h.b16 %v167
  %v870 = vunpack.c.l.b16 %v168
  %v871 = vunpack.c.h.b16 %v168
  %v872 = vunpack.c.l.b16 %v169
  %v873 = vunpack.c.h.b16 %v169
  %v874 = vunpack.c.l.b16 %v170
  %v875 = vunpack.c.h.b16 %v170
  %v876 = vunpack.c.l.b16 %v171
  %v877 = vunpack.c.h.b16 %v171
  %v878 = vunpack.c.l.b16 %v172
  %v879 = vunpack.c.h.b16 %v172
  %v880 = vunpack.c.l.b16 %v173
  %v881 = vunpack.c.h.b16 %v173
  %v882 = vunpack.c.l.b16 %v174
  %v883 = vunpack.c.h.b16 %v174
  %v884 = vunpack.c.l.b16 %v175
  %v885 = vunpack.c.h.b16 %v175
  %v886 = vunpack.c.l.b16 %v176
  %v887 = vunpack.c.h.b16 %v176
  %v888 = vunpack.c.l.b16 %v177
  %v889 = vunpack.c.h.b16 %v177
  %v890 = vunpack.c.l.b16 %v178
  %v891 = vunpack.c.h.b16 %v178
  %v892 = vunpack.c.l.b16 %v179
  %v893 = vunpack.c.h.b16 %v179
  %v894 = vunpack.c.l.b16 %v180
  %v895 = vunpack.c.h.b16 %v180
  %v896 = vunpack.c.l.b16 %v181
  %v897 = vunpack.c.h.b16 %v181
  %v898 = vunpack.c.l.b16 %v182
  %v899 = vunpack.c.h.b16 %v182
  %v900 = vunpack.c.l.b16 %v183
  %v901 = vunpack.c.h.b16 %v183
  %v902 = vunpack.c.l.b16 %v184
  %v903 = vunpack.c.h.b16 %v184
  %v904 = vunpack.c.l.b16 %v185
  %v905 = vunpack.c.h.b16 %v185
  %v906 = vunpack.c.l.b16 %v186
  %v907 = vunpack.c.h.b16 %v186
  %v908 = vunpack.c.l.b16 %v187
  %v909 = vunpack.c.h.b16 %v187
  %v910 = vunpack.c.l.b16 %v188
  %v911 = vunpack.c.h.b16 %v188
  %v912 = vunpack.c.l.b16 %v189
  %v913 = vunpack.c.h.b16 %v189
  %v914 = vunpack.c.l.b16 %v190
  %v915 = vunpack.c.h.b16 %v190
  %v916 = vunpack.c.l.b16 %v191
  %v917 = vunpack.c.h.b16 %v191
  %v918 = vunpack.c.l.b16 %v192
  %v919 = vunpack.c.h.b16 %v192
  %v920 = vunpack.c.l.b16 %v193
  %v921 = vunpack.c.h.b16 %v193
  %v922 = vunpack.c.l.b16 %v194
  %v923 = vunpack.c.h.b16 %v194
  %v924 = vunpack.c.l.b16 %v195
  %v925 = vunpack.c.h.b16 %v195
  %v926 = vunpack.c.l.b16 %v196
  %v927 = vunpack.c.h.b16 %v196
  %v928 = vunpack.c.l.b16 %v197
  %v929 = vunpack.c.h.b16 %v197
  %v930 = vunpack.c.l.b16 %v198
  %v931 = vunpack.c.h.b16 %v198
  %v932 = vunpack.c.l.b16 %v199
  %v933 = vunpack.c.h.b16 %v199
  %v934 = vunpack.c.l.b16 %v200
  %v935 = vunpack.c.h.b16 %v200
  %v936 = vunpack.c.l.b16 %v201
  %v937 = vunpack.c.h.b16 %v201
  %v938 = vunpack.c.l.b16 %v202
  %v939 = vunpack.c.h.b16 %v202
  %v940 = vunpack.c.l.b16 %v203
  %v941 = vunpack.c.h.b16 %v203
  %v942 = vunpack.c.l.b16 %v204
  %v943 = vunpack.c.h.b16 %v204
  %v944 = vunpack.c.l.b16 %v205
  %v945 = vunpack.c.h.b16 %v205
  %v946 = vunpack.c.l.b16 %v206
  %v947 = vunpack.c.h.b16 %v206
  %v948 = vunpack.c.l.b16 %v207
  %v949 = vunpack.c.h.b16 %v207
  %v950 = vunpack.c.l.b16 %v208
  %v951 = vunpack.c.h.b16 %v208
  %v952 = vunpack.c.l.b16 %v209
  %v953 = vunpack.c.h.b16 %v209
  %v954 = vunpack.c.l.b16 %v210
  %v955 = vunpack.c.h.b16 %v210
  %v956 = vunpack.c.l.b16 %v211
  %v957 = vunpack.c.h.b16 %v211
  %v958 = vunpack.c.l.b16 %v212
  %v959 = vunpack.c.h.b16 %v212
  %v960 = vunpack.c.l.b16 %v213
  %v961 = vunpack.c.h.b16 %v213
  %v962 = vunpack.c.l.b16 %v214
  %v963 = vunpack.c.h.b16 %v214
  %v964 = vunpack.c.l.b16 %v215
  %v965 = vunpack.c.h.b16 %v215
  %v966 = vunpack.c.l.b16 %v216
  %v967 = vunpack.c.h.b16 %v216
  %v968 = vunpack.c.l.b16 %v217
  %v969 = vunpack.c.h.b16 %v217
  %v970 = vunpack.c.l.b16 %v218
  %v971 = vunpack.c.h.b16 %v218
  %v972 = vunpack.c.l.b16 %v219
  %v973 = vunpack.c.h.b16 %v219
  %v974 = vunpack.c.l.b16 %v220
  %v975 = vunpack.c.h.b16 %v220
  %v976 = vunpack.c.l.b16 %v221
  %v977 = vunpack.c.h.b16 %v221
  %v978 = vunpack.c.l.b16 %v222
  %v979 = vunpack.c.h.b16 %v222
  %v980 = vunpack.c.l.b16 %v223
  %v981 = vunpack.c.h.b16 %v223
  %v982 = vunpack.c.l.b16 %v224
  %v983 = vunpack.c.h.b16 %v224
  %v984 = vunpack.c.l.b16 %v225
  %v985 = vunpack.c.h.b16 %v225
  %v986 = vunpack.c.l.b16 %v226
  %v987 = vunpack.c.h.b16 %v226
  %v988 = vunpack.c.l.b16 %v227
  %v989 = vunpack.c.h.b16 %v227
  %v990 = vunpack.c.l.b16 %v228
  %v991 = vunpack.c.h.b16 %v228
  %v992 = vunpack.c.l.b16 %v229
  %v993 = vunpack.c.h.b16 %v229
  %v994 = vunpack.c.l.b16 %v230
  %v995 = vunpack.c.h.b16 %v230
  %v996 = vunpack.c.l.b16 %v231
  %v997 = vunpack.c.h.b16 %v231
  %v998 = vunpack.c.l.b16 %v232
  %v999 = vunpack.c.h.b16 %v232
  %v1000 = vunpack.c.l.b16 %v233
  %v1001 = vunpack.c.h.b16 %v233
  %v1002 = vunpack.c.l.b16 %v234
  %v1003 = vunpack.c.h.b16 %v234
  %v1004 = vunpack.c.l.b16 %v235
  %v1005 = vunpack.c.h.b16 %v235
  %v1006 = vunpack.c.l.b16 %v236
  %v1007 = vunpack.c.h.b16 %v236
  %v1008 = vunpack.c.l.b16 %v237
  %v1009 = vunpack.c.h.b16 %v237
  %v1010 = vunpack.c.l.b16 %v238
  %v1011 = vunpack.c.h.b16 %v238
  %v1012 = vunpack.c.l.b16 %v239
  %v1013 = vunpack.c.h.b16 %v239
  %v1014 = vunpack.c.l.b16 %v240
  %v1015 = vunpack.c.h.b16 %v240
  %v1016 = vunpack.c.l.b16 %v241
  %v1017 = vunpack.c.h.b16 %v241
  %v1018 = vunpack.c.l.b16 %v242
  %v1019 = vunpack.c.h.b16 %v242
  %v1020 = vunpack.c.l.b16 %v243
  %v1021 = vunpack.c.h.b16 %v243
  %v1022 = vunpack.c.l.b16 %v244
  %v1023 = vunpack.c.h.b16 %v244
  %v1024 = vunpack.c.l.b16 %v245
  %v1025 = vunpack.c.h.b16 %v245
  %v1026 = vunpack.c.l.b16 %v246
  %v1027 = vunpack.c.h.b16 %v246
  %v1028 = vunpack.c.l.b16 %v247
  %v1029 = vunpack.c.h.b16 %v247
  %v1030 = vunpack.c.l.b16 %v248
  %v1031 = vunpack.c.h.b16 %v248
  %v1032 = vunpack.c.l.b16 %v249
  %v1033 = vunpack.c.h.b16 %v249
  %v1034 = vunpack.c.l.b16 %v250
  %v1035 = vunpack.c.h.b16 %v250
  %v1036 = vunpack.c.l.b16 %v251
  %v1037 = vunpack.c.h.b16 %v251
  %v1038 = vunpack.c.l.b16 %v252
  %v1039 = vunpack.c.h.b16 %v252
  %v1040 = vunpack.c.l.b16 %v253
  %v1041 = vunpack.c.h.b16 %v253
  %v1042 = vunpack.c.l.b16 %v254
  %v1043 = vunpack.c.h.b16 %v254
  %v1044 = vunpack.c.l.b16 %v255
  %v1045 = vunpack.c.h.b16 %v255
  %v1046 = vunpack.c.l.b16 %v256
  %v1047 = vunpack.c.h.b16 %v256
  %v1048 = vunpack.c.l.b16 %v257
  %v1049 = vunpack.c.h.b16 %v257
  %v1050 = vunpack.c.l.b16 %v258
  %v1051 = vunpack.c.h.b16 %v258
  %v1052 = vunpack.c.l.b16 %v259
  %v1053 = vunpack.c.h.b16 %v259
  %v1054 = vunpack.c.l.b16 %v260
  %v1055 = vunpack.c.h.b16 %v260
  %v1056 = vunpack.c.l.b16 %v261
  %v1057 = vunpack.c.h.b16 %v261
  %v1058 = vunpack.c.l.b16 %v262
  %v1059 = vunpack.c.h.b16 %v262
  %v1060 = vunpack.c.l.b16 %v263
  %v1061 = vunpack.c.h.b16 %v263
  %v1062 = vunpack.c.l.b16 %v264
  %v1063 = vunpack.c.h.b16 %v264
  %v1064 = vunpack.c.l.b16 %v265
  %v1065 = vunpack.c.h.b16 %v265
  %v1066 = vunpack.c.l.b16 %v266
  %v1067 = vunpack.c.h.b16 %v266
  %v1068 = vunpack.c.l.b16 %v267
  %v1069 = vunpack.c.h.b16 %v267
  %v1070 = vunpack.c.l.b16 %v268
  %v1071 = vunpack.c.h.b16 %v268
  %v1072 = vunpack.c.l.b16 %v269
  %v1073 = vunpack.c.h.b16 %v269
  %v1074 = vpack.c.b16 %v564, %v562
  %v1075 = vpack.c.b16 %v565, %v563
  %v1076 = vpack.c.b16 %v568, %v566
  %v1077 = vpack.c.b16 %v569, %v567
  %v1078 = vpack.c.b16 %v572, %v570
  %v1079 = vpack.c.b16 %v573, %v571
  %v1080 = vpack.c.b16 %v576, %v574
  %v1081 = vpack.c.b16 %v577, %v575
  %v1082 = vpack.c.b16 %v580, %v578
  %v1083 = vpack.c.b16 %v581, %v579
  %v1084 = vpack.c.b16 %v584, %v582
  %v1085 = vpack.c.b16 %v585, %v583
  %v1086 = vpack.c.b16 %v588, %v586
  %v1087 = vpack.c.b16 %v589, %v587
  %v1088 = vpack.c.b16 %v592, %v590
  %v1089 = vpack.c.b16 %v593, %v591
  %v1090 = vpack.c.b16 %v596, %v594
  %v1091 = vpack.c.b16 %v597, %v595
  %v1092 = vpack.c.b16 %v600, %v598
  %v1093 = vpack.c.b16 %v601, %v599
  %v1094 = vpack.c.b16 %v604, %v602
  %v1095 = vpack.c.b16 %v605, %v603
  %v1096 = vpack.c.b16 %v608, %v606
  %v1097 = vpack.c.b16 %v609, %v607
  %v1098 = vpack.c.b16 %v612, %v610
  %v1099 = vpack.c.b16 %v613, %v611
  %v1100 = vpack.c.b16 %v616, %v614
  %v1101 = vpack.c.b16 %v617, %v615
  %v1102 = vpack.c.b16 %v620, %v618
  %v1103 = vpack.c.b16 %v621, %v619
  %v1104 = vpack.c.b16 %v624, %v622
  %v1105 = vpack.c.b16 %v625, %v623
  %v1106 = vpack.c.b16 %v628, %v626
  %v1107 = vpack.c.b16 %v629, %v627
  %v1108 = vpack.c.b16 %v632, %v630
  %v1109 = vpack.c.b16 %v633, %v631
  %v1110 = vpack.c.b16 %v636, %v634
  %v1111 = vpack.c.b16 %v637, %v635
  %v1112 = vpack.c.b16 %v640, %v638
  %v1113 = vpack.c.b16 %v641, %v639
  %v1114 = vpack.c.b16 %v644, %v642
  %v1115 = vpack.c.b16 %v645, %v643
  %v1116 = vpack.c.b16 %v648, %v646
  %v1117 = vpack.c.b16 %v649, %v647
  %v1118 = vpack.c.b16 %v652, %v650
  %v1119 = vpack.c.b16 %v653, %v651
  %v1120 = vpack.c.b16 %v656, %v654
  %v1121 = vpack.c.b16 %v657, %v655
  %v1122 = vpack.c.b16 %v660, %v658
  %v1123 = vpack.c.b16 %v661, %v659
  %v1124 = vpack.c.b16 %v664, %v662
  %v1125 = vpack.c.b16 %v665, %v663
  %v1126 = vpack.c.b16 %v668, %v666
  %v1127 = vpack.c.b16 %v669, %v667
  %v1128 = vpack.c.b16 %v672, %v670
  %v1129 = vpack.c.b16 %v673, %v671
  %v1130 = vpack.c.b16 %v676, %v674
  %v1131 = vpack.c.b16 %v677, %v675
  %v1132 = vpack.c.b16 %v680, %v678
  %v1133 = vpack.c.b16 %v681, %v679
  %v1134 = vpack.c.b16 %v684, %v682
  %v1135 = vpack.c.b16 %v685, %v683
  %v1136 = vpack.c.b16 %v688, %v686
  %v1137 = vpack.c.b16 %v689, %v687
  %v1138 = vpack.c.b16 %v692, %v690
  %v1139 = vpack.c.b16 %v693, %v691
  %v1140 = vpack.c.b16 %v696, %v694
  %v1141 = vpack.c.b16 %v697, %v695
  %v1142 = vpack.c.b16 %v700, %v698
  %v1143 = vpack.c.b16 %v701, %v699
  %v1144 = vpack.c.b16 %v704, %v702
  %v1145 = vpack.c.b16 %v705, %v703
  %v1146 = vpack.c.b16 %v708, %v706
  %v1147 = vpack.c.b16 %v709, %v707
  %v1148 = vpack.c.b16 %v712, %v710
  %v1149 = vpack.c.b16 %v713, %v711
  %v1150 = vpack.c.b16 %v716, %v714
  %v1151 = vpack.c.b16 %v717, %v715
  %v1152 = vpack.c.b16 %v720, %v718
  %v1153 = vpack.c.b16 %v721, %v719
  %v1154 = vpack.c.b16 %v724, %v722
  %v1155 = vpack.c.b16 %v725, %v723
  %v1156 = vpack.c.b16 %v728, %v726
  %v1157 = vpack.c.b16 %v729, %v727
  %v1158 = vpack.c.b16 %v732, %v730
  %v1159 = vpack.c.b16 %v733, %v731
  %v1160 = vpack.c.b16 %v736, %v734
  %v1161 = vpack.c.b16 %v737, %v735
  %v1162 = vpack.c.b16 %v740, %v738
  %v1163 = vpack.c.b16 %v741, %v739
  %v1164 = vpack.c.b16 %v744, %v742
  %v1165 = vpack.c.b16 %v745, %v743
  %v1166 = vpack.c.b16 %v748, %v746
  %v1167 = vpack.c.b16 %v749, %v747
  %v1168 = vpack.c.b16 %v752, %v750
  %v1169 = vpack.c.b16 %v753, %v751
  %v1170 = vpack.c.b16 %v756, %v754
  %v1171 = vpack.c.b16 %v757, %v755
  %v1172 = vpack.c.b16 %v760, %v758
  %v1173 = vpack.c.b16 %v761, %v759
  %v1174 = vpack.c.b16 %v764, %v762
  %v1175 = vpack.c.b16 %v765, %v763
  %v1176 = vpack.c.b16 %v768, %v766
  %v1177 = vpack.c.b16 %v769, %v767
  %v1178 = vpack.c.b16 %v772, %v770
  %v1179 = vpack.c.b16 %v773, %v771
  %v1180 = vpack.c.b16 %v776, %v774
  %v1181 = vpack.c.b16 %v777, %v775
  %v1182 = vpack.c.b16 %v780, %v778
  %v1183 = vpack.c.b16 %v781, %v779
  %v1184 = vpack.c.b16 %v784, %v782
  %v1185 = vpack.c.b16 %v785, %v783
  %v1186 = vpack.c.b16 %v788, %v786
  %v1187 = vpack.c.b16 %v789, %v787
  %v1188 = vpack.c.b16 %v792, %v790
  %v1189 = vpack.c.b16 %v793, %v791
  %v1190 = vpack.c.b16 %v796, %v794
  %v1191 = vpack.c.b16 %v797, %v795
  %v1192 = vpack.c.b16 %v800, %v798
  %v1193 = vpack.c.b16 %v801, %v799
  %v1194 = vpack.c.b16 %v804, %v802
  %v1195 = vpack.c.b16 %v805, %v803
  %v1196 = vpack.c.b16 %v808, %v806
  %v1197 = vpack.c.b16 %v809, %v807
  %v1198 = vpack.c.b16 %v812, %v810
  %v1199 = vpack.c.b16 %v813, %v811
  %v1200 = vpack.c.b16 %v816, %v814
  %v1201 = vpack.c.b16 %v817, %v815
  %v1202 = vpack.c.b16 %v820, %v818
  %v1203 = vpack.c.b16 %v821, %v819
  %v1204 = vpack.c.b16 %v824, %v822
  %v1205 = vpack.c.b16 %v825, %v823
  %v1206 = vpack.c.b16 %v828, %v826
  %v1207 = vpack.c.b16 %v829, %v827
  %v1208 = vpack.c.b16 %v832, %v830
  %v1209 = vpack.c.b16 %v833, %v831
  %v1210 = vpack.c.b16 %v836, %v834
  %v1211 = vpack.c.b16 %v837, %v835
  %v1212 = vpack.c.b16 %v840, %v838
  %v1213 = vpack.c.b16 %v841, %v839
  %v1214 = vpack.c.b16 %v844, %v842
  %v1215 = vpack.c.b16 %v845, %v843
  %v1216 = vpack.c.b16 %v848, %v846
  %v1217 = vpack.c.b16 %v849, %v847
  %v1218 = vpack.c.b16 %v852, %v850
  %v1219 = vpack.c.b16 %v853, %v851
  %v1220 = vpack.c.b16 %v856, %v854
  %v1221 = vpack.c.b16 %v857, %v855
  %v1222 = vpack.c.b16 %v860, %v858
  %v1223 = vpack.c.b16 %v861, %v859
  %v1224 = vpack.c.b16 %v864, %v862
  %v1225 = vpack.c.b16 %v865, %v863
  %v1226 = vpack.c.b16 %v868, %v866
  %v1227 = vpack.c.b16 %v869, %v867
  %v1228 = vpack.c.b16 %v872, %v870
  %v1229 = vpack.c.b16 %v873, %v871
  %v1230 = vpack.c.b16 %v876, %v874
  %v1231 = vpack.c.b16 %v877, %v875
  %v1232 = vpack.c.b16 %v880, %v878
  %v1233 = vpack.c.b16 %v881, %v879
  %v1234 = vpack.c.b16 %v884, %v882
  %v1235 = vpack.c.b16 %v885, %v883
  %v1236 = vpack.c.b16 %v888, %v886
  %v1237 = vpack.c.b16 %v889, %v887
  %v1238 = vpack.c.b16 %v892, %v890
  %v1239 = vpack.c.b16 %v893, %v891
  %v1240 = vpack.c.b16 %v896, %v894
  %v1241 = vpack.c.b16 %v897, %v895
  %v1242 = vpack.c.b16 %v900, %v898
  %v1243 = vpack.c.b16 %v901, %v899
  %v1244 = vpack.c.b16 %v904, %v902
  %v1245 = vpack.c.b16 %v905, %v903
  %v1246 = vpack.c.b16 %v908, %v906
  %v1247 = vpack.c.b16 %v909, %v907
  %v1248 = vpack.c.b16 %v912, %v910
  %v1249 = vpack.c.b16 %v913, %v911
  %v1250 = vpack.c.b16 %v916, %v914
  %v1251 = vpack.c.b16 %v917, %v915
  %v1252 = vpack.c.b16 %v920, %v918
  %v1253 = vpack.c.b16 %v921, %v919
  %v1254 = vpack.c.b16 %v924, %v922
  %v1255 = vpack.c.b16 %v925, %v923
  %v1256 = vpack.c.b16 %v928, %v926
  %v1257 = vpack.c.b16 %v929, %v927
  %v1258 = vpack.c.b16 %v932, %v930
  %v1259 = vpack.c.b16 %v933, %v931
  %v1260 = vpack.c.b16 %v936, %v934
  %v1261 = vpack.c.b16 %v937, %v935
  %v1262 = vpack.c.b16 %v940, %v938
  %v1263 = vpack.c.b16 %v941, %v939
  %v1264 = vpack.c.b16 %v944, %v942
  %v1265 = vpack.c.b16 %v945, %v943
  %v1266 = vpack.c.b16 %v948, %v946
  %v1267 = vpack.c.b16 %v949, %v947
  %v1268 = vpack.c.b16 %v952, %v950
  %v1269 = vpack.c.b16 %v953, %v951
  %v1270 = vpack.c.b16 %v956, %v954
  %v1271 = vpack.c.b16 %v957, %v955
  %v1272 = vpack.c.b16 %v960, %v958
  %v1273 = vpack.c.b16 %v961, %v959
  %v1274 = vpack.c.b16 %v964, %v962
  %v1275 = vpack.c.b16 %v965, %v963
  %v1276 = vpack.c.b16 %v968, %v966
  %v1277 = vpack.c.b16 %v969, %v967
  %v1278 = vpack.c.b16 %v972, %v970
  %v1279 = vpack.c.b16 %v973, %v971
  %v1280 = vpack.c.b16 %v976, %v974
  %v1281 = vpack.c.b16 %v977, %v975
  %v1282 = vpack.c.b16 %v980, %v978
  %v1283 = vpack.c.b16 %v981, %v979
  %v1284 = vpack.c.b16 %v984, %v982
  %v1285 = vpack.c.b16 %v985, %v983
  %v1286 = vpack.c.b16 %v988, %v986
  %v1287 = vpack.c.b16 %v989, %v987
  %v1288 = vpack.c.b16 %v992, %v990
  %v1289 = vpack.c.b16 %v993, %v991
  %v1290 = vpack.c.b16 %v996, %v994
  %v1291 = vpack.c.b16 %v997, %v995
  %v1292 = vpack.c.b16 %v1000, %v998
  %v1293 = vpack.c.b16 %v1001, %v999
  %v1294 = vpack.c.b16 %v1004, %v1002
  %v1295 = vpack.c.b16 %v1005, %v1003
  %v1296 = vpack.c.b16 %v1008, %v1006
  %v1297 = vpack.c.b16 %v1009, %v1007
  %v1298 = vpack.c.b16 %v1012, %v1010
  %v1299 = vpack.c.b16 %v1013, %v1011
  %v1300 = vpack.c.b16 %v1016, %v1014
  %v1301 = vpack.c.b16 %v1017, %v1015
  %v1302 = vpack.c.b16 %v1020, %v1018
  %v1303 = vpack.c.b16 %v1021, %v1019
  %v1304 = vpack.c.b16 %v1024, %v1022
  %v1305 = vpack.c.b16 %v1025, %v1023
  %v1306 = vpack.c.b16 %v1028, %v1026
  %v1307 = vpack.c.b16 %v1029, %v1027
  %v1308 = vpack.c.b16 %v1032, %v1030
  %v1309 = vpack.c.b16 %v1033, %v1031
  %v1310 = vpack.c.b16 %v1036, %v1034
  %v1311 = vpack.c.b16 %v1037, %v1035
  %v1312 = vpack.c.b16 %v1040, %v1038
  %v1313 = vpack.c.b16 %v1041, %v1039
  %v1314 = vpack.c.b16 %v1044, %v1042
  %v1315 = vpack.c.b16 %v1045, %v1043
  %v1316 = vpack.c.b16 %v1048, %v1046
  %v1317 = vpack.c.b16 %v1049, %v1047
  %v1318 = vpack.c.b16 %v1052, %v1050
  %v1319 = vpack.c.b16 %v1053, %v1051
  %v1320 = vpack.c.b16 %v1056, %v1054
  %v1321 = vpack.c.b16 %v1057, %v1055
  %v1322 = vpack.c.b16 %v1060, %v1058
  %v1323 = vpack.c.b16 %v1061, %v1059
  %v1324 = vpack.c.b16 %v1064, %v1062
  %v1325 = vpack.c.b16 %v1065, %v1063
  %v1326 = vpack.c.b16 %v1068, %v1066
  %v1327 = vpack.c.b16 %v1069, %v1067
  %v1328 = vpack.c.b16 %v1072, %v1070
  %v1329 = vpack.c.b16 %v1073, %v1071
  %v1618 = vunpack.c.l.b16 %v270
  %v1619 = vunpack.c.l.b16 %v271
  %v1620 = vunpack.c.l.b16 %v272
  %v1621 = vunpack.c.l.b16 %v273
  %v1622 = vunpack.c.l.b16 %v274
  %v1623 = vunpack.c.l.b16 %v275
  %v1624 = vunpack.c.l.b16 %v276
  %v1625 = vunpack.c.l.b16 %v277
  %v1626 = vunpack.c.l.b16 %v278
  %v1627 = vunpack.c.l.b16 %v279
  %v1628 = vunpack.c.l.b16 %v280
  %v1629 = vunpack.c.l.b16 %v281
  %v1630 = vunpack.c.l.b16 %v282
  %v1631 = vunpack.c.l.b16 %v283
  %v1632 = vunpack.c.l.b16 %v284
  %v1633 = vunpack.c.l.b16 %v285
  %v1634 = vunpack.c.l.b16 %v286
  %v1635 = vunpack.c.l.b16 %v287
  %v1636 = vunpack.c.l.b16 %v288
  %v1637 = vunpack.c.l.b16 %v289
  %v1638 = vunpack.c.l.b16 %v290
  %v1639 = vunpack.c.l.b16 %v291
  %v1640 = vunpack.c.l.b16 %v292
  %v1641 = vunpack.c.l.b16 %v293
  %v1642 = vunpack.c.l.b16 %v294
  %v1643 = vunpack.c.l.b16 %v295
  %v1644 = vunpack.c.l.b16 %v296
  %v1645 = vunpack.c.l.b16 %v297
  %v1646 = vunpack.c.l.b16 %v298
  %v1647 = vunpack.c.l.b16 %v299
  %v1648 = vunpack.c.l.b16 %v300
  %v1649 = vunpack.c.l.b16 %v301
  %v1650 = vpack.c.b16 %v1619, %v1618
  %v1651 = vpack.c.b16 %v1621, %v1620
  %v1652 = vpack.c.b16 %v1623, %v1622
  %v1653 = vpack.c.b16 %v1625, %v1624
  %v1654 = vpack.c.b16 %v1627, %v1626
  %v1655 = vpack.c.b16 %v1629, %v1628
  %v1656 = vpack.c.b16 %v1631, %v1630
  %v1657 = vpack.c.b16 %v1633, %v1632
  %v1658 = vpack.c.b16 %v1635, %v1634
  %v1659 = vpack.c.b16 %v1637, %v1636
  %v1660 = vpack.c.b16 %v1639, %v1638
  %v1661 = vpack.c.b16 %v1641, %v1640
  %v1662 = vpack.c.b16 %v1643, %v1642
  %v1663 = vpack.c.b16 %v1645, %v1644
  %v1664 = vpack.c.b16 %v1647, %v1646
  %v1665 = vpack.c.b16 %v1649, %v1648
  %1682 = vmatpush.bf16.msra.mxu0 %v1657
  %1683 = vmatpush.bf16.msra.mxu0 %v1656
  %1684 = vmatpush.bf16.msra.mxu0 %v1655
  %1685 = vmatpush.bf16.msra.mxu0 %v1654
  %1686 = vmatpush.bf16.msra.mxu0 %v1653
  %1687 = vmatpush.bf16.msra.mxu0 %v1652
  %1688 = vmatpush.bf16.msra.mxu0 %v1651
  %1689 = vmatpush.bf16.msra.mxu0 %v1650
  %1690 = vmatmul.bf16.gmra.mxu0 %v1074
  %v1691 = vpop.f32.mrf.mxu0
  %v1692 = vadd.f32 %v304, %v1691
  %v1693 = vpop.f32.mrf.mxu0
  %v1694 = vadd.f32 %v304, %v1693
  %1695 = vmatmul.bf16.gmra.mxu0 %v1076
  %v1696 = vpop.f32.mrf.mxu0
  %v1697 = vadd.f32 %v304, %v1696
  %v1698 = vpop.f32.mrf.mxu0
  %v1699 = vadd.f32 %v304, %v1698
  %1700 = vmatmul.bf16.gmra.mxu0 %v1078
  %v1701 = vpop.f32.mrf.mxu0
  %v1702 = vadd.f32 %v304, %v1701
  %v1703 = vpop.f32.mrf.mxu0
  %v1704 = vadd.f32 %v304, %v1703
  %1705 = vmatmul.bf16.gmra.mxu0 %v1080
  %v1706 = vpop.f32.mrf.mxu0
  %v1707 = vadd.f32 %v304, %v1706
  %v1708 = vpop.f32.mrf.mxu0
  %v1709 = vadd.f32 %v304, %v1708
  %1710 = vmatmul.bf16.gmra.mxu0 %v1082
  %v1711 = vpop.f32.mrf.mxu0
  %v1712 = vadd.f32 %v304, %v1711
  %v1713 = vpop.f32.mrf.mxu0
  %v1714 = vadd.f32 %v304, %v1713
  %1715 = vmatmul.bf16.gmra.mxu0 %v1084
  %v1716 = vpop.f32.mrf.mxu0
  %v1717 = vadd.f32 %v304, %v1716
  %v1718 = vpop.f32.mrf.mxu0
  %v1719 = vadd.f32 %v304, %v1718
  %1720 = vmatmul.bf16.gmra.mxu0 %v1086
  %v1721 = vpop.f32.mrf.mxu0
  %v1722 = vadd.f32 %v304, %v1721
  %v1723 = vpop.f32.mrf.mxu0
  %v1724 = vadd.f32 %v304, %v1723
  %1725 = vmatmul.bf16.gmra.mxu0 %v1088
  %v1726 = vpop.f32.mrf.mxu0
  %v1727 = vadd.f32 %v304, %v1726
  %v1728 = vpop.f32.mrf.mxu0
  %v1729 = vadd.f32 %v304, %v1728
  %1730 = vmatmul.bf16.gmra.mxu0 %v1090
  %v1731 = vpop.f32.mrf.mxu0
  %v1732 = vadd.f32 %v304, %v1731
  %v1733 = vpop.f32.mrf.mxu0
  %v1734 = vadd.f32 %v304, %v1733
  %1735 = vmatmul.bf16.gmra.mxu0 %v1092
  %v1736 = vpop.f32.mrf.mxu0
  %v1737 = vadd.f32 %v304, %v1736
  %v1738 = vpop.f32.mrf.mxu0
  %v1739 = vadd.f32 %v304, %v1738
  %1740 = vmatmul.bf16.gmra.mxu0 %v1094
  %v1741 = vpop.f32.mrf.mxu0
  %v1742 = vadd.f32 %v304, %v1741
  %v1743 = vpop.f32.mrf.mxu0
  %v1744 = vadd.f32 %v304, %v1743
  %1745 = vmatmul.bf16.gmra.mxu0 %v1096
  %v1746 = vpop.f32.mrf.mxu0
  %v1747 = vadd.f32 %v304, %v1746
  %v1748 = vpop.f32.mrf.mxu0
  %v1749 = vadd.f32 %v304, %v1748
  %1750 = vmatmul.bf16.gmra.mxu0 %v1098
  %v1751 = vpop.f32.mrf.mxu0
  %v1752 = vadd.f32 %v304, %v1751
  %v1753 = vpop.f32.mrf.mxu0
  %v1754 = vadd.f32 %v304, %v1753
  %1755 = vmatmul.bf16.gmra.mxu0 %v1100
  %v1756 = vpop.f32.mrf.mxu0
  %v1757 = vadd.f32 %v304, %v1756
  %v1758 = vpop.f32.mrf.mxu0
  %v1759 = vadd.f32 %v304, %v1758
  %1760 = vmatmul.bf16.gmra.mxu0 %v1102
  %v1761 = vpop.f32.mrf.mxu0
  %v1762 = vadd.f32 %v304, %v1761
  %v1763 = vpop.f32.mrf.mxu0
  %v1764 = vadd.f32 %v304, %v1763
  %1765 = vmatmul.bf16.gmra.mxu0 %v1104
  %v1766 = vpop.f32.mrf.mxu0
  %v1767 = vadd.f32 %v304, %v1766
  %v1768 = vpop.f32.mrf.mxu0
  %v1769 = vadd.f32 %v304, %v1768
  %1770 = vmatmul.bf16.gmra.mxu0 %v1106
  %v1771 = vpop.f32.mrf.mxu0
  %v1772 = vadd.f32 %v304, %v1771
  %v1773 = vpop.f32.mrf.mxu0
  %v1774 = vadd.f32 %v304, %v1773
  %1775 = vmatmul.bf16.gmra.mxu0 %v1108
  %v1776 = vpop.f32.mrf.mxu0
  %v1777 = vadd.f32 %v304, %v1776
  %v1778 = vpop.f32.mrf.mxu0
  %v1779 = vadd.f32 %v304, %v1778
  %1780 = vmatmul.bf16.gmra.mxu0 %v1110
  %v1781 = vpop.f32.mrf.mxu0
  %v1782 = vadd.f32 %v304, %v1781
  %v1783 = vpop.f32.mrf.mxu0
  %v1784 = vadd.f32 %v304, %v1783
  %1785 = vmatmul.bf16.gmra.mxu0 %v1112
  %v1786 = vpop.f32.mrf.mxu0
  %v1787 = vadd.f32 %v304, %v1786
  %v1788 = vpop.f32.mrf.mxu0
  %v1789 = vadd.f32 %v304, %v1788
  %1790 = vmatmul.bf16.gmra.mxu0 %v1114
  %v1791 = vpop.f32.mrf.mxu0
  %v1792 = vadd.f32 %v304, %v1791
  %v1793 = vpop.f32.mrf.mxu0
  %v1794 = vadd.f32 %v304, %v1793
  %1795 = vmatmul.bf16.gmra.mxu0 %v1116
  %v1796 = vpop.f32.mrf.mxu0
  %v1797 = vadd.f32 %v304, %v1796
  %v1798 = vpop.f32.mrf.mxu0
  %v1799 = vadd.f32 %v304, %v1798
  %1800 = vmatmul.bf16.gmra.mxu0 %v1118
  %v1801 = vpop.f32.mrf.mxu0
  %v1802 = vadd.f32 %v304, %v1801
  %v1803 = vpop.f32.mrf.mxu0
  %v1804 = vadd.f32 %v304, %v1803
  %1805 = vmatmul.bf16.gmra.mxu0 %v1120
  %v1806 = vpop.f32.mrf.mxu0
  %v1807 = vadd.f32 %v304, %v1806
  %v1808 = vpop.f32.mrf.mxu0
  %v1809 = vadd.f32 %v304, %v1808
  %1810 = vmatmul.bf16.gmra.mxu0 %v1122
  %v1811 = vpop.f32.mrf.mxu0
  %v1812 = vadd.f32 %v304, %v1811
  %v1813 = vpop.f32.mrf.mxu0
  %v1814 = vadd.f32 %v304, %v1813
  %1815 = vmatmul.bf16.gmra.mxu0 %v1124
  %v1816 = vpop.f32.mrf.mxu0
  %v1817 = vadd.f32 %v304, %v1816
  %v1818 = vpop.f32.mrf.mxu0
  %v1819 = vadd.f32 %v304, %v1818
  %1820 = vmatmul.bf16.gmra.mxu0 %v1126
  %v1821 = vpop.f32.mrf.mxu0
  %v1822 = vadd.f32 %v304, %v1821
  %v1823 = vpop.f32.mrf.mxu0
  %v1824 = vadd.f32 %v304, %v1823
  %1825 = vmatmul.bf16.gmra.mxu0 %v1128
  %v1826 = vpop.f32.mrf.mxu0
  %v1827 = vadd.f32 %v304, %v1826
  %v1828 = vpop.f32.mrf.mxu0
  %v1829 = vadd.f32 %v304, %v1828
  %1830 = vmatmul.bf16.gmra.mxu0 %v1130
  %v1831 = vpop.f32.mrf.mxu0
  %v1832 = vadd.f32 %v304, %v1831
  %v1833 = vpop.f32.mrf.mxu0
  %v1834 = vadd.f32 %v304, %v1833
  %1835 = vmatmul.bf16.gmra.mxu0 %v1132
  %v1836 = vpop.f32.mrf.mxu0
  %v1837 = vadd.f32 %v304, %v1836
  %v1838 = vpop.f32.mrf.mxu0
  %v1839 = vadd.f32 %v304, %v1838
  %1840 = vmatmul.bf16.gmra.mxu0 %v1134
  %v1841 = vpop.f32.mrf.mxu0
  %v1842 = vadd.f32 %v304, %v1841
  %v1843 = vpop.f32.mrf.mxu0
  %v1844 = vadd.f32 %v304, %v1843
  %1845 = vmatmul.bf16.gmra.mxu0 %v1136
  %v1846 = vpop.f32.mrf.mxu0
  %v1847 = vadd.f32 %v304, %v1846
  %v1848 = vpop.f32.mrf.mxu0
  %v1849 = vadd.f32 %v304, %v1848
  %1850 = vmatmul.bf16.gmra.mxu0 %v1138
  %v1851 = vpop.f32.mrf.mxu0
  %v1852 = vadd.f32 %v304, %v1851
  %v1853 = vpop.f32.mrf.mxu0
  %v1854 = vadd.f32 %v304, %v1853
  %1855 = vmatmul.bf16.gmra.mxu0 %v1140
  %v1856 = vpop.f32.mrf.mxu0
  %v1857 = vadd.f32 %v304, %v1856
  %v1858 = vpop.f32.mrf.mxu0
  %v1859 = vadd.f32 %v304, %v1858
  %1860 = vmatmul.bf16.gmra.mxu0 %v1142
  %v1861 = vpop.f32.mrf.mxu0
  %v1862 = vadd.f32 %v304, %v1861
  %v1863 = vpop.f32.mrf.mxu0
  %v1864 = vadd.f32 %v304, %v1863
  %1865 = vmatmul.bf16.gmra.mxu0 %v1144
  %v1866 = vpop.f32.mrf.mxu0
  %v1867 = vadd.f32 %v304, %v1866
  %v1868 = vpop.f32.mrf.mxu0
  %v1869 = vadd.f32 %v304, %v1868
  %1870 = vmatmul.bf16.gmra.mxu0 %v1146
  %v1871 = vpop.f32.mrf.mxu0
  %v1872 = vadd.f32 %v304, %v1871
  %v1873 = vpop.f32.mrf.mxu0
  %v1874 = vadd.f32 %v304, %v1873
  %1875 = vmatmul.bf16.gmra.mxu0 %v1148
  %v1876 = vpop.f32.mrf.mxu0
  %v1877 = vadd.f32 %v304, %v1876
  %v1878 = vpop.f32.mrf.mxu0
  %v1879 = vadd.f32 %v304, %v1878
  %1880 = vmatmul.bf16.gmra.mxu0 %v1150
  %v1881 = vpop.f32.mrf.mxu0
  %v1882 = vadd.f32 %v304, %v1881
  %v1883 = vpop.f32.mrf.mxu0
  %v1884 = vadd.f32 %v304, %v1883
  %1885 = vmatmul.bf16.gmra.mxu0 %v1152
  %v1886 = vpop.f32.mrf.mxu0
  %v1887 = vadd.f32 %v304, %v1886
  %v1888 = vpop.f32.mrf.mxu0
  %v1889 = vadd.f32 %v304, %v1888
  %1890 = vmatmul.bf16.gmra.mxu0 %v1154
  %v1891 = vpop.f32.mrf.mxu0
  %v1892 = vadd.f32 %v304, %v1891
  %v1893 = vpop.f32.mrf.mxu0
  %v1894 = vadd.f32 %v304, %v1893
  %1895 = vmatmul.bf16.gmra.mxu0 %v1156
  %v1896 = vpop.f32.mrf.mxu0
  %v1897 = vadd.f32 %v304, %v1896
  %v1898 = vpop.f32.mrf.mxu0
  %v1899 = vadd.f32 %v304, %v1898
  %1900 = vmatmul.bf16.gmra.mxu0 %v1158
  %v1901 = vpop.f32.mrf.mxu0
  %v1902 = vadd.f32 %v304, %v1901
  %v1903 = vpop.f32.mrf.mxu0
  %v1904 = vadd.f32 %v304, %v1903
  %1905 = vmatmul.bf16.gmra.mxu0 %v1160
  %v1906 = vpop.f32.mrf.mxu0
  %v1907 = vadd.f32 %v304, %v1906
  %v1908 = vpop.f32.mrf.mxu0
  %v1909 = vadd.f32 %v304, %v1908
  %1910 = vmatmul.bf16.gmra.mxu0 %v1162
  %v1911 = vpop.f32.mrf.mxu0
  %v1912 = vadd.f32 %v304, %v1911
  %v1913 = vpop.f32.mrf.mxu0
  %v1914 = vadd.f32 %v304, %v1913
  %1915 = vmatmul.bf16.gmra.mxu0 %v1164
  %v1916 = vpop.f32.mrf.mxu0
  %v1917 = vadd.f32 %v304, %v1916
  %v1918 = vpop.f32.mrf.mxu0
  %v1919 = vadd.f32 %v304, %v1918
  %1920 = vmatmul.bf16.gmra.mxu0 %v1166
  %v1921 = vpop.f32.mrf.mxu0
  %v1922 = vadd.f32 %v304, %v1921
  %v1923 = vpop.f32.mrf.mxu0
  %v1924 = vadd.f32 %v304, %v1923
  %1925 = vmatmul.bf16.gmra.mxu0 %v1168
  %v1926 = vpop.f32.mrf.mxu0
  %v1927 = vadd.f32 %v304, %v1926
  %v1928 = vpop.f32.mrf.mxu0
  %v1929 = vadd.f32 %v304, %v1928
  %1930 = vmatmul.bf16.gmra.mxu0 %v1170
  %v1931 = vpop.f32.mrf.mxu0
  %v1932 = vadd.f32 %v304, %v1931
  %v1933 = vpop.f32.mrf.mxu0
  %v1934 = vadd.f32 %v304, %v1933
  %1935 = vmatmul.bf16.gmra.mxu0 %v1172
  %v1936 = vpop.f32.mrf.mxu0
  %v1937 = vadd.f32 %v304, %v1936
  %v1938 = vpop.f32.mrf.mxu0
  %v1939 = vadd.f32 %v304, %v1938
  %1940 = vmatmul.bf16.gmra.mxu0 %v1174
  %v1941 = vpop.f32.mrf.mxu0
  %v1942 = vadd.f32 %v304, %v1941
  %v1943 = vpop.f32.mrf.mxu0
  %v1944 = vadd.f32 %v304, %v1943
  %1945 = vmatmul.bf16.gmra.mxu0 %v1176
  %v1946 = vpop.f32.mrf.mxu0
  %v1947 = vadd.f32 %v304, %v1946
  %v1948 = vpop.f32.mrf.mxu0
  %v1949 = vadd.f32 %v304, %v1948
  %1950 = vmatmul.bf16.gmra.mxu0 %v1178
  %v1951 = vpop.f32.mrf.mxu0
  %v1952 = vadd.f32 %v304, %v1951
  %v1953 = vpop.f32.mrf.mxu0
  %v1954 = vadd.f32 %v304, %v1953
  %1955 = vmatmul.bf16.gmra.mxu0 %v1180
  %v1956 = vpop.f32.mrf.mxu0
  %v1957 = vadd.f32 %v304, %v1956
  %v1958 = vpop.f32.mrf.mxu0
  %v1959 = vadd.f32 %v304, %v1958
  %1960 = vmatmul.bf16.gmra.mxu0 %v1182
  %v1961 = vpop.f32.mrf.mxu0
  %v1962 = vadd.f32 %v304, %v1961
  %v1963 = vpop.f32.mrf.mxu0
  %v1964 = vadd.f32 %v304, %v1963
  %1965 = vmatmul.bf16.gmra.mxu0 %v1184
  %v1966 = vpop.f32.mrf.mxu0
  %v1967 = vadd.f32 %v304, %v1966
  %v1968 = vpop.f32.mrf.mxu0
  %v1969 = vadd.f32 %v304, %v1968
  %1970 = vmatmul.bf16.gmra.mxu0 %v1186
  %v1971 = vpop.f32.mrf.mxu0
  %v1972 = vadd.f32 %v304, %v1971
  %v1973 = vpop.f32.mrf.mxu0
  %v1974 = vadd.f32 %v304, %v1973
  %1975 = vmatmul.bf16.gmra.mxu0 %v1188
  %v1976 = vpop.f32.mrf.mxu0
  %v1977 = vadd.f32 %v304, %v1976
  %v1978 = vpop.f32.mrf.mxu0
  %v1979 = vadd.f32 %v304, %v1978
  %1980 = vmatmul.bf16.gmra.mxu0 %v1190
  %v1981 = vpop.f32.mrf.mxu0
  %v1982 = vadd.f32 %v304, %v1981
  %v1983 = vpop.f32.mrf.mxu0
  %v1984 = vadd.f32 %v304, %v1983
  %1985 = vmatmul.bf16.gmra.mxu0 %v1192
  %v1986 = vpop.f32.mrf.mxu0
  %v1987 = vadd.f32 %v304, %v1986
  %v1988 = vpop.f32.mrf.mxu0
  %v1989 = vadd.f32 %v304, %v1988
  %1990 = vmatmul.bf16.gmra.mxu0 %v1194
  %v1991 = vpop.f32.mrf.mxu0
  %v1992 = vadd.f32 %v304, %v1991
  %v1993 = vpop.f32.mrf.mxu0
  %v1994 = vadd.f32 %v304, %v1993
  %1995 = vmatmul.bf16.gmra.mxu0 %v1196
  %v1996 = vpop.f32.mrf.mxu0
  %v1997 = vadd.f32 %v304, %v1996
  %v1998 = vpop.f32.mrf.mxu0
  %v1999 = vadd.f32 %v304, %v1998
  %2000 = vmatmul.bf16.gmra.mxu0 %v1198
  %v2001 = vpop.f32.mrf.mxu0
  %v2002 = vadd.f32 %v304, %v2001
  %v2003 = vpop.f32.mrf.mxu0
  %v2004 = vadd.f32 %v304, %v2003
  %2005 = vmatmul.bf16.gmra.mxu0 %v1200
  %v2006 = vpop.f32.mrf.mxu0
  %v2007 = vadd.f32 %v304, %v2006
  %v2008 = vpop.f32.mrf.mxu0
  %v2009 = vadd.f32 %v304, %v2008
  %2010 = vmatmul.bf16.gmra.mxu0 %v1202
  %v2011 = vpop.f32.mrf.mxu0
  %v2012 = vadd.f32 %v304, %v2011
  %v2013 = vpop.f32.mrf.mxu0
  %v2014 = vadd.f32 %v304, %v2013
  %2015 = vmatmul.bf16.gmra.mxu0 %v1204
  %v2016 = vpop.f32.mrf.mxu0
  %v2017 = vadd.f32 %v304, %v2016
  %v2018 = vpop.f32.mrf.mxu0
  %v2019 = vadd.f32 %v304, %v2018
  %2020 = vmatmul.bf16.gmra.mxu0 %v1206
  %v2021 = vpop.f32.mrf.mxu0
  %v2022 = vadd.f32 %v304, %v2021
  %v2023 = vpop.f32.mrf.mxu0
  %v2024 = vadd.f32 %v304, %v2023
  %2025 = vmatmul.bf16.gmra.mxu0 %v1208
  %v2026 = vpop.f32.mrf.mxu0
  %v2027 = vadd.f32 %v304, %v2026
  %v2028 = vpop.f32.mrf.mxu0
  %v2029 = vadd.f32 %v304, %v2028
  %2030 = vmatmul.bf16.gmra.mxu0 %v1210
  %v2031 = vpop.f32.mrf.mxu0
  %v2032 = vadd.f32 %v304, %v2031
  %v2033 = vpop.f32.mrf.mxu0
  %v2034 = vadd.f32 %v304, %v2033
  %2035 = vmatmul.bf16.gmra.mxu0 %v1212
  %v2036 = vpop.f32.mrf.mxu0
  %v2037 = vadd.f32 %v304, %v2036
  %v2038 = vpop.f32.mrf.mxu0
  %v2039 = vadd.f32 %v304, %v2038
  %2040 = vmatmul.bf16.gmra.mxu0 %v1214
  %v2041 = vpop.f32.mrf.mxu0
  %v2042 = vadd.f32 %v304, %v2041
  %v2043 = vpop.f32.mrf.mxu0
  %v2044 = vadd.f32 %v304, %v2043
  %2045 = vmatmul.bf16.gmra.mxu0 %v1216
  %v2046 = vpop.f32.mrf.mxu0
  %v2047 = vadd.f32 %v304, %v2046
  %v2048 = vpop.f32.mrf.mxu0
  %v2049 = vadd.f32 %v304, %v2048
  %2050 = vmatmul.bf16.gmra.mxu0 %v1218
  %v2051 = vpop.f32.mrf.mxu0
  %v2052 = vadd.f32 %v304, %v2051
  %v2053 = vpop.f32.mrf.mxu0
  %v2054 = vadd.f32 %v304, %v2053
  %2055 = vmatmul.bf16.gmra.mxu0 %v1220
  %v2056 = vpop.f32.mrf.mxu0
  %v2057 = vadd.f32 %v304, %v2056
  %v2058 = vpop.f32.mrf.mxu0
  %v2059 = vadd.f32 %v304, %v2058
  %2060 = vmatmul.bf16.gmra.mxu0 %v1222
  %v2061 = vpop.f32.mrf.mxu0
  %v2062 = vadd.f32 %v304, %v2061
  %v2063 = vpop.f32.mrf.mxu0
  %v2064 = vadd.f32 %v304, %v2063
  %2065 = vmatmul.bf16.gmra.mxu0 %v1224
  %v2066 = vpop.f32.mrf.mxu0
  %v2067 = vadd.f32 %v304, %v2066
  %v2068 = vpop.f32.mrf.mxu0
  %v2069 = vadd.f32 %v304, %v2068
  %2070 = vmatmul.bf16.gmra.mxu0 %v1226
  %v2071 = vpop.f32.mrf.mxu0
  %v2072 = vadd.f32 %v304, %v2071
  %v2073 = vpop.f32.mrf.mxu0
  %v2074 = vadd.f32 %v304, %v2073
  %2075 = vmatmul.bf16.gmra.mxu0 %v1228
  %v2076 = vpop.f32.mrf.mxu0
  %v2077 = vadd.f32 %v304, %v2076
  %v2078 = vpop.f32.mrf.mxu0
  %v2079 = vadd.f32 %v304, %v2078
  %2080 = vmatmul.bf16.gmra.mxu0 %v1230
  %v2081 = vpop.f32.mrf.mxu0
  %v2082 = vadd.f32 %v304, %v2081
  %v2083 = vpop.f32.mrf.mxu0
  %v2084 = vadd.f32 %v304, %v2083
  %2085 = vmatmul.bf16.gmra.mxu0 %v1232
  %v2086 = vpop.f32.mrf.mxu0
  %v2087 = vadd.f32 %v304, %v2086
  %v2088 = vpop.f32.mrf.mxu0
  %v2089 = vadd.f32 %v304, %v2088
  %2090 = vmatmul.bf16.gmra.mxu0 %v1234
  %v2091 = vpop.f32.mrf.mxu0
  %v2092 = vadd.f32 %v304, %v2091
  %v2093 = vpop.f32.mrf.mxu0
  %v2094 = vadd.f32 %v304, %v2093
  %2095 = vmatmul.bf16.gmra.mxu0 %v1236
  %v2096 = vpop.f32.mrf.mxu0
  %v2097 = vadd.f32 %v304, %v2096
  %v2098 = vpop.f32.mrf.mxu0
  %v2099 = vadd.f32 %v304, %v2098
  %2100 = vmatmul.bf16.gmra.mxu0 %v1238
  %v2101 = vpop.f32.mrf.mxu0
  %v2102 = vadd.f32 %v304, %v2101
  %v2103 = vpop.f32.mrf.mxu0
  %v2104 = vadd.f32 %v304, %v2103
  %2105 = vmatmul.bf16.gmra.mxu0 %v1240
  %v2106 = vpop.f32.mrf.mxu0
  %v2107 = vadd.f32 %v304, %v2106
  %v2108 = vpop.f32.mrf.mxu0
  %v2109 = vadd.f32 %v304, %v2108
  %2110 = vmatmul.bf16.gmra.mxu0 %v1242
  %v2111 = vpop.f32.mrf.mxu0
  %v2112 = vadd.f32 %v304, %v2111
  %v2113 = vpop.f32.mrf.mxu0
  %v2114 = vadd.f32 %v304, %v2113
  %2115 = vmatmul.bf16.gmra.mxu0 %v1244
  %v2116 = vpop.f32.mrf.mxu0
  %v2117 = vadd.f32 %v304, %v2116
  %v2118 = vpop.f32.mrf.mxu0
  %v2119 = vadd.f32 %v304, %v2118
  %2120 = vmatmul.bf16.gmra.mxu0 %v1246
  %v2121 = vpop.f32.mrf.mxu0
  %v2122 = vadd.f32 %v304, %v2121
  %v2123 = vpop.f32.mrf.mxu0
  %v2124 = vadd.f32 %v304, %v2123
  %2125 = vmatmul.bf16.gmra.mxu0 %v1248
  %v2126 = vpop.f32.mrf.mxu0
  %v2127 = vadd.f32 %v304, %v2126
  %v2128 = vpop.f32.mrf.mxu0
  %v2129 = vadd.f32 %v304, %v2128
  %2130 = vmatmul.bf16.gmra.mxu0 %v1250
  %v2131 = vpop.f32.mrf.mxu0
  %v2132 = vadd.f32 %v304, %v2131
  %v2133 = vpop.f32.mrf.mxu0
  %v2134 = vadd.f32 %v304, %v2133
  %2135 = vmatmul.bf16.gmra.mxu0 %v1252
  %v2136 = vpop.f32.mrf.mxu0
  %v2137 = vadd.f32 %v304, %v2136
  %v2138 = vpop.f32.mrf.mxu0
  %v2139 = vadd.f32 %v304, %v2138
  %2140 = vmatmul.bf16.gmra.mxu0 %v1254
  %v2141 = vpop.f32.mrf.mxu0
  %v2142 = vadd.f32 %v304, %v2141
  %v2143 = vpop.f32.mrf.mxu0
  %v2144 = vadd.f32 %v304, %v2143
  %2145 = vmatmul.bf16.gmra.mxu0 %v1256
  %v2146 = vpop.f32.mrf.mxu0
  %v2147 = vadd.f32 %v304, %v2146
  %v2148 = vpop.f32.mrf.mxu0
  %v2149 = vadd.f32 %v304, %v2148
  %2150 = vmatmul.bf16.gmra.mxu0 %v1258
  %v2151 = vpop.f32.mrf.mxu0
  %v2152 = vadd.f32 %v304, %v2151
  %v2153 = vpop.f32.mrf.mxu0
  %v2154 = vadd.f32 %v304, %v2153
  %2155 = vmatmul.bf16.gmra.mxu0 %v1260
  %v2156 = vpop.f32.mrf.mxu0
  %v2157 = vadd.f32 %v304, %v2156
  %v2158 = vpop.f32.mrf.mxu0
  %v2159 = vadd.f32 %v304, %v2158
  %2160 = vmatmul.bf16.gmra.mxu0 %v1262
  %v2161 = vpop.f32.mrf.mxu0
  %v2162 = vadd.f32 %v304, %v2161
  %v2163 = vpop.f32.mrf.mxu0
  %v2164 = vadd.f32 %v304, %v2163
  %2165 = vmatmul.bf16.gmra.mxu0 %v1264
  %v2166 = vpop.f32.mrf.mxu0
  %v2167 = vadd.f32 %v304, %v2166
  %v2168 = vpop.f32.mrf.mxu0
  %v2169 = vadd.f32 %v304, %v2168
  %2170 = vmatmul.bf16.gmra.mxu0 %v1266
  %v2171 = vpop.f32.mrf.mxu0
  %v2172 = vadd.f32 %v304, %v2171
  %v2173 = vpop.f32.mrf.mxu0
  %v2174 = vadd.f32 %v304, %v2173
  %2175 = vmatmul.bf16.gmra.mxu0 %v1268
  %v2176 = vpop.f32.mrf.mxu0
  %v2177 = vadd.f32 %v304, %v2176
  %v2178 = vpop.f32.mrf.mxu0
  %v2179 = vadd.f32 %v304, %v2178
  %2180 = vmatmul.bf16.gmra.mxu0 %v1270
  %v2181 = vpop.f32.mrf.mxu0
  %v2182 = vadd.f32 %v304, %v2181
  %v2183 = vpop.f32.mrf.mxu0
  %v2184 = vadd.f32 %v304, %v2183
  %2185 = vmatmul.bf16.gmra.mxu0 %v1272
  %v2186 = vpop.f32.mrf.mxu0
  %v2187 = vadd.f32 %v304, %v2186
  %v2188 = vpop.f32.mrf.mxu0
  %v2189 = vadd.f32 %v304, %v2188
  %2190 = vmatmul.bf16.gmra.mxu0 %v1274
  %v2191 = vpop.f32.mrf.mxu0
  %v2192 = vadd.f32 %v304, %v2191
  %v2193 = vpop.f32.mrf.mxu0
  %v2194 = vadd.f32 %v304, %v2193
  %2195 = vmatmul.bf16.gmra.mxu0 %v1276
  %v2196 = vpop.f32.mrf.mxu0
  %v2197 = vadd.f32 %v304, %v2196
  %v2198 = vpop.f32.mrf.mxu0
  %v2199 = vadd.f32 %v304, %v2198
  %2200 = vmatmul.bf16.gmra.mxu0 %v1278
  %v2201 = vpop.f32.mrf.mxu0
  %v2202 = vadd.f32 %v304, %v2201
  %v2203 = vpop.f32.mrf.mxu0
  %v2204 = vadd.f32 %v304, %v2203
  %2205 = vmatmul.bf16.gmra.mxu0 %v1280
  %v2206 = vpop.f32.mrf.mxu0
  %v2207 = vadd.f32 %v304, %v2206
  %v2208 = vpop.f32.mrf.mxu0
  %v2209 = vadd.f32 %v304, %v2208
  %2210 = vmatmul.bf16.gmra.mxu0 %v1282
  %v2211 = vpop.f32.mrf.mxu0
  %v2212 = vadd.f32 %v304, %v2211
  %v2213 = vpop.f32.mrf.mxu0
  %v2214 = vadd.f32 %v304, %v2213
  %2215 = vmatmul.bf16.gmra.mxu0 %v1284
  %v2216 = vpop.f32.mrf.mxu0
  %v2217 = vadd.f32 %v304, %v2216
  %v2218 = vpop.f32.mrf.mxu0
  %v2219 = vadd.f32 %v304, %v2218
  %2220 = vmatmul.bf16.gmra.mxu0 %v1286
  %v2221 = vpop.f32.mrf.mxu0
  %v2222 = vadd.f32 %v304, %v2221
  %v2223 = vpop.f32.mrf.mxu0
  %v2224 = vadd.f32 %v304, %v2223
  %2225 = vmatmul.bf16.gmra.mxu0 %v1288
  %v2226 = vpop.f32.mrf.mxu0
  %v2227 = vadd.f32 %v304, %v2226
  %v2228 = vpop.f32.mrf.mxu0
  %v2229 = vadd.f32 %v304, %v2228
  %2230 = vmatmul.bf16.gmra.mxu0 %v1290
  %v2231 = vpop.f32.mrf.mxu0
  %v2232 = vadd.f32 %v304, %v2231
  %v2233 = vpop.f32.mrf.mxu0
  %v2234 = vadd.f32 %v304, %v2233
  %2235 = vmatmul.bf16.gmra.mxu0 %v1292
  %v2236 = vpop.f32.mrf.mxu0
  %v2237 = vadd.f32 %v304, %v2236
  %v2238 = vpop.f32.mrf.mxu0
  %v2239 = vadd.f32 %v304, %v2238
  %2240 = vmatmul.bf16.gmra.mxu0 %v1294
  %v2241 = vpop.f32.mrf.mxu0
  %v2242 = vadd.f32 %v304, %v2241
  %v2243 = vpop.f32.mrf.mxu0
  %v2244 = vadd.f32 %v304, %v2243
  %2245 = vmatmul.bf16.gmra.mxu0 %v1296
  %v2246 = vpop.f32.mrf.mxu0
  %v2247 = vadd.f32 %v304, %v2246
  %v2248 = vpop.f32.mrf.mxu0
  %v2249 = vadd.f32 %v304, %v2248
  %2250 = vmatmul.bf16.gmra.mxu0 %v1298
  %v2251 = vpop.f32.mrf.mxu0
  %v2252 = vadd.f32 %v304, %v2251
  %v2253 = vpop.f32.mrf.mxu0
  %v2254 = vadd.f32 %v304, %v2253
  %2255 = vmatmul.bf16.gmra.mxu0 %v1300
  %v2256 = vpop.f32.mrf.mxu0
  %v2257 = vadd.f32 %v304, %v2256
  %v2258 = vpop.f32.mrf.mxu0
  %v2259 = vadd.f32 %v304, %v2258
  %2260 = vmatmul.bf16.gmra.mxu0 %v1302
  %v2261 = vpop.f32.mrf.mxu0
  %v2262 = vadd.f32 %v304, %v2261
  %v2263 = vpop.f32.mrf.mxu0
  %v2264 = vadd.f32 %v304, %v2263
  %2265 = vmatmul.bf16.gmra.mxu0 %v1304
  %v2266 = vpop.f32.mrf.mxu0
  %v2267 = vadd.f32 %v304, %v2266
  %v2268 = vpop.f32.mrf.mxu0
  %v2269 = vadd.f32 %v304, %v2268
  %2270 = vmatmul.bf16.gmra.mxu0 %v1306
  %v2271 = vpop.f32.mrf.mxu0
  %v2272 = vadd.f32 %v304, %v2271
  %v2273 = vpop.f32.mrf.mxu0
  %v2274 = vadd.f32 %v304, %v2273
  %2275 = vmatmul.bf16.gmra.mxu0 %v1308
  %v2276 = vpop.f32.mrf.mxu0
  %v2277 = vadd.f32 %v304, %v2276
  %v2278 = vpop.f32.mrf.mxu0
  %v2279 = vadd.f32 %v304, %v2278
  %2280 = vmatmul.bf16.gmra.mxu0 %v1310
  %v2281 = vpop.f32.mrf.mxu0
  %v2282 = vadd.f32 %v304, %v2281
  %v2283 = vpop.f32.mrf.mxu0
  %v2284 = vadd.f32 %v304, %v2283
  %2285 = vmatmul.bf16.gmra.mxu0 %v1312
  %v2286 = vpop.f32.mrf.mxu0
  %v2287 = vadd.f32 %v304, %v2286
  %v2288 = vpop.f32.mrf.mxu0
  %v2289 = vadd.f32 %v304, %v2288
  %2290 = vmatmul.bf16.gmra.mxu0 %v1314
  %v2291 = vpop.f32.mrf.mxu0
  %v2292 = vadd.f32 %v304, %v2291
  %v2293 = vpop.f32.mrf.mxu0
  %v2294 = vadd.f32 %v304, %v2293
  %2295 = vmatmul.bf16.gmra.mxu0 %v1316
  %v2296 = vpop.f32.mrf.mxu0
  %v2297 = vadd.f32 %v304, %v2296
  %v2298 = vpop.f32.mrf.mxu0
  %v2299 = vadd.f32 %v304, %v2298
  %2300 = vmatmul.bf16.gmra.mxu0 %v1318
  %v2301 = vpop.f32.mrf.mxu0
  %v2302 = vadd.f32 %v304, %v2301
  %v2303 = vpop.f32.mrf.mxu0
  %v2304 = vadd.f32 %v304, %v2303
  %2305 = vmatmul.bf16.gmra.mxu0 %v1320
  %v2306 = vpop.f32.mrf.mxu0
  %v2307 = vadd.f32 %v304, %v2306
  %v2308 = vpop.f32.mrf.mxu0
  %v2309 = vadd.f32 %v304, %v2308
  %2310 = vmatmul.bf16.gmra.mxu0 %v1322
  %v2311 = vpop.f32.mrf.mxu0
  %v2312 = vadd.f32 %v304, %v2311
  %v2313 = vpop.f32.mrf.mxu0
  %v2314 = vadd.f32 %v304, %v2313
  %2315 = vmatmul.bf16.gmra.mxu0 %v1324
  %v2316 = vpop.f32.mrf.mxu0
  %v2317 = vadd.f32 %v304, %v2316
  %v2318 = vpop.f32.mrf.mxu0
  %v2319 = vadd.f32 %v304, %v2318
  %2320 = vmatmul.bf16.gmra.mxu0 %v1326
  %v2321 = vpop.f32.mrf.mxu0
  %v2322 = vadd.f32 %v304, %v2321
  %v2323 = vpop.f32.mrf.mxu0
  %v2324 = vadd.f32 %v304, %v2323
  %2325 = vmatmul.bf16.gmra.mxu0 %v1328
  %v2326 = vpop.f32.mrf.mxu0
  %v2327 = vadd.f32 %v304, %v2326
  %v2328 = vpop.f32.mrf.mxu0
  %v2329 = vadd.f32 %v304, %v2328
  %2330 = vdwg.mxu0
  %2331 = vmatpush.bf16.msra.mxu0 %v1665
  %2332 = vmatpush.bf16.msra.mxu0 %v1664
  %2333 = vmatpush.bf16.msra.mxu0 %v1663
  %2334 = vmatpush.bf16.msra.mxu0 %v1662
  %2335 = vmatpush.bf16.msra.mxu0 %v1661
  %2336 = vmatpush.bf16.msra.mxu0 %v1660
  %2337 = vmatpush.bf16.msra.mxu0 %v1659
  %2338 = vmatpush.bf16.msra.mxu0 %v1658
  %2339 = vmatmul.bf16.gmra.mxu0 %v1075
  %v2340 = vpop.f32.mrf.mxu0
  %v2341 = vadd.f32 %v1692, %v2340
  %v2342 = vpop.f32.mrf.mxu0
  %v2343 = vadd.f32 %v1694, %v2342
  %2344 = vmatmul.bf16.gmra.mxu0 %v1077
  %v2345 = vpop.f32.mrf.mxu0
  %v2346 = vadd.f32 %v1697, %v2345
  %v2347 = vpop.f32.mrf.mxu0
  %v2348 = vadd.f32 %v1699, %v2347
  %2349 = vmatmul.bf16.gmra.mxu0 %v1079
  %v2350 = vpop.f32.mrf.mxu0
  %v2351 = vadd.f32 %v1702, %v2350
  %v2352 = vpop.f32.mrf.mxu0
  %v2353 = vadd.f32 %v1704, %v2352
  %2354 = vmatmul.bf16.gmra.mxu0 %v1081
  %v2355 = vpop.f32.mrf.mxu0
  %v2356 = vadd.f32 %v1707, %v2355
  %v2357 = vpop.f32.mrf.mxu0
  %v2358 = vadd.f32 %v1709, %v2357
  %2359 = vmatmul.bf16.gmra.mxu0 %v1083
  %v2360 = vpop.f32.mrf.mxu0
  %v2361 = vadd.f32 %v1712, %v2360
  %v2362 = vpop.f32.mrf.mxu0
  %v2363 = vadd.f32 %v1714, %v2362
  %2364 = vmatmul.bf16.gmra.mxu0 %v1085
  %v2365 = vpop.f32.mrf.mxu0
  %v2366 = vadd.f32 %v1717, %v2365
  %v2367 = vpop.f32.mrf.mxu0
  %v2368 = vadd.f32 %v1719, %v2367
  %2369 = vmatmul.bf16.gmra.mxu0 %v1087
  %v2370 = vpop.f32.mrf.mxu0
  %v2371 = vadd.f32 %v1722, %v2370
  %v2372 = vpop.f32.mrf.mxu0
  %v2373 = vadd.f32 %v1724, %v2372
  %2374 = vmatmul.bf16.gmra.mxu0 %v1089
  %v2375 = vpop.f32.mrf.mxu0
  %v2376 = vadd.f32 %v1727, %v2375
  %v2377 = vpop.f32.mrf.mxu0
  %v2378 = vadd.f32 %v1729, %v2377
  %2379 = vmatmul.bf16.gmra.mxu0 %v1091
  %v2380 = vpop.f32.mrf.mxu0
  %v2381 = vadd.f32 %v1732, %v2380
  %v2382 = vpop.f32.mrf.mxu0
  %v2383 = vadd.f32 %v1734, %v2382
  %2384 = vmatmul.bf16.gmra.mxu0 %v1093
  %v2385 = vpop.f32.mrf.mxu0
  %v2386 = vadd.f32 %v1737, %v2385
  %v2387 = vpop.f32.mrf.mxu0
  %v2388 = vadd.f32 %v1739, %v2387
  %2389 = vmatmul.bf16.gmra.mxu0 %v1095
  %v2390 = vpop.f32.mrf.mxu0
  %v2391 = vadd.f32 %v1742, %v2390
  %v2392 = vpop.f32.mrf.mxu0
  %v2393 = vadd.f32 %v1744, %v2392
  %2394 = vmatmul.bf16.gmra.mxu0 %v1097
  %v2395 = vpop.f32.mrf.mxu0
  %v2396 = vadd.f32 %v1747, %v2395
  %v2397 = vpop.f32.mrf.mxu0
  %v2398 = vadd.f32 %v1749, %v2397
  %2399 = vmatmul.bf16.gmra.mxu0 %v1099
  %v2400 = vpop.f32.mrf.mxu0
  %v2401 = vadd.f32 %v1752, %v2400
  %v2402 = vpop.f32.mrf.mxu0
  %v2403 = vadd.f32 %v1754, %v2402
  %2404 = vmatmul.bf16.gmra.mxu0 %v1101
  %v2405 = vpop.f32.mrf.mxu0
  %v2406 = vadd.f32 %v1757, %v2405
  %v2407 = vpop.f32.mrf.mxu0
  %v2408 = vadd.f32 %v1759, %v2407
  %2409 = vmatmul.bf16.gmra.mxu0 %v1103
  %v2410 = vpop.f32.mrf.mxu0
  %v2411 = vadd.f32 %v1762, %v2410
  %v2412 = vpop.f32.mrf.mxu0
  %v2413 = vadd.f32 %v1764, %v2412
  %2414 = vmatmul.bf16.gmra.mxu0 %v1105
  %v2415 = vpop.f32.mrf.mxu0
  %v2416 = vadd.f32 %v1767, %v2415
  %v2417 = vpop.f32.mrf.mxu0
  %v2418 = vadd.f32 %v1769, %v2417
  %2419 = vmatmul.bf16.gmra.mxu0 %v1107
  %v2420 = vpop.f32.mrf.mxu0
  %v2421 = vadd.f32 %v1772, %v2420
  %v2422 = vpop.f32.mrf.mxu0
  %v2423 = vadd.f32 %v1774, %v2422
  %2424 = vmatmul.bf16.gmra.mxu0 %v1109
  %v2425 = vpop.f32.mrf.mxu0
  %v2426 = vadd.f32 %v1777, %v2425
  %v2427 = vpop.f32.mrf.mxu0
  %v2428 = vadd.f32 %v1779, %v2427
  %2429 = vmatmul.bf16.gmra.mxu0 %v1111
  %v2430 = vpop.f32.mrf.mxu0
  %v2431 = vadd.f32 %v1782, %v2430
  %v2432 = vpop.f32.mrf.mxu0
  %v2433 = vadd.f32 %v1784, %v2432
  %2434 = vmatmul.bf16.gmra.mxu0 %v1113
  %v2435 = vpop.f32.mrf.mxu0
  %v2436 = vadd.f32 %v1787, %v2435
  %v2437 = vpop.f32.mrf.mxu0
  %v2438 = vadd.f32 %v1789, %v2437
  %2439 = vmatmul.bf16.gmra.mxu0 %v1115
  %v2440 = vpop.f32.mrf.mxu0
  %v2441 = vadd.f32 %v1792, %v2440
  %v2442 = vpop.f32.mrf.mxu0
  %v2443 = vadd.f32 %v1794, %v2442
  %2444 = vmatmul.bf16.gmra.mxu0 %v1117
  %v2445 = vpop.f32.mrf.mxu0
  %v2446 = vadd.f32 %v1797, %v2445
  %v2447 = vpop.f32.mrf.mxu0
  %v2448 = vadd.f32 %v1799, %v2447
  %2449 = vmatmul.bf16.gmra.mxu0 %v1119
  %v2450 = vpop.f32.mrf.mxu0
  %v2451 = vadd.f32 %v1802, %v2450
  %v2452 = vpop.f32.mrf.mxu0
  %v2453 = vadd.f32 %v1804, %v2452
  %2454 = vmatmul.bf16.gmra.mxu0 %v1121
  %v2455 = vpop.f32.mrf.mxu0
  %v2456 = vadd.f32 %v1807, %v2455
  %v2457 = vpop.f32.mrf.mxu0
  %v2458 = vadd.f32 %v1809, %v2457
  %2459 = vmatmul.bf16.gmra.mxu0 %v1123
  %v2460 = vpop.f32.mrf.mxu0
  %v2461 = vadd.f32 %v1812, %v2460
  %v2462 = vpop.f32.mrf.mxu0
  %v2463 = vadd.f32 %v1814, %v2462
  %2464 = vmatmul.bf16.gmra.mxu0 %v1125
  %v2465 = vpop.f32.mrf.mxu0
  %v2466 = vadd.f32 %v1817, %v2465
  %v2467 = vpop.f32.mrf.mxu0
  %v2468 = vadd.f32 %v1819, %v2467
  %2469 = vmatmul.bf16.gmra.mxu0 %v1127
  %v2470 = vpop.f32.mrf.mxu0
  %v2471 = vadd.f32 %v1822, %v2470
  %v2472 = vpop.f32.mrf.mxu0
  %v2473 = vadd.f32 %v1824, %v2472
  %2474 = vmatmul.bf16.gmra.mxu0 %v1129
  %v2475 = vpop.f32.mrf.mxu0
  %v2476 = vadd.f32 %v1827, %v2475
  %v2477 = vpop.f32.mrf.mxu0
  %v2478 = vadd.f32 %v1829, %v2477
  %2479 = vmatmul.bf16.gmra.mxu0 %v1131
  %v2480 = vpop.f32.mrf.mxu0
  %v2481 = vadd.f32 %v1832, %v2480
  %v2482 = vpop.f32.mrf.mxu0
  %v2483 = vadd.f32 %v1834, %v2482
  %2484 = vmatmul.bf16.gmra.mxu0 %v1133
  %v2485 = vpop.f32.mrf.mxu0
  %v2486 = vadd.f32 %v1837, %v2485
  %v2487 = vpop.f32.mrf.mxu0
  %v2488 = vadd.f32 %v1839, %v2487
  %2489 = vmatmul.bf16.gmra.mxu0 %v1135
  %v2490 = vpop.f32.mrf.mxu0
  %v2491 = vadd.f32 %v1842, %v2490
  %v2492 = vpop.f32.mrf.mxu0
  %v2493 = vadd.f32 %v1844, %v2492
  %2494 = vmatmul.bf16.gmra.mxu0 %v1137
  %v2495 = vpop.f32.mrf.mxu0
  %v2496 = vadd.f32 %v1847, %v2495
  %v2497 = vpop.f32.mrf.mxu0
  %v2498 = vadd.f32 %v1849, %v2497
  %2499 = vmatmul.bf16.gmra.mxu0 %v1139
  %v2500 = vpop.f32.mrf.mxu0
  %v2501 = vadd.f32 %v1852, %v2500
  %v2502 = vpop.f32.mrf.mxu0
  %v2503 = vadd.f32 %v1854, %v2502
  %2504 = vmatmul.bf16.gmra.mxu0 %v1141
  %v2505 = vpop.f32.mrf.mxu0
  %v2506 = vadd.f32 %v1857, %v2505
  %v2507 = vpop.f32.mrf.mxu0
  %v2508 = vadd.f32 %v1859, %v2507
  %2509 = vmatmul.bf16.gmra.mxu0 %v1143
  %v2510 = vpop.f32.mrf.mxu0
  %v2511 = vadd.f32 %v1862, %v2510
  %v2512 = vpop.f32.mrf.mxu0
  %v2513 = vadd.f32 %v1864, %v2512
  %2514 = vmatmul.bf16.gmra.mxu0 %v1145
  %v2515 = vpop.f32.mrf.mxu0
  %v2516 = vadd.f32 %v1867, %v2515
  %v2517 = vpop.f32.mrf.mxu0
  %v2518 = vadd.f32 %v1869, %v2517
  %2519 = vmatmul.bf16.gmra.mxu0 %v1147
  %v2520 = vpop.f32.mrf.mxu0
  %v2521 = vadd.f32 %v1872, %v2520
  %v2522 = vpop.f32.mrf.mxu0
  %v2523 = vadd.f32 %v1874, %v2522
  %2524 = vmatmul.bf16.gmra.mxu0 %v1149
  %v2525 = vpop.f32.mrf.mxu0
  %v2526 = vadd.f32 %v1877, %v2525
  %v2527 = vpop.f32.mrf.mxu0
  %v2528 = vadd.f32 %v1879, %v2527
  %2529 = vmatmul.bf16.gmra.mxu0 %v1151
  %v2530 = vpop.f32.mrf.mxu0
  %v2531 = vadd.f32 %v1882, %v2530
  %v2532 = vpop.f32.mrf.mxu0
  %v2533 = vadd.f32 %v1884, %v2532
  %2534 = vmatmul.bf16.gmra.mxu0 %v1153
  %v2535 = vpop.f32.mrf.mxu0
  %v2536 = vadd.f32 %v1887, %v2535
  %v2537 = vpop.f32.mrf.mxu0
  %v2538 = vadd.f32 %v1889, %v2537
  %2539 = vmatmul.bf16.gmra.mxu0 %v1155
  %v2540 = vpop.f32.mrf.mxu0
  %v2541 = vadd.f32 %v1892, %v2540
  %v2542 = vpop.f32.mrf.mxu0
  %v2543 = vadd.f32 %v1894, %v2542
  %2544 = vmatmul.bf16.gmra.mxu0 %v1157
  %v2545 = vpop.f32.mrf.mxu0
  %v2546 = vadd.f32 %v1897, %v2545
  %v2547 = vpop.f32.mrf.mxu0
  %v2548 = vadd.f32 %v1899, %v2547
  %2549 = vmatmul.bf16.gmra.mxu0 %v1159
  %v2550 = vpop.f32.mrf.mxu0
  %v2551 = vadd.f32 %v1902, %v2550
  %v2552 = vpop.f32.mrf.mxu0
  %v2553 = vadd.f32 %v1904, %v2552
  %2554 = vmatmul.bf16.gmra.mxu0 %v1161
  %v2555 = vpop.f32.mrf.mxu0
  %v2556 = vadd.f32 %v1907, %v2555
  %v2557 = vpop.f32.mrf.mxu0
  %v2558 = vadd.f32 %v1909, %v2557
  %2559 = vmatmul.bf16.gmra.mxu0 %v1163
  %v2560 = vpop.f32.mrf.mxu0
  %v2561 = vadd.f32 %v1912, %v2560
  %v2562 = vpop.f32.mrf.mxu0
  %v2563 = vadd.f32 %v1914, %v2562
  %2564 = vmatmul.bf16.gmra.mxu0 %v1165
  %v2565 = vpop.f32.mrf.mxu0
  %v2566 = vadd.f32 %v1917, %v2565
  %v2567 = vpop.f32.mrf.mxu0
  %v2568 = vadd.f32 %v1919, %v2567
  %2569 = vmatmul.bf16.gmra.mxu0 %v1167
  %v2570 = vpop.f32.mrf.mxu0
  %v2571 = vadd.f32 %v1922, %v2570
  %v2572 = vpop.f32.mrf.mxu0
  %v2573 = vadd.f32 %v1924, %v2572
  %2574 = vmatmul.bf16.gmra.mxu0 %v1169
  %v2575 = vpop.f32.mrf.mxu0
  %v2576 = vadd.f32 %v1927, %v2575
  %v2577 = vpop.f32.mrf.mxu0
  %v2578 = vadd.f32 %v1929, %v2577
  %2579 = vmatmul.bf16.gmra.mxu0 %v1171
  %v2580 = vpop.f32.mrf.mxu0
  %v2581 = vadd.f32 %v1932, %v2580
  %v2582 = vpop.f32.mrf.mxu0
  %v2583 = vadd.f32 %v1934, %v2582
  %2584 = vmatmul.bf16.gmra.mxu0 %v1173
  %v2585 = vpop.f32.mrf.mxu0
  %v2586 = vadd.f32 %v1937, %v2585
  %v2587 = vpop.f32.mrf.mxu0
  %v2588 = vadd.f32 %v1939, %v2587
  %2589 = vmatmul.bf16.gmra.mxu0 %v1175
  %v2590 = vpop.f32.mrf.mxu0
  %v2591 = vadd.f32 %v1942, %v2590
  %v2592 = vpop.f32.mrf.mxu0
  %v2593 = vadd.f32 %v1944, %v2592
  %2594 = vmatmul.bf16.gmra.mxu0 %v1177
  %v2595 = vpop.f32.mrf.mxu0
  %v2596 = vadd.f32 %v1947, %v2595
  %v2597 = vpop.f32.mrf.mxu0
  %v2598 = vadd.f32 %v1949, %v2597
  %2599 = vmatmul.bf16.gmra.mxu0 %v1179
  %v2600 = vpop.f32.mrf.mxu0
  %v2601 = vadd.f32 %v1952, %v2600
  %v2602 = vpop.f32.mrf.mxu0
  %v2603 = vadd.f32 %v1954, %v2602
  %2604 = vmatmul.bf16.gmra.mxu0 %v1181
  %v2605 = vpop.f32.mrf.mxu0
  %v2606 = vadd.f32 %v1957, %v2605
  %v2607 = vpop.f32.mrf.mxu0
  %v2608 = vadd.f32 %v1959, %v2607
  %2609 = vmatmul.bf16.gmra.mxu0 %v1183
  %v2610 = vpop.f32.mrf.mxu0
  %v2611 = vadd.f32 %v1962, %v2610
  %v2612 = vpop.f32.mrf.mxu0
  %v2613 = vadd.f32 %v1964, %v2612
  %2614 = vmatmul.bf16.gmra.mxu0 %v1185
  %v2615 = vpop.f32.mrf.mxu0
  %v2616 = vadd.f32 %v1967, %v2615
  %v2617 = vpop.f32.mrf.mxu0
  %v2618 = vadd.f32 %v1969, %v2617
  %2619 = vmatmul.bf16.gmra.mxu0 %v1187
  %v2620 = vpop.f32.mrf.mxu0
  %v2621 = vadd.f32 %v1972, %v2620
  %v2622 = vpop.f32.mrf.mxu0
  %v2623 = vadd.f32 %v1974, %v2622
  %2624 = vmatmul.bf16.gmra.mxu0 %v1189
  %v2625 = vpop.f32.mrf.mxu0
  %v2626 = vadd.f32 %v1977, %v2625
  %v2627 = vpop.f32.mrf.mxu0
  %v2628 = vadd.f32 %v1979, %v2627
  %2629 = vmatmul.bf16.gmra.mxu0 %v1191
  %v2630 = vpop.f32.mrf.mxu0
  %v2631 = vadd.f32 %v1982, %v2630
  %v2632 = vpop.f32.mrf.mxu0
  %v2633 = vadd.f32 %v1984, %v2632
  %2634 = vmatmul.bf16.gmra.mxu0 %v1193
  %v2635 = vpop.f32.mrf.mxu0
  %v2636 = vadd.f32 %v1987, %v2635
  %v2637 = vpop.f32.mrf.mxu0
  %v2638 = vadd.f32 %v1989, %v2637
  %2639 = vmatmul.bf16.gmra.mxu0 %v1195
  %v2640 = vpop.f32.mrf.mxu0
  %v2641 = vadd.f32 %v1992, %v2640
  %v2642 = vpop.f32.mrf.mxu0
  %v2643 = vadd.f32 %v1994, %v2642
  %2644 = vmatmul.bf16.gmra.mxu0 %v1197
  %v2645 = vpop.f32.mrf.mxu0
  %v2646 = vadd.f32 %v1997, %v2645
  %v2647 = vpop.f32.mrf.mxu0
  %v2648 = vadd.f32 %v1999, %v2647
  %2649 = vmatmul.bf16.gmra.mxu0 %v1199
  %v2650 = vpop.f32.mrf.mxu0
  %v2651 = vadd.f32 %v2002, %v2650
  %v2652 = vpop.f32.mrf.mxu0
  %v2653 = vadd.f32 %v2004, %v2652
  %2654 = vmatmul.bf16.gmra.mxu0 %v1201
  %v2655 = vpop.f32.mrf.mxu0
  %v2656 = vadd.f32 %v2007, %v2655
  %v2657 = vpop.f32.mrf.mxu0
  %v2658 = vadd.f32 %v2009, %v2657
  %2659 = vmatmul.bf16.gmra.mxu0 %v1203
  %v2660 = vpop.f32.mrf.mxu0
  %v2661 = vadd.f32 %v2012, %v2660
  %v2662 = vpop.f32.mrf.mxu0
  %v2663 = vadd.f32 %v2014, %v2662
  %2664 = vmatmul.bf16.gmra.mxu0 %v1205
  %v2665 = vpop.f32.mrf.mxu0
  %v2666 = vadd.f32 %v2017, %v2665
  %v2667 = vpop.f32.mrf.mxu0
  %v2668 = vadd.f32 %v2019, %v2667
  %2669 = vmatmul.bf16.gmra.mxu0 %v1207
  %v2670 = vpop.f32.mrf.mxu0
  %v2671 = vadd.f32 %v2022, %v2670
  %v2672 = vpop.f32.mrf.mxu0
  %v2673 = vadd.f32 %v2024, %v2672
  %2674 = vmatmul.bf16.gmra.mxu0 %v1209
  %v2675 = vpop.f32.mrf.mxu0
  %v2676 = vadd.f32 %v2027, %v2675
  %v2677 = vpop.f32.mrf.mxu0
  %v2678 = vadd.f32 %v2029, %v2677
  %2679 = vmatmul.bf16.gmra.mxu0 %v1211
  %v2680 = vpop.f32.mrf.mxu0
  %v2681 = vadd.f32 %v2032, %v2680
  %v2682 = vpop.f32.mrf.mxu0
  %v2683 = vadd.f32 %v2034, %v2682
  %2684 = vmatmul.bf16.gmra.mxu0 %v1213
  %v2685 = vpop.f32.mrf.mxu0
  %v2686 = vadd.f32 %v2037, %v2685
  %v2687 = vpop.f32.mrf.mxu0
  %v2688 = vadd.f32 %v2039, %v2687
  %2689 = vmatmul.bf16.gmra.mxu0 %v1215
  %v2690 = vpop.f32.mrf.mxu0
  %v2691 = vadd.f32 %v2042, %v2690
  %v2692 = vpop.f32.mrf.mxu0
  %v2693 = vadd.f32 %v2044, %v2692
  %2694 = vmatmul.bf16.gmra.mxu0 %v1217
  %v2695 = vpop.f32.mrf.mxu0
  %v2696 = vadd.f32 %v2047, %v2695
  %v2697 = vpop.f32.mrf.mxu0
  %v2698 = vadd.f32 %v2049, %v2697
  %2699 = vmatmul.bf16.gmra.mxu0 %v1219
  %v2700 = vpop.f32.mrf.mxu0
  %v2701 = vadd.f32 %v2052, %v2700
  %v2702 = vpop.f32.mrf.mxu0
  %v2703 = vadd.f32 %v2054, %v2702
  %2704 = vmatmul.bf16.gmra.mxu0 %v1221
  %v2705 = vpop.f32.mrf.mxu0
  %v2706 = vadd.f32 %v2057, %v2705
  %v2707 = vpop.f32.mrf.mxu0
  %v2708 = vadd.f32 %v2059, %v2707
  %2709 = vmatmul.bf16.gmra.mxu0 %v1223
  %v2710 = vpop.f32.mrf.mxu0
  %v2711 = vadd.f32 %v2062, %v2710
  %v2712 = vpop.f32.mrf.mxu0
  %v2713 = vadd.f32 %v2064, %v2712
  %2714 = vmatmul.bf16.gmra.mxu0 %v1225
  %v2715 = vpop.f32.mrf.mxu0
  %v2716 = vadd.f32 %v2067, %v2715
  %v2717 = vpop.f32.mrf.mxu0
  %v2718 = vadd.f32 %v2069, %v2717
  %2719 = vmatmul.bf16.gmra.mxu0 %v1227
  %v2720 = vpop.f32.mrf.mxu0
  %v2721 = vadd.f32 %v2072, %v2720
  %v2722 = vpop.f32.mrf.mxu0
  %v2723 = vadd.f32 %v2074, %v2722
  %2724 = vmatmul.bf16.gmra.mxu0 %v1229
  %v2725 = vpop.f32.mrf.mxu0
  %v2726 = vadd.f32 %v2077, %v2725
  %v2727 = vpop.f32.mrf.mxu0
  %v2728 = vadd.f32 %v2079, %v2727
  %2729 = vmatmul.bf16.gmra.mxu0 %v1231
  %v2730 = vpop.f32.mrf.mxu0
  %v2731 = vadd.f32 %v2082, %v2730
  %v2732 = vpop.f32.mrf.mxu0
  %v2733 = vadd.f32 %v2084, %v2732
  %2734 = vmatmul.bf16.gmra.mxu0 %v1233
  %v2735 = vpop.f32.mrf.mxu0
  %v2736 = vadd.f32 %v2087, %v2735
  %v2737 = vpop.f32.mrf.mxu0
  %v2738 = vadd.f32 %v2089, %v2737
  %2739 = vmatmul.bf16.gmra.mxu0 %v1235
  %v2740 = vpop.f32.mrf.mxu0
  %v2741 = vadd.f32 %v2092, %v2740
  %v2742 = vpop.f32.mrf.mxu0
  %v2743 = vadd.f32 %v2094, %v2742
  %2744 = vmatmul.bf16.gmra.mxu0 %v1237
  %v2745 = vpop.f32.mrf.mxu0
  %v2746 = vadd.f32 %v2097, %v2745
  %v2747 = vpop.f32.mrf.mxu0
  %v2748 = vadd.f32 %v2099, %v2747
  %2749 = vmatmul.bf16.gmra.mxu0 %v1239
  %v2750 = vpop.f32.mrf.mxu0
  %v2751 = vadd.f32 %v2102, %v2750
  %v2752 = vpop.f32.mrf.mxu0
  %v2753 = vadd.f32 %v2104, %v2752
  %2754 = vmatmul.bf16.gmra.mxu0 %v1241
  %v2755 = vpop.f32.mrf.mxu0
  %v2756 = vadd.f32 %v2107, %v2755
  %v2757 = vpop.f32.mrf.mxu0
  %v2758 = vadd.f32 %v2109, %v2757
  %2759 = vmatmul.bf16.gmra.mxu0 %v1243
  %v2760 = vpop.f32.mrf.mxu0
  %v2761 = vadd.f32 %v2112, %v2760
  %v2762 = vpop.f32.mrf.mxu0
  %v2763 = vadd.f32 %v2114, %v2762
  %2764 = vmatmul.bf16.gmra.mxu0 %v1245
  %v2765 = vpop.f32.mrf.mxu0
  %v2766 = vadd.f32 %v2117, %v2765
  %v2767 = vpop.f32.mrf.mxu0
  %v2768 = vadd.f32 %v2119, %v2767
  %2769 = vmatmul.bf16.gmra.mxu0 %v1247
  %v2770 = vpop.f32.mrf.mxu0
  %v2771 = vadd.f32 %v2122, %v2770
  %v2772 = vpop.f32.mrf.mxu0
  %v2773 = vadd.f32 %v2124, %v2772
  %2774 = vmatmul.bf16.gmra.mxu0 %v1249
  %v2775 = vpop.f32.mrf.mxu0
  %v2776 = vadd.f32 %v2127, %v2775
  %v2777 = vpop.f32.mrf.mxu0
  %v2778 = vadd.f32 %v2129, %v2777
  %2779 = vmatmul.bf16.gmra.mxu0 %v1251
  %v2780 = vpop.f32.mrf.mxu0
  %v2781 = vadd.f32 %v2132, %v2780
  %v2782 = vpop.f32.mrf.mxu0
  %v2783 = vadd.f32 %v2134, %v2782
  %2784 = vmatmul.bf16.gmra.mxu0 %v1253
  %v2785 = vpop.f32.mrf.mxu0
  %v2786 = vadd.f32 %v2137, %v2785
  %v2787 = vpop.f32.mrf.mxu0
  %v2788 = vadd.f32 %v2139, %v2787
  %2789 = vmatmul.bf16.gmra.mxu0 %v1255
  %v2790 = vpop.f32.mrf.mxu0
  %v2791 = vadd.f32 %v2142, %v2790
  %v2792 = vpop.f32.mrf.mxu0
  %v2793 = vadd.f32 %v2144, %v2792
  %2794 = vmatmul.bf16.gmra.mxu0 %v1257
  %v2795 = vpop.f32.mrf.mxu0
  %v2796 = vadd.f32 %v2147, %v2795
  %v2797 = vpop.f32.mrf.mxu0
  %v2798 = vadd.f32 %v2149, %v2797
  %2799 = vmatmul.bf16.gmra.mxu0 %v1259
  %v2800 = vpop.f32.mrf.mxu0
  %v2801 = vadd.f32 %v2152, %v2800
  %v2802 = vpop.f32.mrf.mxu0
  %v2803 = vadd.f32 %v2154, %v2802
  %2804 = vmatmul.bf16.gmra.mxu0 %v1261
  %v2805 = vpop.f32.mrf.mxu0
  %v2806 = vadd.f32 %v2157, %v2805
  %v2807 = vpop.f32.mrf.mxu0
  %v2808 = vadd.f32 %v2159, %v2807
  %2809 = vmatmul.bf16.gmra.mxu0 %v1263
  %v2810 = vpop.f32.mrf.mxu0
  %v2811 = vadd.f32 %v2162, %v2810
  %v2812 = vpop.f32.mrf.mxu0
  %v2813 = vadd.f32 %v2164, %v2812
  %2814 = vmatmul.bf16.gmra.mxu0 %v1265
  %v2815 = vpop.f32.mrf.mxu0
  %v2816 = vadd.f32 %v2167, %v2815
  %v2817 = vpop.f32.mrf.mxu0
  %v2818 = vadd.f32 %v2169, %v2817
  %2819 = vmatmul.bf16.gmra.mxu0 %v1267
  %v2820 = vpop.f32.mrf.mxu0
  %v2821 = vadd.f32 %v2172, %v2820
  %v2822 = vpop.f32.mrf.mxu0
  %v2823 = vadd.f32 %v2174, %v2822
  %2824 = vmatmul.bf16.gmra.mxu0 %v1269
  %v2825 = vpop.f32.mrf.mxu0
  %v2826 = vadd.f32 %v2177, %v2825
  %v2827 = vpop.f32.mrf.mxu0
  %v2828 = vadd.f32 %v2179, %v2827
  %2829 = vmatmul.bf16.gmra.mxu0 %v1271
  %v2830 = vpop.f32.mrf.mxu0
  %v2831 = vadd.f32 %v2182, %v2830
  %v2832 = vpop.f32.mrf.mxu0
  %v2833 = vadd.f32 %v2184, %v2832
  %2834 = vmatmul.bf16.gmra.mxu0 %v1273
  %v2835 = vpop.f32.mrf.mxu0
  %v2836 = vadd.f32 %v2187, %v2835
  %v2837 = vpop.f32.mrf.mxu0
  %v2838 = vadd.f32 %v2189, %v2837
  %2839 = vmatmul.bf16.gmra.mxu0 %v1275
  %v2840 = vpop.f32.mrf.mxu0
  %v2841 = vadd.f32 %v2192, %v2840
  %v2842 = vpop.f32.mrf.mxu0
  %v2843 = vadd.f32 %v2194, %v2842
  %2844 = vmatmul.bf16.gmra.mxu0 %v1277
  %v2845 = vpop.f32.mrf.mxu0
  %v2846 = vadd.f32 %v2197, %v2845
  %v2847 = vpop.f32.mrf.mxu0
  %v2848 = vadd.f32 %v2199, %v2847
  %2849 = vmatmul.bf16.gmra.mxu0 %v1279
  %v2850 = vpop.f32.mrf.mxu0
  %v2851 = vadd.f32 %v2202, %v2850
  %v2852 = vpop.f32.mrf.mxu0
  %v2853 = vadd.f32 %v2204, %v2852
  %2854 = vmatmul.bf16.gmra.mxu0 %v1281
  %v2855 = vpop.f32.mrf.mxu0
  %v2856 = vadd.f32 %v2207, %v2855
  %v2857 = vpop.f32.mrf.mxu0
  %v2858 = vadd.f32 %v2209, %v2857
  %2859 = vmatmul.bf16.gmra.mxu0 %v1283
  %v2860 = vpop.f32.mrf.mxu0
  %v2861 = vadd.f32 %v2212, %v2860
  %v2862 = vpop.f32.mrf.mxu0
  %v2863 = vadd.f32 %v2214, %v2862
  %2864 = vmatmul.bf16.gmra.mxu0 %v1285
  %v2865 = vpop.f32.mrf.mxu0
  %v2866 = vadd.f32 %v2217, %v2865
  %v2867 = vpop.f32.mrf.mxu0
  %v2868 = vadd.f32 %v2219, %v2867
  %2869 = vmatmul.bf16.gmra.mxu0 %v1287
  %v2870 = vpop.f32.mrf.mxu0
  %v2871 = vadd.f32 %v2222, %v2870
  %v2872 = vpop.f32.mrf.mxu0
  %v2873 = vadd.f32 %v2224, %v2872
  %2874 = vmatmul.bf16.gmra.mxu0 %v1289
  %v2875 = vpop.f32.mrf.mxu0
  %v2876 = vadd.f32 %v2227, %v2875
  %v2877 = vpop.f32.mrf.mxu0
  %v2878 = vadd.f32 %v2229, %v2877
  %2879 = vmatmul.bf16.gmra.mxu0 %v1291
  %v2880 = vpop.f32.mrf.mxu0
  %v2881 = vadd.f32 %v2232, %v2880
  %v2882 = vpop.f32.mrf.mxu0
  %v2883 = vadd.f32 %v2234, %v2882
  %2884 = vmatmul.bf16.gmra.mxu0 %v1293
  %v2885 = vpop.f32.mrf.mxu0
  %v2886 = vadd.f32 %v2237, %v2885
  %v2887 = vpop.f32.mrf.mxu0
  %v2888 = vadd.f32 %v2239, %v2887
  %2889 = vmatmul.bf16.gmra.mxu0 %v1295
  %v2890 = vpop.f32.mrf.mxu0
  %v2891 = vadd.f32 %v2242, %v2890
  %v2892 = vpop.f32.mrf.mxu0
  %v2893 = vadd.f32 %v2244, %v2892
  %2894 = vmatmul.bf16.gmra.mxu0 %v1297
  %v2895 = vpop.f32.mrf.mxu0
  %v2896 = vadd.f32 %v2247, %v2895
  %v2897 = vpop.f32.mrf.mxu0
  %v2898 = vadd.f32 %v2249, %v2897
  %2899 = vmatmul.bf16.gmra.mxu0 %v1299
  %v2900 = vpop.f32.mrf.mxu0
  %v2901 = vadd.f32 %v2252, %v2900
  %v2902 = vpop.f32.mrf.mxu0
  %v2903 = vadd.f32 %v2254, %v2902
  %2904 = vmatmul.bf16.gmra.mxu0 %v1301
  %v2905 = vpop.f32.mrf.mxu0
  %v2906 = vadd.f32 %v2257, %v2905
  %v2907 = vpop.f32.mrf.mxu0
  %v2908 = vadd.f32 %v2259, %v2907
  %2909 = vmatmul.bf16.gmra.mxu0 %v1303
  %v2910 = vpop.f32.mrf.mxu0
  %v2911 = vadd.f32 %v2262, %v2910
  %v2912 = vpop.f32.mrf.mxu0
  %v2913 = vadd.f32 %v2264, %v2912
  %2914 = vmatmul.bf16.gmra.mxu0 %v1305
  %v2915 = vpop.f32.mrf.mxu0
  %v2916 = vadd.f32 %v2267, %v2915
  %v2917 = vpop.f32.mrf.mxu0
  %v2918 = vadd.f32 %v2269, %v2917
  %2919 = vmatmul.bf16.gmra.mxu0 %v1307
  %v2920 = vpop.f32.mrf.mxu0
  %v2921 = vadd.f32 %v2272, %v2920
  %v2922 = vpop.f32.mrf.mxu0
  %v2923 = vadd.f32 %v2274, %v2922
  %2924 = vmatmul.bf16.gmra.mxu0 %v1309
  %v2925 = vpop.f32.mrf.mxu0
  %v2926 = vadd.f32 %v2277, %v2925
  %v2927 = vpop.f32.mrf.mxu0
  %v2928 = vadd.f32 %v2279, %v2927
  %2929 = vmatmul.bf16.gmra.mxu0 %v1311
  %v2930 = vpop.f32.mrf.mxu0
  %v2931 = vadd.f32 %v2282, %v2930
  %v2932 = vpop.f32.mrf.mxu0
  %v2933 = vadd.f32 %v2284, %v2932
  %2934 = vmatmul.bf16.gmra.mxu0 %v1313
  %v2935 = vpop.f32.mrf.mxu0
  %v2936 = vadd.f32 %v2287, %v2935
  %v2937 = vpop.f32.mrf.mxu0
  %v2938 = vadd.f32 %v2289, %v2937
  %2939 = vmatmul.bf16.gmra.mxu0 %v1315
  %v2940 = vpop.f32.mrf.mxu0
  %v2941 = vadd.f32 %v2292, %v2940
  %v2942 = vpop.f32.mrf.mxu0
  %v2943 = vadd.f32 %v2294, %v2942
  %2944 = vmatmul.bf16.gmra.mxu0 %v1317
  %v2945 = vpop.f32.mrf.mxu0
  %v2946 = vadd.f32 %v2297, %v2945
  %v2947 = vpop.f32.mrf.mxu0
  %v2948 = vadd.f32 %v2299, %v2947
  %2949 = vmatmul.bf16.gmra.mxu0 %v1319
  %v2950 = vpop.f32.mrf.mxu0
  %v2951 = vadd.f32 %v2302, %v2950
  %v2952 = vpop.f32.mrf.mxu0
  %v2953 = vadd.f32 %v2304, %v2952
  %2954 = vmatmul.bf16.gmra.mxu0 %v1321
  %v2955 = vpop.f32.mrf.mxu0
  %v2956 = vadd.f32 %v2307, %v2955
  %v2957 = vpop.f32.mrf.mxu0
  %v2958 = vadd.f32 %v2309, %v2957
  %2959 = vmatmul.bf16.gmra.mxu0 %v1323
  %v2960 = vpop.f32.mrf.mxu0
  %v2961 = vadd.f32 %v2312, %v2960
  %v2962 = vpop.f32.mrf.mxu0
  %v2963 = vadd.f32 %v2314, %v2962
  %2964 = vmatmul.bf16.gmra.mxu0 %v1325
  %v2965 = vpop.f32.mrf.mxu0
  %v2966 = vadd.f32 %v2317, %v2965
  %v2967 = vpop.f32.mrf.mxu0
  %v2968 = vadd.f32 %v2319, %v2967
  %2969 = vmatmul.bf16.gmra.mxu0 %v1327
  %v2970 = vpop.f32.mrf.mxu0
  %v2971 = vadd.f32 %v2322, %v2970
  %v2972 = vpop.f32.mrf.mxu0
  %v2973 = vadd.f32 %v2324, %v2972
  %2974 = vmatmul.bf16.gmra.mxu0 %v1329
  %v2975 = vpop.f32.mrf.mxu0
  %v2976 = vadd.f32 %v2327, %v2975
  %v2977 = vpop.f32.mrf.mxu0
  %v2978 = vadd.f32 %v2329, %v2977
  %2979 = vdwg.mxu0
  %2980 = vst [vmem:[%s3] sm:$0xff] %v2341
  %2981 = vst [vmem:[%s3 + $0x8] sm:$0xff] %v2343
  %2982 = vst [vmem:[%s3 + $0x10] sm:$0xff] %v2346
  %2983 = vst [vmem:[%s3 + $0x18] sm:$0xff] %v2348
  %2984 = vst [vmem:[%s3 + $0x20] sm:$0xff] %v2351
  %2985 = vst [vmem:[%s3 + $0x28] sm:$0xff] %v2353
  %2986 = vst [vmem:[%s3 + $0x30] sm:$0xff] %v2356
  %2987 = vst [vmem:[%s3 + $0x38] sm:$0xff] %v2358
  %2988 = vst [vmem:[%s3 + $0x40] sm:$0xff] %v2361
  %2989 = vst [vmem:[%s3 + $0x48] sm:$0xff] %v2363
  %2990 = vst [vmem:[%s3 + $0x50] sm:$0xff] %v2366
  %2991 = vst [vmem:[%s3 + $0x58] sm:$0xff] %v2368
  %2992 = vst [vmem:[%s3 + $0x60] sm:$0xff] %v2371
  %2993 = vst [vmem:[%s3 + $0x68] sm:$0xff] %v2373
  %2994 = vst [vmem:[%s3 + $0x70] sm:$0xff] %v2376
  %2995 = vst [vmem:[%s3 + $0x78] sm:$0xff] %v2378
  %2996 = vst [vmem:[%s3 + $0x80] sm:$0xff] %v2381
  %2997 = vst [vmem:[%s3 + $0x88] sm:$0xff] %v2383
  %2998 = vst [vmem:[%s3 + $0x90] sm:$0xff] %v2386
  %2999 = vst [vmem:[%s3 + $0x98] sm:$0xff] %v2388
  %3000 = vst [vmem:[%s3 + $0xa0] sm:$0xff] %v2391
  %3001 = vst [vmem:[%s3 + $0xa8] sm:$0xff] %v2393
  %3002 = vst [vmem:[%s3 + $0xb0] sm:$0xff] %v2396
  %3003 = vst [vmem:[%s3 + $0xb8] sm:$0xff] %v2398
  %3004 = vst [vmem:[%s3 + $0xc0] sm:$0xff] %v2401
  %3005 = vst [vmem:[%s3 + $0xc8] sm:$0xff] %v2403
  %3006 = vst [vmem:[%s3 + $0xd0] sm:$0xff] %v2406
  %3007 = vst [vmem:[%s3 + $0xd8] sm:$0xff] %v2408
  %3008 = vst [vmem:[%s3 + $0xe0] sm:$0xff] %v2411
  %3009 = vst [vmem:[%s3 + $0xe8] sm:$0xff] %v2413
  %3010 = vst [vmem:[%s3 + $0xf0] sm:$0xff] %v2416
  %3011 = vst [vmem:[%s3 + $0xf8] sm:$0xff] %v2418
  %3012 = vst [vmem:[%s3 + $0x100] sm:$0xff] %v2421
  %3013 = vst [vmem:[%s3 + $0x108] sm:$0xff] %v2423
  %3014 = vst [vmem:[%s3 + $0x110] sm:$0xff] %v2426
  %3015 = vst [vmem:[%s3 + $0x118] sm:$0xff] %v2428
  %3016 = vst [vmem:[%s3 + $0x120] sm:$0xff] %v2431
  %3017 = vst [vmem:[%s3 + $0x128] sm:$0xff] %v2433
  %3018 = vst [vmem:[%s3 + $0x130] sm:$0xff] %v2436
  %3019 = vst [vmem:[%s3 + $0x138] sm:$0xff] %v2438
  %3020 = vst [vmem:[%s3 + $0x140] sm:$0xff] %v2441
  %3021 = vst [vmem:[%s3 + $0x148] sm:$0xff] %v2443
  %3022 = vst [vmem:[%s3 + $0x150] sm:$0xff] %v2446
  %3023 = vst [vmem:[%s3 + $0x158] sm:$0xff] %v2448
  %3024 = vst [vmem:[%s3 + $0x160] sm:$0xff] %v2451
  %3025 = vst [vmem:[%s3 + $0x168] sm:$0xff] %v2453
  %3026 = vst [vmem:[%s3 + $0x170] sm:$0xff] %v2456
  %3027 = vst [vmem:[%s3 + $0x178] sm:$0xff] %v2458
  %3028 = vst [vmem:[%s3 + $0x180] sm:$0xff] %v2461
  %3029 = vst [vmem:[%s3 + $0x188] sm:$0xff] %v2463
  %3030 = vst [vmem:[%s3 + $0x190] sm:$0xff] %v2466
  %3031 = vst [vmem:[%s3 + $0x198] sm:$0xff] %v2468
  %3032 = vst [vmem:[%s3 + $0x1a0] sm:$0xff] %v2471
  %3033 = vst [vmem:[%s3 + $0x1a8] sm:$0xff] %v2473
  %3034 = vst [vmem:[%s3 + $0x1b0] sm:$0xff] %v2476
  %3035 = vst [vmem:[%s3 + $0x1b8] sm:$0xff] %v2478
  %3036 = vst [vmem:[%s3 + $0x1c0] sm:$0xff] %v2481
  %3037 = vst [vmem:[%s3 + $0x1c8] sm:$0xff] %v2483
  %3038 = vst [vmem:[%s3 + $0x1d0] sm:$0xff] %v2486
  %3039 = vst [vmem:[%s3 + $0x1d8] sm:$0xff] %v2488
  %3040 = vst [vmem:[%s3 + $0x1e0] sm:$0xff] %v2491
  %3041 = vst [vmem:[%s3 + $0x1e8] sm:$0xff] %v2493
  %3042 = vst [vmem:[%s3 + $0x1f0] sm:$0xff] %v2496
  %3043 = vst [vmem:[%s3 + $0x1f8] sm:$0xff] %v2498
  %3044 = vst [vmem:[%s3 + $0x200] sm:$0xff] %v2501
  %3045 = vst [vmem:[%s3 + $0x208] sm:$0xff] %v2503
  %3046 = vst [vmem:[%s3 + $0x210] sm:$0xff] %v2506
  %3047 = vst [vmem:[%s3 + $0x218] sm:$0xff] %v2508
  %3048 = vst [vmem:[%s3 + $0x220] sm:$0xff] %v2511
  %3049 = vst [vmem:[%s3 + $0x228] sm:$0xff] %v2513
  %3050 = vst [vmem:[%s3 + $0x230] sm:$0xff] %v2516
  %3051 = vst [vmem:[%s3 + $0x238] sm:$0xff] %v2518
  %3052 = vst [vmem:[%s3 + $0x240] sm:$0xff] %v2521
  %3053 = vst [vmem:[%s3 + $0x248] sm:$0xff] %v2523
  %3054 = vst [vmem:[%s3 + $0x250] sm:$0xff] %v2526
  %3055 = vst [vmem:[%s3 + $0x258] sm:$0xff] %v2528
  %3056 = vst [vmem:[%s3 + $0x260] sm:$0xff] %v2531
  %3057 = vst [vmem:[%s3 + $0x268] sm:$0xff] %v2533
  %3058 = vst [vmem:[%s3 + $0x270] sm:$0xff] %v2536
  %3059 = vst [vmem:[%s3 + $0x278] sm:$0xff] %v2538
  %3060 = vst [vmem:[%s3 + $0x280] sm:$0xff] %v2541
  %3061 = vst [vmem:[%s3 + $0x288] sm:$0xff] %v2543
  %3062 = vst [vmem:[%s3 + $0x290] sm:$0xff] %v2546
  %3063 = vst [vmem:[%s3 + $0x298] sm:$0xff] %v2548
  %3064 = vst [vmem:[%s3 + $0x2a0] sm:$0xff] %v2551
  %3065 = vst [vmem:[%s3 + $0x2a8] sm:$0xff] %v2553
  %3066 = vst [vmem:[%s3 + $0x2b0] sm:$0xff] %v2556
  %3067 = vst [vmem:[%s3 + $0x2b8] sm:$0xff] %v2558
  %3068 = vst [vmem:[%s3 + $0x2c0] sm:$0xff] %v2561
  %3069 = vst [vmem:[%s3 + $0x2c8] sm:$0xff] %v2563
  %3070 = vst [vmem:[%s3 + $0x2d0] sm:$0xff] %v2566
  %3071 = vst [vmem:[%s3 + $0x2d8] sm:$0xff] %v2568
  %3072 = vst [vmem:[%s3 + $0x2e0] sm:$0xff] %v2571
  %3073 = vst [vmem:[%s3 + $0x2e8] sm:$0xff] %v2573
  %3074 = vst [vmem:[%s3 + $0x2f0] sm:$0xff] %v2576
  %3075 = vst [vmem:[%s3 + $0x2f8] sm:$0xff] %v2578
  %3076 = vst [vmem:[%s3 + $0x300] sm:$0xff] %v2581
  %3077 = vst [vmem:[%s3 + $0x308] sm:$0xff] %v2583
  %3078 = vst [vmem:[%s3 + $0x310] sm:$0xff] %v2586
  %3079 = vst [vmem:[%s3 + $0x318] sm:$0xff] %v2588
  %3080 = vst [vmem:[%s3 + $0x320] sm:$0xff] %v2591
  %3081 = vst [vmem:[%s3 + $0x328] sm:$0xff] %v2593
  %3082 = vst [vmem:[%s3 + $0x330] sm:$0xff] %v2596
  %3083 = vst [vmem:[%s3 + $0x338] sm:$0xff] %v2598
  %3084 = vst [vmem:[%s3 + $0x340] sm:$0xff] %v2601
  %3085 = vst [vmem:[%s3 + $0x348] sm:$0xff] %v2603
  %3086 = vst [vmem:[%s3 + $0x350] sm:$0xff] %v2606
  %3087 = vst [vmem:[%s3 + $0x358] sm:$0xff] %v2608
  %3088 = vst [vmem:[%s3 + $0x360] sm:$0xff] %v2611
  %3089 = vst [vmem:[%s3 + $0x368] sm:$0xff] %v2613
  %3090 = vst [vmem:[%s3 + $0x370] sm:$0xff] %v2616
  %3091 = vst [vmem:[%s3 + $0x378] sm:$0xff] %v2618
  %3092 = vst [vmem:[%s3 + $0x380] sm:$0xff] %v2621
  %3093 = vst [vmem:[%s3 + $0x388] sm:$0xff] %v2623
  %3094 = vst [vmem:[%s3 + $0x390] sm:$0xff] %v2626
  %3095 = vst [vmem:[%s3 + $0x398] sm:$0xff] %v2628
  %3096 = vst [vmem:[%s3 + $0x3a0] sm:$0xff] %v2631
  %3097 = vst [vmem:[%s3 + $0x3a8] sm:$0xff] %v2633
  %3098 = vst [vmem:[%s3 + $0x3b0] sm:$0xff] %v2636
  %3099 = vst [vmem:[%s3 + $0x3b8] sm:$0xff] %v2638
  %3100 = vst [vmem:[%s3 + $0x3c0] sm:$0xff] %v2641
  %3101 = vst [vmem:[%s3 + $0x3c8] sm:$0xff] %v2643
  %3102 = vst [vmem:[%s3 + $0x3d0] sm:$0xff] %v2646
  %3103 = vst [vmem:[%s3 + $0x3d8] sm:$0xff] %v2648
  %3104 = vst [vmem:[%s3 + $0x3e0] sm:$0xff] %v2651
  %3105 = vst [vmem:[%s3 + $0x3e8] sm:$0xff] %v2653
  %3106 = vst [vmem:[%s3 + $0x3f0] sm:$0xff] %v2656
  %3107 = vst [vmem:[%s3 + $0x3f8] sm:$0xff] %v2658
  %3108 = vst [vmem:[%s3 + $0x400] sm:$0xff] %v2661
  %3109 = vst [vmem:[%s3 + $0x408] sm:$0xff] %v2663
  %3110 = vst [vmem:[%s3 + $0x410] sm:$0xff] %v2666
  %3111 = vst [vmem:[%s3 + $0x418] sm:$0xff] %v2668
  %3112 = vst [vmem:[%s3 + $0x420] sm:$0xff] %v2671
  %3113 = vst [vmem:[%s3 + $0x428] sm:$0xff] %v2673
  %3114 = vst [vmem:[%s3 + $0x430] sm:$0xff] %v2676
  %3115 = vst [vmem:[%s3 + $0x438] sm:$0xff] %v2678
  %3116 = vst [vmem:[%s3 + $0x440] sm:$0xff] %v2681
  %3117 = vst [vmem:[%s3 + $0x448] sm:$0xff] %v2683
  %3118 = vst [vmem:[%s3 + $0x450] sm:$0xff] %v2686
  %3119 = vst [vmem:[%s3 + $0x458] sm:$0xff] %v2688
  %3120 = vst [vmem:[%s3 + $0x460] sm:$0xff] %v2691
  %3121 = vst [vmem:[%s3 + $0x468] sm:$0xff] %v2693
  %3122 = vst [vmem:[%s3 + $0x470] sm:$0xff] %v2696
  %3123 = vst [vmem:[%s3 + $0x478] sm:$0xff] %v2698
  %3124 = vst [vmem:[%s3 + $0x480] sm:$0xff] %v2701
  %3125 = vst [vmem:[%s3 + $0x488] sm:$0xff] %v2703
  %3126 = vst [vmem:[%s3 + $0x490] sm:$0xff] %v2706
  %3127 = vst [vmem:[%s3 + $0x498] sm:$0xff] %v2708
  %3128 = vst [vmem:[%s3 + $0x4a0] sm:$0xff] %v2711
  %3129 = vst [vmem:[%s3 + $0x4a8] sm:$0xff] %v2713
  %3130 = vst [vmem:[%s3 + $0x4b0] sm:$0xff] %v2716
  %3131 = vst [vmem:[%s3 + $0x4b8] sm:$0xff] %v2718
  %3132 = vst [vmem:[%s3 + $0x4c0] sm:$0xff] %v2721
  %3133 = vst [vmem:[%s3 + $0x4c8] sm:$0xff] %v2723
  %3134 = vst [vmem:[%s3 + $0x4d0] sm:$0xff] %v2726
  %3135 = vst [vmem:[%s3 + $0x4d8] sm:$0xff] %v2728
  %3136 = vst [vmem:[%s3 + $0x4e0] sm:$0xff] %v2731
  %3137 = vst [vmem:[%s3 + $0x4e8] sm:$0xff] %v2733
  %3138 = vst [vmem:[%s3 + $0x4f0] sm:$0xff] %v2736
  %3139 = vst [vmem:[%s3 + $0x4f8] sm:$0xff] %v2738
  %3140 = vst [vmem:[%s3 + $0x500] sm:$0xff] %v2741
  %3141 = vst [vmem:[%s3 + $0x508] sm:$0xff] %v2743
  %3142 = vst [vmem:[%s3 + $0x510] sm:$0xff] %v2746
  %3143 = vst [vmem:[%s3 + $0x518] sm:$0xff] %v2748
  %3144 = vst [vmem:[%s3 + $0x520] sm:$0xff] %v2751
  %3145 = vst [vmem:[%s3 + $0x528] sm:$0xff] %v2753
  %3146 = vst [vmem:[%s3 + $0x530] sm:$0xff] %v2756
  %3147 = vst [vmem:[%s3 + $0x538] sm:$0xff] %v2758
  %3148 = vst [vmem:[%s3 + $0x540] sm:$0xff] %v2761
  %3149 = vst [vmem:[%s3 + $0x548] sm:$0xff] %v2763
  %3150 = vst [vmem:[%s3 + $0x550] sm:$0xff] %v2766
  %3151 = vst [vmem:[%s3 + $0x558] sm:$0xff] %v2768
  %3152 = vst [vmem:[%s3 + $0x560] sm:$0xff] %v2771
  %3153 = vst [vmem:[%s3 + $0x568] sm:$0xff] %v2773
  %3154 = vst [vmem:[%s3 + $0x570] sm:$0xff] %v2776
  %3155 = vst [vmem:[%s3 + $0x578] sm:$0xff] %v2778
  %3156 = vst [vmem:[%s3 + $0x580] sm:$0xff] %v2781
  %3157 = vst [vmem:[%s3 + $0x588] sm:$0xff] %v2783
  %3158 = vst [vmem:[%s3 + $0x590] sm:$0xff] %v2786
  %3159 = vst [vmem:[%s3 + $0x598] sm:$0xff] %v2788
  %3160 = vst [vmem:[%s3 + $0x5a0] sm:$0xff] %v2791
  %3161 = vst [vmem:[%s3 + $0x5a8] sm:$0xff] %v2793
  %3162 = vst [vmem:[%s3 + $0x5b0] sm:$0xff] %v2796
  %3163 = vst [vmem:[%s3 + $0x5b8] sm:$0xff] %v2798
  %3164 = vst [vmem:[%s3 + $0x5c0] sm:$0xff] %v2801
  %3165 = vst [vmem:[%s3 + $0x5c8] sm:$0xff] %v2803
  %3166 = vst [vmem:[%s3 + $0x5d0] sm:$0xff] %v2806
  %3167 = vst [vmem:[%s3 + $0x5d8] sm:$0xff] %v2808
  %3168 = vst [vmem:[%s3 + $0x5e0] sm:$0xff] %v2811
  %3169 = vst [vmem:[%s3 + $0x5e8] sm:$0xff] %v2813
  %3170 = vst [vmem:[%s3 + $0x5f0] sm:$0xff] %v2816
  %3171 = vst [vmem:[%s3 + $0x5f8] sm:$0xff] %v2818
  %3172 = vst [vmem:[%s3 + $0x600] sm:$0xff] %v2821
  %3173 = vst [vmem:[%s3 + $0x608] sm:$0xff] %v2823
  %3174 = vst [vmem:[%s3 + $0x610] sm:$0xff] %v2826
  %3175 = vst [vmem:[%s3 + $0x618] sm:$0xff] %v2828
  %3176 = vst [vmem:[%s3 + $0x620] sm:$0xff] %v2831
  %3177 = vst [vmem:[%s3 + $0x628] sm:$0xff] %v2833
  %3178 = vst [vmem:[%s3 + $0x630] sm:$0xff] %v2836
  %3179 = vst [vmem:[%s3 + $0x638] sm:$0xff] %v2838
  %3180 = vst [vmem:[%s3 + $0x640] sm:$0xff] %v2841
  %3181 = vst [vmem:[%s3 + $0x648] sm:$0xff] %v2843
  %3182 = vst [vmem:[%s3 + $0x650] sm:$0xff] %v2846
  %3183 = vst [vmem:[%s3 + $0x658] sm:$0xff] %v2848
  %3184 = vst [vmem:[%s3 + $0x660] sm:$0xff] %v2851
  %3185 = vst [vmem:[%s3 + $0x668] sm:$0xff] %v2853
  %3186 = vst [vmem:[%s3 + $0x670] sm:$0xff] %v2856
  %3187 = vst [vmem:[%s3 + $0x678] sm:$0xff] %v2858
  %3188 = vst [vmem:[%s3 + $0x680] sm:$0xff] %v2861
  %3189 = vst [vmem:[%s3 + $0x688] sm:$0xff] %v2863
  %3190 = vst [vmem:[%s3 + $0x690] sm:$0xff] %v2866
  %3191 = vst [vmem:[%s3 + $0x698] sm:$0xff] %v2868
  %3192 = vst [vmem:[%s3 + $0x6a0] sm:$0xff] %v2871
  %3193 = vst [vmem:[%s3 + $0x6a8] sm:$0xff] %v2873
  %3194 = vst [vmem:[%s3 + $0x6b0] sm:$0xff] %v2876
  %3195 = vst [vmem:[%s3 + $0x6b8] sm:$0xff] %v2878
  %3196 = vst [vmem:[%s3 + $0x6c0] sm:$0xff] %v2881
  %3197 = vst [vmem:[%s3 + $0x6c8] sm:$0xff] %v2883
  %3198 = vst [vmem:[%s3 + $0x6d0] sm:$0xff] %v2886
  %3199 = vst [vmem:[%s3 + $0x6d8] sm:$0xff] %v2888
  %3200 = vst [vmem:[%s3 + $0x6e0] sm:$0xff] %v2891
  %3201 = vst [vmem:[%s3 + $0x6e8] sm:$0xff] %v2893
  %3202 = vst [vmem:[%s3 + $0x6f0] sm:$0xff] %v2896
  %3203 = vst [vmem:[%s3 + $0x6f8] sm:$0xff] %v2898
  %3204 = vst [vmem:[%s3 + $0x700] sm:$0xff] %v2901
  %3205 = vst [vmem:[%s3 + $0x708] sm:$0xff] %v2903
  %3206 = vst [vmem:[%s3 + $0x710] sm:$0xff] %v2906
  %3207 = vst [vmem:[%s3 + $0x718] sm:$0xff] %v2908
  %3208 = vst [vmem:[%s3 + $0x720] sm:$0xff] %v2911
  %3209 = vst [vmem:[%s3 + $0x728] sm:$0xff] %v2913
  %3210 = vst [vmem:[%s3 + $0x730] sm:$0xff] %v2916
  %3211 = vst [vmem:[%s3 + $0x738] sm:$0xff] %v2918
  %3212 = vst [vmem:[%s3 + $0x740] sm:$0xff] %v2921
  %3213 = vst [vmem:[%s3 + $0x748] sm:$0xff] %v2923
  %3214 = vst [vmem:[%s3 + $0x750] sm:$0xff] %v2926
  %3215 = vst [vmem:[%s3 + $0x758] sm:$0xff] %v2928
  %3216 = vst [vmem:[%s3 + $0x760] sm:$0xff] %v2931
  %3217 = vst [vmem:[%s3 + $0x768] sm:$0xff] %v2933
  %3218 = vst [vmem:[%s3 + $0x770] sm:$0xff] %v2936
  %3219 = vst [vmem:[%s3 + $0x778] sm:$0xff] %v2938
  %3220 = vst [vmem:[%s3 + $0x780] sm:$0xff] %v2941
  %3221 = vst [vmem:[%s3 + $0x788] sm:$0xff] %v2943
  %3222 = vst [vmem:[%s3 + $0x790] sm:$0xff] %v2946
  %3223 = vst [vmem:[%s3 + $0x798] sm:$0xff] %v2948
  %3224 = vst [vmem:[%s3 + $0x7a0] sm:$0xff] %v2951
  %3225 = vst [vmem:[%s3 + $0x7a8] sm:$0xff] %v2953
  %3226 = vst [vmem:[%s3 + $0x7b0] sm:$0xff] %v2956
  %3227 = vst [vmem:[%s3 + $0x7b8] sm:$0xff] %v2958
  %3228 = vst [vmem:[%s3 + $0x7c0] sm:$0xff] %v2961
  %3229 = vst [vmem:[%s3 + $0x7c8] sm:$0xff] %v2963
  %3230 = vst [vmem:[%s3 + $0x7d0] sm:$0xff] %v2966
  %3231 = vst [vmem:[%s3 + $0x7d8] sm:$0xff] %v2968
  %3232 = vst [vmem:[%s3 + $0x7e0] sm:$0xff] %v2971
  %3233 = vst [vmem:[%s3 + $0x7e8] sm:$0xff] %v2973
  %3234 = vst [vmem:[%s3 + $0x7f0] sm:$0xff] %v2976
  %3235 = vst [vmem:[%s3 + $0x7f8] sm:$0xff] %v2978
  // Predicated region
  $region14: #{t_mv2_unet_forward.15} parent=0 // pred_check
    _
  $region15: #{t_mv2_unet_forward.15} parent=0 // pred_check_branch
    %3237 = sbr.rel (0) target = $region17
  $region16: #{t_mv2_unet_forward.15} parent=0 // pred_region
    _
  $region17: #{t_mv2_unet_forward.15} parent=0 // pred_fallthru
    _
  // Predicated region
  $region18: #{t_mv2_unet_forward.15} parent=0 // pred_check
    _
  $region19: #{t_mv2_unet_forward.15} parent=0 // pred_check_branch
    %3239 = sbr.rel (0) target = $region21
  $region20: #{t_mv2_unet_forward.15} parent=0 // pred_region
    _
  $region21: #{t_mv2_unet_forward.15} parent=0 // pred_fallthru
    _

// kernel: t_mv2_unet_forward.14
$region0: #{t_mv2_unet_forward.14}
  #allocation0 [shape = 'u32[]', space=smem, size = 0x4, offset = 0x4, fixed_abs, tag = 'smem constant byte address 0x4 - core index']
  #allocation1 [shape = 'u32[72,128]{1,0:T(1,128)}', space=vmem, size = 0x9000, scoped, tag = 'internal scratch']
  %s0 = inlined_call_operand.vmem [shape: bf16[2048,256], index: 0, kind: input, shape index: {}]
  %s1 = inlined_call_operand.vmem [shape: bf16[256,128], index: 1, kind: input, shape index: {}]
  %s2 = inlined_call_operand.vmem [shape: f32[1,128], index: 2, kind: input, shape index: {}]
  %s3 = inlined_call_operand.vmem [shape: bf16[2048,128], index: 3, kind: output, shape index: {}]
  %s4 = sld [smem:[#allocation0]]
  $region22: #{t_mv2_unet_forward.14} parent=0
    _
  %s6 = ssub.s32 1, %s4
  %s7 = scalar_select 0, %s6, %s4
  // Predicated region
  $region2: #{t_mv2_unet_forward.14} parent=0 // pred_check
    _
  $region3: #{t_mv2_unet_forward.14} parent=0 // pred_check_branch
    %9 = sbr.rel (0) target = $region5
  $region4: #{t_mv2_unet_forward.14} parent=0 // pred_region
    _
  $region5: #{t_mv2_unet_forward.14} parent=0 // pred_fallthru
    _
  // Predicated region
  $region6: #{t_mv2_unet_forward.14} parent=0 // pred_check
    _
  $region7: #{t_mv2_unet_forward.14} parent=0 // pred_check_branch
    %11 = sbr.rel (0) target = $region9
  $region8: #{t_mv2_unet_forward.14} parent=0 // pred_region
    _
  $region9: #{t_mv2_unet_forward.14} parent=0 // pred_fallthru
    _
  // Predicated region
  $region10: #{t_mv2_unet_forward.14} parent=0 // pred_check
    _
  $region11: #{t_mv2_unet_forward.14} parent=0 // pred_check_branch
    %13 = sbr.rel (0) target = $region13
  $region12: #{t_mv2_unet_forward.14} parent=0 // pred_region
    _
  $region13: #{t_mv2_unet_forward.14} parent=0 // pred_fallthru
    _
  %v14 = vld [vmem:[%s0] sm:$0xff]
  %v15 = vld [vmem:[%s0 + $0x8] sm:$0xff]
  %v16 = vld [vmem:[%s0 + $0x10] sm:$0xff]
  %v17 = vld [vmem:[%s0 + $0x18] sm:$0xff]
  %v18 = vld [vmem:[%s0 + $0x20] sm:$0xff]
  %v19 = vld [vmem:[%s0 + $0x28] sm:$0xff]
  %v20 = vld [vmem:[%s0 + $0x30] sm:$0xff]
  %v21 = vld [vmem:[%s0 + $0x38] sm:$0xff]
  %v22 = vld [vmem:[%s0 + $0x40] sm:$0xff]
  %v23 = vld [vmem:[%s0 + $0x48] sm:$0xff]
  %v24 = vld [vmem:[%s0 + $0x50] sm:$0xff]
  %v25 = vld [vmem:[%s0 + $0x58] sm:$0xff]
  %v26 = vld [vmem:[%s0 + $0x60] sm:$0xff]
  %v27 = vld [vmem:[%s0 + $0x68] sm:$0xff]
  %v28 = vld [vmem:[%s0 + $0x70] sm:$0xff]
  %v29 = vld [vmem:[%s0 + $0x78] sm:$0xff]
  %v30 = vld [vmem:[%s0 + $0x80] sm:$0xff]
  %v31 = vld [vmem:[%s0 + $0x88] sm:$0xff]
  %v32 = vld [vmem:[%s0 + $0x90] sm:$0xff]
  %v33 = vld [vmem:[%s0 + $0x98] sm:$0xff]
  %v34 = vld [vmem:[%s0 + $0xa0] sm:$0xff]
  %v35 = vld [vmem:[%s0 + $0xa8] sm:$0xff]
  %v36 = vld [vmem:[%s0 + $0xb0] sm:$0xff]
  %v37 = vld [vmem:[%s0 + $0xb8] sm:$0xff]
  %v38 = vld [vmem:[%s0 + $0xc0] sm:$0xff]
  %v39 = vld [vmem:[%s0 + $0xc8] sm:$0xff]
  %v40 = vld [vmem:[%s0 + $0xd0] sm:$0xff]
  %v41 = vld [vmem:[%s0 + $0xd8] sm:$0xff]
  %v42 = vld [vmem:[%s0 + $0xe0] sm:$0xff]
  %v43 = vld [vmem:[%s0 + $0xe8] sm:$0xff]
  %v44 = vld [vmem:[%s0 + $0xf0] sm:$0xff]
  %v45 = vld [vmem:[%s0 + $0xf8] sm:$0xff]
  %v46 = vld [vmem:[%s0 + $0x100] sm:$0xff]
  %v47 = vld [vmem:[%s0 + $0x108] sm:$0xff]
  %v48 = vld [vmem:[%s0 + $0x110] sm:$0xff]
  %v49 = vld [vmem:[%s0 + $0x118] sm:$0xff]
  %v50 = vld [vmem:[%s0 + $0x120] sm:$0xff]
  %v51 = vld [vmem:[%s0 + $0x128] sm:$0xff]
  %v52 = vld [vmem:[%s0 + $0x130] sm:$0xff]
  %v53 = vld [vmem:[%s0 + $0x138] sm:$0xff]
  %v54 = vld [vmem:[%s0 + $0x140] sm:$0xff]
  %v55 = vld [vmem:[%s0 + $0x148] sm:$0xff]
  %v56 = vld [vmem:[%s0 + $0x150] sm:$0xff]
  %v57 = vld [vmem:[%s0 + $0x158] sm:$0xff]
  %v58 = vld [vmem:[%s0 + $0x160] sm:$0xff]
  %v59 = vld [vmem:[%s0 + $0x168] sm:$0xff]
  %v60 = vld [vmem:[%s0 + $0x170] sm:$0xff]
  %v61 = vld [vmem:[%s0 + $0x178] sm:$0xff]
  %v62 = vld [vmem:[%s0 + $0x180] sm:$0xff]
  %v63 = vld [vmem:[%s0 + $0x188] sm:$0xff]
  %v64 = vld [vmem:[%s0 + $0x190] sm:$0xff]
  %v65 = vld [vmem:[%s0 + $0x198] sm:$0xff]
  %v66 = vld [vmem:[%s0 + $0x1a0] sm:$0xff]
  %v67 = vld [vmem:[%s0 + $0x1a8] sm:$0xff]
  %v68 = vld [vmem:[%s0 + $0x1b0] sm:$0xff]
  %v69 = vld [vmem:[%s0 + $0x1b8] sm:$0xff]
  %v70 = vld [vmem:[%s0 + $0x1c0] sm:$0xff]
  %v71 = vld [vmem:[%s0 + $0x1c8] sm:$0xff]
  %v72 = vld [vmem:[%s0 + $0x1d0] sm:$0xff]
  %v73 = vld [vmem:[%s0 + $0x1d8] sm:$0xff]
  %v74 = vld [vmem:[%s0 + $0x1e0] sm:$0xff]
  %v75 = vld [vmem:[%s0 + $0x1e8] sm:$0xff]
  %v76 = vld [vmem:[%s0 + $0x1f0] sm:$0xff]
  %v77 = vld [vmem:[%s0 + $0x1f8] sm:$0xff]
  %v78 = vld [vmem:[%s0 + $0x200] sm:$0xff]
  %v79 = vld [vmem:[%s0 + $0x208] sm:$0xff]
  %v80 = vld [vmem:[%s0 + $0x210] sm:$0xff]
  %v81 = vld [vmem:[%s0 + $0x218] sm:$0xff]
  %v82 = vld [vmem:[%s0 + $0x220] sm:$0xff]
  %v83 = vld [vmem:[%s0 + $0x228] sm:$0xff]
  %v84 = vld [vmem:[%s0 + $0x230] sm:$0xff]
  %v85 = vld [vmem:[%s0 + $0x238] sm:$0xff]
  %v86 = vld [vmem:[%s0 + $0x240] sm:$0xff]
  %v87 = vld [vmem:[%s0 + $0x248] sm:$0xff]
  %v88 = vld [vmem:[%s0 + $0x250] sm:$0xff]
  %v89 = vld [vmem:[%s0 + $0x258] sm:$0xff]
  %v90 = vld [vmem:[%s0 + $0x260] sm:$0xff]
  %v91 = vld [vmem:[%s0 + $0x268] sm:$0xff]
  %v92 = vld [vmem:[%s0 + $0x270] sm:$0xff]
  %v93 = vld [vmem:[%s0 + $0x278] sm:$0xff]
  %v94 = vld [vmem:[%s0 + $0x280] sm:$0xff]
  %v95 = vld [vmem:[%s0 + $0x288] sm:$0xff]
  %v96 = vld [vmem:[%s0 + $0x290] sm:$0xff]
  %v97 = vld [vmem:[%s0 + $0x298] sm:$0xff]
  %v98 = vld [vmem:[%s0 + $0x2a0] sm:$0xff]
  %v99 = vld [vmem:[%s0 + $0x2a8] sm:$0xff]
  %v100 = vld [vmem:[%s0 + $0x2b0] sm:$0xff]
  %v101 = vld [vmem:[%s0 + $0x2b8] sm:$0xff]
  %v102 = vld [vmem:[%s0 + $0x2c0] sm:$0xff]
  %v103 = vld [vmem:[%s0 + $0x2c8] sm:$0xff]
  %v104 = vld [vmem:[%s0 + $0x2d0] sm:$0xff]
  %v105 = vld [vmem:[%s0 + $0x2d8] sm:$0xff]
  %v106 = vld [vmem:[%s0 + $0x2e0] sm:$0xff]
  %v107 = vld [vmem:[%s0 + $0x2e8] sm:$0xff]
  %v108 = vld [vmem:[%s0 + $0x2f0] sm:$0xff]
  %v109 = vld [vmem:[%s0 + $0x2f8] sm:$0xff]
  %v110 = vld [vmem:[%s0 + $0x300] sm:$0xff]
  %v111 = vld [vmem:[%s0 + $0x308] sm:$0xff]
  %v112 = vld [vmem:[%s0 + $0x310] sm:$0xff]
  %v113 = vld [vmem:[%s0 + $0x318] sm:$0xff]
  %v114 = vld [vmem:[%s0 + $0x320] sm:$0xff]
  %v115 = vld [vmem:[%s0 + $0x328] sm:$0xff]
  %v116 = vld [vmem:[%s0 + $0x330] sm:$0xff]
  %v117 = vld [vmem:[%s0 + $0x338] sm:$0xff]
  %v118 = vld [vmem:[%s0 + $0x340] sm:$0xff]
  %v119 = vld [vmem:[%s0 + $0x348] sm:$0xff]
  %v120 = vld [vmem:[%s0 + $0x350] sm:$0xff]
  %v121 = vld [vmem:[%s0 + $0x358] sm:$0xff]
  %v122 = vld [vmem:[%s0 + $0x360] sm:$0xff]
  %v123 = vld [vmem:[%s0 + $0x368] sm:$0xff]
  %v124 = vld [vmem:[%s0 + $0x370] sm:$0xff]
  %v125 = vld [vmem:[%s0 + $0x378] sm:$0xff]
  %v126 = vld [vmem:[%s0 + $0x380] sm:$0xff]
  %v127 = vld [vmem:[%s0 + $0x388] sm:$0xff]
  %v128 = vld [vmem:[%s0 + $0x390] sm:$0xff]
  %v129 = vld [vmem:[%s0 + $0x398] sm:$0xff]
  %v130 = vld [vmem:[%s0 + $0x3a0] sm:$0xff]
  %v131 = vld [vmem:[%s0 + $0x3a8] sm:$0xff]
  %v132 = vld [vmem:[%s0 + $0x3b0] sm:$0xff]
  %v133 = vld [vmem:[%s0 + $0x3b8] sm:$0xff]
  %v134 = vld [vmem:[%s0 + $0x3c0] sm:$0xff]
  %v135 = vld [vmem:[%s0 + $0x3c8] sm:$0xff]
  %v136 = vld [vmem:[%s0 + $0x3d0] sm:$0xff]
  %v137 = vld [vmem:[%s0 + $0x3d8] sm:$0xff]
  %v138 = vld [vmem:[%s0 + $0x3e0] sm:$0xff]
  %v139 = vld [vmem:[%s0 + $0x3e8] sm:$0xff]
  %v140 = vld [vmem:[%s0 + $0x3f0] sm:$0xff]
  %v141 = vld [vmem:[%s0 + $0x3f8] sm:$0xff]
  %v142 = vld [vmem:[%s0 + $0x400] sm:$0xff]
  %v143 = vld [vmem:[%s0 + $0x408] sm:$0xff]
  %v144 = vld [vmem:[%s0 + $0x410] sm:$0xff]
  %v145 = vld [vmem:[%s0 + $0x418] sm:$0xff]
  %v146 = vld [vmem:[%s0 + $0x420] sm:$0xff]
  %v147 = vld [vmem:[%s0 + $0x428] sm:$0xff]
  %v148 = vld [vmem:[%s0 + $0x430] sm:$0xff]
  %v149 = vld [vmem:[%s0 + $0x438] sm:$0xff]
  %v150 = vld [vmem:[%s0 + $0x440] sm:$0xff]
  %v151 = vld [vmem:[%s0 + $0x448] sm:$0xff]
  %v152 = vld [vmem:[%s0 + $0x450] sm:$0xff]
  %v153 = vld [vmem:[%s0 + $0x458] sm:$0xff]
  %v154 = vld [vmem:[%s0 + $0x460] sm:$0xff]
  %v155 = vld [vmem:[%s0 + $0x468] sm:$0xff]
  %v156 = vld [vmem:[%s0 + $0x470] sm:$0xff]
  %v157 = vld [vmem:[%s0 + $0x478] sm:$0xff]
  %v158 = vld [vmem:[%s0 + $0x480] sm:$0xff]
  %v159 = vld [vmem:[%s0 + $0x488] sm:$0xff]
  %v160 = vld [vmem:[%s0 + $0x490] sm:$0xff]
  %v161 = vld [vmem:[%s0 + $0x498] sm:$0xff]
  %v162 = vld [vmem:[%s0 + $0x4a0] sm:$0xff]
  %v163 = vld [vmem:[%s0 + $0x4a8] sm:$0xff]
  %v164 = vld [vmem:[%s0 + $0x4b0] sm:$0xff]
  %v165 = vld [vmem:[%s0 + $0x4b8] sm:$0xff]
  %v166 = vld [vmem:[%s0 + $0x4c0] sm:$0xff]
  %v167 = vld [vmem:[%s0 + $0x4c8] sm:$0xff]
  %v168 = vld [vmem:[%s0 + $0x4d0] sm:$0xff]
  %v169 = vld [vmem:[%s0 + $0x4d8] sm:$0xff]
  %v170 = vld [vmem:[%s0 + $0x4e0] sm:$0xff]
  %v171 = vld [vmem:[%s0 + $0x4e8] sm:$0xff]
  %v172 = vld [vmem:[%s0 + $0x4f0] sm:$0xff]
  %v173 = vld [vmem:[%s0 + $0x4f8] sm:$0xff]
  %v174 = vld [vmem:[%s0 + $0x500] sm:$0xff]
  %v175 = vld [vmem:[%s0 + $0x508] sm:$0xff]
  %v176 = vld [vmem:[%s0 + $0x510] sm:$0xff]
  %v177 = vld [vmem:[%s0 + $0x518] sm:$0xff]
  %v178 = vld [vmem:[%s0 + $0x520] sm:$0xff]
  %v179 = vld [vmem:[%s0 + $0x528] sm:$0xff]
  %v180 = vld [vmem:[%s0 + $0x530] sm:$0xff]
  %v181 = vld [vmem:[%s0 + $0x538] sm:$0xff]
  %v182 = vld [vmem:[%s0 + $0x540] sm:$0xff]
  %v183 = vld [vmem:[%s0 + $0x548] sm:$0xff]
  %v184 = vld [vmem:[%s0 + $0x550] sm:$0xff]
  %v185 = vld [vmem:[%s0 + $0x558] sm:$0xff]
  %v186 = vld [vmem:[%s0 + $0x560] sm:$0xff]
  %v187 = vld [vmem:[%s0 + $0x568] sm:$0xff]
  %v188 = vld [vmem:[%s0 + $0x570] sm:$0xff]
  %v189 = vld [vmem:[%s0 + $0x578] sm:$0xff]
  %v190 = vld [vmem:[%s0 + $0x580] sm:$0xff]
  %v191 = vld [vmem:[%s0 + $0x588] sm:$0xff]
  %v192 = vld [vmem:[%s0 + $0x590] sm:$0xff]
  %v193 = vld [vmem:[%s0 + $0x598] sm:$0xff]
  %v194 = vld [vmem:[%s0 + $0x5a0] sm:$0xff]
  %v195 = vld [vmem:[%s0 + $0x5a8] sm:$0xff]
  %v196 = vld [vmem:[%s0 + $0x5b0] sm:$0xff]
  %v197 = vld [vmem:[%s0 + $0x5b8] sm:$0xff]
  %v198 = vld [vmem:[%s0 + $0x5c0] sm:$0xff]
  %v199 = vld [vmem:[%s0 + $0x5c8] sm:$0xff]
  %v200 = vld [vmem:[%s0 + $0x5d0] sm:$0xff]
  %v201 = vld [vmem:[%s0 + $0x5d8] sm:$0xff]
  %v202 = vld [vmem:[%s0 + $0x5e0] sm:$0xff]
  %v203 = vld [vmem:[%s0 + $0x5e8] sm:$0xff]
  %v204 = vld [vmem:[%s0 + $0x5f0] sm:$0xff]
  %v205 = vld [vmem:[%s0 + $0x5f8] sm:$0xff]
  %v206 = vld [vmem:[%s0 + $0x600] sm:$0xff]
  %v207 = vld [vmem:[%s0 + $0x608] sm:$0xff]
  %v208 = vld [vmem:[%s0 + $0x610] sm:$0xff]
  %v209 = vld [vmem:[%s0 + $0x618] sm:$0xff]
  %v210 = vld [vmem:[%s0 + $0x620] sm:$0xff]
  %v211 = vld [vmem:[%s0 + $0x628] sm:$0xff]
  %v212 = vld [vmem:[%s0 + $0x630] sm:$0xff]
  %v213 = vld [vmem:[%s0 + $0x638] sm:$0xff]
  %v214 = vld [vmem:[%s0 + $0x640] sm:$0xff]
  %v215 = vld [vmem:[%s0 + $0x648] sm:$0xff]
  %v216 = vld [vmem:[%s0 + $0x650] sm:$0xff]
  %v217 = vld [vmem:[%s0 + $0x658] sm:$0xff]
  %v218 = vld [vmem:[%s0 + $0x660] sm:$0xff]
  %v219 = vld [vmem:[%s0 + $0x668] sm:$0xff]
  %v220 = vld [vmem:[%s0 + $0x670] sm:$0xff]
  %v221 = vld [vmem:[%s0 + $0x678] sm:$0xff]
  %v222 = vld [vmem:[%s0 + $0x680] sm:$0xff]
  %v223 = vld [vmem:[%s0 + $0x688] sm:$0xff]
  %v224 = vld [vmem:[%s0 + $0x690] sm:$0xff]
  %v225 = vld [vmem:[%s0 + $0x698] sm:$0xff]
  %v226 = vld [vmem:[%s0 + $0x6a0] sm:$0xff]
  %v227 = vld [vmem:[%s0 + $0x6a8] sm:$0xff]
  %v228 = vld [vmem:[%s0 + $0x6b0] sm:$0xff]
  %v229 = vld [vmem:[%s0 + $0x6b8] sm:$0xff]
  %v230 = vld [vmem:[%s0 + $0x6c0] sm:$0xff]
  %v231 = vld [vmem:[%s0 + $0x6c8] sm:$0xff]
  %v232 = vld [vmem:[%s0 + $0x6d0] sm:$0xff]
  %v233 = vld [vmem:[%s0 + $0x6d8] sm:$0xff]
  %v234 = vld [vmem:[%s0 + $0x6e0] sm:$0xff]
  %v235 = vld [vmem:[%s0 + $0x6e8] sm:$0xff]
  %v236 = vld [vmem:[%s0 + $0x6f0] sm:$0xff]
  %v237 = vld [vmem:[%s0 + $0x6f8] sm:$0xff]
  %v238 = vld [vmem:[%s0 + $0x700] sm:$0xff]
  %v239 = vld [vmem:[%s0 + $0x708] sm:$0xff]
  %v240 = vld [vmem:[%s0 + $0x710] sm:$0xff]
  %v241 = vld [vmem:[%s0 + $0x718] sm:$0xff]
  %v242 = vld [vmem:[%s0 + $0x720] sm:$0xff]
  %v243 = vld [vmem:[%s0 + $0x728] sm:$0xff]
  %v244 = vld [vmem:[%s0 + $0x730] sm:$0xff]
  %v245 = vld [vmem:[%s0 + $0x738] sm:$0xff]
  %v246 = vld [vmem:[%s0 + $0x740] sm:$0xff]
  %v247 = vld [vmem:[%s0 + $0x748] sm:$0xff]
  %v248 = vld [vmem:[%s0 + $0x750] sm:$0xff]
  %v249 = vld [vmem:[%s0 + $0x758] sm:$0xff]
  %v250 = vld [vmem:[%s0 + $0x760] sm:$0xff]
  %v251 = vld [vmem:[%s0 + $0x768] sm:$0xff]
  %v252 = vld [vmem:[%s0 + $0x770] sm:$0xff]
  %v253 = vld [vmem:[%s0 + $0x778] sm:$0xff]
  %v254 = vld [vmem:[%s0 + $0x780] sm:$0xff]
  %v255 = vld [vmem:[%s0 + $0x788] sm:$0xff]
  %v256 = vld [vmem:[%s0 + $0x790] sm:$0xff]
  %v257 = vld [vmem:[%s0 + $0x798] sm:$0xff]
  %v258 = vld [vmem:[%s0 + $0x7a0] sm:$0xff]
  %v259 = vld [vmem:[%s0 + $0x7a8] sm:$0xff]
  %v260 = vld [vmem:[%s0 + $0x7b0] sm:$0xff]
  %v261 = vld [vmem:[%s0 + $0x7b8] sm:$0xff]
  %v262 = vld [vmem:[%s0 + $0x7c0] sm:$0xff]
  %v263 = vld [vmem:[%s0 + $0x7c8] sm:$0xff]
  %v264 = vld [vmem:[%s0 + $0x7d0] sm:$0xff]
  %v265 = vld [vmem:[%s0 + $0x7d8] sm:$0xff]
  %v266 = vld [vmem:[%s0 + $0x7e0] sm:$0xff]
  %v267 = vld [vmem:[%s0 + $0x7e8] sm:$0xff]
  %v268 = vld [vmem:[%s0 + $0x7f0] sm:$0xff]
  %v269 = vld [vmem:[%s0 + $0x7f8] sm:$0xff]
  %v270 = vld [vmem:[%s1] sm:$0xf]
  %v271 = vld [vmem:[%s1 + $0x4] sm:$0xf]
  %v272 = vld [vmem:[%s1 + $0x8] sm:$0xf]
  %v273 = vld [vmem:[%s1 + $0xc] sm:$0xf]
  %v274 = vld [vmem:[%s1 + $0x10] sm:$0xf]
  %v275 = vld [vmem:[%s1 + $0x14] sm:$0xf]
  %v276 = vld [vmem:[%s1 + $0x18] sm:$0xf]
  %v277 = vld [vmem:[%s1 + $0x1c] sm:$0xf]
  %v278 = vld [vmem:[%s1 + $0x20] sm:$0xf]
  %v279 = vld [vmem:[%s1 + $0x24] sm:$0xf]
  %v280 = vld [vmem:[%s1 + $0x28] sm:$0xf]
  %v281 = vld [vmem:[%s1 + $0x2c] sm:$0xf]
  %v282 = vld [vmem:[%s1 + $0x30] sm:$0xf]
  %v283 = vld [vmem:[%s1 + $0x34] sm:$0xf]
  %v284 = vld [vmem:[%s1 + $0x38] sm:$0xf]
  %v285 = vld [vmem:[%s1 + $0x3c] sm:$0xf]
  %v286 = vld [vmem:[%s1 + $0x40] sm:$0xf]
  %v287 = vld [vmem:[%s1 + $0x44] sm:$0xf]
  %v288 = vld [vmem:[%s1 + $0x48] sm:$0xf]
  %v289 = vld [vmem:[%s1 + $0x4c] sm:$0xf]
  %v290 = vld [vmem:[%s1 + $0x50] sm:$0xf]
  %v291 = vld [vmem:[%s1 + $0x54] sm:$0xf]
  %v292 = vld [vmem:[%s1 + $0x58] sm:$0xf]
  %v293 = vld [vmem:[%s1 + $0x5c] sm:$0xf]
  %v294 = vld [vmem:[%s1 + $0x60] sm:$0xf]
  %v295 = vld [vmem:[%s1 + $0x64] sm:$0xf]
  %v296 = vld [vmem:[%s1 + $0x68] sm:$0xf]
  %v297 = vld [vmem:[%s1 + $0x6c] sm:$0xf]
  %v298 = vld [vmem:[%s1 + $0x70] sm:$0xf]
  %v299 = vld [vmem:[%s1 + $0x74] sm:$0xf]
  %v300 = vld [vmem:[%s1 + $0x78] sm:$0xf]
  %v301 = vld [vmem:[%s1 + $0x7c] sm:$0xf]
  %v302 = vld [vmem:[%s2] sm:$0x1]
  %v304 = vperm.slane %v302, 0
  %v562 = vunpack.c.l.b16 %v14
  %v563 = vunpack.c.h.b16 %v14
  %v564 = vunpack.c.l.b16 %v15
  %v565 = vunpack.c.h.b16 %v15
  %v566 = vunpack.c.l.b16 %v16
  %v567 = vunpack.c.h.b16 %v16
  %v568 = vunpack.c.l.b16 %v17
  %v569 = vunpack.c.h.b16 %v17
  %v570 = vunpack.c.l.b16 %v18
  %v571 = vunpack.c.h.b16 %v18
  %v572 = vunpack.c.l.b16 %v19
  %v573 = vunpack.c.h.b16 %v19
  %v574 = vunpack.c.l.b16 %v20
  %v575 = vunpack.c.h.b16 %v20
  %v576 = vunpack.c.l.b16 %v21
  %v577 = vunpack.c.h.b16 %v21
  %v578 = vunpack.c.l.b16 %v22
  %v579 = vunpack.c.h.b16 %v22
  %v580 = vunpack.c.l.b16 %v23
  %v581 = vunpack.c.h.b16 %v23
  %v582 = vunpack.c.l.b16 %v24
  %v583 = vunpack.c.h.b16 %v24
  %v584 = vunpack.c.l.b16 %v25
  %v585 = vunpack.c.h.b16 %v25
  %v586 = vunpack.c.l.b16 %v26
  %v587 = vunpack.c.h.b16 %v26
  %v588 = vunpack.c.l.b16 %v27
  %v589 = vunpack.c.h.b16 %v27
  %v590 = vunpack.c.l.b16 %v28
  %v591 = vunpack.c.h.b16 %v28
  %v592 = vunpack.c.l.b16 %v29
  %v593 = vunpack.c.h.b16 %v29
  %v594 = vunpack.c.l.b16 %v30
  %v595 = vunpack.c.h.b16 %v30
  %v596 = vunpack.c.l.b16 %v31
  %v597 = vunpack.c.h.b16 %v31
  %v598 = vunpack.c.l.b16 %v32
  %v599 = vunpack.c.h.b16 %v32
  %v600 = vunpack.c.l.b16 %v33
  %v601 = vunpack.c.h.b16 %v33
  %v602 = vunpack.c.l.b16 %v34
  %v603 = vunpack.c.h.b16 %v34
  %v604 = vunpack.c.l.b16 %v35
  %v605 = vunpack.c.h.b16 %v35
  %v606 = vunpack.c.l.b16 %v36
  %v607 = vunpack.c.h.b16 %v36
  %v608 = vunpack.c.l.b16 %v37
  %v609 = vunpack.c.h.b16 %v37
  %v610 = vunpack.c.l.b16 %v38
  %v611 = vunpack.c.h.b16 %v38
  %v612 = vunpack.c.l.b16 %v39
  %v613 = vunpack.c.h.b16 %v39
  %v614 = vunpack.c.l.b16 %v40
  %v615 = vunpack.c.h.b16 %v40
  %v616 = vunpack.c.l.b16 %v41
  %v617 = vunpack.c.h.b16 %v41
  %v618 = vunpack.c.l.b16 %v42
  %v619 = vunpack.c.h.b16 %v42
  %v620 = vunpack.c.l.b16 %v43
  %v621 = vunpack.c.h.b16 %v43
  %v622 = vunpack.c.l.b16 %v44
  %v623 = vunpack.c.h.b16 %v44
  %v624 = vunpack.c.l.b16 %v45
  %v625 = vunpack.c.h.b16 %v45
  %v626 = vunpack.c.l.b16 %v46
  %v627 = vunpack.c.h.b16 %v46
  %v628 = vunpack.c.l.b16 %v47
  %v629 = vunpack.c.h.b16 %v47
  %v630 = vunpack.c.l.b16 %v48
  %v631 = vunpack.c.h.b16 %v48
  %v632 = vunpack.c.l.b16 %v49
  %v633 = vunpack.c.h.b16 %v49
  %v634 = vunpack.c.l.b16 %v50
  %v635 = vunpack.c.h.b16 %v50
  %v636 = vunpack.c.l.b16 %v51
  %v637 = vunpack.c.h.b16 %v51
  %v638 = vunpack.c.l.b16 %v52
  %v639 = vunpack.c.h.b16 %v52
  %v640 = vunpack.c.l.b16 %v53
  %v641 = vunpack.c.h.b16 %v53
  %v642 = vunpack.c.l.b16 %v54
  %v643 = vunpack.c.h.b16 %v54
  %v644 = vunpack.c.l.b16 %v55
  %v645 = vunpack.c.h.b16 %v55
  %v646 = vunpack.c.l.b16 %v56
  %v647 = vunpack.c.h.b16 %v56
  %v648 = vunpack.c.l.b16 %v57
  %v649 = vunpack.c.h.b16 %v57
  %v650 = vunpack.c.l.b16 %v58
  %v651 = vunpack.c.h.b16 %v58
  %v652 = vunpack.c.l.b16 %v59
  %v653 = vunpack.c.h.b16 %v59
  %v654 = vunpack.c.l.b16 %v60
  %v655 = vunpack.c.h.b16 %v60
  %v656 = vunpack.c.l.b16 %v61
  %v657 = vunpack.c.h.b16 %v61
  %v658 = vunpack.c.l.b16 %v62
  %v659 = vunpack.c.h.b16 %v62
  %v660 = vunpack.c.l.b16 %v63
  %v661 = vunpack.c.h.b16 %v63
  %v662 = vunpack.c.l.b16 %v64
  %v663 = vunpack.c.h.b16 %v64
  %v664 = vunpack.c.l.b16 %v65
  %v665 = vunpack.c.h.b16 %v65
  %v666 = vunpack.c.l.b16 %v66
  %v667 = vunpack.c.h.b16 %v66
  %v668 = vunpack.c.l.b16 %v67
  %v669 = vunpack.c.h.b16 %v67
  %v670 = vunpack.c.l.b16 %v68
  %v671 = vunpack.c.h.b16 %v68
  %v672 = vunpack.c.l.b16 %v69
  %v673 = vunpack.c.h.b16 %v69
  %v674 = vunpack.c.l.b16 %v70
  %v675 = vunpack.c.h.b16 %v70
  %v676 = vunpack.c.l.b16 %v71
  %v677 = vunpack.c.h.b16 %v71
  %v678 = vunpack.c.l.b16 %v72
  %v679 = vunpack.c.h.b16 %v72
  %v680 = vunpack.c.l.b16 %v73
  %v681 = vunpack.c.h.b16 %v73
  %v682 = vunpack.c.l.b16 %v74
  %v683 = vunpack.c.h.b16 %v74
  %v684 = vunpack.c.l.b16 %v75
  %v685 = vunpack.c.h.b16 %v75
  %v686 = vunpack.c.l.b16 %v76
  %v687 = vunpack.c.h.b16 %v76
  %v688 = vunpack.c.l.b16 %v77
  %v689 = vunpack.c.h.b16 %v77
  %v690 = vunpack.c.l.b16 %v78
  %v691 = vunpack.c.h.b16 %v78
  %v692 = vunpack.c.l.b16 %v79
  %v693 = vunpack.c.h.b16 %v79
  %v694 = vunpack.c.l.b16 %v80
  %v695 = vunpack.c.h.b16 %v80
  %v696 = vunpack.c.l.b16 %v81
  %v697 = vunpack.c.h.b16 %v81
  %v698 = vunpack.c.l.b16 %v82
  %v699 = vunpack.c.h.b16 %v82
  %v700 = vunpack.c.l.b16 %v83
  %v701 = vunpack.c.h.b16 %v83
  %v702 = vunpack.c.l.b16 %v84
  %v703 = vunpack.c.h.b16 %v84
  %v704 = vunpack.c.l.b16 %v85
  %v705 = vunpack.c.h.b16 %v85
  %v706 = vunpack.c.l.b16 %v86
  %v707 = vunpack.c.h.b16 %v86
  %v708 = vunpack.c.l.b16 %v87
  %v709 = vunpack.c.h.b16 %v87
  %v710 = vunpack.c.l.b16 %v88
  %v711 = vunpack.c.h.b16 %v88
  %v712 = vunpack.c.l.b16 %v89
  %v713 = vunpack.c.h.b16 %v89
  %v714 = vunpack.c.l.b16 %v90
  %v715 = vunpack.c.h.b16 %v90
  %v716 = vunpack.c.l.b16 %v91
  %v717 = vunpack.c.h.b16 %v91
  %v718 = vunpack.c.l.b16 %v92
  %v719 = vunpack.c.h.b16 %v92
  %v720 = vunpack.c.l.b16 %v93
  %v721 = vunpack.c.h.b16 %v93
  %v722 = vunpack.c.l.b16 %v94
  %v723 = vunpack.c.h.b16 %v94
  %v724 = vunpack.c.l.b16 %v95
  %v725 = vunpack.c.h.b16 %v95
  %v726 = vunpack.c.l.b16 %v96
  %v727 = vunpack.c.h.b16 %v96
  %v728 = vunpack.c.l.b16 %v97
  %v729 = vunpack.c.h.b16 %v97
  %v730 = vunpack.c.l.b16 %v98
  %v731 = vunpack.c.h.b16 %v98
  %v732 = vunpack.c.l.b16 %v99
  %v733 = vunpack.c.h.b16 %v99
  %v734 = vunpack.c.l.b16 %v100
  %v735 = vunpack.c.h.b16 %v100
  %v736 = vunpack.c.l.b16 %v101
  %v737 = vunpack.c.h.b16 %v101
  %v738 = vunpack.c.l.b16 %v102
  %v739 = vunpack.c.h.b16 %v102
  %v740 = vunpack.c.l.b16 %v103
  %v741 = vunpack.c.h.b16 %v103
  %v742 = vunpack.c.l.b16 %v104
  %v743 = vunpack.c.h.b16 %v104
  %v744 = vunpack.c.l.b16 %v105
  %v745 = vunpack.c.h.b16 %v105
  %v746 = vunpack.c.l.b16 %v106
  %v747 = vunpack.c.h.b16 %v106
  %v748 = vunpack.c.l.b16 %v107
  %v749 = vunpack.c.h.b16 %v107
  %v750 = vunpack.c.l.b16 %v108
  %v751 = vunpack.c.h.b16 %v108
  %v752 = vunpack.c.l.b16 %v109
  %v753 = vunpack.c.h.b16 %v109
  %v754 = vunpack.c.l.b16 %v110
  %v755 = vunpack.c.h.b16 %v110
  %v756 = vunpack.c.l.b16 %v111
  %v757 = vunpack.c.h.b16 %v111
  %v758 = vunpack.c.l.b16 %v112
  %v759 = vunpack.c.h.b16 %v112
  %v760 = vunpack.c.l.b16 %v113
  %v761 = vunpack.c.h.b16 %v113
  %v762 = vunpack.c.l.b16 %v114
  %v763 = vunpack.c.h.b16 %v114
  %v764 = vunpack.c.l.b16 %v115
  %v765 = vunpack.c.h.b16 %v115
  %v766 = vunpack.c.l.b16 %v116
  %v767 = vunpack.c.h.b16 %v116
  %v768 = vunpack.c.l.b16 %v117
  %v769 = vunpack.c.h.b16 %v117
  %v770 = vunpack.c.l.b16 %v118
  %v771 = vunpack.c.h.b16 %v118
  %v772 = vunpack.c.l.b16 %v119
  %v773 = vunpack.c.h.b16 %v119
  %v774 = vunpack.c.l.b16 %v120
  %v775 = vunpack.c.h.b16 %v120
  %v776 = vunpack.c.l.b16 %v121
  %v777 = vunpack.c.h.b16 %v121
  %v778 = vunpack.c.l.b16 %v122
  %v779 = vunpack.c.h.b16 %v122
  %v780 = vunpack.c.l.b16 %v123
  %v781 = vunpack.c.h.b16 %v123
  %v782 = vunpack.c.l.b16 %v124
  %v783 = vunpack.c.h.b16 %v124
  %v784 = vunpack.c.l.b16 %v125
  %v785 = vunpack.c.h.b16 %v125
  %v786 = vunpack.c.l.b16 %v126
  %v787 = vunpack.c.h.b16 %v126
  %v788 = vunpack.c.l.b16 %v127
  %v789 = vunpack.c.h.b16 %v127
  %v790 = vunpack.c.l.b16 %v128
  %v791 = vunpack.c.h.b16 %v128
  %v792 = vunpack.c.l.b16 %v129
  %v793 = vunpack.c.h.b16 %v129
  %v794 = vunpack.c.l.b16 %v130
  %v795 = vunpack.c.h.b16 %v130
  %v796 = vunpack.c.l.b16 %v131
  %v797 = vunpack.c.h.b16 %v131
  %v798 = vunpack.c.l.b16 %v132
  %v799 = vunpack.c.h.b16 %v132
  %v800 = vunpack.c.l.b16 %v133
  %v801 = vunpack.c.h.b16 %v133
  %v802 = vunpack.c.l.b16 %v134
  %v803 = vunpack.c.h.b16 %v134
  %v804 = vunpack.c.l.b16 %v135
  %v805 = vunpack.c.h.b16 %v135
  %v806 = vunpack.c.l.b16 %v136
  %v807 = vunpack.c.h.b16 %v136
  %v808 = vunpack.c.l.b16 %v137
  %v809 = vunpack.c.h.b16 %v137
  %v810 = vunpack.c.l.b16 %v138
  %v811 = vunpack.c.h.b16 %v138
  %v812 = vunpack.c.l.b16 %v139
  %v813 = vunpack.c.h.b16 %v139
  %v814 = vunpack.c.l.b16 %v140
  %v815 = vunpack.c.h.b16 %v140
  %v816 = vunpack.c.l.b16 %v141
  %v817 = vunpack.c.h.b16 %v141
  %v818 = vunpack.c.l.b16 %v142
  %v819 = vunpack.c.h.b16 %v142
  %v820 = vunpack.c.l.b16 %v143
  %v821 = vunpack.c.h.b16 %v143
  %v822 = vunpack.c.l.b16 %v144
  %v823 = vunpack.c.h.b16 %v144
  %v824 = vunpack.c.l.b16 %v145
  %v825 = vunpack.c.h.b16 %v145
  %v826 = vunpack.c.l.b16 %v146
  %v827 = vunpack.c.h.b16 %v146
  %v828 = vunpack.c.l.b16 %v147
  %v829 = vunpack.c.h.b16 %v147
  %v830 = vunpack.c.l.b16 %v148
  %v831 = vunpack.c.h.b16 %v148
  %v832 = vunpack.c.l.b16 %v149
  %v833 = vunpack.c.h.b16 %v149
  %v834 = vunpack.c.l.b16 %v150
  %v835 = vunpack.c.h.b16 %v150
  %v836 = vunpack.c.l.b16 %v151
  %v837 = vunpack.c.h.b16 %v151
  %v838 = vunpack.c.l.b16 %v152
  %v839 = vunpack.c.h.b16 %v152
  %v840 = vunpack.c.l.b16 %v153
  %v841 = vunpack.c.h.b16 %v153
  %v842 = vunpack.c.l.b16 %v154
  %v843 = vunpack.c.h.b16 %v154
  %v844 = vunpack.c.l.b16 %v155
  %v845 = vunpack.c.h.b16 %v155
  %v846 = vunpack.c.l.b16 %v156
  %v847 = vunpack.c.h.b16 %v156
  %v848 = vunpack.c.l.b16 %v157
  %v849 = vunpack.c.h.b16 %v157
  %v850 = vunpack.c.l.b16 %v158
  %v851 = vunpack.c.h.b16 %v158
  %v852 = vunpack.c.l.b16 %v159
  %v853 = vunpack.c.h.b16 %v159
  %v854 = vunpack.c.l.b16 %v160
  %v855 = vunpack.c.h.b16 %v160
  %v856 = vunpack.c.l.b16 %v161
  %v857 = vunpack.c.h.b16 %v161
  %v858 = vunpack.c.l.b16 %v162
  %v859 = vunpack.c.h.b16 %v162
  %v860 = vunpack.c.l.b16 %v163
  %v861 = vunpack.c.h.b16 %v163
  %v862 = vunpack.c.l.b16 %v164
  %v863 = vunpack.c.h.b16 %v164
  %v864 = vunpack.c.l.b16 %v165
  %v865 = vunpack.c.h.b16 %v165
  %v866 = vunpack.c.l.b16 %v166
  %v867 = vunpack.c.h.b16 %v166
  %v868 = vunpack.c.l.b16 %v167
  %v869 = vunpack.c.h.b16 %v167
  %v870 = vunpack.c.l.b16 %v168
  %v871 = vunpack.c.h.b16 %v168
  %v872 = vunpack.c.l.b16 %v169
  %v873 = vunpack.c.h.b16 %v169
  %v874 = vunpack.c.l.b16 %v170
  %v875 = vunpack.c.h.b16 %v170
  %v876 = vunpack.c.l.b16 %v171
  %v877 = vunpack.c.h.b16 %v171
  %v878 = vunpack.c.l.b16 %v172
  %v879 = vunpack.c.h.b16 %v172
  %v880 = vunpack.c.l.b16 %v173
  %v881 = vunpack.c.h.b16 %v173
  %v882 = vunpack.c.l.b16 %v174
  %v883 = vunpack.c.h.b16 %v174
  %v884 = vunpack.c.l.b16 %v175
  %v885 = vunpack.c.h.b16 %v175
  %v886 = vunpack.c.l.b16 %v176
  %v887 = vunpack.c.h.b16 %v176
  %v888 = vunpack.c.l.b16 %v177
  %v889 = vunpack.c.h.b16 %v177
  %v890 = vunpack.c.l.b16 %v178
  %v891 = vunpack.c.h.b16 %v178
  %v892 = vunpack.c.l.b16 %v179
  %v893 = vunpack.c.h.b16 %v179
  %v894 = vunpack.c.l.b16 %v180
  %v895 = vunpack.c.h.b16 %v180
  %v896 = vunpack.c.l.b16 %v181
  %v897 = vunpack.c.h.b16 %v181
  %v898 = vunpack.c.l.b16 %v182
  %v899 = vunpack.c.h.b16 %v182
  %v900 = vunpack.c.l.b16 %v183
  %v901 = vunpack.c.h.b16 %v183
  %v902 = vunpack.c.l.b16 %v184
  %v903 = vunpack.c.h.b16 %v184
  %v904 = vunpack.c.l.b16 %v185
  %v905 = vunpack.c.h.b16 %v185
  %v906 = vunpack.c.l.b16 %v186
  %v907 = vunpack.c.h.b16 %v186
  %v908 = vunpack.c.l.b16 %v187
  %v909 = vunpack.c.h.b16 %v187
  %v910 = vunpack.c.l.b16 %v188
  %v911 = vunpack.c.h.b16 %v188
  %v912 = vunpack.c.l.b16 %v189
  %v913 = vunpack.c.h.b16 %v189
  %v914 = vunpack.c.l.b16 %v190
  %v915 = vunpack.c.h.b16 %v190
  %v916 = vunpack.c.l.b16 %v191
  %v917 = vunpack.c.h.b16 %v191
  %v918 = vunpack.c.l.b16 %v192
  %v919 = vunpack.c.h.b16 %v192
  %v920 = vunpack.c.l.b16 %v193
  %v921 = vunpack.c.h.b16 %v193
  %v922 = vunpack.c.l.b16 %v194
  %v923 = vunpack.c.h.b16 %v194
  %v924 = vunpack.c.l.b16 %v195
  %v925 = vunpack.c.h.b16 %v195
  %v926 = vunpack.c.l.b16 %v196
  %v927 = vunpack.c.h.b16 %v196
  %v928 = vunpack.c.l.b16 %v197
  %v929 = vunpack.c.h.b16 %v197
  %v930 = vunpack.c.l.b16 %v198
  %v931 = vunpack.c.h.b16 %v198
  %v932 = vunpack.c.l.b16 %v199
  %v933 = vunpack.c.h.b16 %v199
  %v934 = vunpack.c.l.b16 %v200
  %v935 = vunpack.c.h.b16 %v200
  %v936 = vunpack.c.l.b16 %v201
  %v937 = vunpack.c.h.b16 %v201
  %v938 = vunpack.c.l.b16 %v202
  %v939 = vunpack.c.h.b16 %v202
  %v940 = vunpack.c.l.b16 %v203
  %v941 = vunpack.c.h.b16 %v203
  %v942 = vunpack.c.l.b16 %v204
  %v943 = vunpack.c.h.b16 %v204
  %v944 = vunpack.c.l.b16 %v205
  %v945 = vunpack.c.h.b16 %v205
  %v946 = vunpack.c.l.b16 %v206
  %v947 = vunpack.c.h.b16 %v206
  %v948 = vunpack.c.l.b16 %v207
  %v949 = vunpack.c.h.b16 %v207
  %v950 = vunpack.c.l.b16 %v208
  %v951 = vunpack.c.h.b16 %v208
  %v952 = vunpack.c.l.b16 %v209
  %v953 = vunpack.c.h.b16 %v209
  %v954 = vunpack.c.l.b16 %v210
  %v955 = vunpack.c.h.b16 %v210
  %v956 = vunpack.c.l.b16 %v211
  %v957 = vunpack.c.h.b16 %v211
  %v958 = vunpack.c.l.b16 %v212
  %v959 = vunpack.c.h.b16 %v212
  %v960 = vunpack.c.l.b16 %v213
  %v961 = vunpack.c.h.b16 %v213
  %v962 = vunpack.c.l.b16 %v214
  %v963 = vunpack.c.h.b16 %v214
  %v964 = vunpack.c.l.b16 %v215
  %v965 = vunpack.c.h.b16 %v215
  %v966 = vunpack.c.l.b16 %v216
  %v967 = vunpack.c.h.b16 %v216
  %v968 = vunpack.c.l.b16 %v217
  %v969 = vunpack.c.h.b16 %v217
  %v970 = vunpack.c.l.b16 %v218
  %v971 = vunpack.c.h.b16 %v218
  %v972 = vunpack.c.l.b16 %v219
  %v973 = vunpack.c.h.b16 %v219
  %v974 = vunpack.c.l.b16 %v220
  %v975 = vunpack.c.h.b16 %v220
  %v976 = vunpack.c.l.b16 %v221
  %v977 = vunpack.c.h.b16 %v221
  %v978 = vunpack.c.l.b16 %v222
  %v979 = vunpack.c.h.b16 %v222
  %v980 = vunpack.c.l.b16 %v223
  %v981 = vunpack.c.h.b16 %v223
  %v982 = vunpack.c.l.b16 %v224
  %v983 = vunpack.c.h.b16 %v224
  %v984 = vunpack.c.l.b16 %v225
  %v985 = vunpack.c.h.b16 %v225
  %v986 = vunpack.c.l.b16 %v226
  %v987 = vunpack.c.h.b16 %v226
  %v988 = vunpack.c.l.b16 %v227
  %v989 = vunpack.c.h.b16 %v227
  %v990 = vunpack.c.l.b16 %v228
  %v991 = vunpack.c.h.b16 %v228
  %v992 = vunpack.c.l.b16 %v229
  %v993 = vunpack.c.h.b16 %v229
  %v994 = vunpack.c.l.b16 %v230
  %v995 = vunpack.c.h.b16 %v230
  %v996 = vunpack.c.l.b16 %v231
  %v997 = vunpack.c.h.b16 %v231
  %v998 = vunpack.c.l.b16 %v232
  %v999 = vunpack.c.h.b16 %v232
  %v1000 = vunpack.c.l.b16 %v233
  %v1001 = vunpack.c.h.b16 %v233
  %v1002 = vunpack.c.l.b16 %v234
  %v1003 = vunpack.c.h.b16 %v234
  %v1004 = vunpack.c.l.b16 %v235
  %v1005 = vunpack.c.h.b16 %v235
  %v1006 = vunpack.c.l.b16 %v236
  %v1007 = vunpack.c.h.b16 %v236
  %v1008 = vunpack.c.l.b16 %v237
  %v1009 = vunpack.c.h.b16 %v237
  %v1010 = vunpack.c.l.b16 %v238
  %v1011 = vunpack.c.h.b16 %v238
  %v1012 = vunpack.c.l.b16 %v239
  %v1013 = vunpack.c.h.b16 %v239
  %v1014 = vunpack.c.l.b16 %v240
  %v1015 = vunpack.c.h.b16 %v240
  %v1016 = vunpack.c.l.b16 %v241
  %v1017 = vunpack.c.h.b16 %v241
  %v1018 = vunpack.c.l.b16 %v242
  %v1019 = vunpack.c.h.b16 %v242
  %v1020 = vunpack.c.l.b16 %v243
  %v1021 = vunpack.c.h.b16 %v243
  %v1022 = vunpack.c.l.b16 %v244
  %v1023 = vunpack.c.h.b16 %v244
  %v1024 = vunpack.c.l.b16 %v245
  %v1025 = vunpack.c.h.b16 %v245
  %v1026 = vunpack.c.l.b16 %v246
  %v1027 = vunpack.c.h.b16 %v246
  %v1028 = vunpack.c.l.b16 %v247
  %v1029 = vunpack.c.h.b16 %v247
  %v1030 = vunpack.c.l.b16 %v248
  %v1031 = vunpack.c.h.b16 %v248
  %v1032 = vunpack.c.l.b16 %v249
  %v1033 = vunpack.c.h.b16 %v249
  %v1034 = vunpack.c.l.b16 %v250
  %v1035 = vunpack.c.h.b16 %v250
  %v1036 = vunpack.c.l.b16 %v251
  %v1037 = vunpack.c.h.b16 %v251
  %v1038 = vunpack.c.l.b16 %v252
  %v1039 = vunpack.c.h.b16 %v252
  %v1040 = vunpack.c.l.b16 %v253
  %v1041 = vunpack.c.h.b16 %v253
  %v1042 = vunpack.c.l.b16 %v254
  %v1043 = vunpack.c.h.b16 %v254
  %v1044 = vunpack.c.l.b16 %v255
  %v1045 = vunpack.c.h.b16 %v255
  %v1046 = vunpack.c.l.b16 %v256
  %v1047 = vunpack.c.h.b16 %v256
  %v1048 = vunpack.c.l.b16 %v257
  %v1049 = vunpack.c.h.b16 %v257
  %v1050 = vunpack.c.l.b16 %v258
  %v1051 = vunpack.c.h.b16 %v258
  %v1052 = vunpack.c.l.b16 %v259
  %v1053 = vunpack.c.h.b16 %v259
  %v1054 = vunpack.c.l.b16 %v260
  %v1055 = vunpack.c.h.b16 %v260
  %v1056 = vunpack.c.l.b16 %v261
  %v1057 = vunpack.c.h.b16 %v261
  %v1058 = vunpack.c.l.b16 %v262
  %v1059 = vunpack.c.h.b16 %v262
  %v1060 = vunpack.c.l.b16 %v263
  %v1061 = vunpack.c.h.b16 %v263
  %v1062 = vunpack.c.l.b16 %v264
  %v1063 = vunpack.c.h.b16 %v264
  %v1064 = vunpack.c.l.b16 %v265
  %v1065 = vunpack.c.h.b16 %v265
  %v1066 = vunpack.c.l.b16 %v266
  %v1067 = vunpack.c.h.b16 %v266
  %v1068 = vunpack.c.l.b16 %v267
  %v1069 = vunpack.c.h.b16 %v267
  %v1070 = vunpack.c.l.b16 %v268
  %v1071 = vunpack.c.h.b16 %v268
  %v1072 = vunpack.c.l.b16 %v269
  %v1073 = vunpack.c.h.b16 %v269
  %v1074 = vpack.c.b16 %v564, %v562
  %v1075 = vpack.c.b16 %v565, %v563
  %v1076 = vpack.c.b16 %v568, %v566
  %v1077 = vpack.c.b16 %v569, %v567
  %v1078 = vpack.c.b16 %v572, %v570
  %v1079 = vpack.c.b16 %v573, %v571
  %v1080 = vpack.c.b16 %v576, %v574
  %v1081 = vpack.c.b16 %v577, %v575
  %v1082 = vpack.c.b16 %v580, %v578
  %v1083 = vpack.c.b16 %v581, %v579
  %v1084 = vpack.c.b16 %v584, %v582
  %v1085 = vpack.c.b16 %v585, %v583
  %v1086 = vpack.c.b16 %v588, %v586
  %v1087 = vpack.c.b16 %v589, %v587
  %v1088 = vpack.c.b16 %v592, %v590
  %v1089 = vpack.c.b16 %v593, %v591
  %v1090 = vpack.c.b16 %v596, %v594
  %v1091 = vpack.c.b16 %v597, %v595
  %v1092 = vpack.c.b16 %v600, %v598
  %v1093 = vpack.c.b16 %v601, %v599
  %v1094 = vpack.c.b16 %v604, %v602
  %v1095 = vpack.c.b16 %v605, %v603
  %v1096 = vpack.c.b16 %v608, %v606
  %v1097 = vpack.c.b16 %v609, %v607
  %v1098 = vpack.c.b16 %v612, %v610
  %v1099 = vpack.c.b16 %v613, %v611
  %v1100 = vpack.c.b16 %v616, %v614
  %v1101 = vpack.c.b16 %v617, %v615
  %v1102 = vpack.c.b16 %v620, %v618
  %v1103 = vpack.c.b16 %v621, %v619
  %v1104 = vpack.c.b16 %v624, %v622
  %v1105 = vpack.c.b16 %v625, %v623
  %v1106 = vpack.c.b16 %v628, %v626
  %v1107 = vpack.c.b16 %v629, %v627
  %v1108 = vpack.c.b16 %v632, %v630
  %v1109 = vpack.c.b16 %v633, %v631
  %v1110 = vpack.c.b16 %v636, %v634
  %v1111 = vpack.c.b16 %v637, %v635
  %v1112 = vpack.c.b16 %v640, %v638
  %v1113 = vpack.c.b16 %v641, %v639
  %v1114 = vpack.c.b16 %v644, %v642
  %v1115 = vpack.c.b16 %v645, %v643
  %v1116 = vpack.c.b16 %v648, %v646
  %v1117 = vpack.c.b16 %v649, %v647
  %v1118 = vpack.c.b16 %v652, %v650
  %v1119 = vpack.c.b16 %v653, %v651
  %v1120 = vpack.c.b16 %v656, %v654
  %v1121 = vpack.c.b16 %v657, %v655
  %v1122 = vpack.c.b16 %v660, %v658
  %v1123 = vpack.c.b16 %v661, %v659
  %v1124 = vpack.c.b16 %v664, %v662
  %v1125 = vpack.c.b16 %v665, %v663
  %v1126 = vpack.c.b16 %v668, %v666
  %v1127 = vpack.c.b16 %v669, %v667
  %v1128 = vpack.c.b16 %v672, %v670
  %v1129 = vpack.c.b16 %v673, %v671
  %v1130 = vpack.c.b16 %v676, %v674
  %v1131 = vpack.c.b16 %v677, %v675
  %v1132 = vpack.c.b16 %v680, %v678
  %v1133 = vpack.c.b16 %v681, %v679
  %v1134 = vpack.c.b16 %v684, %v682
  %v1135 = vpack.c.b16 %v685, %v683
  %v1136 = vpack.c.b16 %v688, %v686
  %v1137 = vpack.c.b16 %v689, %v687
  %v1138 = vpack.c.b16 %v692, %v690
  %v1139 = vpack.c.b16 %v693, %v691
  %v1140 = vpack.c.b16 %v696, %v694
  %v1141 = vpack.c.b16 %v697, %v695
  %v1142 = vpack.c.b16 %v700, %v698
  %v1143 = vpack.c.b16 %v701, %v699
  %v1144 = vpack.c.b16 %v704, %v702
  %v1145 = vpack.c.b16 %v705, %v703
  %v1146 = vpack.c.b16 %v708, %v706
  %v1147 = vpack.c.b16 %v709, %v707
  %v1148 = vpack.c.b16 %v712, %v710
  %v1149 = vpack.c.b16 %v713, %v711
  %v1150 = vpack.c.b16 %v716, %v714
  %v1151 = vpack.c.b16 %v717, %v715
  %v1152 = vpack.c.b16 %v720, %v718
  %v1153 = vpack.c.b16 %v721, %v719
  %v1154 = vpack.c.b16 %v724, %v722
  %v1155 = vpack.c.b16 %v725, %v723
  %v1156 = vpack.c.b16 %v728, %v726
  %v1157 = vpack.c.b16 %v729, %v727
  %v1158 = vpack.c.b16 %v732, %v730
  %v1159 = vpack.c.b16 %v733, %v731
  %v1160 = vpack.c.b16 %v736, %v734
  %v1161 = vpack.c.b16 %v737, %v735
  %v1162 = vpack.c.b16 %v740, %v738
  %v1163 = vpack.c.b16 %v741, %v739
  %v1164 = vpack.c.b16 %v744, %v742
  %v1165 = vpack.c.b16 %v745, %v743
  %v1166 = vpack.c.b16 %v748, %v746
  %v1167 = vpack.c.b16 %v749, %v747
  %v1168 = vpack.c.b16 %v752, %v750
  %v1169 = vpack.c.b16 %v753, %v751
  %v1170 = vpack.c.b16 %v756, %v754
  %v1171 = vpack.c.b16 %v757, %v755
  %v1172 = vpack.c.b16 %v760, %v758
  %v1173 = vpack.c.b16 %v761, %v759
  %v1174 = vpack.c.b16 %v764, %v762
  %v1175 = vpack.c.b16 %v765, %v763
  %v1176 = vpack.c.b16 %v768, %v766
  %v1177 = vpack.c.b16 %v769, %v767
  %v1178 = vpack.c.b16 %v772, %v770
  %v1179 = vpack.c.b16 %v773, %v771
  %v1180 = vpack.c.b16 %v776, %v774
  %v1181 = vpack.c.b16 %v777, %v775
  %v1182 = vpack.c.b16 %v780, %v778
  %v1183 = vpack.c.b16 %v781, %v779
  %v1184 = vpack.c.b16 %v784, %v782
  %v1185 = vpack.c.b16 %v785, %v783
  %v1186 = vpack.c.b16 %v788, %v786
  %v1187 = vpack.c.b16 %v789, %v787
  %v1188 = vpack.c.b16 %v792, %v790
  %v1189 = vpack.c.b16 %v793, %v791
  %v1190 = vpack.c.b16 %v796, %v794
  %v1191 = vpack.c.b16 %v797, %v795
  %v1192 = vpack.c.b16 %v800, %v798
  %v1193 = vpack.c.b16 %v801, %v799
  %v1194 = vpack.c.b16 %v804, %v802
  %v1195 = vpack.c.b16 %v805, %v803
  %v1196 = vpack.c.b16 %v808, %v806
  %v1197 = vpack.c.b16 %v809, %v807
  %v1198 = vpack.c.b16 %v812, %v810
  %v1199 = vpack.c.b16 %v813, %v811
  %v1200 = vpack.c.b16 %v816, %v814
  %v1201 = vpack.c.b16 %v817, %v815
  %v1202 = vpack.c.b16 %v820, %v818
  %v1203 = vpack.c.b16 %v821, %v819
  %v1204 = vpack.c.b16 %v824, %v822
  %v1205 = vpack.c.b16 %v825, %v823
  %v1206 = vpack.c.b16 %v828, %v826
  %v1207 = vpack.c.b16 %v829, %v827
  %v1208 = vpack.c.b16 %v832, %v830
  %v1209 = vpack.c.b16 %v833, %v831
  %v1210 = vpack.c.b16 %v836, %v834
  %v1211 = vpack.c.b16 %v837, %v835
  %v1212 = vpack.c.b16 %v840, %v838
  %v1213 = vpack.c.b16 %v841, %v839
  %v1214 = vpack.c.b16 %v844, %v842
  %v1215 = vpack.c.b16 %v845, %v843
  %v1216 = vpack.c.b16 %v848, %v846
  %v1217 = vpack.c.b16 %v849, %v847
  %v1218 = vpack.c.b16 %v852, %v850
  %v1219 = vpack.c.b16 %v853, %v851
  %v1220 = vpack.c.b16 %v856, %v854
  %v1221 = vpack.c.b16 %v857, %v855
  %v1222 = vpack.c.b16 %v860, %v858
  %v1223 = vpack.c.b16 %v861, %v859
  %v1224 = vpack.c.b16 %v864, %v862
  %v1225 = vpack.c.b16 %v865, %v863
  %v1226 = vpack.c.b16 %v868, %v866
  %v1227 = vpack.c.b16 %v869, %v867
  %v1228 = vpack.c.b16 %v872, %v870
  %v1229 = vpack.c.b16 %v873, %v871
  %v1230 = vpack.c.b16 %v876, %v874
  %v1231 = vpack.c.b16 %v877, %v875
  %v1232 = vpack.c.b16 %v880, %v878
  %v1233 = vpack.c.b16 %v881, %v879
  %v1234 = vpack.c.b16 %v884, %v882
  %v1235 = vpack.c.b16 %v885, %v883
  %v1236 = vpack.c.b16 %v888, %v886
  %v1237 = vpack.c.b16 %v889, %v887
  %v1238 = vpack.c.b16 %v892, %v890
  %v1239 = vpack.c.b16 %v893, %v891
  %v1240 = vpack.c.b16 %v896, %v894
  %v1241 = vpack.c.b16 %v897, %v895
  %v1242 = vpack.c.b16 %v900, %v898
  %v1243 = vpack.c.b16 %v901, %v899
  %v1244 = vpack.c.b16 %v904, %v902
  %v1245 = vpack.c.b16 %v905, %v903
  %v1246 = vpack.c.b16 %v908, %v906
  %v1247 = vpack.c.b16 %v909, %v907
  %v1248 = vpack.c.b16 %v912, %v910
  %v1249 = vpack.c.b16 %v913, %v911
  %v1250 = vpack.c.b16 %v916, %v914
  %v1251 = vpack.c.b16 %v917, %v915
  %v1252 = vpack.c.b16 %v920, %v918
  %v1253 = vpack.c.b16 %v921, %v919
  %v1254 = vpack.c.b16 %v924, %v922
  %v1255 = vpack.c.b16 %v925, %v923
  %v1256 = vpack.c.b16 %v928, %v926
  %v1257 = vpack.c.b16 %v929, %v927
  %v1258 = vpack.c.b16 %v932, %v930
  %v1259 = vpack.c.b16 %v933, %v931
  %v1260 = vpack.c.b16 %v936, %v934
  %v1261 = vpack.c.b16 %v937, %v935
  %v1262 = vpack.c.b16 %v940, %v938
  %v1263 = vpack.c.b16 %v941, %v939
  %v1264 = vpack.c.b16 %v944, %v942
  %v1265 = vpack.c.b16 %v945, %v943
  %v1266 = vpack.c.b16 %v948, %v946
  %v1267 = vpack.c.b16 %v949, %v947
  %v1268 = vpack.c.b16 %v952, %v950
  %v1269 = vpack.c.b16 %v953, %v951
  %v1270 = vpack.c.b16 %v956, %v954
  %v1271 = vpack.c.b16 %v957, %v955
  %v1272 = vpack.c.b16 %v960, %v958
  %v1273 = vpack.c.b16 %v961, %v959
  %v1274 = vpack.c.b16 %v964, %v962
  %v1275 = vpack.c.b16 %v965, %v963
  %v1276 = vpack.c.b16 %v968, %v966
  %v1277 = vpack.c.b16 %v969, %v967
  %v1278 = vpack.c.b16 %v972, %v970
  %v1279 = vpack.c.b16 %v973, %v971
  %v1280 = vpack.c.b16 %v976, %v974
  %v1281 = vpack.c.b16 %v977, %v975
  %v1282 = vpack.c.b16 %v980, %v978
  %v1283 = vpack.c.b16 %v981, %v979
  %v1284 = vpack.c.b16 %v984, %v982
  %v1285 = vpack.c.b16 %v985, %v983
  %v1286 = vpack.c.b16 %v988, %v986
  %v1287 = vpack.c.b16 %v989, %v987
  %v1288 = vpack.c.b16 %v992, %v990
  %v1289 = vpack.c.b16 %v993, %v991
  %v1290 = vpack.c.b16 %v996, %v994
  %v1291 = vpack.c.b16 %v997, %v995
  %v1292 = vpack.c.b16 %v1000, %v998
  %v1293 = vpack.c.b16 %v1001, %v999
  %v1294 = vpack.c.b16 %v1004, %v1002
  %v1295 = vpack.c.b16 %v1005, %v1003
  %v1296 = vpack.c.b16 %v1008, %v1006
  %v1297 = vpack.c.b16 %v1009, %v1007
  %v1298 = vpack.c.b16 %v1012, %v1010
  %v1299 = vpack.c.b16 %v1013, %v1011
  %v1300 = vpack.c.b16 %v1016, %v1014
  %v1301 = vpack.c.b16 %v1017, %v1015
  %v1302 = vpack.c.b16 %v1020, %v1018
  %v1303 = vpack.c.b16 %v1021, %v1019
  %v1304 = vpack.c.b16 %v1024, %v1022
  %v1305 = vpack.c.b16 %v1025, %v1023
  %v1306 = vpack.c.b16 %v1028, %v1026
  %v1307 = vpack.c.b16 %v1029, %v1027
  %v1308 = vpack.c.b16 %v1032, %v1030
  %v1309 = vpack.c.b16 %v1033, %v1031
  %v1310 = vpack.c.b16 %v1036, %v1034
  %v1311 = vpack.c.b16 %v1037, %v1035
  %v1312 = vpack.c.b16 %v1040, %v1038
  %v1313 = vpack.c.b16 %v1041, %v1039
  %v1314 = vpack.c.b16 %v1044, %v1042
  %v1315 = vpack.c.b16 %v1045, %v1043
  %v1316 = vpack.c.b16 %v1048, %v1046
  %v1317 = vpack.c.b16 %v1049, %v1047
  %v1318 = vpack.c.b16 %v1052, %v1050
  %v1319 = vpack.c.b16 %v1053, %v1051
  %v1320 = vpack.c.b16 %v1056, %v1054
  %v1321 = vpack.c.b16 %v1057, %v1055
  %v1322 = vpack.c.b16 %v1060, %v1058
  %v1323 = vpack.c.b16 %v1061, %v1059
  %v1324 = vpack.c.b16 %v1064, %v1062
  %v1325 = vpack.c.b16 %v1065, %v1063
  %v1326 = vpack.c.b16 %v1068, %v1066
  %v1327 = vpack.c.b16 %v1069, %v1067
  %v1328 = vpack.c.b16 %v1072, %v1070
  %v1329 = vpack.c.b16 %v1073, %v1071
  %v1618 = vunpack.c.l.b16 %v270
  %v1619 = vunpack.c.l.b16 %v271
  %v1620 = vunpack.c.l.b16 %v272
  %v1621 = vunpack.c.l.b16 %v273
  %v1622 = vunpack.c.l.b16 %v274
  %v1623 = vunpack.c.l.b16 %v275
  %v1624 = vunpack.c.l.b16 %v276
  %v1625 = vunpack.c.l.b16 %v277
  %v1626 = vunpack.c.l.b16 %v278
  %v1627 = vunpack.c.l.b16 %v279
  %v1628 = vunpack.c.l.b16 %v280
  %v1629 = vunpack.c.l.b16 %v281
  %v1630 = vunpack.c.l.b16 %v282
  %v1631 = vunpack.c.l.b16 %v283
  %v1632 = vunpack.c.l.b16 %v284
  %v1633 = vunpack.c.l.b16 %v285
  %v1634 = vunpack.c.l.b16 %v286
  %v1635 = vunpack.c.l.b16 %v287
  %v1636 = vunpack.c.l.b16 %v288
  %v1637 = vunpack.c.l.b16 %v289
  %v1638 = vunpack.c.l.b16 %v290
  %v1639 = vunpack.c.l.b16 %v291
  %v1640 = vunpack.c.l.b16 %v292
  %v1641 = vunpack.c.l.b16 %v293
  %v1642 = vunpack.c.l.b16 %v294
  %v1643 = vunpack.c.l.b16 %v295
  %v1644 = vunpack.c.l.b16 %v296
  %v1645 = vunpack.c.l.b16 %v297
  %v1646 = vunpack.c.l.b16 %v298
  %v1647 = vunpack.c.l.b16 %v299
  %v1648 = vunpack.c.l.b16 %v300
  %v1649 = vunpack.c.l.b16 %v301
  %v1650 = vpack.c.b16 %v1619, %v1618
  %v1651 = vpack.c.b16 %v1621, %v1620
  %v1652 = vpack.c.b16 %v1623, %v1622
  %v1653 = vpack.c.b16 %v1625, %v1624
  %v1654 = vpack.c.b16 %v1627, %v1626
  %v1655 = vpack.c.b16 %v1629, %v1628
  %v1656 = vpack.c.b16 %v1631, %v1630
  %v1657 = vpack.c.b16 %v1633, %v1632
  %v1658 = vpack.c.b16 %v1635, %v1634
  %v1659 = vpack.c.b16 %v1637, %v1636
  %v1660 = vpack.c.b16 %v1639, %v1638
  %v1661 = vpack.c.b16 %v1641, %v1640
  %v1662 = vpack.c.b16 %v1643, %v1642
  %v1663 = vpack.c.b16 %v1645, %v1644
  %v1664 = vpack.c.b16 %v1647, %v1646
  %v1665 = vpack.c.b16 %v1649, %v1648
  %1682 = vmatpush.bf16.msra.mxu0 %v1657
  %1683 = vmatpush.bf16.msra.mxu0 %v1656
  %1684 = vmatpush.bf16.msra.mxu0 %v1655
  %1685 = vmatpush.bf16.msra.mxu0 %v1654
  %1686 = vmatpush.bf16.msra.mxu0 %v1653
  %1687 = vmatpush.bf16.msra.mxu0 %v1652
  %1688 = vmatpush.bf16.msra.mxu0 %v1651
  %1689 = vmatpush.bf16.msra.mxu0 %v1650
  %1690 = vmatmul.bf16.gmra.mxu0 %v1074
  %v1691 = vpop.f32.mrf.mxu0
  %v1692 = vadd.f32 %v304, %v1691
  %v1693 = vpop.f32.mrf.mxu0
  %v1694 = vadd.f32 %v304, %v1693
  %1695 = vmatmul.bf16.gmra.mxu0 %v1076
  %v1696 = vpop.f32.mrf.mxu0
  %v1697 = vadd.f32 %v304, %v1696
  %v1698 = vpop.f32.mrf.mxu0
  %v1699 = vadd.f32 %v304, %v1698
  %1700 = vmatmul.bf16.gmra.mxu0 %v1078
  %v1701 = vpop.f32.mrf.mxu0
  %v1702 = vadd.f32 %v304, %v1701
  %v1703 = vpop.f32.mrf.mxu0
  %v1704 = vadd.f32 %v304, %v1703
  %1705 = vmatmul.bf16.gmra.mxu0 %v1080
  %v1706 = vpop.f32.mrf.mxu0
  %v1707 = vadd.f32 %v304, %v1706
  %v1708 = vpop.f32.mrf.mxu0
  %v1709 = vadd.f32 %v304, %v1708
  %1710 = vmatmul.bf16.gmra.mxu0 %v1082
  %v1711 = vpop.f32.mrf.mxu0
  %v1712 = vadd.f32 %v304, %v1711
  %v1713 = vpop.f32.mrf.mxu0
  %v1714 = vadd.f32 %v304, %v1713
  %1715 = vmatmul.bf16.gmra.mxu0 %v1084
  %v1716 = vpop.f32.mrf.mxu0
  %v1717 = vadd.f32 %v304, %v1716
  %v1718 = vpop.f32.mrf.mxu0
  %v1719 = vadd.f32 %v304, %v1718
  %1720 = vmatmul.bf16.gmra.mxu0 %v1086
  %v1721 = vpop.f32.mrf.mxu0
  %v1722 = vadd.f32 %v304, %v1721
  %v1723 = vpop.f32.mrf.mxu0
  %v1724 = vadd.f32 %v304, %v1723
  %1725 = vmatmul.bf16.gmra.mxu0 %v1088
  %v1726 = vpop.f32.mrf.mxu0
  %v1727 = vadd.f32 %v304, %v1726
  %v1728 = vpop.f32.mrf.mxu0
  %v1729 = vadd.f32 %v304, %v1728
  %1730 = vmatmul.bf16.gmra.mxu0 %v1090
  %v1731 = vpop.f32.mrf.mxu0
  %v1732 = vadd.f32 %v304, %v1731
  %v1733 = vpop.f32.mrf.mxu0
  %v1734 = vadd.f32 %v304, %v1733
  %1735 = vmatmul.bf16.gmra.mxu0 %v1092
  %v1736 = vpop.f32.mrf.mxu0
  %v1737 = vadd.f32 %v304, %v1736
  %v1738 = vpop.f32.mrf.mxu0
  %v1739 = vadd.f32 %v304, %v1738
  %1740 = vmatmul.bf16.gmra.mxu0 %v1094
  %v1741 = vpop.f32.mrf.mxu0
  %v1742 = vadd.f32 %v304, %v1741
  %v1743 = vpop.f32.mrf.mxu0
  %v1744 = vadd.f32 %v304, %v1743
  %1745 = vmatmul.bf16.gmra.mxu0 %v1096
  %v1746 = vpop.f32.mrf.mxu0
  %v1747 = vadd.f32 %v304, %v1746
  %v1748 = vpop.f32.mrf.mxu0
  %v1749 = vadd.f32 %v304, %v1748
  %1750 = vmatmul.bf16.gmra.mxu0 %v1098
  %v1751 = vpop.f32.mrf.mxu0
  %v1752 = vadd.f32 %v304, %v1751
  %v1753 = vpop.f32.mrf.mxu0
  %v1754 = vadd.f32 %v304, %v1753
  %1755 = vmatmul.bf16.gmra.mxu0 %v1100
  %v1756 = vpop.f32.mrf.mxu0
  %v1757 = vadd.f32 %v304, %v1756
  %v1758 = vpop.f32.mrf.mxu0
  %v1759 = vadd.f32 %v304, %v1758
  %1760 = vmatmul.bf16.gmra.mxu0 %v1102
  %v1761 = vpop.f32.mrf.mxu0
  %v1762 = vadd.f32 %v304, %v1761
  %v1763 = vpop.f32.mrf.mxu0
  %v1764 = vadd.f32 %v304, %v1763
  %1765 = vmatmul.bf16.gmra.mxu0 %v1104
  %v1766 = vpop.f32.mrf.mxu0
  %v1767 = vadd.f32 %v304, %v1766
  %v1768 = vpop.f32.mrf.mxu0
  %v1769 = vadd.f32 %v304, %v1768
  %1770 = vmatmul.bf16.gmra.mxu0 %v1106
  %v1771 = vpop.f32.mrf.mxu0
  %v1772 = vadd.f32 %v304, %v1771
  %v1773 = vpop.f32.mrf.mxu0
  %v1774 = vadd.f32 %v304, %v1773
  %1775 = vmatmul.bf16.gmra.mxu0 %v1108
  %v1776 = vpop.f32.mrf.mxu0
  %v1777 = vadd.f32 %v304, %v1776
  %v1778 = vpop.f32.mrf.mxu0
  %v1779 = vadd.f32 %v304, %v1778
  %1780 = vmatmul.bf16.gmra.mxu0 %v1110
  %v1781 = vpop.f32.mrf.mxu0
  %v1782 = vadd.f32 %v304, %v1781
  %v1783 = vpop.f32.mrf.mxu0
  %v1784 = vadd.f32 %v304, %v1783
  %1785 = vmatmul.bf16.gmra.mxu0 %v1112
  %v1786 = vpop.f32.mrf.mxu0
  %v1787 = vadd.f32 %v304, %v1786
  %v1788 = vpop.f32.mrf.mxu0
  %v1789 = vadd.f32 %v304, %v1788
  %1790 = vmatmul.bf16.gmra.mxu0 %v1114
  %v1791 = vpop.f32.mrf.mxu0
  %v1792 = vadd.f32 %v304, %v1791
  %v1793 = vpop.f32.mrf.mxu0
  %v1794 = vadd.f32 %v304, %v1793
  %1795 = vmatmul.bf16.gmra.mxu0 %v1116
  %v1796 = vpop.f32.mrf.mxu0
  %v1797 = vadd.f32 %v304, %v1796
  %v1798 = vpop.f32.mrf.mxu0
  %v1799 = vadd.f32 %v304, %v1798
  %1800 = vmatmul.bf16.gmra.mxu0 %v1118
  %v1801 = vpop.f32.mrf.mxu0
  %v1802 = vadd.f32 %v304, %v1801
  %v1803 = vpop.f32.mrf.mxu0
  %v1804 = vadd.f32 %v304, %v1803
  %1805 = vmatmul.bf16.gmra.mxu0 %v1120
  %v1806 = vpop.f32.mrf.mxu0
  %v1807 = vadd.f32 %v304, %v1806
  %v1808 = vpop.f32.mrf.mxu0
  %v1809 = vadd.f32 %v304, %v1808
  %1810 = vmatmul.bf16.gmra.mxu0 %v1122
  %v1811 = vpop.f32.mrf.mxu0
  %v1812 = vadd.f32 %v304, %v1811
  %v1813 = vpop.f32.mrf.mxu0
  %v1814 = vadd.f32 %v304, %v1813
  %1815 = vmatmul.bf16.gmra.mxu0 %v1124
  %v1816 = vpop.f32.mrf.mxu0
  %v1817 = vadd.f32 %v304, %v1816
  %v1818 = vpop.f32.mrf.mxu0
  %v1819 = vadd.f32 %v304, %v1818
  %1820 = vmatmul.bf16.gmra.mxu0 %v1126
  %v1821 = vpop.f32.mrf.mxu0
  %v1822 = vadd.f32 %v304, %v1821
  %v1823 = vpop.f32.mrf.mxu0
  %v1824 = vadd.f32 %v304, %v1823
  %1825 = vmatmul.bf16.gmra.mxu0 %v1128
  %v1826 = vpop.f32.mrf.mxu0
  %v1827 = vadd.f32 %v304, %v1826
  %v1828 = vpop.f32.mrf.mxu0
  %v1829 = vadd.f32 %v304, %v1828
  %1830 = vmatmul.bf16.gmra.mxu0 %v1130
  %v1831 = vpop.f32.mrf.mxu0
  %v1832 = vadd.f32 %v304, %v1831
  %v1833 = vpop.f32.mrf.mxu0
  %v1834 = vadd.f32 %v304, %v1833
  %1835 = vmatmul.bf16.gmra.mxu0 %v1132
  %v1836 = vpop.f32.mrf.mxu0
  %v1837 = vadd.f32 %v304, %v1836
  %v1838 = vpop.f32.mrf.mxu0
  %v1839 = vadd.f32 %v304, %v1838
  %1840 = vmatmul.bf16.gmra.mxu0 %v1134
  %v1841 = vpop.f32.mrf.mxu0
  %v1842 = vadd.f32 %v304, %v1841
  %v1843 = vpop.f32.mrf.mxu0
  %v1844 = vadd.f32 %v304, %v1843
  %1845 = vmatmul.bf16.gmra.mxu0 %v1136
  %v1846 = vpop.f32.mrf.mxu0
  %v1847 = vadd.f32 %v304, %v1846
  %v1848 = vpop.f32.mrf.mxu0
  %v1849 = vadd.f32 %v304, %v1848
  %1850 = vmatmul.bf16.gmra.mxu0 %v1138
  %v1851 = vpop.f32.mrf.mxu0
  %v1852 = vadd.f32 %v304, %v1851
  %v1853 = vpop.f32.mrf.mxu0
  %v1854 = vadd.f32 %v304, %v1853
  %1855 = vmatmul.bf16.gmra.mxu0 %v1140
  %v1856 = vpop.f32.mrf.mxu0
  %v1857 = vadd.f32 %v304, %v1856
  %v1858 = vpop.f32.mrf.mxu0
  %v1859 = vadd.f32 %v304, %v1858
  %1860 = vmatmul.bf16.gmra.mxu0 %v1142
  %v1861 = vpop.f32.mrf.mxu0
  %v1862 = vadd.f32 %v304, %v1861
  %v1863 = vpop.f32.mrf.mxu0
  %v1864 = vadd.f32 %v304, %v1863
  %1865 = vmatmul.bf16.gmra.mxu0 %v1144
  %v1866 = vpop.f32.mrf.mxu0
  %v1867 = vadd.f32 %v304, %v1866
  %v1868 = vpop.f32.mrf.mxu0
  %v1869 = vadd.f32 %v304, %v1868
  %1870 = vmatmul.bf16.gmra.mxu0 %v1146
  %v1871 = vpop.f32.mrf.mxu0
  %v1872 = vadd.f32 %v304, %v1871
  %v1873 = vpop.f32.mrf.mxu0
  %v1874 = vadd.f32 %v304, %v1873
  %1875 = vmatmul.bf16.gmra.mxu0 %v1148
  %v1876 = vpop.f32.mrf.mxu0
  %v1877 = vadd.f32 %v304, %v1876
  %v1878 = vpop.f32.mrf.mxu0
  %v1879 = vadd.f32 %v304, %v1878
  %1880 = vmatmul.bf16.gmra.mxu0 %v1150
  %v1881 = vpop.f32.mrf.mxu0
  %v1882 = vadd.f32 %v304, %v1881
  %v1883 = vpop.f32.mrf.mxu0
  %v1884 = vadd.f32 %v304, %v1883
  %1885 = vmatmul.bf16.gmra.mxu0 %v1152
  %v1886 = vpop.f32.mrf.mxu0
  %v1887 = vadd.f32 %v304, %v1886
  %v1888 = vpop.f32.mrf.mxu0
  %v1889 = vadd.f32 %v304, %v1888
  %1890 = vmatmul.bf16.gmra.mxu0 %v1154
  %v1891 = vpop.f32.mrf.mxu0
  %v1892 = vadd.f32 %v304, %v1891
  %v1893 = vpop.f32.mrf.mxu0
  %v1894 = vadd.f32 %v304, %v1893
  %1895 = vmatmul.bf16.gmra.mxu0 %v1156
  %v1896 = vpop.f32.mrf.mxu0
  %v1897 = vadd.f32 %v304, %v1896
  %v1898 = vpop.f32.mrf.mxu0
  %v1899 = vadd.f32 %v304, %v1898
  %1900 = vmatmul.bf16.gmra.mxu0 %v1158
  %v1901 = vpop.f32.mrf.mxu0
  %v1902 = vadd.f32 %v304, %v1901
  %v1903 = vpop.f32.mrf.mxu0
  %v1904 = vadd.f32 %v304, %v1903
  %1905 = vmatmul.bf16.gmra.mxu0 %v1160
  %v1906 = vpop.f32.mrf.mxu0
  %v1907 = vadd.f32 %v304, %v1906
  %v1908 = vpop.f32.mrf.mxu0
  %v1909 = vadd.f32 %v304, %v1908
  %1910 = vmatmul.bf16.gmra.mxu0 %v1162
  %v1911 = vpop.f32.mrf.mxu0
  %v1912 = vadd.f32 %v304, %v1911
  %v1913 = vpop.f32.mrf.mxu0
  %v1914 = vadd.f32 %v304, %v1913
  %1915 = vmatmul.bf16.gmra.mxu0 %v1164
  %v1916 = vpop.f32.mrf.mxu0
  %v1917 = vadd.f32 %v304, %v1916
  %v1918 = vpop.f32.mrf.mxu0
  %v1919 = vadd.f32 %v304, %v1918
  %1920 = vmatmul.bf16.gmra.mxu0 %v1166
  %v1921 = vpop.f32.mrf.mxu0
  %v1922 = vadd.f32 %v304, %v1921
  %v1923 = vpop.f32.mrf.mxu0
  %v1924 = vadd.f32 %v304, %v1923
  %1925 = vmatmul.bf16.gmra.mxu0 %v1168
  %v1926 = vpop.f32.mrf.mxu0
  %v1927 = vadd.f32 %v304, %v1926
  %v1928 = vpop.f32.mrf.mxu0
  %v1929 = vadd.f32 %v304, %v1928
  %1930 = vmatmul.bf16.gmra.mxu0 %v1170
  %v1931 = vpop.f32.mrf.mxu0
  %v1932 = vadd.f32 %v304, %v1931
  %v1933 = vpop.f32.mrf.mxu0
  %v1934 = vadd.f32 %v304, %v1933
  %1935 = vmatmul.bf16.gmra.mxu0 %v1172
  %v1936 = vpop.f32.mrf.mxu0
  %v1937 = vadd.f32 %v304, %v1936
  %v1938 = vpop.f32.mrf.mxu0
  %v1939 = vadd.f32 %v304, %v1938
  %1940 = vmatmul.bf16.gmra.mxu0 %v1174
  %v1941 = vpop.f32.mrf.mxu0
  %v1942 = vadd.f32 %v304, %v1941
  %v1943 = vpop.f32.mrf.mxu0
  %v1944 = vadd.f32 %v304, %v1943
  %1945 = vmatmul.bf16.gmra.mxu0 %v1176
  %v1946 = vpop.f32.mrf.mxu0
  %v1947 = vadd.f32 %v304, %v1946
  %v1948 = vpop.f32.mrf.mxu0
  %v1949 = vadd.f32 %v304, %v1948
  %1950 = vmatmul.bf16.gmra.mxu0 %v1178
  %v1951 = vpop.f32.mrf.mxu0
  %v1952 = vadd.f32 %v304, %v1951
  %v1953 = vpop.f32.mrf.mxu0
  %v1954 = vadd.f32 %v304, %v1953
  %1955 = vmatmul.bf16.gmra.mxu0 %v1180
  %v1956 = vpop.f32.mrf.mxu0
  %v1957 = vadd.f32 %v304, %v1956
  %v1958 = vpop.f32.mrf.mxu0
  %v1959 = vadd.f32 %v304, %v1958
  %1960 = vmatmul.bf16.gmra.mxu0 %v1182
  %v1961 = vpop.f32.mrf.mxu0
  %v1962 = vadd.f32 %v304, %v1961
  %v1963 = vpop.f32.mrf.mxu0
  %v1964 = vadd.f32 %v304, %v1963
  %1965 = vmatmul.bf16.gmra.mxu0 %v1184
  %v1966 = vpop.f32.mrf.mxu0
  %v1967 = vadd.f32 %v304, %v1966
  %v1968 = vpop.f32.mrf.mxu0
  %v1969 = vadd.f32 %v304, %v1968
  %1970 = vmatmul.bf16.gmra.mxu0 %v1186
  %v1971 = vpop.f32.mrf.mxu0
  %v1972 = vadd.f32 %v304, %v1971
  %v1973 = vpop.f32.mrf.mxu0
  %v1974 = vadd.f32 %v304, %v1973
  %1975 = vmatmul.bf16.gmra.mxu0 %v1188
  %v1976 = vpop.f32.mrf.mxu0
  %v1977 = vadd.f32 %v304, %v1976
  %v1978 = vpop.f32.mrf.mxu0
  %v1979 = vadd.f32 %v304, %v1978
  %1980 = vmatmul.bf16.gmra.mxu0 %v1190
  %v1981 = vpop.f32.mrf.mxu0
  %v1982 = vadd.f32 %v304, %v1981
  %v1983 = vpop.f32.mrf.mxu0
  %v1984 = vadd.f32 %v304, %v1983
  %1985 = vmatmul.bf16.gmra.mxu0 %v1192
  %v1986 = vpop.f32.mrf.mxu0
  %v1987 = vadd.f32 %v304, %v1986
  %v1988 = vpop.f32.mrf.mxu0
  %v1989 = vadd.f32 %v304, %v1988
  %1990 = vmatmul.bf16.gmra.mxu0 %v1194
  %v1991 = vpop.f32.mrf.mxu0
  %v1992 = vadd.f32 %v304, %v1991
  %v1993 = vpop.f32.mrf.mxu0
  %v1994 = vadd.f32 %v304, %v1993
  %1995 = vmatmul.bf16.gmra.mxu0 %v1196
  %v1996 = vpop.f32.mrf.mxu0
  %v1997 = vadd.f32 %v304, %v1996
  %v1998 = vpop.f32.mrf.mxu0
  %v1999 = vadd.f32 %v304, %v1998
  %2000 = vmatmul.bf16.gmra.mxu0 %v1198
  %v2001 = vpop.f32.mrf.mxu0
  %v2002 = vadd.f32 %v304, %v2001
  %v2003 = vpop.f32.mrf.mxu0
  %v2004 = vadd.f32 %v304, %v2003
  %2005 = vmatmul.bf16.gmra.mxu0 %v1200
  %v2006 = vpop.f32.mrf.mxu0
  %v2007 = vadd.f32 %v304, %v2006
  %v2008 = vpop.f32.mrf.mxu0
  %v2009 = vadd.f32 %v304, %v2008
  %2010 = vmatmul.bf16.gmra.mxu0 %v1202
  %v2011 = vpop.f32.mrf.mxu0
  %v2012 = vadd.f32 %v304, %v2011
  %v2013 = vpop.f32.mrf.mxu0
  %v2014 = vadd.f32 %v304, %v2013
  %2015 = vmatmul.bf16.gmra.mxu0 %v1204
  %v2016 = vpop.f32.mrf.mxu0
  %v2017 = vadd.f32 %v304, %v2016
  %v2018 = vpop.f32.mrf.mxu0
  %v2019 = vadd.f32 %v304, %v2018
  %2020 = vmatmul.bf16.gmra.mxu0 %v1206
  %v2021 = vpop.f32.mrf.mxu0
  %v2022 = vadd.f32 %v304, %v2021
  %v2023 = vpop.f32.mrf.mxu0
  %v2024 = vadd.f32 %v304, %v2023
  %2025 = vmatmul.bf16.gmra.mxu0 %v1208
  %v2026 = vpop.f32.mrf.mxu0
  %v2027 = vadd.f32 %v304, %v2026
  %v2028 = vpop.f32.mrf.mxu0
  %v2029 = vadd.f32 %v304, %v2028
  %2030 = vmatmul.bf16.gmra.mxu0 %v1210
  %v2031 = vpop.f32.mrf.mxu0
  %v2032 = vadd.f32 %v304, %v2031
  %v2033 = vpop.f32.mrf.mxu0
  %v2034 = vadd.f32 %v304, %v2033
  %2035 = vmatmul.bf16.gmra.mxu0 %v1212
  %v2036 = vpop.f32.mrf.mxu0
  %v2037 = vadd.f32 %v304, %v2036
  %v2038 = vpop.f32.mrf.mxu0
  %v2039 = vadd.f32 %v304, %v2038
  %2040 = vmatmul.bf16.gmra.mxu0 %v1214
  %v2041 = vpop.f32.mrf.mxu0
  %v2042 = vadd.f32 %v304, %v2041
  %v2043 = vpop.f32.mrf.mxu0
  %v2044 = vadd.f32 %v304, %v2043
  %2045 = vmatmul.bf16.gmra.mxu0 %v1216
  %v2046 = vpop.f32.mrf.mxu0
  %v2047 = vadd.f32 %v304, %v2046
  %v2048 = vpop.f32.mrf.mxu0
  %v2049 = vadd.f32 %v304, %v2048
  %2050 = vmatmul.bf16.gmra.mxu0 %v1218
  %v2051 = vpop.f32.mrf.mxu0
  %v2052 = vadd.f32 %v304, %v2051
  %v2053 = vpop.f32.mrf.mxu0
  %v2054 = vadd.f32 %v304, %v2053
  %2055 = vmatmul.bf16.gmra.mxu0 %v1220
  %v2056 = vpop.f32.mrf.mxu0
  %v2057 = vadd.f32 %v304, %v2056
  %v2058 = vpop.f32.mrf.mxu0
  %v2059 = vadd.f32 %v304, %v2058
  %2060 = vmatmul.bf16.gmra.mxu0 %v1222
  %v2061 = vpop.f32.mrf.mxu0
  %v2062 = vadd.f32 %v304, %v2061
  %v2063 = vpop.f32.mrf.mxu0
  %v2064 = vadd.f32 %v304, %v2063
  %2065 = vmatmul.bf16.gmra.mxu0 %v1224
  %v2066 = vpop.f32.mrf.mxu0
  %v2067 = vadd.f32 %v304, %v2066
  %v2068 = vpop.f32.mrf.mxu0
  %v2069 = vadd.f32 %v304, %v2068
  %2070 = vmatmul.bf16.gmra.mxu0 %v1226
  %v2071 = vpop.f32.mrf.mxu0
  %v2072 = vadd.f32 %v304, %v2071
  %v2073 = vpop.f32.mrf.mxu0
  %v2074 = vadd.f32 %v304, %v2073
  %2075 = vmatmul.bf16.gmra.mxu0 %v1228
  %v2076 = vpop.f32.mrf.mxu0
  %v2077 = vadd.f32 %v304, %v2076
  %v2078 = vpop.f32.mrf.mxu0
  %v2079 = vadd.f32 %v304, %v2078
  %2080 = vmatmul.bf16.gmra.mxu0 %v1230
  %v2081 = vpop.f32.mrf.mxu0
  %v2082 = vadd.f32 %v304, %v2081
  %v2083 = vpop.f32.mrf.mxu0
  %v2084 = vadd.f32 %v304, %v2083
  %2085 = vmatmul.bf16.gmra.mxu0 %v1232
  %v2086 = vpop.f32.mrf.mxu0
  %v2087 = vadd.f32 %v304, %v2086
  %v2088 = vpop.f32.mrf.mxu0
  %v2089 = vadd.f32 %v304, %v2088
  %2090 = vmatmul.bf16.gmra.mxu0 %v1234
  %v2091 = vpop.f32.mrf.mxu0
  %v2092 = vadd.f32 %v304, %v2091
  %v2093 = vpop.f32.mrf.mxu0
  %v2094 = vadd.f32 %v304, %v2093
  %2095 = vmatmul.bf16.gmra.mxu0 %v1236
  %v2096 = vpop.f32.mrf.mxu0
  %v2097 = vadd.f32 %v304, %v2096
  %v2098 = vpop.f32.mrf.mxu0
  %v2099 = vadd.f32 %v304, %v2098
  %2100 = vmatmul.bf16.gmra.mxu0 %v1238
  %v2101 = vpop.f32.mrf.mxu0
  %v2102 = vadd.f32 %v304, %v2101
  %v2103 = vpop.f32.mrf.mxu0
  %v2104 = vadd.f32 %v304, %v2103
  %2105 = vmatmul.bf16.gmra.mxu0 %v1240
  %v2106 = vpop.f32.mrf.mxu0
  %v2107 = vadd.f32 %v304, %v2106
  %v2108 = vpop.f32.mrf.mxu0
  %v2109 = vadd.f32 %v304, %v2108
  %2110 = vmatmul.bf16.gmra.mxu0 %v1242
  %v2111 = vpop.f32.mrf.mxu0
  %v2112 = vadd.f32 %v304, %v2111
  %v2113 = vpop.f32.mrf.mxu0
  %v2114 = vadd.f32 %v304, %v2113
  %2115 = vmatmul.bf16.gmra.mxu0 %v1244
  %v2116 = vpop.f32.mrf.mxu0
  %v2117 = vadd.f32 %v304, %v2116
  %v2118 = vpop.f32.mrf.mxu0
  %v2119 = vadd.f32 %v304, %v2118
  %2120 = vmatmul.bf16.gmra.mxu0 %v1246
  %v2121 = vpop.f32.mrf.mxu0
  %v2122 = vadd.f32 %v304, %v2121
  %v2123 = vpop.f32.mrf.mxu0
  %v2124 = vadd.f32 %v304, %v2123
  %2125 = vmatmul.bf16.gmra.mxu0 %v1248
  %v2126 = vpop.f32.mrf.mxu0
  %v2127 = vadd.f32 %v304, %v2126
  %v2128 = vpop.f32.mrf.mxu0
  %v2129 = vadd.f32 %v304, %v2128
  %2130 = vmatmul.bf16.gmra.mxu0 %v1250
  %v2131 = vpop.f32.mrf.mxu0
  %v2132 = vadd.f32 %v304, %v2131
  %v2133 = vpop.f32.mrf.mxu0
  %v2134 = vadd.f32 %v304, %v2133
  %2135 = vmatmul.bf16.gmra.mxu0 %v1252
  %v2136 = vpop.f32.mrf.mxu0
  %v2137 = vadd.f32 %v304, %v2136
  %v2138 = vpop.f32.mrf.mxu0
  %v2139 = vadd.f32 %v304, %v2138
  %2140 = vmatmul.bf16.gmra.mxu0 %v1254
  %v2141 = vpop.f32.mrf.mxu0
  %v2142 = vadd.f32 %v304, %v2141
  %v2143 = vpop.f32.mrf.mxu0
  %v2144 = vadd.f32 %v304, %v2143
  %2145 = vmatmul.bf16.gmra.mxu0 %v1256
  %v2146 = vpop.f32.mrf.mxu0
  %v2147 = vadd.f32 %v304, %v2146
  %v2148 = vpop.f32.mrf.mxu0
  %v2149 = vadd.f32 %v304, %v2148
  %2150 = vmatmul.bf16.gmra.mxu0 %v1258
  %v2151 = vpop.f32.mrf.mxu0
  %v2152 = vadd.f32 %v304, %v2151
  %v2153 = vpop.f32.mrf.mxu0
  %v2154 = vadd.f32 %v304, %v2153
  %2155 = vmatmul.bf16.gmra.mxu0 %v1260
  %v2156 = vpop.f32.mrf.mxu0
  %v2157 = vadd.f32 %v304, %v2156
  %v2158 = vpop.f32.mrf.mxu0
  %v2159 = vadd.f32 %v304, %v2158
  %2160 = vmatmul.bf16.gmra.mxu0 %v1262
  %v2161 = vpop.f32.mrf.mxu0
  %v2162 = vadd.f32 %v304, %v2161
  %v2163 = vpop.f32.mrf.mxu0
  %v2164 = vadd.f32 %v304, %v2163
  %2165 = vmatmul.bf16.gmra.mxu0 %v1264
  %v2166 = vpop.f32.mrf.mxu0
  %v2167 = vadd.f32 %v304, %v2166
  %v2168 = vpop.f32.mrf.mxu0
  %v2169 = vadd.f32 %v304, %v2168
  %2170 = vmatmul.bf16.gmra.mxu0 %v1266
  %v2171 = vpop.f32.mrf.mxu0
  %v2172 = vadd.f32 %v304, %v2171
  %v2173 = vpop.f32.mrf.mxu0
  %v2174 = vadd.f32 %v304, %v2173
  %2175 = vmatmul.bf16.gmra.mxu0 %v1268
  %v2176 = vpop.f32.mrf.mxu0
  %v2177 = vadd.f32 %v304, %v2176
  %v2178 = vpop.f32.mrf.mxu0
  %v2179 = vadd.f32 %v304, %v2178
  %2180 = vmatmul.bf16.gmra.mxu0 %v1270
  %v2181 = vpop.f32.mrf.mxu0
  %v2182 = vadd.f32 %v304, %v2181
  %v2183 = vpop.f32.mrf.mxu0
  %v2184 = vadd.f32 %v304, %v2183
  %2185 = vmatmul.bf16.gmra.mxu0 %v1272
  %v2186 = vpop.f32.mrf.mxu0
  %v2187 = vadd.f32 %v304, %v2186
  %v2188 = vpop.f32.mrf.mxu0
  %v2189 = vadd.f32 %v304, %v2188
  %2190 = vmatmul.bf16.gmra.mxu0 %v1274
  %v2191 = vpop.f32.mrf.mxu0
  %v2192 = vadd.f32 %v304, %v2191
  %v2193 = vpop.f32.mrf.mxu0
  %v2194 = vadd.f32 %v304, %v2193
  %2195 = vmatmul.bf16.gmra.mxu0 %v1276
  %v2196 = vpop.f32.mrf.mxu0
  %v2197 = vadd.f32 %v304, %v2196
  %v2198 = vpop.f32.mrf.mxu0
  %v2199 = vadd.f32 %v304, %v2198
  %2200 = vmatmul.bf16.gmra.mxu0 %v1278
  %v2201 = vpop.f32.mrf.mxu0
  %v2202 = vadd.f32 %v304, %v2201
  %v2203 = vpop.f32.mrf.mxu0
  %v2204 = vadd.f32 %v304, %v2203
  %2205 = vmatmul.bf16.gmra.mxu0 %v1280
  %v2206 = vpop.f32.mrf.mxu0
  %v2207 = vadd.f32 %v304, %v2206
  %v2208 = vpop.f32.mrf.mxu0
  %v2209 = vadd.f32 %v304, %v2208
  %2210 = vmatmul.bf16.gmra.mxu0 %v1282
  %v2211 = vpop.f32.mrf.mxu0
  %v2212 = vadd.f32 %v304, %v2211
  %v2213 = vpop.f32.mrf.mxu0
  %v2214 = vadd.f32 %v304, %v2213
  %2215 = vmatmul.bf16.gmra.mxu0 %v1284
  %v2216 = vpop.f32.mrf.mxu0
  %v2217 = vadd.f32 %v304, %v2216
  %v2218 = vpop.f32.mrf.mxu0
  %v2219 = vadd.f32 %v304, %v2218
  %2220 = vmatmul.bf16.gmra.mxu0 %v1286
  %v2221 = vpop.f32.mrf.mxu0
  %v2222 = vadd.f32 %v304, %v2221
  %v2223 = vpop.f32.mrf.mxu0
  %v2224 = vadd.f32 %v304, %v2223
  %2225 = vmatmul.bf16.gmra.mxu0 %v1288
  %v2226 = vpop.f32.mrf.mxu0
  %v2227 = vadd.f32 %v304, %v2226
  %v2228 = vpop.f32.mrf.mxu0
  %v2229 = vadd.f32 %v304, %v2228
  %2230 = vmatmul.bf16.gmra.mxu0 %v1290
  %v2231 = vpop.f32.mrf.mxu0
  %v2232 = vadd.f32 %v304, %v2231
  %v2233 = vpop.f32.mrf.mxu0
  %v2234 = vadd.f32 %v304, %v2233
  %2235 = vmatmul.bf16.gmra.mxu0 %v1292
  %v2236 = vpop.f32.mrf.mxu0
  %v2237 = vadd.f32 %v304, %v2236
  %v2238 = vpop.f32.mrf.mxu0
  %v2239 = vadd.f32 %v304, %v2238
  %2240 = vmatmul.bf16.gmra.mxu0 %v1294
  %v2241 = vpop.f32.mrf.mxu0
  %v2242 = vadd.f32 %v304, %v2241
  %v2243 = vpop.f32.mrf.mxu0
  %v2244 = vadd.f32 %v304, %v2243
  %2245 = vmatmul.bf16.gmra.mxu0 %v1296
  %v2246 = vpop.f32.mrf.mxu0
  %v2247 = vadd.f32 %v304, %v2246
  %v2248 = vpop.f32.mrf.mxu0
  %v2249 = vadd.f32 %v304, %v2248
  %2250 = vmatmul.bf16.gmra.mxu0 %v1298
  %v2251 = vpop.f32.mrf.mxu0
  %v2252 = vadd.f32 %v304, %v2251
  %v2253 = vpop.f32.mrf.mxu0
  %v2254 = vadd.f32 %v304, %v2253
  %2255 = vmatmul.bf16.gmra.mxu0 %v1300
  %v2256 = vpop.f32.mrf.mxu0
  %v2257 = vadd.f32 %v304, %v2256
  %v2258 = vpop.f32.mrf.mxu0
  %v2259 = vadd.f32 %v304, %v2258
  %2260 = vmatmul.bf16.gmra.mxu0 %v1302
  %v2261 = vpop.f32.mrf.mxu0
  %v2262 = vadd.f32 %v304, %v2261
  %v2263 = vpop.f32.mrf.mxu0
  %v2264 = vadd.f32 %v304, %v2263
  %2265 = vmatmul.bf16.gmra.mxu0 %v1304
  %v2266 = vpop.f32.mrf.mxu0
  %v2267 = vadd.f32 %v304, %v2266
  %v2268 = vpop.f32.mrf.mxu0
  %v2269 = vadd.f32 %v304, %v2268
  %2270 = vmatmul.bf16.gmra.mxu0 %v1306
  %v2271 = vpop.f32.mrf.mxu0
  %v2272 = vadd.f32 %v304, %v2271
  %v2273 = vpop.f32.mrf.mxu0
  %v2274 = vadd.f32 %v304, %v2273
  %2275 = vmatmul.bf16.gmra.mxu0 %v1308
  %v2276 = vpop.f32.mrf.mxu0
  %v2277 = vadd.f32 %v304, %v2276
  %v2278 = vpop.f32.mrf.mxu0
  %v2279 = vadd.f32 %v304, %v2278
  %2280 = vmatmul.bf16.gmra.mxu0 %v1310
  %v2281 = vpop.f32.mrf.mxu0
  %v2282 = vadd.f32 %v304, %v2281
  %v2283 = vpop.f32.mrf.mxu0
  %v2284 = vadd.f32 %v304, %v2283
  %2285 = vmatmul.bf16.gmra.mxu0 %v1312
  %v2286 = vpop.f32.mrf.mxu0
  %v2287 = vadd.f32 %v304, %v2286
  %v2288 = vpop.f32.mrf.mxu0
  %v2289 = vadd.f32 %v304, %v2288
  %2290 = vmatmul.bf16.gmra.mxu0 %v1314
  %v2291 = vpop.f32.mrf.mxu0
  %v2292 = vadd.f32 %v304, %v2291
  %v2293 = vpop.f32.mrf.mxu0
  %v2294 = vadd.f32 %v304, %v2293
  %2295 = vmatmul.bf16.gmra.mxu0 %v1316
  %v2296 = vpop.f32.mrf.mxu0
  %v2297 = vadd.f32 %v304, %v2296
  %v2298 = vpop.f32.mrf.mxu0
  %v2299 = vadd.f32 %v304, %v2298
  %2300 = vmatmul.bf16.gmra.mxu0 %v1318
  %v2301 = vpop.f32.mrf.mxu0
  %v2302 = vadd.f32 %v304, %v2301
  %v2303 = vpop.f32.mrf.mxu0
  %v2304 = vadd.f32 %v304, %v2303
  %2305 = vmatmul.bf16.gmra.mxu0 %v1320
  %v2306 = vpop.f32.mrf.mxu0
  %v2307 = vadd.f32 %v304, %v2306
  %v2308 = vpop.f32.mrf.mxu0
  %v2309 = vadd.f32 %v304, %v2308
  %2310 = vmatmul.bf16.gmra.mxu0 %v1322
  %v2311 = vpop.f32.mrf.mxu0
  %v2312 = vadd.f32 %v304, %v2311
  %v2313 = vpop.f32.mrf.mxu0
  %v2314 = vadd.f32 %v304, %v2313
  %2315 = vmatmul.bf16.gmra.mxu0 %v1324
  %v2316 = vpop.f32.mrf.mxu0
  %v2317 = vadd.f32 %v304, %v2316
  %v2318 = vpop.f32.mrf.mxu0
  %v2319 = vadd.f32 %v304, %v2318
  %2320 = vmatmul.bf16.gmra.mxu0 %v1326
  %v2321 = vpop.f32.mrf.mxu0
  %v2322 = vadd.f32 %v304, %v2321
  %v2323 = vpop.f32.mrf.mxu0
  %v2324 = vadd.f32 %v304, %v2323
  %2325 = vmatmul.bf16.gmra.mxu0 %v1328
  %v2326 = vpop.f32.mrf.mxu0
  %v2327 = vadd.f32 %v304, %v2326
  %v2328 = vpop.f32.mrf.mxu0
  %v2329 = vadd.f32 %v304, %v2328
  %2330 = vdwg.mxu0
  %2331 = vmatpush.bf16.msra.mxu0 %v1665
  %2332 = vmatpush.bf16.msra.mxu0 %v1664
  %2333 = vmatpush.bf16.msra.mxu0 %v1663
  %2334 = vmatpush.bf16.msra.mxu0 %v1662
  %2335 = vmatpush.bf16.msra.mxu0 %v1661
  %2336 = vmatpush.bf16.msra.mxu0 %v1660
  %2337 = vmatpush.bf16.msra.mxu0 %v1659
  %2338 = vmatpush.bf16.msra.mxu0 %v1658
  %2339 = vmatmul.bf16.gmra.mxu0 %v1075
  %v2340 = vpop.f32.mrf.mxu0
  %v2341 = vadd.f32 %v1692, %v2340
  %v2342 = vpop.f32.mrf.mxu0
  %v2343 = vadd.f32 %v1694, %v2342
  %2344 = vmatmul.bf16.gmra.mxu0 %v1077
  %v2345 = vpop.f32.mrf.mxu0
  %v2346 = vadd.f32 %v1697, %v2345
  %v2347 = vpop.f32.mrf.mxu0
  %v2348 = vadd.f32 %v1699, %v2347
  %2349 = vmatmul.bf16.gmra.mxu0 %v1079
  %v2350 = vpop.f32.mrf.mxu0
  %v2351 = vadd.f32 %v1702, %v2350
  %v2352 = vpop.f32.mrf.mxu0
  %v2353 = vadd.f32 %v1704, %v2352
  %2354 = vmatmul.bf16.gmra.mxu0 %v1081
  %v2355 = vpop.f32.mrf.mxu0
  %v2356 = vadd.f32 %v1707, %v2355
  %v2357 = vpop.f32.mrf.mxu0
  %v2358 = vadd.f32 %v1709, %v2357
  %2359 = vmatmul.bf16.gmra.mxu0 %v1083
  %v2360 = vpop.f32.mrf.mxu0
  %v2361 = vadd.f32 %v1712, %v2360
  %v2362 = vpop.f32.mrf.mxu0
  %v2363 = vadd.f32 %v1714, %v2362
  %2364 = vmatmul.bf16.gmra.mxu0 %v1085
  %v2365 = vpop.f32.mrf.mxu0
  %v2366 = vadd.f32 %v1717, %v2365
  %v2367 = vpop.f32.mrf.mxu0
  %v2368 = vadd.f32 %v1719, %v2367
  %2369 = vmatmul.bf16.gmra.mxu0 %v1087
  %v2370 = vpop.f32.mrf.mxu0
  %v2371 = vadd.f32 %v1722, %v2370
  %v2372 = vpop.f32.mrf.mxu0
  %v2373 = vadd.f32 %v1724, %v2372
  %2374 = vmatmul.bf16.gmra.mxu0 %v1089
  %v2375 = vpop.f32.mrf.mxu0
  %v2376 = vadd.f32 %v1727, %v2375
  %v2377 = vpop.f32.mrf.mxu0
  %v2378 = vadd.f32 %v1729, %v2377
  %2379 = vmatmul.bf16.gmra.mxu0 %v1091
  %v2380 = vpop.f32.mrf.mxu0
  %v2381 = vadd.f32 %v1732, %v2380
  %v2382 = vpop.f32.mrf.mxu0
  %v2383 = vadd.f32 %v1734, %v2382
  %2384 = vmatmul.bf16.gmra.mxu0 %v1093
  %v2385 = vpop.f32.mrf.mxu0
  %v2386 = vadd.f32 %v1737, %v2385
  %v2387 = vpop.f32.mrf.mxu0
  %v2388 = vadd.f32 %v1739, %v2387
  %2389 = vmatmul.bf16.gmra.mxu0 %v1095
  %v2390 = vpop.f32.mrf.mxu0
  %v2391 = vadd.f32 %v1742, %v2390
  %v2392 = vpop.f32.mrf.mxu0
  %v2393 = vadd.f32 %v1744, %v2392
  %2394 = vmatmul.bf16.gmra.mxu0 %v1097
  %v2395 = vpop.f32.mrf.mxu0
  %v2396 = vadd.f32 %v1747, %v2395
  %v2397 = vpop.f32.mrf.mxu0
  %v2398 = vadd.f32 %v1749, %v2397
  %2399 = vmatmul.bf16.gmra.mxu0 %v1099
  %v2400 = vpop.f32.mrf.mxu0
  %v2401 = vadd.f32 %v1752, %v2400
  %v2402 = vpop.f32.mrf.mxu0
  %v2403 = vadd.f32 %v1754, %v2402
  %2404 = vmatmul.bf16.gmra.mxu0 %v1101
  %v2405 = vpop.f32.mrf.mxu0
  %v2406 = vadd.f32 %v1757, %v2405
  %v2407 = vpop.f32.mrf.mxu0
  %v2408 = vadd.f32 %v1759, %v2407
  %2409 = vmatmul.bf16.gmra.mxu0 %v1103
  %v2410 = vpop.f32.mrf.mxu0
  %v2411 = vadd.f32 %v1762, %v2410
  %v2412 = vpop.f32.mrf.mxu0
  %v2413 = vadd.f32 %v1764, %v2412
  %2414 = vmatmul.bf16.gmra.mxu0 %v1105
  %v2415 = vpop.f32.mrf.mxu0
  %v2416 = vadd.f32 %v1767, %v2415
  %v2417 = vpop.f32.mrf.mxu0
  %v2418 = vadd.f32 %v1769, %v2417
  %2419 = vmatmul.bf16.gmra.mxu0 %v1107
  %v2420 = vpop.f32.mrf.mxu0
  %v2421 = vadd.f32 %v1772, %v2420
  %v2422 = vpop.f32.mrf.mxu0
  %v2423 = vadd.f32 %v1774, %v2422
  %2424 = vmatmul.bf16.gmra.mxu0 %v1109
  %v2425 = vpop.f32.mrf.mxu0
  %v2426 = vadd.f32 %v1777, %v2425
  %v2427 = vpop.f32.mrf.mxu0
  %v2428 = vadd.f32 %v1779, %v2427
  %2429 = vmatmul.bf16.gmra.mxu0 %v1111
  %v2430 = vpop.f32.mrf.mxu0
  %v2431 = vadd.f32 %v1782, %v2430
  %v2432 = vpop.f32.mrf.mxu0
  %v2433 = vadd.f32 %v1784, %v2432
  %2434 = vmatmul.bf16.gmra.mxu0 %v1113
  %v2435 = vpop.f32.mrf.mxu0
  %v2436 = vadd.f32 %v1787, %v2435
  %v2437 = vpop.f32.mrf.mxu0
  %v2438 = vadd.f32 %v1789, %v2437
  %2439 = vmatmul.bf16.gmra.mxu0 %v1115
  %v2440 = vpop.f32.mrf.mxu0
  %v2441 = vadd.f32 %v1792, %v2440
  %v2442 = vpop.f32.mrf.mxu0
  %v2443 = vadd.f32 %v1794, %v2442
  %2444 = vmatmul.bf16.gmra.mxu0 %v1117
  %v2445 = vpop.f32.mrf.mxu0
  %v2446 = vadd.f32 %v1797, %v2445
  %v2447 = vpop.f32.mrf.mxu0
  %v2448 = vadd.f32 %v1799, %v2447
  %2449 = vmatmul.bf16.gmra.mxu0 %v1119
  %v2450 = vpop.f32.mrf.mxu0
  %v2451 = vadd.f32 %v1802, %v2450
  %v2452 = vpop.f32.mrf.mxu0
  %v2453 = vadd.f32 %v1804, %v2452
  %2454 = vmatmul.bf16.gmra.mxu0 %v1121
  %v2455 = vpop.f32.mrf.mxu0
  %v2456 = vadd.f32 %v1807, %v2455
  %v2457 = vpop.f32.mrf.mxu0
  %v2458 = vadd.f32 %v1809, %v2457
  %2459 = vmatmul.bf16.gmra.mxu0 %v1123
  %v2460 = vpop.f32.mrf.mxu0
  %v2461 = vadd.f32 %v1812, %v2460
  %v2462 = vpop.f32.mrf.mxu0
  %v2463 = vadd.f32 %v1814, %v2462
  %2464 = vmatmul.bf16.gmra.mxu0 %v1125
  %v2465 = vpop.f32.mrf.mxu0
  %v2466 = vadd.f32 %v1817, %v2465
  %v2467 = vpop.f32.mrf.mxu0
  %v2468 = vadd.f32 %v1819, %v2467
  %2469 = vmatmul.bf16.gmra.mxu0 %v1127
  %v2470 = vpop.f32.mrf.mxu0
  %v2471 = vadd.f32 %v1822, %v2470
  %v2472 = vpop.f32.mrf.mxu0
  %v2473 = vadd.f32 %v1824, %v2472
  %2474 = vmatmul.bf16.gmra.mxu0 %v1129
  %v2475 = vpop.f32.mrf.mxu0
  %v2476 = vadd.f32 %v1827, %v2475
  %v2477 = vpop.f32.mrf.mxu0
  %v2478 = vadd.f32 %v1829, %v2477
  %2479 = vmatmul.bf16.gmra.mxu0 %v1131
  %v2480 = vpop.f32.mrf.mxu0
  %v2481 = vadd.f32 %v1832, %v2480
  %v2482 = vpop.f32.mrf.mxu0
  %v2483 = vadd.f32 %v1834, %v2482
  %2484 = vmatmul.bf16.gmra.mxu0 %v1133
  %v2485 = vpop.f32.mrf.mxu0
  %v2486 = vadd.f32 %v1837, %v2485
  %v2487 = vpop.f32.mrf.mxu0
  %v2488 = vadd.f32 %v1839, %v2487
  %2489 = vmatmul.bf16.gmra.mxu0 %v1135
  %v2490 = vpop.f32.mrf.mxu0
  %v2491 = vadd.f32 %v1842, %v2490
  %v2492 = vpop.f32.mrf.mxu0
  %v2493 = vadd.f32 %v1844, %v2492
  %2494 = vmatmul.bf16.gmra.mxu0 %v1137
  %v2495 = vpop.f32.mrf.mxu0
  %v2496 = vadd.f32 %v1847, %v2495
  %v2497 = vpop.f32.mrf.mxu0
  %v2498 = vadd.f32 %v1849, %v2497
  %2499 = vmatmul.bf16.gmra.mxu0 %v1139
  %v2500 = vpop.f32.mrf.mxu0
  %v2501 = vadd.f32 %v1852, %v2500
  %v2502 = vpop.f32.mrf.mxu0
  %v2503 = vadd.f32 %v1854, %v2502
  %2504 = vmatmul.bf16.gmra.mxu0 %v1141
  %v2505 = vpop.f32.mrf.mxu0
  %v2506 = vadd.f32 %v1857, %v2505
  %v2507 = vpop.f32.mrf.mxu0
  %v2508 = vadd.f32 %v1859, %v2507
  %2509 = vmatmul.bf16.gmra.mxu0 %v1143
  %v2510 = vpop.f32.mrf.mxu0
  %v2511 = vadd.f32 %v1862, %v2510
  %v2512 = vpop.f32.mrf.mxu0
  %v2513 = vadd.f32 %v1864, %v2512
  %2514 = vmatmul.bf16.gmra.mxu0 %v1145
  %v2515 = vpop.f32.mrf.mxu0
  %v2516 = vadd.f32 %v1867, %v2515
  %v2517 = vpop.f32.mrf.mxu0
  %v2518 = vadd.f32 %v1869, %v2517
  %2519 = vmatmul.bf16.gmra.mxu0 %v1147
  %v2520 = vpop.f32.mrf.mxu0
  %v2521 = vadd.f32 %v1872, %v2520
  %v2522 = vpop.f32.mrf.mxu0
  %v2523 = vadd.f32 %v1874, %v2522
  %2524 = vmatmul.bf16.gmra.mxu0 %v1149
  %v2525 = vpop.f32.mrf.mxu0
  %v2526 = vadd.f32 %v1877, %v2525
  %v2527 = vpop.f32.mrf.mxu0
  %v2528 = vadd.f32 %v1879, %v2527
  %2529 = vmatmul.bf16.gmra.mxu0 %v1151
  %v2530 = vpop.f32.mrf.mxu0
  %v2531 = vadd.f32 %v1882, %v2530
  %v2532 = vpop.f32.mrf.mxu0
  %v2533 = vadd.f32 %v1884, %v2532
  %2534 = vmatmul.bf16.gmra.mxu0 %v1153
  %v2535 = vpop.f32.mrf.mxu0
  %v2536 = vadd.f32 %v1887, %v2535
  %v2537 = vpop.f32.mrf.mxu0
  %v2538 = vadd.f32 %v1889, %v2537
  %2539 = vmatmul.bf16.gmra.mxu0 %v1155
  %v2540 = vpop.f32.mrf.mxu0
  %v2541 = vadd.f32 %v1892, %v2540
  %v2542 = vpop.f32.mrf.mxu0
  %v2543 = vadd.f32 %v1894, %v2542
  %2544 = vmatmul.bf16.gmra.mxu0 %v1157
  %v2545 = vpop.f32.mrf.mxu0
  %v2546 = vadd.f32 %v1897, %v2545
  %v2547 = vpop.f32.mrf.mxu0
  %v2548 = vadd.f32 %v1899, %v2547
  %2549 = vmatmul.bf16.gmra.mxu0 %v1159
  %v2550 = vpop.f32.mrf.mxu0
  %v2551 = vadd.f32 %v1902, %v2550
  %v2552 = vpop.f32.mrf.mxu0
  %v2553 = vadd.f32 %v1904, %v2552
  %2554 = vmatmul.bf16.gmra.mxu0 %v1161
  %v2555 = vpop.f32.mrf.mxu0
  %v2556 = vadd.f32 %v1907, %v2555
  %v2557 = vpop.f32.mrf.mxu0
  %v2558 = vadd.f32 %v1909, %v2557
  %2559 = vmatmul.bf16.gmra.mxu0 %v1163
  %v2560 = vpop.f32.mrf.mxu0
  %v2561 = vadd.f32 %v1912, %v2560
  %v2562 = vpop.f32.mrf.mxu0
  %v2563 = vadd.f32 %v1914, %v2562
  %2564 = vmatmul.bf16.gmra.mxu0 %v1165
  %v2565 = vpop.f32.mrf.mxu0
  %v2566 = vadd.f32 %v1917, %v2565
  %v2567 = vpop.f32.mrf.mxu0
  %v2568 = vadd.f32 %v1919, %v2567
  %2569 = vmatmul.bf16.gmra.mxu0 %v1167
  %v2570 = vpop.f32.mrf.mxu0
  %v2571 = vadd.f32 %v1922, %v2570
  %v2572 = vpop.f32.mrf.mxu0
  %v2573 = vadd.f32 %v1924, %v2572
  %2574 = vmatmul.bf16.gmra.mxu0 %v1169
  %v2575 = vpop.f32.mrf.mxu0
  %v2576 = vadd.f32 %v1927, %v2575
  %v2577 = vpop.f32.mrf.mxu0
  %v2578 = vadd.f32 %v1929, %v2577
  %2579 = vmatmul.bf16.gmra.mxu0 %v1171
  %v2580 = vpop.f32.mrf.mxu0
  %v2581 = vadd.f32 %v1932, %v2580
  %v2582 = vpop.f32.mrf.mxu0
  %v2583 = vadd.f32 %v1934, %v2582
  %2584 = vmatmul.bf16.gmra.mxu0 %v1173
  %v2585 = vpop.f32.mrf.mxu0
  %v2586 = vadd.f32 %v1937, %v2585
  %v2587 = vpop.f32.mrf.mxu0
  %v2588 = vadd.f32 %v1939, %v2587
  %2589 = vmatmul.bf16.gmra.mxu0 %v1175
  %v2590 = vpop.f32.mrf.mxu0
  %v2591 = vadd.f32 %v1942, %v2590
  %v2592 = vpop.f32.mrf.mxu0
  %v2593 = vadd.f32 %v1944, %v2592
  %2594 = vmatmul.bf16.gmra.mxu0 %v1177
  %v2595 = vpop.f32.mrf.mxu0
  %v2596 = vadd.f32 %v1947, %v2595
  %v2597 = vpop.f32.mrf.mxu0
  %v2598 = vadd.f32 %v1949, %v2597
  %2599 = vmatmul.bf16.gmra.mxu0 %v1179
  %v2600 = vpop.f32.mrf.mxu0
  %v2601 = vadd.f32 %v1952, %v2600
  %v2602 = vpop.f32.mrf.mxu0
  %v2603 = vadd.f32 %v1954, %v2602
  %2604 = vmatmul.bf16.gmra.mxu0 %v1181
  %v2605 = vpop.f32.mrf.mxu0
  %v2606 = vadd.f32 %v1957, %v2605
  %v2607 = vpop.f32.mrf.mxu0
  %v2608 = vadd.f32 %v1959, %v2607
  %2609 = vmatmul.bf16.gmra.mxu0 %v1183
  %v2610 = vpop.f32.mrf.mxu0
  %v2611 = vadd.f32 %v1962, %v2610
  %v2612 = vpop.f32.mrf.mxu0
  %v2613 = vadd.f32 %v1964, %v2612
  %2614 = vmatmul.bf16.gmra.mxu0 %v1185
  %v2615 = vpop.f32.mrf.mxu0
  %v2616 = vadd.f32 %v1967, %v2615
  %v2617 = vpop.f32.mrf.mxu0
  %v2618 = vadd.f32 %v1969, %v2617
  %2619 = vmatmul.bf16.gmra.mxu0 %v1187
  %v2620 = vpop.f32.mrf.mxu0
  %v2621 = vadd.f32 %v1972, %v2620
  %v2622 = vpop.f32.mrf.mxu0
  %v2623 = vadd.f32 %v1974, %v2622
  %2624 = vmatmul.bf16.gmra.mxu0 %v1189
  %v2625 = vpop.f32.mrf.mxu0
  %v2626 = vadd.f32 %v1977, %v2625
  %v2627 = vpop.f32.mrf.mxu0
  %v2628 = vadd.f32 %v1979, %v2627
  %2629 = vmatmul.bf16.gmra.mxu0 %v1191
  %v2630 = vpop.f32.mrf.mxu0
  %v2631 = vadd.f32 %v1982, %v2630
  %v2632 = vpop.f32.mrf.mxu0
  %v2633 = vadd.f32 %v1984, %v2632
  %2634 = vmatmul.bf16.gmra.mxu0 %v1193
  %v2635 = vpop.f32.mrf.mxu0
  %v2636 = vadd.f32 %v1987, %v2635
  %v2637 = vpop.f32.mrf.mxu0
  %v2638 = vadd.f32 %v1989, %v2637
  %2639 = vmatmul.bf16.gmra.mxu0 %v1195
  %v2640 = vpop.f32.mrf.mxu0
  %v2641 = vadd.f32 %v1992, %v2640
  %v2642 = vpop.f32.mrf.mxu0
  %v2643 = vadd.f32 %v1994, %v2642
  %2644 = vmatmul.bf16.gmra.mxu0 %v1197
  %v2645 = vpop.f32.mrf.mxu0
  %v2646 = vadd.f32 %v1997, %v2645
  %v2647 = vpop.f32.mrf.mxu0
  %v2648 = vadd.f32 %v1999, %v2647
  %2649 = vmatmul.bf16.gmra.mxu0 %v1199
  %v2650 = vpop.f32.mrf.mxu0
  %v2651 = vadd.f32 %v2002, %v2650
  %v2652 = vpop.f32.mrf.mxu0
  %v2653 = vadd.f32 %v2004, %v2652
  %2654 = vmatmul.bf16.gmra.mxu0 %v1201
  %v2655 = vpop.f32.mrf.mxu0
  %v2656 = vadd.f32 %v2007, %v2655
  %v2657 = vpop.f32.mrf.mxu0
  %v2658 = vadd.f32 %v2009, %v2657
  %2659 = vmatmul.bf16.gmra.mxu0 %v1203
  %v2660 = vpop.f32.mrf.mxu0
  %v2661 = vadd.f32 %v2012, %v2660
  %v2662 = vpop.f32.mrf.mxu0
  %v2663 = vadd.f32 %v2014, %v2662
  %2664 = vmatmul.bf16.gmra.mxu0 %v1205
  %v2665 = vpop.f32.mrf.mxu0
  %v2666 = vadd.f32 %v2017, %v2665
  %v2667 = vpop.f32.mrf.mxu0
  %v2668 = vadd.f32 %v2019, %v2667
  %2669 = vmatmul.bf16.gmra.mxu0 %v1207
  %v2670 = vpop.f32.mrf.mxu0
  %v2671 = vadd.f32 %v2022, %v2670
  %v2672 = vpop.f32.mrf.mxu0
  %v2673 = vadd.f32 %v2024, %v2672
  %2674 = vmatmul.bf16.gmra.mxu0 %v1209
  %v2675 = vpop.f32.mrf.mxu0
  %v2676 = vadd.f32 %v2027, %v2675
  %v2677 = vpop.f32.mrf.mxu0
  %v2678 = vadd.f32 %v2029, %v2677
  %2679 = vmatmul.bf16.gmra.mxu0 %v1211
  %v2680 = vpop.f32.mrf.mxu0
  %v2681 = vadd.f32 %v2032, %v2680
  %v2682 = vpop.f32.mrf.mxu0
  %v2683 = vadd.f32 %v2034, %v2682
  %2684 = vmatmul.bf16.gmra.mxu0 %v1213
  %v2685 = vpop.f32.mrf.mxu0
  %v2686 = vadd.f32 %v2037, %v2685
  %v2687 = vpop.f32.mrf.mxu0
  %v2688 = vadd.f32 %v2039, %v2687
  %2689 = vmatmul.bf16.gmra.mxu0 %v1215
  %v2690 = vpop.f32.mrf.mxu0
  %v2691 = vadd.f32 %v2042, %v2690
  %v2692 = vpop.f32.mrf.mxu0
  %v2693 = vadd.f32 %v2044, %v2692
  %2694 = vmatmul.bf16.gmra.mxu0 %v1217
  %v2695 = vpop.f32.mrf.mxu0
  %v2696 = vadd.f32 %v2047, %v2695
  %v2697 = vpop.f32.mrf.mxu0
  %v2698 = vadd.f32 %v2049, %v2697
  %2699 = vmatmul.bf16.gmra.mxu0 %v1219
  %v2700 = vpop.f32.mrf.mxu0
  %v2701 = vadd.f32 %v2052, %v2700
  %v2702 = vpop.f32.mrf.mxu0
  %v2703 = vadd.f32 %v2054, %v2702
  %2704 = vmatmul.bf16.gmra.mxu0 %v1221
  %v2705 = vpop.f32.mrf.mxu0
  %v2706 = vadd.f32 %v2057, %v2705
  %v2707 = vpop.f32.mrf.mxu0
  %v2708 = vadd.f32 %v2059, %v2707
  %2709 = vmatmul.bf16.gmra.mxu0 %v1223
  %v2710 = vpop.f32.mrf.mxu0
  %v2711 = vadd.f32 %v2062, %v2710
  %v2712 = vpop.f32.mrf.mxu0
  %v2713 = vadd.f32 %v2064, %v2712
  %2714 = vmatmul.bf16.gmra.mxu0 %v1225
  %v2715 = vpop.f32.mrf.mxu0
  %v2716 = vadd.f32 %v2067, %v2715
  %v2717 = vpop.f32.mrf.mxu0
  %v2718 = vadd.f32 %v2069, %v2717
  %2719 = vmatmul.bf16.gmra.mxu0 %v1227
  %v2720 = vpop.f32.mrf.mxu0
  %v2721 = vadd.f32 %v2072, %v2720
  %v2722 = vpop.f32.mrf.mxu0
  %v2723 = vadd.f32 %v2074, %v2722
  %2724 = vmatmul.bf16.gmra.mxu0 %v1229
  %v2725 = vpop.f32.mrf.mxu0
  %v2726 = vadd.f32 %v2077, %v2725
  %v2727 = vpop.f32.mrf.mxu0
  %v2728 = vadd.f32 %v2079, %v2727
  %2729 = vmatmul.bf16.gmra.mxu0 %v1231
  %v2730 = vpop.f32.mrf.mxu0
  %v2731 = vadd.f32 %v2082, %v2730
  %v2732 = vpop.f32.mrf.mxu0
  %v2733 = vadd.f32 %v2084, %v2732
  %2734 = vmatmul.bf16.gmra.mxu0 %v1233
  %v2735 = vpop.f32.mrf.mxu0
  %v2736 = vadd.f32 %v2087, %v2735
  %v2737 = vpop.f32.mrf.mxu0
  %v2738 = vadd.f32 %v2089, %v2737
  %2739 = vmatmul.bf16.gmra.mxu0 %v1235
  %v2740 = vpop.f32.mrf.mxu0
  %v2741 = vadd.f32 %v2092, %v2740
  %v2742 = vpop.f32.mrf.mxu0
  %v2743 = vadd.f32 %v2094, %v2742
  %2744 = vmatmul.bf16.gmra.mxu0 %v1237
  %v2745 = vpop.f32.mrf.mxu0
  %v2746 = vadd.f32 %v2097, %v2745
  %v2747 = vpop.f32.mrf.mxu0
  %v2748 = vadd.f32 %v2099, %v2747
  %2749 = vmatmul.bf16.gmra.mxu0 %v1239
  %v2750 = vpop.f32.mrf.mxu0
  %v2751 = vadd.f32 %v2102, %v2750
  %v2752 = vpop.f32.mrf.mxu0
  %v2753 = vadd.f32 %v2104, %v2752
  %2754 = vmatmul.bf16.gmra.mxu0 %v1241
  %v2755 = vpop.f32.mrf.mxu0
  %v2756 = vadd.f32 %v2107, %v2755
  %v2757 = vpop.f32.mrf.mxu0
  %v2758 = vadd.f32 %v2109, %v2757
  %2759 = vmatmul.bf16.gmra.mxu0 %v1243
  %v2760 = vpop.f32.mrf.mxu0
  %v2761 = vadd.f32 %v2112, %v2760
  %v2762 = vpop.f32.mrf.mxu0
  %v2763 = vadd.f32 %v2114, %v2762
  %2764 = vmatmul.bf16.gmra.mxu0 %v1245
  %v2765 = vpop.f32.mrf.mxu0
  %v2766 = vadd.f32 %v2117, %v2765
  %v2767 = vpop.f32.mrf.mxu0
  %v2768 = vadd.f32 %v2119, %v2767
  %2769 = vmatmul.bf16.gmra.mxu0 %v1247
  %v2770 = vpop.f32.mrf.mxu0
  %v2771 = vadd.f32 %v2122, %v2770
  %v2772 = vpop.f32.mrf.mxu0
  %v2773 = vadd.f32 %v2124, %v2772
  %2774 = vmatmul.bf16.gmra.mxu0 %v1249
  %v2775 = vpop.f32.mrf.mxu0
  %v2776 = vadd.f32 %v2127, %v2775
  %v2777 = vpop.f32.mrf.mxu0
  %v2778 = vadd.f32 %v2129, %v2777
  %2779 = vmatmul.bf16.gmra.mxu0 %v1251
  %v2780 = vpop.f32.mrf.mxu0
  %v2781 = vadd.f32 %v2132, %v2780
  %v2782 = vpop.f32.mrf.mxu0
  %v2783 = vadd.f32 %v2134, %v2782
  %2784 = vmatmul.bf16.gmra.mxu0 %v1253
  %v2785 = vpop.f32.mrf.mxu0
  %v2786 = vadd.f32 %v2137, %v2785
  %v2787 = vpop.f32.mrf.mxu0
  %v2788 = vadd.f32 %v2139, %v2787
  %2789 = vmatmul.bf16.gmra.mxu0 %v1255
  %v2790 = vpop.f32.mrf.mxu0
  %v2791 = vadd.f32 %v2142, %v2790
  %v2792 = vpop.f32.mrf.mxu0
  %v2793 = vadd.f32 %v2144, %v2792
  %2794 = vmatmul.bf16.gmra.mxu0 %v1257
  %v2795 = vpop.f32.mrf.mxu0
  %v2796 = vadd.f32 %v2147, %v2795
  %v2797 = vpop.f32.mrf.mxu0
  %v2798 = vadd.f32 %v2149, %v2797
  %2799 = vmatmul.bf16.gmra.mxu0 %v1259
  %v2800 = vpop.f32.mrf.mxu0
  %v2801 = vadd.f32 %v2152, %v2800
  %v2802 = vpop.f32.mrf.mxu0
  %v2803 = vadd.f32 %v2154, %v2802
  %2804 = vmatmul.bf16.gmra.mxu0 %v1261
  %v2805 = vpop.f32.mrf.mxu0
  %v2806 = vadd.f32 %v2157, %v2805
  %v2807 = vpop.f32.mrf.mxu0
  %v2808 = vadd.f32 %v2159, %v2807
  %2809 = vmatmul.bf16.gmra.mxu0 %v1263
  %v2810 = vpop.f32.mrf.mxu0
  %v2811 = vadd.f32 %v2162, %v2810
  %v2812 = vpop.f32.mrf.mxu0
  %v2813 = vadd.f32 %v2164, %v2812
  %2814 = vmatmul.bf16.gmra.mxu0 %v1265
  %v2815 = vpop.f32.mrf.mxu0
  %v2816 = vadd.f32 %v2167, %v2815
  %v2817 = vpop.f32.mrf.mxu0
  %v2818 = vadd.f32 %v2169, %v2817
  %2819 = vmatmul.bf16.gmra.mxu0 %v1267
  %v2820 = vpop.f32.mrf.mxu0
  %v2821 = vadd.f32 %v2172, %v2820
  %v2822 = vpop.f32.mrf.mxu0
  %v2823 = vadd.f32 %v2174, %v2822
  %2824 = vmatmul.bf16.gmra.mxu0 %v1269
  %v2825 = vpop.f32.mrf.mxu0
  %v2826 = vadd.f32 %v2177, %v2825
  %v2827 = vpop.f32.mrf.mxu0
  %v2828 = vadd.f32 %v2179, %v2827
  %2829 = vmatmul.bf16.gmra.mxu0 %v1271
  %v2830 = vpop.f32.mrf.mxu0
  %v2831 = vadd.f32 %v2182, %v2830
  %v2832 = vpop.f32.mrf.mxu0
  %v2833 = vadd.f32 %v2184, %v2832
  %2834 = vmatmul.bf16.gmra.mxu0 %v1273
  %v2835 = vpop.f32.mrf.mxu0
  %v2836 = vadd.f32 %v2187, %v2835
  %v2837 = vpop.f32.mrf.mxu0
  %v2838 = vadd.f32 %v2189, %v2837
  %2839 = vmatmul.bf16.gmra.mxu0 %v1275
  %v2840 = vpop.f32.mrf.mxu0
  %v2841 = vadd.f32 %v2192, %v2840
  %v2842 = vpop.f32.mrf.mxu0
  %v2843 = vadd.f32 %v2194, %v2842
  %2844 = vmatmul.bf16.gmra.mxu0 %v1277
  %v2845 = vpop.f32.mrf.mxu0
  %v2846 = vadd.f32 %v2197, %v2845
  %v2847 = vpop.f32.mrf.mxu0
  %v2848 = vadd.f32 %v2199, %v2847
  %2849 = vmatmul.bf16.gmra.mxu0 %v1279
  %v2850 = vpop.f32.mrf.mxu0
  %v2851 = vadd.f32 %v2202, %v2850
  %v2852 = vpop.f32.mrf.mxu0
  %v2853 = vadd.f32 %v2204, %v2852
  %2854 = vmatmul.bf16.gmra.mxu0 %v1281
  %v2855 = vpop.f32.mrf.mxu0
  %v2856 = vadd.f32 %v2207, %v2855
  %v2857 = vpop.f32.mrf.mxu0
  %v2858 = vadd.f32 %v2209, %v2857
  %2859 = vmatmul.bf16.gmra.mxu0 %v1283
  %v2860 = vpop.f32.mrf.mxu0
  %v2861 = vadd.f32 %v2212, %v2860
  %v2862 = vpop.f32.mrf.mxu0
  %v2863 = vadd.f32 %v2214, %v2862
  %2864 = vmatmul.bf16.gmra.mxu0 %v1285
  %v2865 = vpop.f32.mrf.mxu0
  %v2866 = vadd.f32 %v2217, %v2865
  %v2867 = vpop.f32.mrf.mxu0
  %v2868 = vadd.f32 %v2219, %v2867
  %2869 = vmatmul.bf16.gmra.mxu0 %v1287
  %v2870 = vpop.f32.mrf.mxu0
  %v2871 = vadd.f32 %v2222, %v2870
  %v2872 = vpop.f32.mrf.mxu0
  %v2873 = vadd.f32 %v2224, %v2872
  %2874 = vmatmul.bf16.gmra.mxu0 %v1289
  %v2875 = vpop.f32.mrf.mxu0
  %v2876 = vadd.f32 %v2227, %v2875
  %v2877 = vpop.f32.mrf.mxu0
  %v2878 = vadd.f32 %v2229, %v2877
  %2879 = vmatmul.bf16.gmra.mxu0 %v1291
  %v2880 = vpop.f32.mrf.mxu0
  %v2881 = vadd.f32 %v2232, %v2880
  %v2882 = vpop.f32.mrf.mxu0
  %v2883 = vadd.f32 %v2234, %v2882
  %2884 = vmatmul.bf16.gmra.mxu0 %v1293
  %v2885 = vpop.f32.mrf.mxu0
  %v2886 = vadd.f32 %v2237, %v2885
  %v2887 = vpop.f32.mrf.mxu0
  %v2888 = vadd.f32 %v2239, %v2887
  %2889 = vmatmul.bf16.gmra.mxu0 %v1295
  %v2890 = vpop.f32.mrf.mxu0
  %v2891 = vadd.f32 %v2242, %v2890
  %v2892 = vpop.f32.mrf.mxu0
  %v2893 = vadd.f32 %v2244, %v2892
  %2894 = vmatmul.bf16.gmra.mxu0 %v1297
  %v2895 = vpop.f32.mrf.mxu0
  %v2896 = vadd.f32 %v2247, %v2895
  %v2897 = vpop.f32.mrf.mxu0
  %v2898 = vadd.f32 %v2249, %v2897
  %2899 = vmatmul.bf16.gmra.mxu0 %v1299
  %v2900 = vpop.f32.mrf.mxu0
  %v2901 = vadd.f32 %v2252, %v2900
  %v2902 = vpop.f32.mrf.mxu0
  %v2903 = vadd.f32 %v2254, %v2902
  %2904 = vmatmul.bf16.gmra.mxu0 %v1301
  %v2905 = vpop.f32.mrf.mxu0
  %v2906 = vadd.f32 %v2257, %v2905
  %v2907 = vpop.f32.mrf.mxu0
  %v2908 = vadd.f32 %v2259, %v2907
  %2909 = vmatmul.bf16.gmra.mxu0 %v1303
  %v2910 = vpop.f32.mrf.mxu0
  %v2911 = vadd.f32 %v2262, %v2910
  %v2912 = vpop.f32.mrf.mxu0
  %v2913 = vadd.f32 %v2264, %v2912
  %2914 = vmatmul.bf16.gmra.mxu0 %v1305
  %v2915 = vpop.f32.mrf.mxu0
  %v2916 = vadd.f32 %v2267, %v2915
  %v2917 = vpop.f32.mrf.mxu0
  %v2918 = vadd.f32 %v2269, %v2917
  %2919 = vmatmul.bf16.gmra.mxu0 %v1307
  %v2920 = vpop.f32.mrf.mxu0
  %v2921 = vadd.f32 %v2272, %v2920
  %v2922 = vpop.f32.mrf.mxu0
  %v2923 = vadd.f32 %v2274, %v2922
  %2924 = vmatmul.bf16.gmra.mxu0 %v1309
  %v2925 = vpop.f32.mrf.mxu0
  %v2926 = vadd.f32 %v2277, %v2925
  %v2927 = vpop.f32.mrf.mxu0
  %v2928 = vadd.f32 %v2279, %v2927
  %2929 = vmatmul.bf16.gmra.mxu0 %v1311
  %v2930 = vpop.f32.mrf.mxu0
  %v2931 = vadd.f32 %v2282, %v2930
  %v2932 = vpop.f32.mrf.mxu0
  %v2933 = vadd.f32 %v2284, %v2932
  %2934 = vmatmul.bf16.gmra.mxu0 %v1313
  %v2935 = vpop.f32.mrf.mxu0
  %v2936 = vadd.f32 %v2287, %v2935
  %v2937 = vpop.f32.mrf.mxu0
  %v2938 = vadd.f32 %v2289, %v2937
  %2939 = vmatmul.bf16.gmra.mxu0 %v1315
  %v2940 = vpop.f32.mrf.mxu0
  %v2941 = vadd.f32 %v2292, %v2940
  %v2942 = vpop.f32.mrf.mxu0
  %v2943 = vadd.f32 %v2294, %v2942
  %2944 = vmatmul.bf16.gmra.mxu0 %v1317
  %v2945 = vpop.f32.mrf.mxu0
  %v2946 = vadd.f32 %v2297, %v2945
  %v2947 = vpop.f32.mrf.mxu0
  %v2948 = vadd.f32 %v2299, %v2947
  %2949 = vmatmul.bf16.gmra.mxu0 %v1319
  %v2950 = vpop.f32.mrf.mxu0
  %v2951 = vadd.f32 %v2302, %v2950
  %v2952 = vpop.f32.mrf.mxu0
  %v2953 = vadd.f32 %v2304, %v2952
  %2954 = vmatmul.bf16.gmra.mxu0 %v1321
  %v2955 = vpop.f32.mrf.mxu0
  %v2956 = vadd.f32 %v2307, %v2955
  %v2957 = vpop.f32.mrf.mxu0
  %v2958 = vadd.f32 %v2309, %v2957
  %2959 = vmatmul.bf16.gmra.mxu0 %v1323
  %v2960 = vpop.f32.mrf.mxu0
  %v2961 = vadd.f32 %v2312, %v2960
  %v2962 = vpop.f32.mrf.mxu0
  %v2963 = vadd.f32 %v2314, %v2962
  %2964 = vmatmul.bf16.gmra.mxu0 %v1325
  %v2965 = vpop.f32.mrf.mxu0
  %v2966 = vadd.f32 %v2317, %v2965
  %v2967 = vpop.f32.mrf.mxu0
  %v2968 = vadd.f32 %v2319, %v2967
  %2969 = vmatmul.bf16.gmra.mxu0 %v1327
  %v2970 = vpop.f32.mrf.mxu0
  %v2971 = vadd.f32 %v2322, %v2970
  %v2972 = vpop.f32.mrf.mxu0
  %v2973 = vadd.f32 %v2324, %v2972
  %2974 = vmatmul.bf16.gmra.mxu0 %v1329
  %v2975 = vpop.f32.mrf.mxu0
  %v2976 = vadd.f32 %v2327, %v2975
  %v2977 = vpop.f32.mrf.mxu0
  %v2978 = vadd.f32 %v2329, %v2977
  %2979 = vdwg.mxu0
  %v2980 = vmax.f32 %v2341, 0.0
  %v2981 = vmax.f32 %v2343, 0.0
  %v2982 = vmax.f32 %v2346, 0.0
  %v2983 = vmax.f32 %v2348, 0.0
  %v2984 = vmax.f32 %v2351, 0.0
  %v2985 = vmax.f32 %v2353, 0.0
  %v2986 = vmax.f32 %v2356, 0.0
  %v2987 = vmax.f32 %v2358, 0.0
  %v2988 = vmax.f32 %v2361, 0.0
  %v2989 = vmax.f32 %v2363, 0.0
  %v2990 = vmax.f32 %v2366, 0.0
  %v2991 = vmax.f32 %v2368, 0.0
  %v2992 = vmax.f32 %v2371, 0.0
  %v2993 = vmax.f32 %v2373, 0.0
  %v2994 = vmax.f32 %v2376, 0.0
  %v2995 = vmax.f32 %v2378, 0.0
  %v2996 = vmax.f32 %v2381, 0.0
  %v2997 = vmax.f32 %v2383, 0.0
  %v2998 = vmax.f32 %v2386, 0.0
  %v2999 = vmax.f32 %v2388, 0.0
  %v3000 = vmax.f32 %v2391, 0.0
  %v3001 = vmax.f32 %v2393, 0.0
  %v3002 = vmax.f32 %v2396, 0.0
  %v3003 = vmax.f32 %v2398, 0.0
  %v3004 = vmax.f32 %v2401, 0.0
  %v3005 = vmax.f32 %v2403, 0.0
  %v3006 = vmax.f32 %v2406, 0.0
  %v3007 = vmax.f32 %v2408, 0.0
  %v3008 = vmax.f32 %v2411, 0.0
  %v3009 = vmax.f32 %v2413, 0.0
  %v3010 = vmax.f32 %v2416, 0.0
  %v3011 = vmax.f32 %v2418, 0.0
  %v3012 = vmax.f32 %v2421, 0.0
  %v3013 = vmax.f32 %v2423, 0.0
  %v3014 = vmax.f32 %v2426, 0.0
  %v3015 = vmax.f32 %v2428, 0.0
  %v3016 = vmax.f32 %v2431, 0.0
  %v3017 = vmax.f32 %v2433, 0.0
  %v3018 = vmax.f32 %v2436, 0.0
  %v3019 = vmax.f32 %v2438, 0.0
  %v3020 = vmax.f32 %v2441, 0.0
  %v3021 = vmax.f32 %v2443, 0.0
  %v3022 = vmax.f32 %v2446, 0.0
  %v3023 = vmax.f32 %v2448, 0.0
  %v3024 = vmax.f32 %v2451, 0.0
  %v3025 = vmax.f32 %v2453, 0.0
  %v3026 = vmax.f32 %v2456, 0.0
  %v3027 = vmax.f32 %v2458, 0.0
  %v3028 = vmax.f32 %v2461, 0.0
  %v3029 = vmax.f32 %v2463, 0.0
  %v3030 = vmax.f32 %v2466, 0.0
  %v3031 = vmax.f32 %v2468, 0.0
  %v3032 = vmax.f32 %v2471, 0.0
  %v3033 = vmax.f32 %v2473, 0.0
  %v3034 = vmax.f32 %v2476, 0.0
  %v3035 = vmax.f32 %v2478, 0.0
  %v3036 = vmax.f32 %v2481, 0.0
  %v3037 = vmax.f32 %v2483, 0.0
  %v3038 = vmax.f32 %v2486, 0.0
  %v3039 = vmax.f32 %v2488, 0.0
  %v3040 = vmax.f32 %v2491, 0.0
  %v3041 = vmax.f32 %v2493, 0.0
  %v3042 = vmax.f32 %v2496, 0.0
  %v3043 = vmax.f32 %v2498, 0.0
  %v3044 = vmax.f32 %v2501, 0.0
  %v3045 = vmax.f32 %v2503, 0.0
  %v3046 = vmax.f32 %v2506, 0.0
  %v3047 = vmax.f32 %v2508, 0.0
  %v3048 = vmax.f32 %v2511, 0.0
  %v3049 = vmax.f32 %v2513, 0.0
  %v3050 = vmax.f32 %v2516, 0.0
  %v3051 = vmax.f32 %v2518, 0.0
  %v3052 = vmax.f32 %v2521, 0.0
  %v3053 = vmax.f32 %v2523, 0.0
  %v3054 = vmax.f32 %v2526, 0.0
  %v3055 = vmax.f32 %v2528, 0.0
  %v3056 = vmax.f32 %v2531, 0.0
  %v3057 = vmax.f32 %v2533, 0.0
  %v3058 = vmax.f32 %v2536, 0.0
  %v3059 = vmax.f32 %v2538, 0.0
  %v3060 = vmax.f32 %v2541, 0.0
  %v3061 = vmax.f32 %v2543, 0.0
  %v3062 = vmax.f32 %v2546, 0.0
  %v3063 = vmax.f32 %v2548, 0.0
  %v3064 = vmax.f32 %v2551, 0.0
  %v3065 = vmax.f32 %v2553, 0.0
  %v3066 = vmax.f32 %v2556, 0.0
  %v3067 = vmax.f32 %v2558, 0.0
  %v3068 = vmax.f32 %v2561, 0.0
  %v3069 = vmax.f32 %v2563, 0.0
  %v3070 = vmax.f32 %v2566, 0.0
  %v3071 = vmax.f32 %v2568, 0.0
  %v3072 = vmax.f32 %v2571, 0.0
  %v3073 = vmax.f32 %v2573, 0.0
  %v3074 = vmax.f32 %v2576, 0.0
  %v3075 = vmax.f32 %v2578, 0.0
  %v3076 = vmax.f32 %v2581, 0.0
  %v3077 = vmax.f32 %v2583, 0.0
  %v3078 = vmax.f32 %v2586, 0.0
  %v3079 = vmax.f32 %v2588, 0.0
  %v3080 = vmax.f32 %v2591, 0.0
  %v3081 = vmax.f32 %v2593, 0.0
  %v3082 = vmax.f32 %v2596, 0.0
  %v3083 = vmax.f32 %v2598, 0.0
  %v3084 = vmax.f32 %v2601, 0.0
  %v3085 = vmax.f32 %v2603, 0.0
  %v3086 = vmax.f32 %v2606, 0.0
  %v3087 = vmax.f32 %v2608, 0.0
  %v3088 = vmax.f32 %v2611, 0.0
  %v3089 = vmax.f32 %v2613, 0.0
  %v3090 = vmax.f32 %v2616, 0.0
  %v3091 = vmax.f32 %v2618, 0.0
  %v3092 = vmax.f32 %v2621, 0.0
  %v3093 = vmax.f32 %v2623, 0.0
  %v3094 = vmax.f32 %v2626, 0.0
  %v3095 = vmax.f32 %v2628, 0.0
  %v3096 = vmax.f32 %v2631, 0.0
  %v3097 = vmax.f32 %v2633, 0.0
  %v3098 = vmax.f32 %v2636, 0.0
  %v3099 = vmax.f32 %v2638, 0.0
  %v3100 = vmax.f32 %v2641, 0.0
  %v3101 = vmax.f32 %v2643, 0.0
  %v3102 = vmax.f32 %v2646, 0.0
  %v3103 = vmax.f32 %v2648, 0.0
  %v3104 = vmax.f32 %v2651, 0.0
  %v3105 = vmax.f32 %v2653, 0.0
  %v3106 = vmax.f32 %v2656, 0.0
  %v3107 = vmax.f32 %v2658, 0.0
  %v3108 = vmax.f32 %v2661, 0.0
  %v3109 = vmax.f32 %v2663, 0.0
  %v3110 = vmax.f32 %v2666, 0.0
  %v3111 = vmax.f32 %v2668, 0.0
  %v3112 = vmax.f32 %v2671, 0.0
  %v3113 = vmax.f32 %v2673, 0.0
  %v3114 = vmax.f32 %v2676, 0.0
  %v3115 = vmax.f32 %v2678, 0.0
  %v3116 = vmax.f32 %v2681, 0.0
  %v3117 = vmax.f32 %v2683, 0.0
  %v3118 = vmax.f32 %v2686, 0.0
  %v3119 = vmax.f32 %v2688, 0.0
  %v3120 = vmax.f32 %v2691, 0.0
  %v3121 = vmax.f32 %v2693, 0.0
  %v3122 = vmax.f32 %v2696, 0.0
  %v3123 = vmax.f32 %v2698, 0.0
  %v3124 = vmax.f32 %v2701, 0.0
  %v3125 = vmax.f32 %v2703, 0.0
  %v3126 = vmax.f32 %v2706, 0.0
  %v3127 = vmax.f32 %v2708, 0.0
  %v3128 = vmax.f32 %v2711, 0.0
  %v3129 = vmax.f32 %v2713, 0.0
  %v3130 = vmax.f32 %v2716, 0.0
  %v3131 = vmax.f32 %v2718, 0.0
  %v3132 = vmax.f32 %v2721, 0.0
  %v3133 = vmax.f32 %v2723, 0.0
  %v3134 = vmax.f32 %v2726, 0.0
  %v3135 = vmax.f32 %v2728, 0.0
  %v3136 = vmax.f32 %v2731, 0.0
  %v3137 = vmax.f32 %v2733, 0.0
  %v3138 = vmax.f32 %v2736, 0.0
  %v3139 = vmax.f32 %v2738, 0.0
  %v3140 = vmax.f32 %v2741, 0.0
  %v3141 = vmax.f32 %v2743, 0.0
  %v3142 = vmax.f32 %v2746, 0.0
  %v3143 = vmax.f32 %v2748, 0.0
  %v3144 = vmax.f32 %v2751, 0.0
  %v3145 = vmax.f32 %v2753, 0.0
  %v3146 = vmax.f32 %v2756, 0.0
  %v3147 = vmax.f32 %v2758, 0.0
  %v3148 = vmax.f32 %v2761, 0.0
  %v3149 = vmax.f32 %v2763, 0.0
  %v3150 = vmax.f32 %v2766, 0.0
  %v3151 = vmax.f32 %v2768, 0.0
  %v3152 = vmax.f32 %v2771, 0.0
  %v3153 = vmax.f32 %v2773, 0.0
  %v3154 = vmax.f32 %v2776, 0.0
  %v3155 = vmax.f32 %v2778, 0.0
  %v3156 = vmax.f32 %v2781, 0.0
  %v3157 = vmax.f32 %v2783, 0.0
  %v3158 = vmax.f32 %v2786, 0.0
  %v3159 = vmax.f32 %v2788, 0.0
  %v3160 = vmax.f32 %v2791, 0.0
  %v3161 = vmax.f32 %v2793, 0.0
  %v3162 = vmax.f32 %v2796, 0.0
  %v3163 = vmax.f32 %v2798, 0.0
  %v3164 = vmax.f32 %v2801, 0.0
  %v3165 = vmax.f32 %v2803, 0.0
  %v3166 = vmax.f32 %v2806, 0.0
  %v3167 = vmax.f32 %v2808, 0.0
  %v3168 = vmax.f32 %v2811, 0.0
  %v3169 = vmax.f32 %v2813, 0.0
  %v3170 = vmax.f32 %v2816, 0.0
  %v3171 = vmax.f32 %v2818, 0.0
  %v3172 = vmax.f32 %v2821, 0.0
  %v3173 = vmax.f32 %v2823, 0.0
  %v3174 = vmax.f32 %v2826, 0.0
  %v3175 = vmax.f32 %v2828, 0.0
  %v3176 = vmax.f32 %v2831, 0.0
  %v3177 = vmax.f32 %v2833, 0.0
  %v3178 = vmax.f32 %v2836, 0.0
  %v3179 = vmax.f32 %v2838, 0.0
  %v3180 = vmax.f32 %v2841, 0.0
  %v3181 = vmax.f32 %v2843, 0.0
  %v3182 = vmax.f32 %v2846, 0.0
  %v3183 = vmax.f32 %v2848, 0.0
  %v3184 = vmax.f32 %v2851, 0.0
  %v3185 = vmax.f32 %v2853, 0.0
  %v3186 = vmax.f32 %v2856, 0.0
  %v3187 = vmax.f32 %v2858, 0.0
  %v3188 = vmax.f32 %v2861, 0.0
  %v3189 = vmax.f32 %v2863, 0.0
  %v3190 = vmax.f32 %v2866, 0.0
  %v3191 = vmax.f32 %v2868, 0.0
  %v3192 = vmax.f32 %v2871, 0.0
  %v3193 = vmax.f32 %v2873, 0.0
  %v3194 = vmax.f32 %v2876, 0.0
  %v3195 = vmax.f32 %v2878, 0.0
  %v3196 = vmax.f32 %v2881, 0.0
  %v3197 = vmax.f32 %v2883, 0.0
  %v3198 = vmax.f32 %v2886, 0.0
  %v3199 = vmax.f32 %v2888, 0.0
  %v3200 = vmax.f32 %v2891, 0.0
  %v3201 = vmax.f32 %v2893, 0.0
  %v3202 = vmax.f32 %v2896, 0.0
  %v3203 = vmax.f32 %v2898, 0.0
  %v3204 = vmax.f32 %v2901, 0.0
  %v3205 = vmax.f32 %v2903, 0.0
  %v3206 = vmax.f32 %v2906, 0.0
  %v3207 = vmax.f32 %v2908, 0.0
  %v3208 = vmax.f32 %v2911, 0.0
  %v3209 = vmax.f32 %v2913, 0.0
  %v3210 = vmax.f32 %v2916, 0.0
  %v3211 = vmax.f32 %v2918, 0.0
  %v3212 = vmax.f32 %v2921, 0.0
  %v3213 = vmax.f32 %v2923, 0.0
  %v3214 = vmax.f32 %v2926, 0.0
  %v3215 = vmax.f32 %v2928, 0.0
  %v3216 = vmax.f32 %v2931, 0.0
  %v3217 = vmax.f32 %v2933, 0.0
  %v3218 = vmax.f32 %v2936, 0.0
  %v3219 = vmax.f32 %v2938, 0.0
  %v3220 = vmax.f32 %v2941, 0.0
  %v3221 = vmax.f32 %v2943, 0.0
  %v3222 = vmax.f32 %v2946, 0.0
  %v3223 = vmax.f32 %v2948, 0.0
  %v3224 = vmax.f32 %v2951, 0.0
  %v3225 = vmax.f32 %v2953, 0.0
  %v3226 = vmax.f32 %v2956, 0.0
  %v3227 = vmax.f32 %v2958, 0.0
  %v3228 = vmax.f32 %v2961, 0.0
  %v3229 = vmax.f32 %v2963, 0.0
  %v3230 = vmax.f32 %v2966, 0.0
  %v3231 = vmax.f32 %v2968, 0.0
  %v3232 = vmax.f32 %v2971, 0.0
  %v3233 = vmax.f32 %v2973, 0.0
  %v3234 = vmax.f32 %v2976, 0.0
  %v3235 = vmax.f32 %v2978, 0.0
  %v3236 = vpack.c.bf16 %v2980, %v2980
  %v3237 = vpack.c.bf16 %v2981, %v2981
  %v3238 = vpack.c.bf16 %v2982, %v2982
  %v3239 = vpack.c.bf16 %v2983, %v2983
  %v3240 = vpack.c.bf16 %v2984, %v2984
  %v3241 = vpack.c.bf16 %v2985, %v2985
  %v3242 = vpack.c.bf16 %v2986, %v2986
  %v3243 = vpack.c.bf16 %v2987, %v2987
  %v3244 = vpack.c.bf16 %v2988, %v2988
  %v3245 = vpack.c.bf16 %v2989, %v2989
  %v3246 = vpack.c.bf16 %v2990, %v2990
  %v3247 = vpack.c.bf16 %v2991, %v2991
  %v3248 = vpack.c.bf16 %v2992, %v2992
  %v3249 = vpack.c.bf16 %v2993, %v2993
  %v3250 = vpack.c.bf16 %v2994, %v2994
  %v3251 = vpack.c.bf16 %v2995, %v2995
  %v3252 = vpack.c.bf16 %v2996, %v2996
  %v3253 = vpack.c.bf16 %v2997, %v2997
  %v3254 = vpack.c.bf16 %v2998, %v2998
  %v3255 = vpack.c.bf16 %v2999, %v2999
  %v3256 = vpack.c.bf16 %v3000, %v3000
  %v3257 = vpack.c.bf16 %v3001, %v3001
  %v3258 = vpack.c.bf16 %v3002, %v3002
  %v3259 = vpack.c.bf16 %v3003, %v3003
  %v3260 = vpack.c.bf16 %v3004, %v3004
  %v3261 = vpack.c.bf16 %v3005, %v3005
  %v3262 = vpack.c.bf16 %v3006, %v3006
  %v3263 = vpack.c.bf16 %v3007, %v3007
  %v3264 = vpack.c.bf16 %v3008, %v3008
  %v3265 = vpack.c.bf16 %v3009, %v3009
  %v3266 = vpack.c.bf16 %v3010, %v3010
  %v3267 = vpack.c.bf16 %v3011, %v3011
  %v3268 = vpack.c.bf16 %v3012, %v3012
  %v3269 = vpack.c.bf16 %v3013, %v3013
  %v3270 = vpack.c.bf16 %v3014, %v3014
  %v3271 = vpack.c.bf16 %v3015, %v3015
  %v3272 = vpack.c.bf16 %v3016, %v3016
  %v3273 = vpack.c.bf16 %v3017, %v3017
  %v3274 = vpack.c.bf16 %v3018, %v3018
  %v3275 = vpack.c.bf16 %v3019, %v3019
  %v3276 = vpack.c.bf16 %v3020, %v3020
  %v3277 = vpack.c.bf16 %v3021, %v3021
  %v3278 = vpack.c.bf16 %v3022, %v3022
  %v3279 = vpack.c.bf16 %v3023, %v3023
  %v3280 = vpack.c.bf16 %v3024, %v3024
  %v3281 = vpack.c.bf16 %v3025, %v3025
  %v3282 = vpack.c.bf16 %v3026, %v3026
  %v3283 = vpack.c.bf16 %v3027, %v3027
  %v3284 = vpack.c.bf16 %v3028, %v3028
  %v3285 = vpack.c.bf16 %v3029, %v3029
  %v3286 = vpack.c.bf16 %v3030, %v3030
  %v3287 = vpack.c.bf16 %v3031, %v3031
  %v3288 = vpack.c.bf16 %v3032, %v3032
  %v3289 = vpack.c.bf16 %v3033, %v3033
  %v3290 = vpack.c.bf16 %v3034, %v3034
  %v3291 = vpack.c.bf16 %v3035, %v3035
  %v3292 = vpack.c.bf16 %v3036, %v3036
  %v3293 = vpack.c.bf16 %v3037, %v3037
  %v3294 = vpack.c.bf16 %v3038, %v3038
  %v3295 = vpack.c.bf16 %v3039, %v3039
  %v3296 = vpack.c.bf16 %v3040, %v3040
  %v3297 = vpack.c.bf16 %v3041, %v3041
  %v3298 = vpack.c.bf16 %v3042, %v3042
  %v3299 = vpack.c.bf16 %v3043, %v3043
  %v3300 = vpack.c.bf16 %v3044, %v3044
  %v3301 = vpack.c.bf16 %v3045, %v3045
  %v3302 = vpack.c.bf16 %v3046, %v3046
  %v3303 = vpack.c.bf16 %v3047, %v3047
  %v3304 = vpack.c.bf16 %v3048, %v3048
  %v3305 = vpack.c.bf16 %v3049, %v3049
  %v3306 = vpack.c.bf16 %v3050, %v3050
  %v3307 = vpack.c.bf16 %v3051, %v3051
  %v3308 = vpack.c.bf16 %v3052, %v3052
  %v3309 = vpack.c.bf16 %v3053, %v3053
  %v3310 = vpack.c.bf16 %v3054, %v3054
  %v3311 = vpack.c.bf16 %v3055, %v3055
  %v3312 = vpack.c.bf16 %v3056, %v3056
  %v3313 = vpack.c.bf16 %v3057, %v3057
  %v3314 = vpack.c.bf16 %v3058, %v3058
  %v3315 = vpack.c.bf16 %v3059, %v3059
  %v3316 = vpack.c.bf16 %v3060, %v3060
  %v3317 = vpack.c.bf16 %v3061, %v3061
  %v3318 = vpack.c.bf16 %v3062, %v3062
  %v3319 = vpack.c.bf16 %v3063, %v3063
  %v3320 = vpack.c.bf16 %v3064, %v3064
  %v3321 = vpack.c.bf16 %v3065, %v3065
  %v3322 = vpack.c.bf16 %v3066, %v3066
  %v3323 = vpack.c.bf16 %v3067, %v3067
  %v3324 = vpack.c.bf16 %v3068, %v3068
  %v3325 = vpack.c.bf16 %v3069, %v3069
  %v3326 = vpack.c.bf16 %v3070, %v3070
  %v3327 = vpack.c.bf16 %v3071, %v3071
  %v3328 = vpack.c.bf16 %v3072, %v3072
  %v3329 = vpack.c.bf16 %v3073, %v3073
  %v3330 = vpack.c.bf16 %v3074, %v3074
  %v3331 = vpack.c.bf16 %v3075, %v3075
  %v3332 = vpack.c.bf16 %v3076, %v3076
  %v3333 = vpack.c.bf16 %v3077, %v3077
  %v3334 = vpack.c.bf16 %v3078, %v3078
  %v3335 = vpack.c.bf16 %v3079, %v3079
  %v3336 = vpack.c.bf16 %v3080, %v3080
  %v3337 = vpack.c.bf16 %v3081, %v3081
  %v3338 = vpack.c.bf16 %v3082, %v3082
  %v3339 = vpack.c.bf16 %v3083, %v3083
  %v3340 = vpack.c.bf16 %v3084, %v3084
  %v3341 = vpack.c.bf16 %v3085, %v3085
  %v3342 = vpack.c.bf16 %v3086, %v3086
  %v3343 = vpack.c.bf16 %v3087, %v3087
  %v3344 = vpack.c.bf16 %v3088, %v3088
  %v3345 = vpack.c.bf16 %v3089, %v3089
  %v3346 = vpack.c.bf16 %v3090, %v3090
  %v3347 = vpack.c.bf16 %v3091, %v3091
  %v3348 = vpack.c.bf16 %v3092, %v3092
  %v3349 = vpack.c.bf16 %v3093, %v3093
  %v3350 = vpack.c.bf16 %v3094, %v3094
  %v3351 = vpack.c.bf16 %v3095, %v3095
  %v3352 = vpack.c.bf16 %v3096, %v3096
  %v3353 = vpack.c.bf16 %v3097, %v3097
  %v3354 = vpack.c.bf16 %v3098, %v3098
  %v3355 = vpack.c.bf16 %v3099, %v3099
  %v3356 = vpack.c.bf16 %v3100, %v3100
  %v3357 = vpack.c.bf16 %v3101, %v3101
  %v3358 = vpack.c.bf16 %v3102, %v3102
  %v3359 = vpack.c.bf16 %v3103, %v3103
  %v3360 = vpack.c.bf16 %v3104, %v3104
  %v3361 = vpack.c.bf16 %v3105, %v3105
  %v3362 = vpack.c.bf16 %v3106, %v3106
  %v3363 = vpack.c.bf16 %v3107, %v3107
  %v3364 = vpack.c.bf16 %v3108, %v3108
  %v3365 = vpack.c.bf16 %v3109, %v3109
  %v3366 = vpack.c.bf16 %v3110, %v3110
  %v3367 = vpack.c.bf16 %v3111, %v3111
  %v3368 = vpack.c.bf16 %v3112, %v3112
  %v3369 = vpack.c.bf16 %v3113, %v3113
  %v3370 = vpack.c.bf16 %v3114, %v3114
  %v3371 = vpack.c.bf16 %v3115, %v3115
  %v3372 = vpack.c.bf16 %v3116, %v3116
  %v3373 = vpack.c.bf16 %v3117, %v3117
  %v3374 = vpack.c.bf16 %v3118, %v3118
  %v3375 = vpack.c.bf16 %v3119, %v3119
  %v3376 = vpack.c.bf16 %v3120, %v3120
  %v3377 = vpack.c.bf16 %v3121, %v3121
  %v3378 = vpack.c.bf16 %v3122, %v3122
  %v3379 = vpack.c.bf16 %v3123, %v3123
  %v3380 = vpack.c.bf16 %v3124, %v3124
  %v3381 = vpack.c.bf16 %v3125, %v3125
  %v3382 = vpack.c.bf16 %v3126, %v3126
  %v3383 = vpack.c.bf16 %v3127, %v3127
  %v3384 = vpack.c.bf16 %v3128, %v3128
  %v3385 = vpack.c.bf16 %v3129, %v3129
  %v3386 = vpack.c.bf16 %v3130, %v3130
  %v3387 = vpack.c.bf16 %v3131, %v3131
  %v3388 = vpack.c.bf16 %v3132, %v3132
  %v3389 = vpack.c.bf16 %v3133, %v3133
  %v3390 = vpack.c.bf16 %v3134, %v3134
  %v3391 = vpack.c.bf16 %v3135, %v3135
  %v3392 = vpack.c.bf16 %v3136, %v3136
  %v3393 = vpack.c.bf16 %v3137, %v3137
  %v3394 = vpack.c.bf16 %v3138, %v3138
  %v3395 = vpack.c.bf16 %v3139, %v3139
  %v3396 = vpack.c.bf16 %v3140, %v3140
  %v3397 = vpack.c.bf16 %v3141, %v3141
  %v3398 = vpack.c.bf16 %v3142, %v3142
  %v3399 = vpack.c.bf16 %v3143, %v3143
  %v3400 = vpack.c.bf16 %v3144, %v3144
  %v3401 = vpack.c.bf16 %v3145, %v3145
  %v3402 = vpack.c.bf16 %v3146, %v3146
  %v3403 = vpack.c.bf16 %v3147, %v3147
  %v3404 = vpack.c.bf16 %v3148, %v3148
  %v3405 = vpack.c.bf16 %v3149, %v3149
  %v3406 = vpack.c.bf16 %v3150, %v3150
  %v3407 = vpack.c.bf16 %v3151, %v3151
  %v3408 = vpack.c.bf16 %v3152, %v3152
  %v3409 = vpack.c.bf16 %v3153, %v3153
  %v3410 = vpack.c.bf16 %v3154, %v3154
  %v3411 = vpack.c.bf16 %v3155, %v3155
  %v3412 = vpack.c.bf16 %v3156, %v3156
  %v3413 = vpack.c.bf16 %v3157, %v3157
  %v3414 = vpack.c.bf16 %v3158, %v3158
  %v3415 = vpack.c.bf16 %v3159, %v3159
  %v3416 = vpack.c.bf16 %v3160, %v3160
  %v3417 = vpack.c.bf16 %v3161, %v3161
  %v3418 = vpack.c.bf16 %v3162, %v3162
  %v3419 = vpack.c.bf16 %v3163, %v3163
  %v3420 = vpack.c.bf16 %v3164, %v3164
  %v3421 = vpack.c.bf16 %v3165, %v3165
  %v3422 = vpack.c.bf16 %v3166, %v3166
  %v3423 = vpack.c.bf16 %v3167, %v3167
  %v3424 = vpack.c.bf16 %v3168, %v3168
  %v3425 = vpack.c.bf16 %v3169, %v3169
  %v3426 = vpack.c.bf16 %v3170, %v3170
  %v3427 = vpack.c.bf16 %v3171, %v3171
  %v3428 = vpack.c.bf16 %v3172, %v3172
  %v3429 = vpack.c.bf16 %v3173, %v3173
  %v3430 = vpack.c.bf16 %v3174, %v3174
  %v3431 = vpack.c.bf16 %v3175, %v3175
  %v3432 = vpack.c.bf16 %v3176, %v3176
  %v3433 = vpack.c.bf16 %v3177, %v3177
  %v3434 = vpack.c.bf16 %v3178, %v3178
  %v3435 = vpack.c.bf16 %v3179, %v3179
  %v3436 = vpack.c.bf16 %v3180, %v3180
  %v3437 = vpack.c.bf16 %v3181, %v3181
  %v3438 = vpack.c.bf16 %v3182, %v3182
  %v3439 = vpack.c.bf16 %v3183, %v3183
  %v3440 = vpack.c.bf16 %v3184, %v3184
  %v3441 = vpack.c.bf16 %v3185, %v3185
  %v3442 = vpack.c.bf16 %v3186, %v3186
  %v3443 = vpack.c.bf16 %v3187, %v3187
  %v3444 = vpack.c.bf16 %v3188, %v3188
  %v3445 = vpack.c.bf16 %v3189, %v3189
  %v3446 = vpack.c.bf16 %v3190, %v3190
  %v3447 = vpack.c.bf16 %v3191, %v3191
  %v3448 = vpack.c.bf16 %v3192, %v3192
  %v3449 = vpack.c.bf16 %v3193, %v3193
  %v3450 = vpack.c.bf16 %v3194, %v3194
  %v3451 = vpack.c.bf16 %v3195, %v3195
  %v3452 = vpack.c.bf16 %v3196, %v3196
  %v3453 = vpack.c.bf16 %v3197, %v3197
  %v3454 = vpack.c.bf16 %v3198, %v3198
  %v3455 = vpack.c.bf16 %v3199, %v3199
  %v3456 = vpack.c.bf16 %v3200, %v3200
  %v3457 = vpack.c.bf16 %v3201, %v3201
  %v3458 = vpack.c.bf16 %v3202, %v3202
  %v3459 = vpack.c.bf16 %v3203, %v3203
  %v3460 = vpack.c.bf16 %v3204, %v3204
  %v3461 = vpack.c.bf16 %v3205, %v3205
  %v3462 = vpack.c.bf16 %v3206, %v3206
  %v3463 = vpack.c.bf16 %v3207, %v3207
  %v3464 = vpack.c.bf16 %v3208, %v3208
  %v3465 = vpack.c.bf16 %v3209, %v3209
  %v3466 = vpack.c.bf16 %v3210, %v3210
  %v3467 = vpack.c.bf16 %v3211, %v3211
  %v3468 = vpack.c.bf16 %v3212, %v3212
  %v3469 = vpack.c.bf16 %v3213, %v3213
  %v3470 = vpack.c.bf16 %v3214, %v3214
  %v3471 = vpack.c.bf16 %v3215, %v3215
  %v3472 = vpack.c.bf16 %v3216, %v3216
  %v3473 = vpack.c.bf16 %v3217, %v3217
  %v3474 = vpack.c.bf16 %v3218, %v3218
  %v3475 = vpack.c.bf16 %v3219, %v3219
  %v3476 = vpack.c.bf16 %v3220, %v3220
  %v3477 = vpack.c.bf16 %v3221, %v3221
  %v3478 = vpack.c.bf16 %v3222, %v3222
  %v3479 = vpack.c.bf16 %v3223, %v3223
  %v3480 = vpack.c.bf16 %v3224, %v3224
  %v3481 = vpack.c.bf16 %v3225, %v3225
  %v3482 = vpack.c.bf16 %v3226, %v3226
  %v3483 = vpack.c.bf16 %v3227, %v3227
  %v3484 = vpack.c.bf16 %v3228, %v3228
  %v3485 = vpack.c.bf16 %v3229, %v3229
  %v3486 = vpack.c.bf16 %v3230, %v3230
  %v3487 = vpack.c.bf16 %v3231, %v3231
  %v3488 = vpack.c.bf16 %v3232, %v3232
  %v3489 = vpack.c.bf16 %v3233, %v3233
  %v3490 = vpack.c.bf16 %v3234, %v3234
  %v3491 = vpack.c.bf16 %v3235, %v3235
  %3492 = vst [vmem:[%s3] sm:$0xf] %v3236
  %3493 = vst [vmem:[%s3 + $0x4] sm:$0xf] %v3237
  %3494 = vst [vmem:[%s3 + $0x8] sm:$0xf] %v3238
  %3495 = vst [vmem:[%s3 + $0xc] sm:$0xf] %v3239
  %3496 = vst [vmem:[%s3 + $0x10] sm:$0xf] %v3240
  %3497 = vst [vmem:[%s3 + $0x14] sm:$0xf] %v3241
  %3498 = vst [vmem:[%s3 + $0x18] sm:$0xf] %v3242
  %3499 = vst [vmem:[%s3 + $0x1c] sm:$0xf] %v3243
  %3500 = vst [vmem:[%s3 + $0x20] sm:$0xf] %v3244
  %3501 = vst [vmem:[%s3 + $0x24] sm:$0xf] %v3245
  %3502 = vst [vmem:[%s3 + $0x28] sm:$0xf] %v3246
  %3503 = vst [vmem:[%s3 + $0x2c] sm:$0xf] %v3247
  %3504 = vst [vmem:[%s3 + $0x30] sm:$0xf] %v3248
  %3505 = vst [vmem:[%s3 + $0x34] sm:$0xf] %v3249
  %3506 = vst [vmem:[%s3 + $0x38] sm:$0xf] %v3250
  %3507 = vst [vmem:[%s3 + $0x3c] sm:$0xf] %v3251
  %3508 = vst [vmem:[%s3 + $0x40] sm:$0xf] %v3252
  %3509 = vst [vmem:[%s3 + $0x44] sm:$0xf] %v3253
  %3510 = vst [vmem:[%s3 + $0x48] sm:$0xf] %v3254
  %3511 = vst [vmem:[%s3 + $0x4c] sm:$0xf] %v3255
  %3512 = vst [vmem:[%s3 + $0x50] sm:$0xf] %v3256
  %3513 = vst [vmem:[%s3 + $0x54] sm:$0xf] %v3257
  %3514 = vst [vmem:[%s3 + $0x58] sm:$0xf] %v3258
  %3515 = vst [vmem:[%s3 + $0x5c] sm:$0xf] %v3259
  %3516 = vst [vmem:[%s3 + $0x60] sm:$0xf] %v3260
  %3517 = vst [vmem:[%s3 + $0x64] sm:$0xf] %v3261
  %3518 = vst [vmem:[%s3 + $0x68] sm:$0xf] %v3262
  %3519 = vst [vmem:[%s3 + $0x6c] sm:$0xf] %v3263
  %3520 = vst [vmem:[%s3 + $0x70] sm:$0xf] %v3264
  %3521 = vst [vmem:[%s3 + $0x74] sm:$0xf] %v3265
  %3522 = vst [vmem:[%s3 + $0x78] sm:$0xf] %v3266
  %3523 = vst [vmem:[%s3 + $0x7c] sm:$0xf] %v3267
  %3524 = vst [vmem:[%s3 + $0x80] sm:$0xf] %v3268
  %3525 = vst [vmem:[%s3 + $0x84] sm:$0xf] %v3269
  %3526 = vst [vmem:[%s3 + $0x88] sm:$0xf] %v3270
  %3527 = vst [vmem:[%s3 + $0x8c] sm:$0xf] %v3271
  %3528 = vst [vmem:[%s3 + $0x90] sm:$0xf] %v3272
  %3529 = vst [vmem:[%s3 + $0x94] sm:$0xf] %v3273
  %3530 = vst [vmem:[%s3 + $0x98] sm:$0xf] %v3274
  %3531 = vst [vmem:[%s3 + $0x9c] sm:$0xf] %v3275
  %3532 = vst [vmem:[%s3 + $0xa0] sm:$0xf] %v3276
  %3533 = vst [vmem:[%s3 + $0xa4] sm:$0xf] %v3277
  %3534 = vst [vmem:[%s3 + $0xa8] sm:$0xf] %v3278
  %3535 = vst [vmem:[%s3 + $0xac] sm:$0xf] %v3279
  %3536 = vst [vmem:[%s3 + $0xb0] sm:$0xf] %v3280
  %3537 = vst [vmem:[%s3 + $0xb4] sm:$0xf] %v3281
  %3538 = vst [vmem:[%s3 + $0xb8] sm:$0xf] %v3282
  %3539 = vst [vmem:[%s3 + $0xbc] sm:$0xf] %v3283
  %3540 = vst [vmem:[%s3 + $0xc0] sm:$0xf] %v3284
  %3541 = vst [vmem:[%s3 + $0xc4] sm:$0xf] %v3285
  %3542 = vst [vmem:[%s3 + $0xc8] sm:$0xf] %v3286
  %3543 = vst [vmem:[%s3 + $0xcc] sm:$0xf] %v3287
  %3544 = vst [vmem:[%s3 + $0xd0] sm:$0xf] %v3288
  %3545 = vst [vmem:[%s3 + $0xd4] sm:$0xf] %v3289
  %3546 = vst [vmem:[%s3 + $0xd8] sm:$0xf] %v3290
  %3547 = vst [vmem:[%s3 + $0xdc] sm:$0xf] %v3291
  %3548 = vst [vmem:[%s3 + $0xe0] sm:$0xf] %v3292
  %3549 = vst [vmem:[%s3 + $0xe4] sm:$0xf] %v3293
  %3550 = vst [vmem:[%s3 + $0xe8] sm:$0xf] %v3294
  %3551 = vst [vmem:[%s3 + $0xec] sm:$0xf] %v3295
  %3552 = vst [vmem:[%s3 + $0xf0] sm:$0xf] %v3296
  %3553 = vst [vmem:[%s3 + $0xf4] sm:$0xf] %v3297
  %3554 = vst [vmem:[%s3 + $0xf8] sm:$0xf] %v3298
  %3555 = vst [vmem:[%s3 + $0xfc] sm:$0xf] %v3299
  %3556 = vst [vmem:[%s3 + $0x100] sm:$0xf] %v3300
  %3557 = vst [vmem:[%s3 + $0x104] sm:$0xf] %v3301
  %3558 = vst [vmem:[%s3 + $0x108] sm:$0xf] %v3302
  %3559 = vst [vmem:[%s3 + $0x10c] sm:$0xf] %v3303
  %3560 = vst [vmem:[%s3 + $0x110] sm:$0xf] %v3304
  %3561 = vst [vmem:[%s3 + $0x114] sm:$0xf] %v3305
  %3562 = vst [vmem:[%s3 + $0x118] sm:$0xf] %v3306
  %3563 = vst [vmem:[%s3 + $0x11c] sm:$0xf] %v3307
  %3564 = vst [vmem:[%s3 + $0x120] sm:$0xf] %v3308
  %3565 = vst [vmem:[%s3 + $0x124] sm:$0xf] %v3309
  %3566 = vst [vmem:[%s3 + $0x128] sm:$0xf] %v3310
  %3567 = vst [vmem:[%s3 + $0x12c] sm:$0xf] %v3311
  %3568 = vst [vmem:[%s3 + $0x130] sm:$0xf] %v3312
  %3569 = vst [vmem:[%s3 + $0x134] sm:$0xf] %v3313
  %3570 = vst [vmem:[%s3 + $0x138] sm:$0xf] %v3314
  %3571 = vst [vmem:[%s3 + $0x13c] sm:$0xf] %v3315
  %3572 = vst [vmem:[%s3 + $0x140] sm:$0xf] %v3316
  %3573 = vst [vmem:[%s3 + $0x144] sm:$0xf] %v3317
  %3574 = vst [vmem:[%s3 + $0x148] sm:$0xf] %v3318
  %3575 = vst [vmem:[%s3 + $0x14c] sm:$0xf] %v3319
  %3576 = vst [vmem:[%s3 + $0x150] sm:$0xf] %v3320
  %3577 = vst [vmem:[%s3 + $0x154] sm:$0xf] %v3321
  %3578 = vst [vmem:[%s3 + $0x158] sm:$0xf] %v3322
  %3579 = vst [vmem:[%s3 + $0x15c] sm:$0xf] %v3323
  %3580 = vst [vmem:[%s3 + $0x160] sm:$0xf] %v3324
  %3581 = vst [vmem:[%s3 + $0x164] sm:$0xf] %v3325
  %3582 = vst [vmem:[%s3 + $0x168] sm:$0xf] %v3326
  %3583 = vst [vmem:[%s3 + $0x16c] sm:$0xf] %v3327
  %3584 = vst [vmem:[%s3 + $0x170] sm:$0xf] %v3328
  %3585 = vst [vmem:[%s3 + $0x174] sm:$0xf] %v3329
  %3586 = vst [vmem:[%s3 + $0x178] sm:$0xf] %v3330
  %3587 = vst [vmem:[%s3 + $0x17c] sm:$0xf] %v3331
  %3588 = vst [vmem:[%s3 + $0x180] sm:$0xf] %v3332
  %3589 = vst [vmem:[%s3 + $0x184] sm:$0xf] %v3333
  %3590 = vst [vmem:[%s3 + $0x188] sm:$0xf] %v3334
  %3591 = vst [vmem:[%s3 + $0x18c] sm:$0xf] %v3335
  %3592 = vst [vmem:[%s3 + $0x190] sm:$0xf] %v3336
  %3593 = vst [vmem:[%s3 + $0x194] sm:$0xf] %v3337
  %3594 = vst [vmem:[%s3 + $0x198] sm:$0xf] %v3338
  %3595 = vst [vmem:[%s3 + $0x19c] sm:$0xf] %v3339
  %3596 = vst [vmem:[%s3 + $0x1a0] sm:$0xf] %v3340
  %3597 = vst [vmem:[%s3 + $0x1a4] sm:$0xf] %v3341
  %3598 = vst [vmem:[%s3 + $0x1a8] sm:$0xf] %v3342
  %3599 = vst [vmem:[%s3 + $0x1ac] sm:$0xf] %v3343
  %3600 = vst [vmem:[%s3 + $0x1b0] sm:$0xf] %v3344
  %3601 = vst [vmem:[%s3 + $0x1b4] sm:$0xf] %v3345
  %3602 = vst [vmem:[%s3 + $0x1b8] sm:$0xf] %v3346
  %3603 = vst [vmem:[%s3 + $0x1bc] sm:$0xf] %v3347
  %3604 = vst [vmem:[%s3 + $0x1c0] sm:$0xf] %v3348
  %3605 = vst [vmem:[%s3 + $0x1c4] sm:$0xf] %v3349
  %3606 = vst [vmem:[%s3 + $0x1c8] sm:$0xf] %v3350
  %3607 = vst [vmem:[%s3 + $0x1cc] sm:$0xf] %v3351
  %3608 = vst [vmem:[%s3 + $0x1d0] sm:$0xf] %v3352
  %3609 = vst [vmem:[%s3 + $0x1d4] sm:$0xf] %v3353
  %3610 = vst [vmem:[%s3 + $0x1d8] sm:$0xf] %v3354
  %3611 = vst [vmem:[%s3 + $0x1dc] sm:$0xf] %v3355
  %3612 = vst [vmem:[%s3 + $0x1e0] sm:$0xf] %v3356
  %3613 = vst [vmem:[%s3 + $0x1e4] sm:$0xf] %v3357
  %3614 = vst [vmem:[%s3 + $0x1e8] sm:$0xf] %v3358
  %3615 = vst [vmem:[%s3 + $0x1ec] sm:$0xf] %v3359
  %3616 = vst [vmem:[%s3 + $0x1f0] sm:$0xf] %v3360
  %3617 = vst [vmem:[%s3 + $0x1f4] sm:$0xf] %v3361
  %3618 = vst [vmem:[%s3 + $0x1f8] sm:$0xf] %v3362
  %3619 = vst [vmem:[%s3 + $0x1fc] sm:$0xf] %v3363
  %3620 = vst [vmem:[%s3 + $0x200] sm:$0xf] %v3364
  %3621 = vst [vmem:[%s3 + $0x204] sm:$0xf] %v3365
  %3622 = vst [vmem:[%s3 + $0x208] sm:$0xf] %v3366
  %3623 = vst [vmem:[%s3 + $0x20c] sm:$0xf] %v3367
  %3624 = vst [vmem:[%s3 + $0x210] sm:$0xf] %v3368
  %3625 = vst [vmem:[%s3 + $0x214] sm:$0xf] %v3369
  %3626 = vst [vmem:[%s3 + $0x218] sm:$0xf] %v3370
  %3627 = vst [vmem:[%s3 + $0x21c] sm:$0xf] %v3371
  %3628 = vst [vmem:[%s3 + $0x220] sm:$0xf] %v3372
  %3629 = vst [vmem:[%s3 + $0x224] sm:$0xf] %v3373
  %3630 = vst [vmem:[%s3 + $0x228] sm:$0xf] %v3374
  %3631 = vst [vmem:[%s3 + $0x22c] sm:$0xf] %v3375
  %3632 = vst [vmem:[%s3 + $0x230] sm:$0xf] %v3376
  %3633 = vst [vmem:[%s3 + $0x234] sm:$0xf] %v3377
  %3634 = vst [vmem:[%s3 + $0x238] sm:$0xf] %v3378
  %3635 = vst [vmem:[%s3 + $0x23c] sm:$0xf] %v3379
  %3636 = vst [vmem:[%s3 + $0x240] sm:$0xf] %v3380
  %3637 = vst [vmem:[%s3 + $0x244] sm:$0xf] %v3381
  %3638 = vst [vmem:[%s3 + $0x248] sm:$0xf] %v3382
  %3639 = vst [vmem:[%s3 + $0x24c] sm:$0xf] %v3383
  %3640 = vst [vmem:[%s3 + $0x250] sm:$0xf] %v3384
  %3641 = vst [vmem:[%s3 + $0x254] sm:$0xf] %v3385
  %3642 = vst [vmem:[%s3 + $0x258] sm:$0xf] %v3386
  %3643 = vst [vmem:[%s3 + $0x25c] sm:$0xf] %v3387
  %3644 = vst [vmem:[%s3 + $0x260] sm:$0xf] %v3388
  %3645 = vst [vmem:[%s3 + $0x264] sm:$0xf] %v3389
  %3646 = vst [vmem:[%s3 + $0x268] sm:$0xf] %v3390
  %3647 = vst [vmem:[%s3 + $0x26c] sm:$0xf] %v3391
  %3648 = vst [vmem:[%s3 + $0x270] sm:$0xf] %v3392
  %3649 = vst [vmem:[%s3 + $0x274] sm:$0xf] %v3393
  %3650 = vst [vmem:[%s3 + $0x278] sm:$0xf] %v3394
  %3651 = vst [vmem:[%s3 + $0x27c] sm:$0xf] %v3395
  %3652 = vst [vmem:[%s3 + $0x280] sm:$0xf] %v3396
  %3653 = vst [vmem:[%s3 + $0x284] sm:$0xf] %v3397
  %3654 = vst [vmem:[%s3 + $0x288] sm:$0xf] %v3398
  %3655 = vst [vmem:[%s3 + $0x28c] sm:$0xf] %v3399
  %3656 = vst [vmem:[%s3 + $0x290] sm:$0xf] %v3400
  %3657 = vst [vmem:[%s3 + $0x294] sm:$0xf] %v3401
  %3658 = vst [vmem:[%s3 + $0x298] sm:$0xf] %v3402
  %3659 = vst [vmem:[%s3 + $0x29c] sm:$0xf] %v3403
  %3660 = vst [vmem:[%s3 + $0x2a0] sm:$0xf] %v3404
  %3661 = vst [vmem:[%s3 + $0x2a4] sm:$0xf] %v3405
  %3662 = vst [vmem:[%s3 + $0x2a8] sm:$0xf] %v3406
  %3663 = vst [vmem:[%s3 + $0x2ac] sm:$0xf] %v3407
  %3664 = vst [vmem:[%s3 + $0x2b0] sm:$0xf] %v3408
  %3665 = vst [vmem:[%s3 + $0x2b4] sm:$0xf] %v3409
  %3666 = vst [vmem:[%s3 + $0x2b8] sm:$0xf] %v3410
  %3667 = vst [vmem:[%s3 + $0x2bc] sm:$0xf] %v3411
  %3668 = vst [vmem:[%s3 + $0x2c0] sm:$0xf] %v3412
  %3669 = vst [vmem:[%s3 + $0x2c4] sm:$0xf] %v3413
  %3670 = vst [vmem:[%s3 + $0x2c8] sm:$0xf] %v3414
  %3671 = vst [vmem:[%s3 + $0x2cc] sm:$0xf] %v3415
  %3672 = vst [vmem:[%s3 + $0x2d0] sm:$0xf] %v3416
  %3673 = vst [vmem:[%s3 + $0x2d4] sm:$0xf] %v3417
  %3674 = vst [vmem:[%s3 + $0x2d8] sm:$0xf] %v3418
  %3675 = vst [vmem:[%s3 + $0x2dc] sm:$0xf] %v3419
  %3676 = vst [vmem:[%s3 + $0x2e0] sm:$0xf] %v3420
  %3677 = vst [vmem:[%s3 + $0x2e4] sm:$0xf] %v3421
  %3678 = vst [vmem:[%s3 + $0x2e8] sm:$0xf] %v3422
  %3679 = vst [vmem:[%s3 + $0x2ec] sm:$0xf] %v3423
  %3680 = vst [vmem:[%s3 + $0x2f0] sm:$0xf] %v3424
  %3681 = vst [vmem:[%s3 + $0x2f4] sm:$0xf] %v3425
  %3682 = vst [vmem:[%s3 + $0x2f8] sm:$0xf] %v3426
  %3683 = vst [vmem:[%s3 + $0x2fc] sm:$0xf] %v3427
  %3684 = vst [vmem:[%s3 + $0x300] sm:$0xf] %v3428
  %3685 = vst [vmem:[%s3 + $0x304] sm:$0xf] %v3429
  %3686 = vst [vmem:[%s3 + $0x308] sm:$0xf] %v3430
  %3687 = vst [vmem:[%s3 + $0x30c] sm:$0xf] %v3431
  %3688 = vst [vmem:[%s3 + $0x310] sm:$0xf] %v3432
  %3689 = vst [vmem:[%s3 + $0x314] sm:$0xf] %v3433
  %3690 = vst [vmem:[%s3 + $0x318] sm:$0xf] %v3434
  %3691 = vst [vmem:[%s3 + $0x31c] sm:$0xf] %v3435
  %3692 = vst [vmem:[%s3 + $0x320] sm:$0xf] %v3436
  %3693 = vst [vmem:[%s3 + $0x324] sm:$0xf] %v3437
  %3694 = vst [vmem:[%s3 + $0x328] sm:$0xf] %v3438
  %3695 = vst [vmem:[%s3 + $0x32c] sm:$0xf] %v3439
  %3696 = vst [vmem:[%s3 + $0x330] sm:$0xf] %v3440
  %3697 = vst [vmem:[%s3 + $0x334] sm:$0xf] %v3441
  %3698 = vst [vmem:[%s3 + $0x338] sm:$0xf] %v3442
  %3699 = vst [vmem:[%s3 + $0x33c] sm:$0xf] %v3443
  %3700 = vst [vmem:[%s3 + $0x340] sm:$0xf] %v3444
  %3701 = vst [vmem:[%s3 + $0x344] sm:$0xf] %v3445
  %3702 = vst [vmem:[%s3 + $0x348] sm:$0xf] %v3446
  %3703 = vst [vmem:[%s3 + $0x34c] sm:$0xf] %v3447
  %3704 = vst [vmem:[%s3 + $0x350] sm:$0xf] %v3448
  %3705 = vst [vmem:[%s3 + $0x354] sm:$0xf] %v3449
  %3706 = vst [vmem:[%s3 + $0x358] sm:$0xf] %v3450
  %3707 = vst [vmem:[%s3 + $0x35c] sm:$0xf] %v3451
  %3708 = vst [vmem:[%s3 + $0x360] sm:$0xf] %v3452
  %3709 = vst [vmem:[%s3 + $0x364] sm:$0xf] %v3453
  %3710 = vst [vmem:[%s3 + $0x368] sm:$0xf] %v3454
  %3711 = vst [vmem:[%s3 + $0x36c] sm:$0xf] %v3455
  %3712 = vst [vmem:[%s3 + $0x370] sm:$0xf] %v3456
  %3713 = vst [vmem:[%s3 + $0x374] sm:$0xf] %v3457
  %3714 = vst [vmem:[%s3 + $0x378] sm:$0xf] %v3458
  %3715 = vst [vmem:[%s3 + $0x37c] sm:$0xf] %v3459
  %3716 = vst [vmem:[%s3 + $0x380] sm:$0xf] %v3460
  %3717 = vst [vmem:[%s3 + $0x384] sm:$0xf] %v3461
  %3718 = vst [vmem:[%s3 + $0x388] sm:$0xf] %v3462
  %3719 = vst [vmem:[%s3 + $0x38c] sm:$0xf] %v3463
  %3720 = vst [vmem:[%s3 + $0x390] sm:$0xf] %v3464
  %3721 = vst [vmem:[%s3 + $0x394] sm:$0xf] %v3465
  %3722 = vst [vmem:[%s3 + $0x398] sm:$0xf] %v3466
  %3723 = vst [vmem:[%s3 + $0x39c] sm:$0xf] %v3467
  %3724 = vst [vmem:[%s3 + $0x3a0] sm:$0xf] %v3468
  %3725 = vst [vmem:[%s3 + $0x3a4] sm:$0xf] %v3469
  %3726 = vst [vmem:[%s3 + $0x3a8] sm:$0xf] %v3470
  %3727 = vst [vmem:[%s3 + $0x3ac] sm:$0xf] %v3471
  %3728 = vst [vmem:[%s3 + $0x3b0] sm:$0xf] %v3472
  %3729 = vst [vmem:[%s3 + $0x3b4] sm:$0xf] %v3473
  %3730 = vst [vmem:[%s3 + $0x3b8] sm:$0xf] %v3474
  %3731 = vst [vmem:[%s3 + $0x3bc] sm:$0xf] %v3475
  %3732 = vst [vmem:[%s3 + $0x3c0] sm:$0xf] %v3476
  %3733 = vst [vmem:[%s3 + $0x3c4] sm:$0xf] %v3477
  %3734 = vst [vmem:[%s3 + $0x3c8] sm:$0xf] %v3478
  %3735 = vst [vmem:[%s3 + $0x3cc] sm:$0xf] %v3479
  %3736 = vst [vmem:[%s3 + $0x3d0] sm:$0xf] %v3480
  %3737 = vst [vmem:[%s3 + $0x3d4] sm:$0xf] %v3481
  %3738 = vst [vmem:[%s3 + $0x3d8] sm:$0xf] %v3482
  %3739 = vst [vmem:[%s3 + $0x3dc] sm:$0xf] %v3483
  %3740 = vst [vmem:[%s3 + $0x3e0] sm:$0xf] %v3484
  %3741 = vst [vmem:[%s3 + $0x3e4] sm:$0xf] %v3485
  %3742 = vst [vmem:[%s3 + $0x3e8] sm:$0xf] %v3486
  %3743 = vst [vmem:[%s3 + $0x3ec] sm:$0xf] %v3487
  %3744 = vst [vmem:[%s3 + $0x3f0] sm:$0xf] %v3488
  %3745 = vst [vmem:[%s3 + $0x3f4] sm:$0xf] %v3489
  %3746 = vst [vmem:[%s3 + $0x3f8] sm:$0xf] %v3490
  %3747 = vst [vmem:[%s3 + $0x3fc] sm:$0xf] %v3491
  // Predicated region
  $region14: #{t_mv2_unet_forward.14} parent=0 // pred_check
    _
  $region15: #{t_mv2_unet_forward.14} parent=0 // pred_check_branch
    %3749 = sbr.rel (0) target = $region17
  $region16: #{t_mv2_unet_forward.14} parent=0 // pred_region
    _
  $region17: #{t_mv2_unet_forward.14} parent=0 // pred_fallthru
    _
  // Predicated region
  $region18: #{t_mv2_unet_forward.14} parent=0 // pred_check
    _
  $region19: #{t_mv2_unet_forward.14} parent=0 // pred_check_branch
    %3751 = sbr.rel (0) target = $region21
  $region20: #{t_mv2_unet_forward.14} parent=0 // pred_region
    _
  $region21: #{t_mv2_unet_forward.14} parent=0 // pred_fallthru
    _

</llo_original>
